<compile_context>
chip_gen: v7x
topology: tpu7x:2x2x1
jax: 0.10.0
libtpu: 0.0.40
codegen_flags: <defaults>
</compile_context>

<pallas_src>
import functools

import jax
import jax.numpy as jnp
from jax.experimental import pallas as pl
from jax.experimental.pallas import tpu as pltpu

_LANE = 128
_BN_EPS = 1e-5


def _round_up(x, m):
    return ((x + m - 1) // m) * m


@functools.lru_cache(maxsize=None)
def _vmem_limit_bytes():
    # v5e/v6e: 128 MiB physical -> ~96 MiB scoped; v7x: 64 MiB -> ~48 MiB.
    try:
        cap = int(pltpu.get_tpu_info().vmem_capacity_bytes)
        return max(32 * 1024 * 1024, min(cap * 3 // 4, 96 * 1024 * 1024))
    except Exception:
        return 48 * 1024 * 1024


# ---------------------------------------------------------------------------
# Pallas kernels
# ---------------------------------------------------------------------------
def _refine_block_kernel(x_ref, wi_ref, bi_ref, w1_ref, h1_ref,
                         w2_ref, h2_ref, o_ref, pad1_ref, pad2_ref):
    """One full RefinementStageBlock for one image, resident in VMEM.

    x_ref:   (1, H, W, Cin) input tile
    wi/bi:   1x1 init conv weight (Cin, C) + bias (1, C)
    w1,w2:   3x3 conv weights, BN scale folded, flattened to (9*C, C)
             (tap-major: ky*3+kx, then cin)
    h1,h2:   folded eval-BatchNorm shift, (1, C)
    o_ref:   (1, H, W, C) output tile
    pad1/2:  VMEM scratch, zero-haloed conv inputs (pad=1 and pad=2)
    """
    _, H, W, C = o_ref.shape
    HW = H * W
    Cin = x_ref.shape[-1]
    cdt = pad1_ref.dtype

    # ---- zero only the halo strips (interior is fully rewritten below).
    # Done every grid step (cheap) so correctness does not depend on which
    # core sees program_id == 0 under a megacore-split batch axis.
    pad1_ref[0:1, :, :] = jnp.zeros((1, W + 2, C), cdt)
    pad1_ref[H + 1:H + 2, :, :] = jnp.zeros((1, W + 2, C), cdt)
    pad1_ref[:, 0:1, :] = jnp.zeros((H + 2, 1, C), cdt)
    pad1_ref[:, W + 1:W + 2, :] = jnp.zeros((H + 2, 1, C), cdt)
    pad2_ref[0:2, :, :] = jnp.zeros((2, W + 4, C), cdt)
    pad2_ref[H + 2:H + 4, :, :] = jnp.zeros((2, W + 4, C), cdt)
    pad2_ref[:, 0:2, :] = jnp.zeros((H + 4, 2, C), cdt)
    pad2_ref[:, W + 2:W + 4, :] = jnp.zeros((H + 4, 2, C), cdt)

    # ---- 1x1 "initial" conv + bias + ReLU -----------------------------------
    x2d = x_ref[0].reshape(HW, Cin)
    init = jnp.dot(x2d, wi_ref[...], preferred_element_type=jnp.float32)
    init = jnp.maximum(init + bi_ref[...], 0.0)                  # (HW, C) f32
    init3d = init.reshape(H, W, C)
    # Stash the residual in the output buffer (frees the f32 live range).
    o_ref[0] = init3d.astype(o_ref.dtype)

    # ---- conv 3x3, dilation 1 (BN scale folded into w1; shift added) --------
    pad1_ref[1:H + 1, 1:W + 1, :] = init3d.astype(cdt)
    # Build the three W-shifted (sublane) copies exactly once; the ky shifts
    # below address the free outer dim.  Three K=3C matmuls accumulate in f32.
    shifted1 = jnp.concatenate(
        [pad1_ref[:, kx:kx + W, :] for kx in range(3)], axis=-1)  # (H+2, W, 3C)
    acc = None
    for ky in range(3):
        part = jnp.dot(shifted1[ky:ky + H].reshape(HW, 3 * C),
                       w1_ref[ky * 3 * C:(ky + 1) * 3 * C, :],
                       preferred_element_type=jnp.float32)
        acc = part if acc is None else acc + part
    t1 = jnp.maximum(acc + h1_ref[...], 0.0)

    # ---- conv 3x3, dilation 2 (pad=2) ----------------------------------------
    pad2_ref[2:H + 2, 2:W + 2, :] = t1.reshape(H, W, C).astype(cdt)
    shifted2 = jnp.concatenate(
        [pad2_ref[:, 2 * kx:2 * kx + W, :] for kx in range(3)], axis=-1)
    acc = None
    for ky in range(3):
        part = jnp.dot(shifted2[2 * ky:2 * ky + H].reshape(HW, 3 * C),
                       w2_ref[ky * 3 * C:(ky + 1) * 3 * C, :],
                       preferred_element_type=jnp.float32)
        acc = part if acc is None else acc + part
    t2 = jnp.maximum(acc + h2_ref[...], 0.0)

    # ---- residual add + writeback --------------------------------------------
    o_ref[0] = (t2.reshape(H, W, C)
                + o_ref[0].astype(jnp.float32)).astype(o_ref.dtype)


def _heads_kernel(x_ref, w1_ref, b1_ref, w2_ref, b2_ref, o_ref):
    """Fused heat+paf heads: relu(x@W1cat+b1), then block-diag W2 (lane-dense)."""
    hq = jnp.dot(x_ref[...], w1_ref[...], preferred_element_type=jnp.float32)
    hq = jnp.maximum(hq + b1_ref[...], 0.0)
    out = jnp.dot(hq.astype(w2_ref.dtype), w2_ref[...],
                  preferred_element_type=jnp.float32) + b2_ref[...]
    o_ref[...] = out.astype(o_ref.dtype)


# ---------------------------------------------------------------------------
# Pallas wrappers
# ---------------------------------------------------------------------------
def refinement_block(x_nhwc, bp):
    N, H, W, Cin = x_nhwc.shape
    wi, bi = bp["wi"], bp["bi"]
    w1, h1 = bp["w1"], bp["h1"]
    w2, h2 = bp["w2"], bp["h2"]
    C = wi.shape[1]
    cdt = wi.dtype
    # In-kernel (H,W,C)<->(H*W,C) reshapes want W to be a multiple of 8.
    assert W % 8 == 0, "W must be a multiple of 8 for this kernel"
    assert Cin % _LANE == 0 and C % _LANE == 0

    itemsize = jnp.dtype(cdt).itemsize
    flops = 2 * N * H * W * (Cin * C + 2 * 9 * C * C)
    bytes_accessed = int(N * H * W * (Cin + C) * itemsize
                         + (wi.size + w1.size + w2.size) * itemsize)

    const2 = lambda n: (0, 0)
    return pl.pallas_call(
        _refine_block_kernel,
        out_shape=jax.ShapeDtypeStruct((N, H, W, C), cdt),
        grid=(N,),
        in_specs=[
            pl.BlockSpec((1, H, W, Cin), lambda n: (n, 0, 0, 0)),
            pl.BlockSpec((Cin, C), const2),
            pl.BlockSpec((1, C), const2),
            pl.BlockSpec((9 * C, C), const2),
            pl.BlockSpec((1, C), const2),
            pl.BlockSpec((9 * C, C), const2),
            pl.BlockSpec((1, C), const2),
        ],
        out_specs=pl.BlockSpec((1, H, W, C), lambda n: (n, 0, 0, 0)),
        scratch_shapes=[pltpu.VMEM((H + 2, W + 2, C), cdt),
                        pltpu.VMEM((H + 4, W + 4, C), cdt)],
        compiler_params=pltpu.CompilerParams(
            dimension_semantics=("parallel",),
            vmem_limit_bytes=_vmem_limit_bytes()),
        cost_estimate=pl.CostEstimate(flops=flops, transcendentals=0,
                                      bytes_accessed=bytes_accessed),
    )(x_nhwc, wi, bi, w1, h1, w2, h2)
    # TODO(synk): add a spatial row-band grid axis (with halo rows) so a
    # single-image batch still uses both v7x TensorCores.


def fused_heads(flat, heads, num_heatmaps, num_pafs, tile_m=512):
    M, Cp = flat.shape
    w1, b1, w2, b2 = heads["w1"], heads["b1"], heads["w2"], heads["b2"]
    cdt = w1.dtype
    two_c = w1.shape[1]
    n_out_p = w2.shape[1]
    n_out = num_heatmaps + num_pafs

    tm = min(tile_m, _round_up(M, 8))
    Mp = _round_up(M, tm)
    x = flat.astype(cdt)
    if Mp != M:
        x = jnp.pad(x, ((0, Mp - M), (0, 0)))

    itemsize = jnp.dtype(cdt).itemsize
    flops = 2 * Mp * (Cp * two_c + two_c * n_out_p)
    bytes_accessed = int(x.size * itemsize + Mp * n_out_p * 4
                         + (w1.size + w2.size) * itemsize)

    const2 = lambda i: (0, 0)
    out = pl.pallas_call(
        _heads_kernel,
        out_shape=jax.ShapeDtypeStruct((Mp, n_out_p), jnp.float32),
        grid=(Mp // tm,),
        in_specs=[
            pl.BlockSpec((tm, Cp), lambda i: (i, 0)),
            pl.BlockSpec((Cp, two_c), const2),
            pl.BlockSpec((1, two_c), const2),
            pl.BlockSpec((two_c, n_out_p), const2),
            pl.BlockSpec((1, n_out_p), const2),
        ],
        out_specs=pl.BlockSpec((tm, n_out_p), lambda i: (i, 0)),
        compiler_params=pltpu.CompilerParams(
            dimension_semantics=("parallel",),
            vmem_limit_bytes=_vmem_limit_bytes()),
        cost_estimate=pl.CostEstimate(flops=flops, transcendentals=0,
                                      bytes_accessed=bytes_accessed),
    )(x, w1, b1, w2, b2)
    return out[:M, :num_heatmaps], out[:M, num_heatmaps:n_out]


# ---------------------------------------------------------------------------
# Parameter initialization (deterministic, synthetic; eval-mode BN)
# ---------------------------------------------------------------------------
def _conv_params(key, cin, cout, ksize):
    kw, kb = jax.random.split(key)
    fan_in = cin * ksize * ksize
    w = jax.random.normal(kw, (ksize * ksize, cin, cout), jnp.float32) \
        * jnp.sqrt(2.0 / fan_in)
    b = 0.01 * jax.random.normal(kb, (cout,), jnp.float32)
    return w, b


def _bn_params(key, c):
    k1, k2, k3, k4 = jax.random.split(key, 4)
    gamma = 1.0 + 0.1 * jax.random.normal(k1, (c,), jnp.float32)
    beta = 0.1 * jax.random.normal(k2, (c,), jnp.float32)
    mean = 0.1 * jax.random.normal(k3, (c,), jnp.float32)
    var = 1.0 + 0.1 * jax.random.uniform(k4, (c,), jnp.float32)
    return gamma, beta, mean, var


def _fold_bn(bias, gamma, beta, mean, var):
    scale = gamma / jnp.sqrt(var + _BN_EPS)
    shift = scale * (bias - mean) + beta
    return scale, shift


def init_refinement_stage(key, in_channels, out_channels, num_heatmaps, num_pafs):
    params = {"blocks": []}
    for b in range(5):
        cin = in_channels if b == 0 else out_channels
        key, k1, k2, k3, k4, k5 = jax.random.split(key, 6)
        w_init, b_init = _conv_params(k1, cin, out_channels, 1)
        w1, bias1 = _conv_params(k2, out_channels, out_channels, 3)
        s1, sh1 = _fold_bn(bias1, *_bn_params(k3, out_channels))
        w2, bias2 = _conv_params(k4, out_channels, out_channels, 3)
        s2, sh2 = _fold_bn(bias2, *_bn_params(k5, out_channels))
        params["blocks"].append(dict(
            init_w=w_init[0], init_b=b_init,
            c1_w=w1, c1_scale=s1, c1_shift=sh1,
            c2_w=w2, c2_scale=s2, c2_shift=sh2))
    key, kh1, kh2, kp1, kp2 = jax.random.split(key, 5)
    hw1, hb1 = _conv_params(kh1, out_channels, out_channels, 1)
    hw2, hb2 = _conv_params(kh2, out_channels, num_heatmaps, 1)
    pw1, pb1 = _conv_params(kp1, out_channels, out_channels, 1)
    pw2, pb2 = _conv_params(kp2, out_channels, num_pafs, 1)
    params["heat"] = dict(w1=hw1[0], b1=hb1, w2=hw2[0], b2=hb2)
    params["paf"] = dict(w1=pw1[0], b1=pb1, w2=pw2[0], b2=pb2)
    return params


# ---------------------------------------------------------------------------
# One-time parameter preparation: lane-pad channels, fold BN scale into
# weights, build fused/block-diagonal head weights, cast to compute dtype.
# Called ONCE outside jit so no concat/pad/scatter ops sit in the hot graph.
# ---------------------------------------------------------------------------
def prepare_refinement_params(params, compute_dtype=jnp.float32):
    cdt = compute_dtype
    blocks = []
    for p in params["blocks"]:
        cin, c = p["init_w"].shape
        cin_p = _round_up(cin, _LANE)
        c_p = _round_up(c, _LANE)
        wi = jnp.zeros((cin_p, c_p), jnp.float32).at[:cin, :c].set(p["init_w"])
        bi = jnp.zeros((1, c_p), jnp.float32).at[0, :c].set(p["init_b"])
        # Fold eval-BN scale into the conv output columns; keep only the shift.
        w1 = p["c1_w"] * p["c1_scale"][None, None, :]
        w2 = p["c2_w"] * p["c2_scale"][None, None, :]
        w1p = jnp.zeros((9, c_p, c_p), jnp.float32).at[:, :c, :c].set(w1)
        w2p = jnp.zeros((9, c_p, c_p), jnp.float32).at[:, :c, :c].set(w2)
        h1 = jnp.zeros((1, c_p), jnp.float32).at[0, :c].set(p["c1_shift"])
        h2 = jnp.zeros((1, c_p), jnp.float32).at[0, :c].set(p["c2_shift"])
        blocks.append(dict(
            wi=wi.astype(cdt), bi=bi,
            w1=w1p.reshape(9 * c_p, c_p).astype(cdt), h1=h1,
            w2=w2p.reshape(9 * c_p, c_p).astype(cdt), h2=h2))

    c = params["heat"]["w1"].shape[0]
    c_p = _round_up(c, _LANE)
    nh = params["heat"]["w2"].shape[1]
    npf = params["paf"]["w2"].shape[1]
    n_out = nh + npf
    n_out_p = _round_up(n_out, _LANE)
    w1 = jnp.zeros((c_p, 2 * c_p), jnp.float32)
    w1 = w1.at[:c, :c].set(params["heat"]["w1"])
    w1 = w1.at[:c, c_p:c_p + c].set(params["paf"]["w1"])
    b1 = jnp.zeros((1, 2 * c_p), jnp.float32)
    b1 = b1.at[0, :c].set(params["heat"]["b1"])
    b1 = b1.at[0, c_p:c_p + c].set(params["paf"]["b1"])
    w2 = jnp.zeros((2 * c_p, n_out_p), jnp.float32)
    w2 = w2.at[:c, :nh].set(params["heat"]["w2"])
    w2 = w2.at[c_p:c_p + c, nh:n_out].set(params["paf"]["w2"])
    b2 = jnp.zeros((1, n_out_p), jnp.float32)
    b2 = b2.at[0, :nh].set(params["heat"]["b2"])
    b2 = b2.at[0, nh:n_out].set(params["paf"]["b2"])
    heads = dict(w1=w1.astype(cdt), b1=b1, w2=w2.astype(cdt), b2=b2)
    return dict(blocks=blocks, heads=heads)


# ---------------------------------------------------------------------------
# Forward pass (Pallas-backed)
# ---------------------------------------------------------------------------
def refinement_stage_forward(x_nchw, prep, *, num_heatmaps, num_pafs):
    N, Cin, H, W = x_nchw.shape
    blocks = prep["blocks"]
    cdt = blocks[0]["w1"].dtype
    cin_p = blocks[0]["wi"].shape[0]

    feat = jnp.transpose(x_nchw, (0, 2, 3, 1)).astype(jnp.float32)   # NHWC
    if cin_p != Cin:
        feat = jnp.pad(feat, ((0, 0), (0, 0), (0, 0), (0, cin_p - Cin)))
    feat = feat.astype(cdt)

    for bp in blocks:
        feat = refinement_block(feat, bp)

    Cp = feat.shape[-1]
    flat = feat.reshape(N * H * W, Cp)
    heat, paf = fused_heads(flat, prep["heads"], num_heatmaps, num_pafs)
    heatmaps = heat.reshape(N, H, W, num_heatmaps).transpose(0, 3, 1, 2)
    pafs = paf.reshape(N, H, W, num_pafs).transpose(0, 3, 1, 2)
    return [heatmaps.astype(jnp.float32), pafs.astype(jnp.float32)]


# ---------------------------------------------------------------------------
# Pure-JAX reference (for correctness checking only)
# ---------------------------------------------------------------------------
def _ref_conv3x3(x_nhwc, w9, scale, shift, dilation, res=None):
    Cin, Cout = w9.shape[1], w9.shape[2]
    k = w9.reshape(3, 3, Cin, Cout)  # HWIO
    y = jax.lax.conv_general_dilated(
        x_nhwc, k, window_strides=(1, 1),
        padding=[(dilation, dilation), (dilation, dilation)],
        rhs_dilation=(dilation, dilation),
        dimension_numbers=("NHWC", "HWIO", "NHWC"))
    y = jnp.maximum(y * scale + shift, 0.0)
    if res is not None:
        y = y + res
    return y


def _ref_forward(x_nchw, params):
    feat = jnp.transpose(x_nchw, (0, 2, 3, 1)).astype(jnp.float32)
    for p in params["blocks"]:
        init = jnp.maximum(feat @ p["init_w"] + p["init_b"], 0.0)
        t1 = _ref_conv3x3(init, p["c1_w"], p["c1_scale"], p["c1_shift"], 1)
        feat = _ref_conv3x3(t1, p["c2_w"], p["c2_scale"], p["c2_shift"], 2, res=init)
    h = jnp.maximum(feat @ params["heat"]["w1"] + params["heat"]["b1"], 0.0)
    heat = h @ params["heat"]["w2"] + params["heat"]["b2"]
    q = jnp.maximum(feat @ params["paf"]["w1"] + params["paf"]["b1"], 0.0)
    paf = q @ params["paf"]["w2"] + params["paf"]["b2"]
    return [heat.transpose(0, 3, 1, 2), paf.transpose(0, 3, 1, 2)]


# ---------------------------------------------------------------------------
if __name__ == "__main__":
    N, IN_CH, OUT_CH, NUM_HEATMAPS, NUM_PAFS, H, W = 2, 8, 32, 8, 16, 16, 16

    key = jax.random.PRNGKey(0)
    key, kx, kp = jax.random.split(key, 3)
    x = jax.random.normal(kx, (N, IN_CH, H, W), jnp.float32)
    params = init_refinement_stage(kp, IN_CH, OUT_CH, NUM_HEATMAPS, NUM_PAFS)

    fwd = jax.jit(functools.partial(refinement_stage_forward,
                                    num_heatmaps=NUM_HEATMAPS,
                                    num_pafs=NUM_PAFS))

    # f32 path: checked tightly against the pure-JAX reference.
    prep_f32 = prepare_refinement_params(params, jnp.float32)
    heatmaps, pafs = fwd(x, prep_f32)
    jax.block_until_ready(heatmaps)
    jax.block_until_ready(pafs)

    ref_heat, ref_paf = _ref_forward(x, params)
    assert heatmaps.shape == (N, NUM_HEATMAPS, H, W)
    assert pafs.shape == (N, NUM_PAFS, H, W)
    assert jnp.allclose(heatmaps, ref_heat, rtol=2e-3, atol=2e-3)
    assert jnp.allclose(pafs, ref_paf, rtol=2e-3, atol=2e-3)

    # bf16 fast path (bf16 MXU staging, f32 accumulation; valid on v5e too):
    # smoke run + finiteness check (expect ~1e-2-level deviation vs f32).
    prep_bf16 = prepare_refinement_params(params, jnp.bfloat16)
    h16, p16 = fwd(x, prep_bf16)
    jax.block_until_ready(h16)
    jax.block_until_ready(p16)
    assert h16.shape == (N, NUM_HEATMAPS, H, W)
    assert p16.shape == (N, NUM_PAFS, H, W)
    assert bool(jnp.isfinite(h16).all()) and bool(jnp.isfinite(p16).all())

    print("KERNEL_OK")
</pallas_src>

<mosaic_0001>
module attributes {stable_mosaic.version = 11 : i64} {
  func.func @_refine_block_kernel(%arg0: i32, %arg1: memref<1x16x16x128xf32, #tpu.memory_space<vmem>>, %arg2: memref<128x128xf32, #tpu.memory_space<vmem>>, %arg3: memref<1x128xf32, #tpu.memory_space<vmem>>, %arg4: memref<1152x128xf32, #tpu.memory_space<vmem>>, %arg5: memref<1x128xf32, #tpu.memory_space<vmem>>, %arg6: memref<1152x128xf32, #tpu.memory_space<vmem>>, %arg7: memref<1x128xf32, #tpu.memory_space<vmem>>, %arg8: memref<1x16x16x128xf32, #tpu.memory_space<vmem>>, %arg9: memref<18x18x128xf32, #tpu.memory_space<vmem>>, %arg10: memref<20x20x128xf32, #tpu.memory_space<vmem>>) attributes {dimension_semantics = [#tpu.dimension_semantics<parallel>], iteration_bounds = array<i64: 2>, scalar_prefetch = 0 : i64, scratch_operands = 2 : i64, tpu.core_type = #tpu.core_type<tc>, window_params = [{transform_indices = @transform_0, window_bounds = array<i64: 1, 16, 16, 128>}, {pipeline_mode = #tpu.pipeline_mode<synchronous>, transform_indices = @transform_1, window_bounds = array<i64: 128, 128>}, {pipeline_mode = #tpu.pipeline_mode<synchronous>, transform_indices = @transform_2, window_bounds = array<i64: 1, 128>}, {pipeline_mode = #tpu.pipeline_mode<synchronous>, transform_indices = @transform_3, window_bounds = array<i64: 1152, 128>}, {pipeline_mode = #tpu.pipeline_mode<synchronous>, transform_indices = @transform_4, window_bounds = array<i64: 1, 128>}, {pipeline_mode = #tpu.pipeline_mode<synchronous>, transform_indices = @transform_5, window_bounds = array<i64: 1152, 128>}, {pipeline_mode = #tpu.pipeline_mode<synchronous>, transform_indices = @transform_6, window_bounds = array<i64: 1, 128>}, {transform_indices = @transform_7, window_bounds = array<i64: 1, 16, 16, 128>}]} {
    %cst = arith.constant 0.000000e+00 : f32
    %0 = vector.broadcast %cst : f32 to vector<1x18x128xf32>
    %c0 = arith.constant 0 : index
    %c0_0 = arith.constant 0 : index
    %c0_1 = arith.constant 0 : index
    %1 = vector.load %arg9[%c0, %c0_0, %c0_1] : memref<18x18x128xf32, #tpu.memory_space<vmem>>, vector<1x18x128xf32>
    tpu.vector_store %arg9[%c0, %c0_0, %c0_1], %0 {strides = array<i32>} : memref<18x18x128xf32, #tpu.memory_space<vmem>>, vector<1x18x128xf32>,
    %cst_2 = arith.constant 0.000000e+00 : f32
    %2 = vector.broadcast %cst_2 : f32 to vector<1x18x128xf32>
    %c17 = arith.constant 17 : index
    %c0_3 = arith.constant 0 : index
    %c0_4 = arith.constant 0 : index
    %3 = vector.load %arg9[%c17, %c0_3, %c0_4] : memref<18x18x128xf32, #tpu.memory_space<vmem>>, vector<1x18x128xf32>
    tpu.vector_store %arg9[%c17, %c0_3, %c0_4], %2 {strides = array<i32>} : memref<18x18x128xf32, #tpu.memory_space<vmem>>, vector<1x18x128xf32>,
    %cst_5 = arith.constant 0.000000e+00 : f32
    %4 = vector.broadcast %cst_5 : f32 to vector<18x1x128xf32>
    %c0_6 = arith.constant 0 : index
    %c0_7 = arith.constant 0 : index
    %c0_8 = arith.constant 0 : index
    %5 = vector.load %arg9[%c0_6, %c0_7, %c0_8] : memref<18x18x128xf32, #tpu.memory_space<vmem>>, vector<18x1x128xf32>
    tpu.vector_store %arg9[%c0_6, %c0_7, %c0_8], %4 {strides = array<i32>} : memref<18x18x128xf32, #tpu.memory_space<vmem>>, vector<18x1x128xf32>,
    %cst_9 = arith.constant 0.000000e+00 : f32
    %6 = vector.broadcast %cst_9 : f32 to vector<18x1x128xf32>
    %c0_10 = arith.constant 0 : index
    %c17_11 = arith.constant 17 : index
    %c0_12 = arith.constant 0 : index
    %7 = vector.load %arg9[%c0_10, %c17_11, %c0_12] : memref<18x18x128xf32, #tpu.memory_space<vmem>>, vector<18x1x128xf32>
    tpu.vector_store %arg9[%c0_10, %c17_11, %c0_12], %6 {strides = array<i32>} : memref<18x18x128xf32, #tpu.memory_space<vmem>>, vector<18x1x128xf32>,
    %cst_13 = arith.constant 0.000000e+00 : f32
    %8 = vector.broadcast %cst_13 : f32 to vector<2x20x128xf32>
    %c0_14 = arith.constant 0 : index
    %c0_15 = arith.constant 0 : index
    %c0_16 = arith.constant 0 : index
    %9 = vector.load %arg10[%c0_14, %c0_15, %c0_16] : memref<20x20x128xf32, #tpu.memory_space<vmem>>, vector<2x20x128xf32>
    tpu.vector_store %arg10[%c0_14, %c0_15, %c0_16], %8 {strides = array<i32>} : memref<20x20x128xf32, #tpu.memory_space<vmem>>, vector<2x20x128xf32>,
    %cst_17 = arith.constant 0.000000e+00 : f32
    %10 = vector.broadcast %cst_17 : f32 to vector<2x20x128xf32>
    %c18 = arith.constant 18 : index
    %c0_18 = arith.constant 0 : index
    %c0_19 = arith.constant 0 : index
    %11 = vector.load %arg10[%c18, %c0_18, %c0_19] : memref<20x20x128xf32, #tpu.memory_space<vmem>>, vector<2x20x128xf32>
    tpu.vector_store %arg10[%c18, %c0_18, %c0_19], %10 {strides = array<i32>} : memref<20x20x128xf32, #tpu.memory_space<vmem>>, vector<2x20x128xf32>,
    %cst_20 = arith.constant 0.000000e+00 : f32
    %12 = vector.broadcast %cst_20 : f32 to vector<20x2x128xf32>
    %c0_21 = arith.constant 0 : index
    %c0_22 = arith.constant 0 : index
    %c0_23 = arith.constant 0 : index
    %13 = vector.load %arg10[%c0_21, %c0_22, %c0_23] : memref<20x20x128xf32, #tpu.memory_space<vmem>>, vector<20x2x128xf32>
    tpu.vector_store %arg10[%c0_21, %c0_22, %c0_23], %12 {strides = array<i32>} : memref<20x20x128xf32, #tpu.memory_space<vmem>>, vector<20x2x128xf32>,
    %cst_24 = arith.constant 0.000000e+00 : f32
    %14 = vector.broadcast %cst_24 : f32 to vector<20x2x128xf32>
    %c0_25 = arith.constant 0 : index
    %c18_26 = arith.constant 18 : index
    %c0_27 = arith.constant 0 : index
    %15 = vector.load %arg10[%c0_25, %c18_26, %c0_27] : memref<20x20x128xf32, #tpu.memory_space<vmem>>, vector<20x2x128xf32>
    tpu.vector_store %arg10[%c0_25, %c18_26, %c0_27], %14 {strides = array<i32>} : memref<20x20x128xf32, #tpu.memory_space<vmem>>, vector<20x2x128xf32>,
    %c0_28 = arith.constant 0 : index
    %c0_29 = arith.constant 0 : index
    %c0_30 = arith.constant 0 : index
    %c0_31 = arith.constant 0 : index
    %16 = vector.load %arg1[%c0_28, %c0_29, %c0_30, %c0_31] : memref<1x16x16x128xf32, #tpu.memory_space<vmem>>, vector<1x16x16x128xf32>
    %17 = vector.shape_cast %16 : vector<1x16x16x128xf32> to vector<16x16x128xf32>
    %18 = vector.shape_cast %17 : vector<16x16x128xf32> to vector<256x128xf32>
    %c0_32 = arith.constant 0 : index
    %c0_33 = arith.constant 0 : index
    %19 = vector.load %arg2[%c0_32, %c0_33] : memref<128x128xf32, #tpu.memory_space<vmem>>, vector<128x128xf32>
    %cst_34 = arith.constant dense<0.000000e+00> : vector<256x128xf32>
    %20 = tpu.matmul %18, %19, %cst_34 {dimension_numbers = #tpu.dot_dimension_numbers<[1], [0], [0], [1], [0, 0, 1, 1], [], []>} : vector<256x128xf32>, vector<128x128xf32>, vector<256x128xf32> -> vector<256x128xf32>
    %c0_35 = arith.constant 0 : index
    %c0_36 = arith.constant 0 : index
    %21 = vector.load %arg3[%c0_35, %c0_36] : memref<1x128xf32, #tpu.memory_space<vmem>>, vector<1x128xf32>
    %22 = vector.broadcast %21 : vector<1x128xf32> to vector<256x128xf32>
    %23 = arith.addf %20, %22 : vector<256x128xf32>
    %cst_37 = arith.constant 0.000000e+00 : f32
    %24 = vector.broadcast %cst_37 : f32 to vector<256x128xf32>
    %25 = arith.maximumf %23, %24 : vector<256x128xf32>
    %26 = vector.shape_cast %25 : vector<256x128xf32> to vector<16x16x128xf32>
    %c0_38 = arith.constant 0 : index
    %c0_39 = arith.constant 0 : index
    %c0_40 = arith.constant 0 : index
    %c0_41 = arith.constant 0 : index
    %27 = vector.load %arg8[%c0_38, %c0_39, %c0_40, %c0_41] : memref<1x16x16x128xf32, #tpu.memory_space<vmem>>, vector<1x16x16x128xf32>
    %28 = vector.shape_cast %27 : vector<1x16x16x128xf32> to vector<16x16x128xf32>
    %29 = vector.shape_cast %26 : vector<16x16x128xf32> to vector<1x16x16x128xf32>
    tpu.vector_store %arg8[%c0_38, %c0_39, %c0_40, %c0_41], %29 {strides = array<i32>} : memref<1x16x16x128xf32, #tpu.memory_space<vmem>>, vector<1x16x16x128xf32>,
    %c1 = arith.constant 1 : index
    %c1_42 = arith.constant 1 : index
    %c0_43 = arith.constant 0 : index
    %30 = vector.load %arg9[%c1, %c1_42, %c0_43] : memref<18x18x128xf32, #tpu.memory_space<vmem>>, vector<16x16x128xf32>
    tpu.vector_store %arg9[%c1, %c1_42, %c0_43], %26 {strides = array<i32>} : memref<18x18x128xf32, #tpu.memory_space<vmem>>, vector<16x16x128xf32>,
    %c0_44 = arith.constant 0 : index
    %c0_45 = arith.constant 0 : index
    %c0_46 = arith.constant 0 : index
    %31 = vector.load %arg9[%c0_44, %c0_45, %c0_46] : memref<18x18x128xf32, #tpu.memory_space<vmem>>, vector<18x16x128xf32>
    %c0_47 = arith.constant 0 : index
    %c1_48 = arith.constant 1 : index
    %c0_49 = arith.constant 0 : index
    %32 = vector.load %arg9[%c0_47, %c1_48, %c0_49] : memref<18x18x128xf32, #tpu.memory_space<vmem>>, vector<18x16x128xf32>
    %c0_50 = arith.constant 0 : index
    %c2 = arith.constant 2 : index
    %c0_51 = arith.constant 0 : index
    %33 = vector.load %arg9[%c0_50, %c2, %c0_51] : memref<18x18x128xf32, #tpu.memory_space<vmem>>, vector<18x16x128xf32>
    %34 = tpu.concatenate %31, %32, %33 in 2 : vector<18x16x128xf32>, vector<18x16x128xf32>, vector<18x16x128xf32> -> vector<18x16x384xf32>
    %35 = vector.extract_strided_slice %34 {offsets = [0, 0, 0], sizes = [16, 16, 384], strides = [1, 1, 1]} : vector<18x16x384xf32> to vector<16x16x384xf32>
    %36 = vector.shape_cast %35 : vector<16x16x384xf32> to vector<256x384xf32>
    %c0_52 = arith.constant 0 : index
    %c0_53 = arith.constant 0 : index
    %37 = vector.load %arg4[%c0_52, %c0_53] : memref<1152x128xf32, #tpu.memory_space<vmem>>, vector<384x128xf32>
    %cst_54 = arith.constant dense<0.000000e+00> : vector<256x128xf32>
    %38 = tpu.matmul %36, %37, %cst_54 {dimension_numbers = #tpu.dot_dimension_numbers<[1], [0], [0], [1], [0, 0, 1, 1], [], []>} : vector<256x384xf32>, vector<384x128xf32>, vector<256x128xf32> -> vector<256x128xf32>
    %39 = vector.extract_strided_slice %34 {offsets = [1, 0, 0], sizes = [16, 16, 384], strides = [1, 1, 1]} : vector<18x16x384xf32> to vector<16x16x384xf32>
    %40 = vector.shape_cast %39 : vector<16x16x384xf32> to vector<256x384xf32>
    %c384 = arith.constant 384 : index
    %c0_55 = arith.constant 0 : index
    %41 = vector.load %arg4[%c384, %c0_55] : memref<1152x128xf32, #tpu.memory_space<vmem>>, vector<384x128xf32>
    %cst_56 = arith.constant dense<0.000000e+00> : vector<256x128xf32>
    %42 = tpu.matmul %40, %41, %cst_56 {dimension_numbers = #tpu.dot_dimension_numbers<[1], [0], [0], [1], [0, 0, 1, 1], [], []>} : vector<256x384xf32>, vector<384x128xf32>, vector<256x128xf32> -> vector<256x128xf32>
    %43 = arith.addf %38, %42 : vector<256x128xf32>
    %44 = vector.extract_strided_slice %34 {offsets = [2, 0, 0], sizes = [16, 16, 384], strides = [1, 1, 1]} : vector<18x16x384xf32> to vector<16x16x384xf32>
    %45 = vector.shape_cast %44 : vector<16x16x384xf32> to vector<256x384xf32>
    %c768 = arith.constant 768 : index
    %c0_57 = arith.constant 0 : index
    %46 = vector.load %arg4[%c768, %c0_57] : memref<1152x128xf32, #tpu.memory_space<vmem>>, vector<384x128xf32>
    %cst_58 = arith.constant dense<0.000000e+00> : vector<256x128xf32>
    %47 = tpu.matmul %45, %46, %cst_58 {dimension_numbers = #tpu.dot_dimension_numbers<[1], [0], [0], [1], [0, 0, 1, 1], [], []>} : vector<256x384xf32>, vector<384x128xf32>, vector<256x128xf32> -> vector<256x128xf32>
    %48 = arith.addf %43, %47 : vector<256x128xf32>
    %c0_59 = arith.constant 0 : index
    %c0_60 = arith.constant 0 : index
    %49 = vector.load %arg5[%c0_59, %c0_60] : memref<1x128xf32, #tpu.memory_space<vmem>>, vector<1x128xf32>
    %50 = vector.broadcast %49 : vector<1x128xf32> to vector<256x128xf32>
    %51 = arith.addf %48, %50 : vector<256x128xf32>
    %cst_61 = arith.constant 0.000000e+00 : f32
    %52 = vector.broadcast %cst_61 : f32 to vector<256x128xf32>
    %53 = arith.maximumf %51, %52 : vector<256x128xf32>
    %54 = vector.shape_cast %53 : vector<256x128xf32> to vector<16x16x128xf32>
    %c2_62 = arith.constant 2 : index
    %c2_63 = arith.constant 2 : index
    %c0_64 = arith.constant 0 : index
    %55 = vector.load %arg10[%c2_62, %c2_63, %c0_64] : memref<20x20x128xf32, #tpu.memory_space<vmem>>, vector<16x16x128xf32>
    tpu.vector_store %arg10[%c2_62, %c2_63, %c0_64], %54 {strides = array<i32>} : memref<20x20x128xf32, #tpu.memory_space<vmem>>, vector<16x16x128xf32>,
    %c0_65 = arith.constant 0 : index
    %c0_66 = arith.constant 0 : index
    %c0_67 = arith.constant 0 : index
    %56 = vector.load %arg10[%c0_65, %c0_66, %c0_67] : memref<20x20x128xf32, #tpu.memory_space<vmem>>, vector<20x16x128xf32>
    %c0_68 = arith.constant 0 : index
    %c2_69 = arith.constant 2 : index
    %c0_70 = arith.constant 0 : index
    %57 = vector.load %arg10[%c0_68, %c2_69, %c0_70] : memref<20x20x128xf32, #tpu.memory_space<vmem>>, vector<20x16x128xf32>
    %c0_71 = arith.constant 0 : index
    %c4 = arith.constant 4 : index
    %c0_72 = arith.constant 0 : index
    %58 = vector.load %arg10[%c0_71, %c4, %c0_72] : memref<20x20x128xf32, #tpu.memory_space<vmem>>, vector<20x16x128xf32>
    %59 = tpu.concatenate %56, %57, %58 in 2 : vector<20x16x128xf32>, vector<20x16x128xf32>, vector<20x16x128xf32> -> vector<20x16x384xf32>
    %60 = vector.extract_strided_slice %59 {offsets = [0, 0, 0], sizes = [16, 16, 384], strides = [1, 1, 1]} : vector<20x16x384xf32> to vector<16x16x384xf32>
    %61 = vector.shape_cast %60 : vector<16x16x384xf32> to vector<256x384xf32>
    %c0_73 = arith.constant 0 : index
    %c0_74 = arith.constant 0 : index
    %62 = vector.load %arg6[%c0_73, %c0_74] : memref<1152x128xf32, #tpu.memory_space<vmem>>, vector<384x128xf32>
    %cst_75 = arith.constant dense<0.000000e+00> : vector<256x128xf32>
    %63 = tpu.matmul %61, %62, %cst_75 {dimension_numbers = #tpu.dot_dimension_numbers<[1], [0], [0], [1], [0, 0, 1, 1], [], []>} : vector<256x384xf32>, vector<384x128xf32>, vector<256x128xf32> -> vector<256x128xf32>
    %64 = vector.extract_strided_slice %59 {offsets = [2, 0, 0], sizes = [16, 16, 384], strides = [1, 1, 1]} : vector<20x16x384xf32> to vector<16x16x384xf32>
    %65 = vector.shape_cast %64 : vector<16x16x384xf32> to vector<256x384xf32>
    %c384_76 = arith.constant 384 : index
    %c0_77 = arith.constant 0 : index
    %66 = vector.load %arg6[%c384_76, %c0_77] : memref<1152x128xf32, #tpu.memory_space<vmem>>, vector<384x128xf32>
    %cst_78 = arith.constant dense<0.000000e+00> : vector<256x128xf32>
    %67 = tpu.matmul %65, %66, %cst_78 {dimension_numbers = #tpu.dot_dimension_numbers<[1], [0], [0], [1], [0, 0, 1, 1], [], []>} : vector<256x384xf32>, vector<384x128xf32>, vector<256x128xf32> -> vector<256x128xf32>
    %68 = arith.addf %63, %67 : vector<256x128xf32>
    %69 = vector.extract_strided_slice %59 {offsets = [4, 0, 0], sizes = [16, 16, 384], strides = [1, 1, 1]} : vector<20x16x384xf32> to vector<16x16x384xf32>
    %70 = vector.shape_cast %69 : vector<16x16x384xf32> to vector<256x384xf32>
    %c768_79 = arith.constant 768 : index
    %c0_80 = arith.constant 0 : index
    %71 = vector.load %arg6[%c768_79, %c0_80] : memref<1152x128xf32, #tpu.memory_space<vmem>>, vector<384x128xf32>
    %cst_81 = arith.constant dense<0.000000e+00> : vector<256x128xf32>
    %72 = tpu.matmul %70, %71, %cst_81 {dimension_numbers = #tpu.dot_dimension_numbers<[1], [0], [0], [1], [0, 0, 1, 1], [], []>} : vector<256x384xf32>, vector<384x128xf32>, vector<256x128xf32> -> vector<256x128xf32>
    %73 = arith.addf %68, %72 : vector<256x128xf32>
    %c0_82 = arith.constant 0 : index
    %c0_83 = arith.constant 0 : index
    %74 = vector.load %arg7[%c0_82, %c0_83] : memref<1x128xf32, #tpu.memory_space<vmem>>, vector<1x128xf32>
    %75 = vector.broadcast %74 : vector<1x128xf32> to vector<256x128xf32>
    %76 = arith.addf %73, %75 : vector<256x128xf32>
    %cst_84 = arith.constant 0.000000e+00 : f32
    %77 = vector.broadcast %cst_84 : f32 to vector<256x128xf32>
    %78 = arith.maximumf %76, %77 : vector<256x128xf32>
    %79 = vector.shape_cast %78 : vector<256x128xf32> to vector<16x16x128xf32>
    %c0_85 = arith.constant 0 : index
    %c0_86 = arith.constant 0 : index
    %c0_87 = arith.constant 0 : index
    %c0_88 = arith.constant 0 : index
    %80 = vector.load %arg8[%c0_85, %c0_86, %c0_87, %c0_88] : memref<1x16x16x128xf32, #tpu.memory_space<vmem>>, vector<1x16x16x128xf32>
    %81 = vector.shape_cast %80 : vector<1x16x16x128xf32> to vector<16x16x128xf32>
    %82 = arith.addf %79, %81 : vector<16x16x128xf32>
    %c0_89 = arith.constant 0 : index
    %c0_90 = arith.constant 0 : index
    %c0_91 = arith.constant 0 : index
    %c0_92 = arith.constant 0 : index
    %83 = vector.load %arg8[%c0_89, %c0_90, %c0_91, %c0_92] : memref<1x16x16x128xf32, #tpu.memory_space<vmem>>, vector<1x16x16x128xf32>
    %84 = vector.shape_cast %83 : vector<1x16x16x128xf32> to vector<16x16x128xf32>
    %85 = vector.shape_cast %82 : vector<16x16x128xf32> to vector<1x16x16x128xf32>
    tpu.vector_store %arg8[%c0_89, %c0_90, %c0_91, %c0_92], %85 {strides = array<i32>} : memref<1x16x16x128xf32, #tpu.memory_space<vmem>>, vector<1x16x16x128xf32>,
    return
  }
  func.func @transform_0(%arg0: i32) -> (i32, i32, i32, i32) {
    %c0_i32 = arith.constant 0 : i32
    %c0_i32_0 = arith.constant 0 : i32
    %c0_i32_1 = arith.constant 0 : i32
    %c0_i32_2 = arith.constant 0 : i32
    return %arg0, %c0_i32, %c0_i32_0, %c0_i32_1 : i32, i32, i32, i32
  }
  func.func @transform_1(%arg0: i32) -> (i32, i32) {
    %c0_i32 = arith.constant 0 : i32
    %c0_i32_0 = arith.constant 0 : i32
    %c0_i32_1 = arith.constant 0 : i32
    return %c0_i32, %c0_i32_0 : i32, i32
  }
  func.func @transform_2(%arg0: i32) -> (i32, i32) {
    %c0_i32 = arith.constant 0 : i32
    %c0_i32_0 = arith.constant 0 : i32
    %c0_i32_1 = arith.constant 0 : i32
    return %c0_i32, %c0_i32_0 : i32, i32
  }
  func.func @transform_3(%arg0: i32) -> (i32, i32) {
    %c0_i32 = arith.constant 0 : i32
    %c0_i32_0 = arith.constant 0 : i32
    %c0_i32_1 = arith.constant 0 : i32
    return %c0_i32, %c0_i32_0 : i32, i32
  }
  func.func @transform_4(%arg0: i32) -> (i32, i32) {
    %c0_i32 = arith.constant 0 : i32
    %c0_i32_0 = arith.constant 0 : i32
    %c0_i32_1 = arith.constant 0 : i32
    return %c0_i32, %c0_i32_0 : i32, i32
  }
  func.func @transform_5(%arg0: i32) -> (i32, i32) {
    %c0_i32 = arith.constant 0 : i32
    %c0_i32_0 = arith.constant 0 : i32
    %c0_i32_1 = arith.constant 0 : i32
    return %c0_i32, %c0_i32_0 : i32, i32
  }
  func.func @transform_6(%arg0: i32) -> (i32, i32) {
    %c0_i32 = arith.constant 0 : i32
    %c0_i32_0 = arith.constant 0 : i32
    %c0_i32_1 = arith.constant 0 : i32
    return %c0_i32, %c0_i32_0 : i32, i32
  }
  func.func @transform_7(%arg0: i32) -> (i32, i32, i32, i32) {
    %c0_i32 = arith.constant 0 : i32
    %c0_i32_0 = arith.constant 0 : i32
    %c0_i32_1 = arith.constant 0 : i32
    %c0_i32_2 = arith.constant 0 : i32
    return %arg0, %c0_i32, %c0_i32_0, %c0_i32_1 : i32, i32, i32, i32
  }
}

module attributes {stable_mosaic.version = 11 : i64} {
  func.func @_refine_block_kernel(%arg0: i32, %arg1: memref<1x16x16x128xf32, #tpu.memory_space<vmem>>, %arg2: memref<128x128xf32, #tpu.memory_space<vmem>>, %arg3: memref<1x128xf32, #tpu.memory_space<vmem>>, %arg4: memref<1152x128xf32, #tpu.memory_space<vmem>>, %arg5: memref<1x128xf32, #tpu.memory_space<vmem>>, %arg6: memref<1152x128xf32, #tpu.memory_space<vmem>>, %arg7: memref<1x128xf32, #tpu.memory_space<vmem>>, %arg8: memref<1x16x16x128xf32, #tpu.memory_space<vmem>>, %arg9: memref<18x18x128xf32, #tpu.memory_space<vmem>>, %arg10: memref<20x20x128xf32, #tpu.memory_space<vmem>>) attributes {dimension_semantics = [#tpu.dimension_semantics<parallel>], iteration_bounds = array<i64: 2>, scalar_prefetch = 0 : i64, scratch_operands = 2 : i64, tpu.core_type = #tpu.core_type<tc>, window_params = [{transform_indices = @transform_0, window_bounds = array<i64: 1, 16, 16, 128>}, {pipeline_mode = #tpu.pipeline_mode<synchronous>, transform_indices = @transform_1, window_bounds = array<i64: 128, 128>}, {pipeline_mode = #tpu.pipeline_mode<synchronous>, transform_indices = @transform_2, window_bounds = array<i64: 1, 128>}, {pipeline_mode = #tpu.pipeline_mode<synchronous>, transform_indices = @transform_3, window_bounds = array<i64: 1152, 128>}, {pipeline_mode = #tpu.pipeline_mode<synchronous>, transform_indices = @transform_4, window_bounds = array<i64: 1, 128>}, {pipeline_mode = #tpu.pipeline_mode<synchronous>, transform_indices = @transform_5, window_bounds = array<i64: 1152, 128>}, {pipeline_mode = #tpu.pipeline_mode<synchronous>, transform_indices = @transform_6, window_bounds = array<i64: 1, 128>}, {transform_indices = @transform_7, window_bounds = array<i64: 1, 16, 16, 128>}]} {
    %cst = arith.constant 0.000000e+00 : f32
    %0 = vector.broadcast %cst : f32 to vector<1x18x128xf32>
    %c0 = arith.constant 0 : index
    %c0_0 = arith.constant 0 : index
    %c0_1 = arith.constant 0 : index
    %1 = vector.load %arg9[%c0, %c0_0, %c0_1] : memref<18x18x128xf32, #tpu.memory_space<vmem>>, vector<1x18x128xf32>
    tpu.vector_store %arg9[%c0, %c0_0, %c0_1], %0 {strides = array<i32>} : memref<18x18x128xf32, #tpu.memory_space<vmem>>, vector<1x18x128xf32>,
    %cst_2 = arith.constant 0.000000e+00 : f32
    %2 = vector.broadcast %cst_2 : f32 to vector<1x18x128xf32>
    %c17 = arith.constant 17 : index
    %c0_3 = arith.constant 0 : index
    %c0_4 = arith.constant 0 : index
    %3 = vector.load %arg9[%c17, %c0_3, %c0_4] : memref<18x18x128xf32, #tpu.memory_space<vmem>>, vector<1x18x128xf32>
    tpu.vector_store %arg9[%c17, %c0_3, %c0_4], %2 {strides = array<i32>} : memref<18x18x128xf32, #tpu.memory_space<vmem>>, vector<1x18x128xf32>,
    %cst_5 = arith.constant 0.000000e+00 : f32
    %4 = vector.broadcast %cst_5 : f32 to vector<18x1x128xf32>
    %c0_6 = arith.constant 0 : index
    %c0_7 = arith.constant 0 : index
    %c0_8 = arith.constant 0 : index
    %5 = vector.load %arg9[%c0_6, %c0_7, %c0_8] : memref<18x18x128xf32, #tpu.memory_space<vmem>>, vector<18x1x128xf32>
    tpu.vector_store %arg9[%c0_6, %c0_7, %c0_8], %4 {strides = array<i32>} : memref<18x18x128xf32, #tpu.memory_space<vmem>>, vector<18x1x128xf32>,
    %cst_9 = arith.constant 0.000000e+00 : f32
    %6 = vector.broadcast %cst_9 : f32 to vector<18x1x128xf32>
    %c0_10 = arith.constant 0 : index
    %c17_11 = arith.constant 17 : index
    %c0_12 = arith.constant 0 : index
    %7 = vector.load %arg9[%c0_10, %c17_11, %c0_12] : memref<18x18x128xf32, #tpu.memory_space<vmem>>, vector<18x1x128xf32>
    tpu.vector_store %arg9[%c0_10, %c17_11, %c0_12], %6 {strides = array<i32>} : memref<18x18x128xf32, #tpu.memory_space<vmem>>, vector<18x1x128xf32>,
    %cst_13 = arith.constant 0.000000e+00 : f32
    %8 = vector.broadcast %cst_13 : f32 to vector<2x20x128xf32>
    %c0_14 = arith.constant 0 : index
    %c0_15 = arith.constant 0 : index
    %c0_16 = arith.constant 0 : index
    %9 = vector.load %arg10[%c0_14, %c0_15, %c0_16] : memref<20x20x128xf32, #tpu.memory_space<vmem>>, vector<2x20x128xf32>
    tpu.vector_store %arg10[%c0_14, %c0_15, %c0_16], %8 {strides = array<i32>} : memref<20x20x128xf32, #tpu.memory_space<vmem>>, vector<2x20x128xf32>,
    %cst_17 = arith.constant 0.000000e+00 : f32
    %10 = vector.broadcast %cst_17 : f32 to vector<2x20x128xf32>
    %c18 = arith.constant 18 : index
    %c0_18 = arith.constant 0 : index
    %c0_19 = arith.constant 0 : index
    %11 = vector.load %arg10[%c18, %c0_18, %c0_19] : memref<20x20x128xf32, #tpu.memory_space<vmem>>, vector<2x20x128xf32>
    tpu.vector_store %arg10[%c18, %c0_18, %c0_19], %10 {strides = array<i32>} : memref<20x20x128xf32, #tpu.memory_space<vmem>>, vector<2x20x128xf32>,
    %cst_20 = arith.constant 0.000000e+00 : f32
    %12 = vector.broadcast %cst_20 : f32 to vector<20x2x128xf32>
    %c0_21 = arith.constant 0 : index
    %c0_22 = arith.constant 0 : index
    %c0_23 = arith.constant 0 : index
    %13 = vector.load %arg10[%c0_21, %c0_22, %c0_23] : memref<20x20x128xf32, #tpu.memory_space<vmem>>, vector<20x2x128xf32>
    tpu.vector_store %arg10[%c0_21, %c0_22, %c0_23], %12 {strides = array<i32>} : memref<20x20x128xf32, #tpu.memory_space<vmem>>, vector<20x2x128xf32>,
    %cst_24 = arith.constant 0.000000e+00 : f32
    %14 = vector.broadcast %cst_24 : f32 to vector<20x2x128xf32>
    %c0_25 = arith.constant 0 : index
    %c18_26 = arith.constant 18 : index
    %c0_27 = arith.constant 0 : index
    %15 = vector.load %arg10[%c0_25, %c18_26, %c0_27] : memref<20x20x128xf32, #tpu.memory_space<vmem>>, vector<20x2x128xf32>
    tpu.vector_store %arg10[%c0_25, %c18_26, %c0_27], %14 {strides = array<i32>} : memref<20x20x128xf32, #tpu.memory_space<vmem>>, vector<20x2x128xf32>,
    %c0_28 = arith.constant 0 : index
    %c0_29 = arith.constant 0 : index
    %c0_30 = arith.constant 0 : index
    %c0_31 = arith.constant 0 : index
    %16 = vector.load %arg1[%c0_28, %c0_29, %c0_30, %c0_31] : memref<1x16x16x128xf32, #tpu.memory_space<vmem>>, vector<1x16x16x128xf32>
    %17 = vector.shape_cast %16 : vector<1x16x16x128xf32> to vector<16x16x128xf32>
    %18 = vector.shape_cast %17 : vector<16x16x128xf32> to vector<256x128xf32>
    %c0_32 = arith.constant 0 : index
    %c0_33 = arith.constant 0 : index
    %19 = vector.load %arg2[%c0_32, %c0_33] : memref<128x128xf32, #tpu.memory_space<vmem>>, vector<128x128xf32>
    %cst_34 = arith.constant dense<0.000000e+00> : vector<256x128xf32>
    %20 = tpu.matmul %18, %19, %cst_34 {dimension_numbers = #tpu.dot_dimension_numbers<[1], [0], [0], [1], [0, 0, 1, 1], [], []>} : vector<256x128xf32>, vector<128x128xf32>, vector<256x128xf32> -> vector<256x128xf32>
    %c0_35 = arith.constant 0 : index
    %c0_36 = arith.constant 0 : index
    %21 = vector.load %arg3[%c0_35, %c0_36] : memref<1x128xf32, #tpu.memory_space<vmem>>, vector<1x128xf32>
    %22 = vector.broadcast %21 : vector<1x128xf32> to vector<256x128xf32>
    %23 = arith.addf %20, %22 : vector<256x128xf32>
    %cst_37 = arith.constant 0.000000e+00 : f32
    %24 = vector.broadcast %cst_37 : f32 to vector<256x128xf32>
    %25 = arith.maximumf %23, %24 : vector<256x128xf32>
    %26 = vector.shape_cast %25 : vector<256x128xf32> to vector<16x16x128xf32>
    %c0_38 = arith.constant 0 : index
    %c0_39 = arith.constant 0 : index
    %c0_40 = arith.constant 0 : index
    %c0_41 = arith.constant 0 : index
    %27 = vector.load %arg8[%c0_38, %c0_39, %c0_40, %c0_41] : memref<1x16x16x128xf32, #tpu.memory_space<vmem>>, vector<1x16x16x128xf32>
    %28 = vector.shape_cast %27 : vector<1x16x16x128xf32> to vector<16x16x128xf32>
    %29 = vector.shape_cast %26 : vector<16x16x128xf32> to vector<1x16x16x128xf32>
    tpu.vector_store %arg8[%c0_38, %c0_39, %c0_40, %c0_41], %29 {strides = array<i32>} : memref<1x16x16x128xf32, #tpu.memory_space<vmem>>, vector<1x16x16x128xf32>,
    %c1 = arith.constant 1 : index
    %c1_42 = arith.constant 1 : index
    %c0_43 = arith.constant 0 : index
    %30 = vector.load %arg9[%c1, %c1_42, %c0_43] : memref<18x18x128xf32, #tpu.memory_space<vmem>>, vector<16x16x128xf32>
    tpu.vector_store %arg9[%c1, %c1_42, %c0_43], %26 {strides = array<i32>} : memref<18x18x128xf32, #tpu.memory_space<vmem>>, vector<16x16x128xf32>,
    %c0_44 = arith.constant 0 : index
    %c0_45 = arith.constant 0 : index
    %c0_46 = arith.constant 0 : index
    %31 = vector.load %arg9[%c0_44, %c0_45, %c0_46] : memref<18x18x128xf32, #tpu.memory_space<vmem>>, vector<18x16x128xf32>
    %c0_47 = arith.constant 0 : index
    %c1_48 = arith.constant 1 : index
    %c0_49 = arith.constant 0 : index
    %32 = vector.load %arg9[%c0_47, %c1_48, %c0_49] : memref<18x18x128xf32, #tpu.memory_space<vmem>>, vector<18x16x128xf32>
    %c0_50 = arith.constant 0 : index
    %c2 = arith.constant 2 : index
    %c0_51 = arith.constant 0 : index
    %33 = vector.load %arg9[%c0_50, %c2, %c0_51] : memref<18x18x128xf32, #tpu.memory_space<vmem>>, vector<18x16x128xf32>
    %34 = tpu.concatenate %31, %32, %33 in 2 : vector<18x16x128xf32>, vector<18x16x128xf32>, vector<18x16x128xf32> -> vector<18x16x384xf32>
    %35 = vector.extract_strided_slice %34 {offsets = [0, 0, 0], sizes = [16, 16, 384], strides = [1, 1, 1]} : vector<18x16x384xf32> to vector<16x16x384xf32>
    %36 = vector.shape_cast %35 : vector<16x16x384xf32> to vector<256x384xf32>
    %c0_52 = arith.constant 0 : index
    %c0_53 = arith.constant 0 : index
    %37 = vector.load %arg4[%c0_52, %c0_53] : memref<1152x128xf32, #tpu.memory_space<vmem>>, vector<384x128xf32>
    %cst_54 = arith.constant dense<0.000000e+00> : vector<256x128xf32>
    %38 = tpu.matmul %36, %37, %cst_54 {dimension_numbers = #tpu.dot_dimension_numbers<[1], [0], [0], [1], [0, 0, 1, 1], [], []>} : vector<256x384xf32>, vector<384x128xf32>, vector<256x128xf32> -> vector<256x128xf32>
    %39 = vector.extract_strided_slice %34 {offsets = [1, 0, 0], sizes = [16, 16, 384], strides = [1, 1, 1]} : vector<18x16x384xf32> to vector<16x16x384xf32>
    %40 = vector.shape_cast %39 : vector<16x16x384xf32> to vector<256x384xf32>
    %c384 = arith.constant 384 : index
    %c0_55 = arith.constant 0 : index
    %41 = vector.load %arg4[%c384, %c0_55] : memref<1152x128xf32, #tpu.memory_space<vmem>>, vector<384x128xf32>
    %cst_56 = arith.constant dense<0.000000e+00> : vector<256x128xf32>
    %42 = tpu.matmul %40, %41, %cst_56 {dimension_numbers = #tpu.dot_dimension_numbers<[1], [0], [0], [1], [0, 0, 1, 1], [], []>} : vector<256x384xf32>, vector<384x128xf32>, vector<256x128xf32> -> vector<256x128xf32>
    %43 = arith.addf %38, %42 : vector<256x128xf32>
    %44 = vector.extract_strided_slice %34 {offsets = [2, 0, 0], sizes = [16, 16, 384], strides = [1, 1, 1]} : vector<18x16x384xf32> to vector<16x16x384xf32>
    %45 = vector.shape_cast %44 : vector<16x16x384xf32> to vector<256x384xf32>
    %c768 = arith.constant 768 : index
    %c0_57 = arith.constant 0 : index
    %46 = vector.load %arg4[%c768, %c0_57] : memref<1152x128xf32, #tpu.memory_space<vmem>>, vector<384x128xf32>
    %cst_58 = arith.constant dense<0.000000e+00> : vector<256x128xf32>
    %47 = tpu.matmul %45, %46, %cst_58 {dimension_numbers = #tpu.dot_dimension_numbers<[1], [0], [0], [1], [0, 0, 1, 1], [], []>} : vector<256x384xf32>, vector<384x128xf32>, vector<256x128xf32> -> vector<256x128xf32>
    %48 = arith.addf %43, %47 : vector<256x128xf32>
    %c0_59 = arith.constant 0 : index
    %c0_60 = arith.constant 0 : index
    %49 = vector.load %arg5[%c0_59, %c0_60] : memref<1x128xf32, #tpu.memory_space<vmem>>, vector<1x128xf32>
    %50 = vector.broadcast %49 : vector<1x128xf32> to vector<256x128xf32>
    %51 = arith.addf %48, %50 : vector<256x128xf32>
    %cst_61 = arith.constant 0.000000e+00 : f32
    %52 = vector.broadcast %cst_61 : f32 to vector<256x128xf32>
    %53 = arith.maximumf %51, %52 : vector<256x128xf32>
    %54 = vector.shape_cast %53 : vector<256x128xf32> to vector<16x16x128xf32>
    %c2_62 = arith.constant 2 : index
    %c2_63 = arith.constant 2 : index
    %c0_64 = arith.constant 0 : index
    %55 = vector.load %arg10[%c2_62, %c2_63, %c0_64] : memref<20x20x128xf32, #tpu.memory_space<vmem>>, vector<16x16x128xf32>
    tpu.vector_store %arg10[%c2_62, %c2_63, %c0_64], %54 {strides = array<i32>} : memref<20x20x128xf32, #tpu.memory_space<vmem>>, vector<16x16x128xf32>,
    %c0_65 = arith.constant 0 : index
    %c0_66 = arith.constant 0 : index
    %c0_67 = arith.constant 0 : index
    %56 = vector.load %arg10[%c0_65, %c0_66, %c0_67] : memref<20x20x128xf32, #tpu.memory_space<vmem>>, vector<20x16x128xf32>
    %c0_68 = arith.constant 0 : index
    %c2_69 = arith.constant 2 : index
    %c0_70 = arith.constant 0 : index
    %57 = vector.load %arg10[%c0_68, %c2_69, %c0_70] : memref<20x20x128xf32, #tpu.memory_space<vmem>>, vector<20x16x128xf32>
    %c0_71 = arith.constant 0 : index
    %c4 = arith.constant 4 : index
    %c0_72 = arith.constant 0 : index
    %58 = vector.load %arg10[%c0_71, %c4, %c0_72] : memref<20x20x128xf32, #tpu.memory_space<vmem>>, vector<20x16x128xf32>
    %59 = tpu.concatenate %56, %57, %58 in 2 : vector<20x16x128xf32>, vector<20x16x128xf32>, vector<20x16x128xf32> -> vector<20x16x384xf32>
    %60 = vector.extract_strided_slice %59 {offsets = [0, 0, 0], sizes = [16, 16, 384], strides = [1, 1, 1]} : vector<20x16x384xf32> to vector<16x16x384xf32>
    %61 = vector.shape_cast %60 : vector<16x16x384xf32> to vector<256x384xf32>
    %c0_73 = arith.constant 0 : index
    %c0_74 = arith.constant 0 : index
    %62 = vector.load %arg6[%c0_73, %c0_74] : memref<1152x128xf32, #tpu.memory_space<vmem>>, vector<384x128xf32>
    %cst_75 = arith.constant dense<0.000000e+00> : vector<256x128xf32>
    %63 = tpu.matmul %61, %62, %cst_75 {dimension_numbers = #tpu.dot_dimension_numbers<[1], [0], [0], [1], [0, 0, 1, 1], [], []>} : vector<256x384xf32>, vector<384x128xf32>, vector<256x128xf32> -> vector<256x128xf32>
    %64 = vector.extract_strided_slice %59 {offsets = [2, 0, 0], sizes = [16, 16, 384], strides = [1, 1, 1]} : vector<20x16x384xf32> to vector<16x16x384xf32>
    %65 = vector.shape_cast %64 : vector<16x16x384xf32> to vector<256x384xf32>
    %c384_76 = arith.constant 384 : index
    %c0_77 = arith.constant 0 : index
    %66 = vector.load %arg6[%c384_76, %c0_77] : memref<1152x128xf32, #tpu.memory_space<vmem>>, vector<384x128xf32>
    %cst_78 = arith.constant dense<0.000000e+00> : vector<256x128xf32>
    %67 = tpu.matmul %65, %66, %cst_78 {dimension_numbers = #tpu.dot_dimension_numbers<[1], [0], [0], [1], [0, 0, 1, 1], [], []>} : vector<256x384xf32>, vector<384x128xf32>, vector<256x128xf32> -> vector<256x128xf32>
    %68 = arith.addf %63, %67 : vector<256x128xf32>
    %69 = vector.extract_strided_slice %59 {offsets = [4, 0, 0], sizes = [16, 16, 384], strides = [1, 1, 1]} : vector<20x16x384xf32> to vector<16x16x384xf32>
    %70 = vector.shape_cast %69 : vector<16x16x384xf32> to vector<256x384xf32>
    %c768_79 = arith.constant 768 : index
    %c0_80 = arith.constant 0 : index
    %71 = vector.load %arg6[%c768_79, %c0_80] : memref<1152x128xf32, #tpu.memory_space<vmem>>, vector<384x128xf32>
    %cst_81 = arith.constant dense<0.000000e+00> : vector<256x128xf32>
    %72 = tpu.matmul %70, %71, %cst_81 {dimension_numbers = #tpu.dot_dimension_numbers<[1], [0], [0], [1], [0, 0, 1, 1], [], []>} : vector<256x384xf32>, vector<384x128xf32>, vector<256x128xf32> -> vector<256x128xf32>
    %73 = arith.addf %68, %72 : vector<256x128xf32>
    %c0_82 = arith.constant 0 : index
    %c0_83 = arith.constant 0 : index
    %74 = vector.load %arg7[%c0_82, %c0_83] : memref<1x128xf32, #tpu.memory_space<vmem>>, vector<1x128xf32>
    %75 = vector.broadcast %74 : vector<1x128xf32> to vector<256x128xf32>
    %76 = arith.addf %73, %75 : vector<256x128xf32>
    %cst_84 = arith.constant 0.000000e+00 : f32
    %77 = vector.broadcast %cst_84 : f32 to vector<256x128xf32>
    %78 = arith.maximumf %76, %77 : vector<256x128xf32>
    %79 = vector.shape_cast %78 : vector<256x128xf32> to vector<16x16x128xf32>
    %c0_85 = arith.constant 0 : index
    %c0_86 = arith.constant 0 : index
    %c0_87 = arith.constant 0 : index
    %c0_88 = arith.constant 0 : index
    %80 = vector.load %arg8[%c0_85, %c0_86, %c0_87, %c0_88] : memref<1x16x16x128xf32, #tpu.memory_space<vmem>>, vector<1x16x16x128xf32>
    %81 = vector.shape_cast %80 : vector<1x16x16x128xf32> to vector<16x16x128xf32>
    %82 = arith.addf %79, %81 : vector<16x16x128xf32>
    %c0_89 = arith.constant 0 : index
    %c0_90 = arith.constant 0 : index
    %c0_91 = arith.constant 0 : index
    %c0_92 = arith.constant 0 : index
    %83 = vector.load %arg8[%c0_89, %c0_90, %c0_91, %c0_92] : memref<1x16x16x128xf32, #tpu.memory_space<vmem>>, vector<1x16x16x128xf32>
    %84 = vector.shape_cast %83 : vector<1x16x16x128xf32> to vector<16x16x128xf32>
    %85 = vector.shape_cast %82 : vector<16x16x128xf32> to vector<1x16x16x128xf32>
    tpu.vector_store %arg8[%c0_89, %c0_90, %c0_91, %c0_92], %85 {strides = array<i32>} : memref<1x16x16x128xf32, #tpu.memory_space<vmem>>, vector<1x16x16x128xf32>,
    return
  }
  func.func @transform_0(%arg0: i32) -> (i32, i32, i32, i32) {
    %c0_i32 = arith.constant 0 : i32
    %c0_i32_0 = arith.constant 0 : i32
    %c0_i32_1 = arith.constant 0 : i32
    %c0_i32_2 = arith.constant 0 : i32
    return %arg0, %c0_i32, %c0_i32_0, %c0_i32_1 : i32, i32, i32, i32
  }
  func.func @transform_1(%arg0: i32) -> (i32, i32) {
    %c0_i32 = arith.constant 0 : i32
    %c0_i32_0 = arith.constant 0 : i32
    %c0_i32_1 = arith.constant 0 : i32
    return %c0_i32, %c0_i32_0 : i32, i32
  }
  func.func @transform_2(%arg0: i32) -> (i32, i32) {
    %c0_i32 = arith.constant 0 : i32
    %c0_i32_0 = arith.constant 0 : i32
    %c0_i32_1 = arith.constant 0 : i32
    return %c0_i32, %c0_i32_0 : i32, i32
  }
  func.func @transform_3(%arg0: i32) -> (i32, i32) {
    %c0_i32 = arith.constant 0 : i32
    %c0_i32_0 = arith.constant 0 : i32
    %c0_i32_1 = arith.constant 0 : i32
    return %c0_i32, %c0_i32_0 : i32, i32
  }
  func.func @transform_4(%arg0: i32) -> (i32, i32) {
    %c0_i32 = arith.constant 0 : i32
    %c0_i32_0 = arith.constant 0 : i32
    %c0_i32_1 = arith.constant 0 : i32
    return %c0_i32, %c0_i32_0 : i32, i32
  }
  func.func @transform_5(%arg0: i32) -> (i32, i32) {
    %c0_i32 = arith.constant 0 : i32
    %c0_i32_0 = arith.constant 0 : i32
    %c0_i32_1 = arith.constant 0 : i32
    return %c0_i32, %c0_i32_0 : i32, i32
  }
  func.func @transform_6(%arg0: i32) -> (i32, i32) {
    %c0_i32 = arith.constant 0 : i32
    %c0_i32_0 = arith.constant 0 : i32
    %c0_i32_1 = arith.constant 0 : i32
    return %c0_i32, %c0_i32_0 : i32, i32
  }
  func.func @transform_7(%arg0: i32) -> (i32, i32, i32, i32) {
    %c0_i32 = arith.constant 0 : i32
    %c0_i32_0 = arith.constant 0 : i32
    %c0_i32_1 = arith.constant 0 : i32
    %c0_i32_2 = arith.constant 0 : i32
    return %arg0, %c0_i32, %c0_i32_0, %c0_i32_1 : i32, i32, i32, i32
  }
}

module attributes {stable_mosaic.version = 11 : i64} {
  func.func @_heads_kernel(%arg0: i32, %arg1: memref<512x128xf32, #tpu.memory_space<vmem>>, %arg2: memref<128x256xf32, #tpu.memory_space<vmem>>, %arg3: memref<1x256xf32, #tpu.memory_space<vmem>>, %arg4: memref<256x128xf32, #tpu.memory_space<vmem>>, %arg5: memref<1x128xf32, #tpu.memory_space<vmem>>, %arg6: memref<512x128xf32, #tpu.memory_space<vmem>>) attributes {dimension_semantics = [#tpu.dimension_semantics<parallel>], iteration_bounds = array<i64: 1>, scalar_prefetch = 0 : i64, scratch_operands = 0 : i64, tpu.core_type = #tpu.core_type<tc>, window_params = [{transform_indices = @transform_0, window_bounds = array<i64: 512, 128>}, {pipeline_mode = #tpu.pipeline_mode<synchronous>, transform_indices = @transform_1, window_bounds = array<i64: 128, 256>}, {pipeline_mode = #tpu.pipeline_mode<synchronous>, transform_indices = @transform_2, window_bounds = array<i64: 1, 256>}, {pipeline_mode = #tpu.pipeline_mode<synchronous>, transform_indices = @transform_3, window_bounds = array<i64: 256, 128>}, {pipeline_mode = #tpu.pipeline_mode<synchronous>, transform_indices = @transform_4, window_bounds = array<i64: 1, 128>}, {transform_indices = @transform_5, window_bounds = array<i64: 512, 128>}]} {
    %c0 = arith.constant 0 : index
    %c0_0 = arith.constant 0 : index
    %0 = vector.load %arg1[%c0, %c0_0] : memref<512x128xf32, #tpu.memory_space<vmem>>, vector<512x128xf32>
    %c0_1 = arith.constant 0 : index
    %c0_2 = arith.constant 0 : index
    %1 = vector.load %arg2[%c0_1, %c0_2] : memref<128x256xf32, #tpu.memory_space<vmem>>, vector<128x256xf32>
    %cst = arith.constant dense<0.000000e+00> : vector<512x256xf32>
    %2 = tpu.matmul %0, %1, %cst {dimension_numbers = #tpu.dot_dimension_numbers<[1], [0], [0], [1], [0, 0, 1, 1], [], []>} : vector<512x128xf32>, vector<128x256xf32>, vector<512x256xf32> -> vector<512x256xf32>
    %c0_3 = arith.constant 0 : index
    %c0_4 = arith.constant 0 : index
    %3 = vector.load %arg3[%c0_3, %c0_4] : memref<1x256xf32, #tpu.memory_space<vmem>>, vector<1x256xf32>
    %4 = vector.broadcast %3 : vector<1x256xf32> to vector<512x256xf32>
    %5 = arith.addf %2, %4 : vector<512x256xf32>
    %cst_5 = arith.constant 0.000000e+00 : f32
    %6 = vector.broadcast %cst_5 : f32 to vector<512x256xf32>
    %7 = arith.maximumf %5, %6 : vector<512x256xf32>
    %c0_6 = arith.constant 0 : index
    %c0_7 = arith.constant 0 : index
    %8 = vector.load %arg4[%c0_6, %c0_7] : memref<256x128xf32, #tpu.memory_space<vmem>>, vector<256x128xf32>
    %cst_8 = arith.constant dense<0.000000e+00> : vector<512x128xf32>
    %9 = tpu.matmul %7, %8, %cst_8 {dimension_numbers = #tpu.dot_dimension_numbers<[1], [0], [0], [1], [0, 0, 1, 1], [], []>} : vector<512x256xf32>, vector<256x128xf32>, vector<512x128xf32> -> vector<512x128xf32>
    %c0_9 = arith.constant 0 : index
    %c0_10 = arith.constant 0 : index
    %10 = vector.load %arg5[%c0_9, %c0_10] : memref<1x128xf32, #tpu.memory_space<vmem>>, vector<1x128xf32>
    %11 = vector.broadcast %10 : vector<1x128xf32> to vector<512x128xf32>
    %12 = arith.addf %9, %11 : vector<512x128xf32>
    %c0_11 = arith.constant 0 : index
    %c0_12 = arith.constant 0 : index
    %13 = vector.load %arg6[%c0_11, %c0_12] : memref<512x128xf32, #tpu.memory_space<vmem>>, vector<512x128xf32>
    tpu.vector_store %arg6[%c0_11, %c0_12], %12 {strides = array<i32>} : memref<512x128xf32, #tpu.memory_space<vmem>>, vector<512x128xf32>,
    return
  }
  func.func @transform_0(%arg0: i32) -> (i32, i32) {
    %c0_i32 = arith.constant 0 : i32
    %c0_i32_0 = arith.constant 0 : i32
    return %arg0, %c0_i32 : i32, i32
  }
  func.func @transform_1(%arg0: i32) -> (i32, i32) {
    %c0_i32 = arith.constant 0 : i32
    %c0_i32_0 = arith.constant 0 : i32
    %c0_i32_1 = arith.constant 0 : i32
    return %c0_i32, %c0_i32_0 : i32, i32
  }
  func.func @transform_2(%arg0: i32) -> (i32, i32) {
    %c0_i32 = arith.constant 0 : i32
    %c0_i32_0 = arith.constant 0 : i32
    %c0_i32_1 = arith.constant 0 : i32
    return %c0_i32, %c0_i32_0 : i32, i32
  }
  func.func @transform_3(%arg0: i32) -> (i32, i32) {
    %c0_i32 = arith.constant 0 : i32
    %c0_i32_0 = arith.constant 0 : i32
    %c0_i32_1 = arith.constant 0 : i32
    return %c0_i32, %c0_i32_0 : i32, i32
  }
  func.func @transform_4(%arg0: i32) -> (i32, i32) {
    %c0_i32 = arith.constant 0 : i32
    %c0_i32_0 = arith.constant 0 : i32
    %c0_i32_1 = arith.constant 0 : i32
    return %c0_i32, %c0_i32_0 : i32, i32
  }
  func.func @transform_5(%arg0: i32) -> (i32, i32) {
    %c0_i32 = arith.constant 0 : i32
    %c0_i32_0 = arith.constant 0 : i32
    return %arg0, %c0_i32 : i32, i32
  }
}

</mosaic_0001>

<llo_original>
// kernel: refinement_stage_forward.11
$region0: #{refinement_stage_forward.11}
  #allocation0 [shape = 'u32[]', space=smem, size = 0x4, offset = 0x4, fixed_abs, tag = 'smem constant byte address 0x4 - core index']
  #allocation1 [shape = 'u32[144,128]{1,0:T(1,128)}', space=vmem, size = 0x12000, scoped, tag = 'internal scratch']
  %s0 = inlined_call_operand.vmem [shape: f32[512,128], index: 0, kind: input, shape index: {}]
  %s1 = inlined_call_operand.vmem [shape: f32[128,256], index: 1, kind: input, shape index: {}]
  %s2 = inlined_call_operand.vmem [shape: f32[1,256], index: 2, kind: input, shape index: {}]
  %s3 = inlined_call_operand.vmem [shape: f32[256,128], index: 3, kind: input, shape index: {}]
  %s4 = inlined_call_operand.vmem [shape: f32[1,128], index: 4, kind: input, shape index: {}]
  %s5 = inlined_call_operand.vmem [shape: f32[512,128], index: 5, kind: output, shape index: {}]
  %s6 = sld [smem:[#allocation0]]
  $region30: #{refinement_stage_forward.11} parent=0
    _
  %s8 = ssub.s32 1, %s6
  %s9 = scalar_select 0, %s8, %s6
  // Predicated region
  $region2: #{refinement_stage_forward.11} parent=0 // pred_check
    _
  $region3: #{refinement_stage_forward.11} parent=0 // pred_check_branch
    %11 = sbr.rel (0) target = $region5
  $region4: #{refinement_stage_forward.11} parent=0 // pred_region
    _
  $region5: #{refinement_stage_forward.11} parent=0 // pred_fallthru
    _
  // Predicated region
  $region6: #{refinement_stage_forward.11} parent=0 // pred_check
    _
  $region7: #{refinement_stage_forward.11} parent=0 // pred_check_branch
    %13 = sbr.rel (0) target = $region9
  $region8: #{refinement_stage_forward.11} parent=0 // pred_region
    _
  $region9: #{refinement_stage_forward.11} parent=0 // pred_fallthru
    _
  // Predicated region
  $region10: #{refinement_stage_forward.11} parent=0 // pred_check
    _
  $region11: #{refinement_stage_forward.11} parent=0 // pred_check_branch
    %15 = sbr.rel (0) target = $region13
  $region12: #{refinement_stage_forward.11} parent=0 // pred_region
    _
  $region13: #{refinement_stage_forward.11} parent=0 // pred_fallthru
    _
  // Predicated region
  $region14: #{refinement_stage_forward.11} parent=0 // pred_check
    _
  $region15: #{refinement_stage_forward.11} parent=0 // pred_check_branch
    %17 = sbr.rel (0) target = $region17
  $region16: #{refinement_stage_forward.11} parent=0 // pred_region
    _
  $region17: #{refinement_stage_forward.11} parent=0 // pred_fallthru
    _
  // Predicated region
  $region18: #{refinement_stage_forward.11} parent=0 // pred_check
    _
  $region19: #{refinement_stage_forward.11} parent=0 // pred_check_branch
    %19 = sbr.rel (0) target = $region21
  $region20: #{refinement_stage_forward.11} parent=0 // pred_region
    _
  $region21: #{refinement_stage_forward.11} parent=0 // pred_fallthru
    _
  %v20 = vld [vmem:[%s0] sm:$0xff]
  %v21 = vld [vmem:[%s0 + $0x8] sm:$0xff]
  %v22 = vld [vmem:[%s0 + $0x10] sm:$0xff]
  %v23 = vld [vmem:[%s0 + $0x18] sm:$0xff]
  %v24 = vld [vmem:[%s0 + $0x20] sm:$0xff]
  %v25 = vld [vmem:[%s0 + $0x28] sm:$0xff]
  %v26 = vld [vmem:[%s0 + $0x30] sm:$0xff]
  %v27 = vld [vmem:[%s0 + $0x38] sm:$0xff]
  %v28 = vld [vmem:[%s0 + $0x40] sm:$0xff]
  %v29 = vld [vmem:[%s0 + $0x48] sm:$0xff]
  %v30 = vld [vmem:[%s0 + $0x50] sm:$0xff]
  %v31 = vld [vmem:[%s0 + $0x58] sm:$0xff]
  %v32 = vld [vmem:[%s0 + $0x60] sm:$0xff]
  %v33 = vld [vmem:[%s0 + $0x68] sm:$0xff]
  %v34 = vld [vmem:[%s0 + $0x70] sm:$0xff]
  %v35 = vld [vmem:[%s0 + $0x78] sm:$0xff]
  %v36 = vld [vmem:[%s0 + $0x80] sm:$0xff]
  %v37 = vld [vmem:[%s0 + $0x88] sm:$0xff]
  %v38 = vld [vmem:[%s0 + $0x90] sm:$0xff]
  %v39 = vld [vmem:[%s0 + $0x98] sm:$0xff]
  %v40 = vld [vmem:[%s0 + $0xa0] sm:$0xff]
  %v41 = vld [vmem:[%s0 + $0xa8] sm:$0xff]
  %v42 = vld [vmem:[%s0 + $0xb0] sm:$0xff]
  %v43 = vld [vmem:[%s0 + $0xb8] sm:$0xff]
  %v44 = vld [vmem:[%s0 + $0xc0] sm:$0xff]
  %v45 = vld [vmem:[%s0 + $0xc8] sm:$0xff]
  %v46 = vld [vmem:[%s0 + $0xd0] sm:$0xff]
  %v47 = vld [vmem:[%s0 + $0xd8] sm:$0xff]
  %v48 = vld [vmem:[%s0 + $0xe0] sm:$0xff]
  %v49 = vld [vmem:[%s0 + $0xe8] sm:$0xff]
  %v50 = vld [vmem:[%s0 + $0xf0] sm:$0xff]
  %v51 = vld [vmem:[%s0 + $0xf8] sm:$0xff]
  %v52 = vld [vmem:[%s0 + $0x100] sm:$0xff]
  %v53 = vld [vmem:[%s0 + $0x108] sm:$0xff]
  %v54 = vld [vmem:[%s0 + $0x110] sm:$0xff]
  %v55 = vld [vmem:[%s0 + $0x118] sm:$0xff]
  %v56 = vld [vmem:[%s0 + $0x120] sm:$0xff]
  %v57 = vld [vmem:[%s0 + $0x128] sm:$0xff]
  %v58 = vld [vmem:[%s0 + $0x130] sm:$0xff]
  %v59 = vld [vmem:[%s0 + $0x138] sm:$0xff]
  %v60 = vld [vmem:[%s0 + $0x140] sm:$0xff]
  %v61 = vld [vmem:[%s0 + $0x148] sm:$0xff]
  %v62 = vld [vmem:[%s0 + $0x150] sm:$0xff]
  %v63 = vld [vmem:[%s0 + $0x158] sm:$0xff]
  %v64 = vld [vmem:[%s0 + $0x160] sm:$0xff]
  %v65 = vld [vmem:[%s0 + $0x168] sm:$0xff]
  %v66 = vld [vmem:[%s0 + $0x170] sm:$0xff]
  %v67 = vld [vmem:[%s0 + $0x178] sm:$0xff]
  %v68 = vld [vmem:[%s0 + $0x180] sm:$0xff]
  %v69 = vld [vmem:[%s0 + $0x188] sm:$0xff]
  %v70 = vld [vmem:[%s0 + $0x190] sm:$0xff]
  %v71 = vld [vmem:[%s0 + $0x198] sm:$0xff]
  %v72 = vld [vmem:[%s0 + $0x1a0] sm:$0xff]
  %v73 = vld [vmem:[%s0 + $0x1a8] sm:$0xff]
  %v74 = vld [vmem:[%s0 + $0x1b0] sm:$0xff]
  %v75 = vld [vmem:[%s0 + $0x1b8] sm:$0xff]
  %v76 = vld [vmem:[%s0 + $0x1c0] sm:$0xff]
  %v77 = vld [vmem:[%s0 + $0x1c8] sm:$0xff]
  %v78 = vld [vmem:[%s0 + $0x1d0] sm:$0xff]
  %v79 = vld [vmem:[%s0 + $0x1d8] sm:$0xff]
  %v80 = vld [vmem:[%s0 + $0x1e0] sm:$0xff]
  %v81 = vld [vmem:[%s0 + $0x1e8] sm:$0xff]
  %v82 = vld [vmem:[%s0 + $0x1f0] sm:$0xff]
  %v83 = vld [vmem:[%s0 + $0x1f8] sm:$0xff]
  %v84 = vld [vmem:[%s1] sm:$0xff]
  %v85 = vld [vmem:[%s1 + $0x8] sm:$0xff]
  %v86 = vld [vmem:[%s1 + $0x10] sm:$0xff]
  %v87 = vld [vmem:[%s1 + $0x18] sm:$0xff]
  %v88 = vld [vmem:[%s1 + $0x20] sm:$0xff]
  %v89 = vld [vmem:[%s1 + $0x28] sm:$0xff]
  %v90 = vld [vmem:[%s1 + $0x30] sm:$0xff]
  %v91 = vld [vmem:[%s1 + $0x38] sm:$0xff]
  %v92 = vld [vmem:[%s1 + $0x40] sm:$0xff]
  %v93 = vld [vmem:[%s1 + $0x48] sm:$0xff]
  %v94 = vld [vmem:[%s1 + $0x50] sm:$0xff]
  %v95 = vld [vmem:[%s1 + $0x58] sm:$0xff]
  %v96 = vld [vmem:[%s1 + $0x60] sm:$0xff]
  %v97 = vld [vmem:[%s1 + $0x68] sm:$0xff]
  %v98 = vld [vmem:[%s1 + $0x70] sm:$0xff]
  %v99 = vld [vmem:[%s1 + $0x78] sm:$0xff]
  %v100 = vld [vmem:[%s1 + $0x80] sm:$0xff]
  %v101 = vld [vmem:[%s1 + $0x88] sm:$0xff]
  %v102 = vld [vmem:[%s1 + $0x90] sm:$0xff]
  %v103 = vld [vmem:[%s1 + $0x98] sm:$0xff]
  %v104 = vld [vmem:[%s1 + $0xa0] sm:$0xff]
  %v105 = vld [vmem:[%s1 + $0xa8] sm:$0xff]
  %v106 = vld [vmem:[%s1 + $0xb0] sm:$0xff]
  %v107 = vld [vmem:[%s1 + $0xb8] sm:$0xff]
  %v108 = vld [vmem:[%s1 + $0xc0] sm:$0xff]
  %v109 = vld [vmem:[%s1 + $0xc8] sm:$0xff]
  %v110 = vld [vmem:[%s1 + $0xd0] sm:$0xff]
  %v111 = vld [vmem:[%s1 + $0xd8] sm:$0xff]
  %v112 = vld [vmem:[%s1 + $0xe0] sm:$0xff]
  %v113 = vld [vmem:[%s1 + $0xe8] sm:$0xff]
  %v114 = vld [vmem:[%s1 + $0xf0] sm:$0xff]
  %v115 = vld [vmem:[%s1 + $0xf8] sm:$0xff]
  %v116 = vld [vmem:[%s2] sm:$0x3]
  %v118 = vlaneseq
  %v119 = vshrl.u32 %v118, 7
  %v120 = vsub.s32 0, %v119
  %v121 = vrot.slane %v116, %v120
  %v122 = vlaneseq
  %v123 = vshrl.u32 %v122, 7
  %v124 = vsub.s32 1, %v123
  %v125 = vrot.slane %v116, %v124
  %128 = vmatprep.subr.mxu0 %v85
  %129 = vmatpush1.msra.mxu0 %v84
  %130 = vmatprep.subr.mxu0 %v87
  %131 = vmatpush1.msra.mxu0 %v86
  %132 = vmatprep.subr.mxu0 %v89
  %133 = vmatpush1.msra.mxu0 %v88
  %134 = vmatprep.subr.mxu0 %v91
  %135 = vmatpush1.msra.mxu0 %v90
  %136 = vmatprep.subr.mxu0 %v93
  %137 = vmatpush1.msra.mxu0 %v92
  %138 = vmatprep.subr.mxu0 %v95
  %139 = vmatpush1.msra.mxu0 %v94
  %140 = vmatprep.subr.mxu0 %v97
  %141 = vmatpush1.msra.mxu0 %v96
  %142 = vmatprep.subr.mxu0 %v99
  %143 = vmatpush1.msra.mxu0 %v98
  %144 = vmatprep.subr.mxu0 %v101
  %145 = vmatpush1.msra.mxu0 %v100
  %146 = vmatprep.subr.mxu0 %v103
  %147 = vmatpush1.msra.mxu0 %v102
  %148 = vmatprep.subr.mxu0 %v105
  %149 = vmatpush1.msra.mxu0 %v104
  %150 = vmatprep.subr.mxu0 %v107
  %151 = vmatpush1.msra.mxu0 %v106
  %152 = vmatprep.subr.mxu0 %v109
  %153 = vmatpush1.msra.mxu0 %v108
  %154 = vmatprep.subr.mxu0 %v111
  %155 = vmatpush1.msra.mxu0 %v110
  %156 = vmatprep.subr.mxu0 %v113
  %157 = vmatpush1.msra.mxu0 %v112
  %158 = vmatprep.subr.mxu0 %v115
  %159 = vmatpush1.msra.mxu0 %v114
  %160 = vmatprep.subr.mxu0 0.0
  %161 = vmatpush1.msra.mxu0 0.0
  %162 = vmatprep.subr.mxu0 0.0
  %163 = vmatpush1.msra.mxu0 0.0
  %164 = vmatprep.subr.mxu0 0.0
  %165 = vmatpush1.msra.mxu0 0.0
  %166 = vmatprep.subr.mxu0 0.0
  %167 = vmatpush1.msra.mxu0 0.0
  %168 = vmatprep.subr.mxu0 0.0
  %169 = vmatpush1.msra.mxu0 0.0
  %170 = vmatprep.subr.mxu0 0.0
  %171 = vmatpush1.msra.mxu0 0.0
  %172 = vmatprep.subr.mxu0 0.0
  %173 = vmatpush1.msra.mxu0 0.0
  %174 = vmatprep.subr.mxu0 0.0
  %175 = vmatpush1.msra.mxu0 0.0
  %176 = vmatprep.subr.mxu0 0.0
  %177 = vmatpush1.msra.mxu0 0.0
  %178 = vmatprep.subr.mxu0 0.0
  %179 = vmatpush1.msra.mxu0 0.0
  %180 = vmatprep.subr.mxu0 0.0
  %181 = vmatpush1.msra.mxu0 0.0
  %182 = vmatprep.subr.mxu0 0.0
  %183 = vmatpush1.msra.mxu0 0.0
  %184 = vmatprep.subr.mxu0 0.0
  %185 = vmatpush1.msra.mxu0 0.0
  %186 = vmatprep.subr.mxu0 0.0
  %187 = vmatpush1.msra.mxu0 0.0
  %188 = vmatprep.subr.mxu0 0.0
  %189 = vmatpush1.msra.mxu0 0.0
  %190 = vmatprep.subr.mxu0 0.0
  %191 = vmatpush1.msra.mxu0 0.0
  %192 = vmatprep.mubr.f32.mxu0 0.0
  %193 = vmatmul.mubr.f32.gmra.mrb[0].mxu0 %v20
  %v194 = vpop.f32.mrb[0].mxu0
  %v195 = vadd.f32 %v121, %v194
  %v196 = vpop.f32.mrb[0].mxu0
  %v197 = vadd.f32 %v125, %v196
  %198 = vmatprep.mubr.f32.mxu0 0.0
  %199 = vmatmul.mubr.f32.gmra.mrb[0].mxu0 %v21
  %v200 = vpop.f32.mrb[0].mxu0
  %v201 = vadd.f32 %v121, %v200
  %v202 = vpop.f32.mrb[0].mxu0
  %v203 = vadd.f32 %v125, %v202
  %204 = vmatprep.mubr.f32.mxu0 0.0
  %205 = vmatmul.mubr.f32.gmra.mrb[0].mxu0 %v22
  %v206 = vpop.f32.mrb[0].mxu0
  %v207 = vadd.f32 %v121, %v206
  %v208 = vpop.f32.mrb[0].mxu0
  %v209 = vadd.f32 %v125, %v208
  %210 = vmatprep.mubr.f32.mxu0 0.0
  %211 = vmatmul.mubr.f32.gmra.mrb[0].mxu0 %v23
  %v212 = vpop.f32.mrb[0].mxu0
  %v213 = vadd.f32 %v121, %v212
  %v214 = vpop.f32.mrb[0].mxu0
  %v215 = vadd.f32 %v125, %v214
  %216 = vmatprep.mubr.f32.mxu0 0.0
  %217 = vmatmul.mubr.f32.gmra.mrb[0].mxu0 %v24
  %v218 = vpop.f32.mrb[0].mxu0
  %v219 = vadd.f32 %v121, %v218
  %v220 = vpop.f32.mrb[0].mxu0
  %v221 = vadd.f32 %v125, %v220
  %222 = vmatprep.mubr.f32.mxu0 0.0
  %223 = vmatmul.mubr.f32.gmra.mrb[0].mxu0 %v25
  %v224 = vpop.f32.mrb[0].mxu0
  %v225 = vadd.f32 %v121, %v224
  %v226 = vpop.f32.mrb[0].mxu0
  %v227 = vadd.f32 %v125, %v226
  %228 = vmatprep.mubr.f32.mxu0 0.0
  %229 = vmatmul.mubr.f32.gmra.mrb[0].mxu0 %v26
  %v230 = vpop.f32.mrb[0].mxu0
  %v231 = vadd.f32 %v121, %v230
  %v232 = vpop.f32.mrb[0].mxu0
  %v233 = vadd.f32 %v125, %v232
  %234 = vmatprep.mubr.f32.mxu0 0.0
  %235 = vmatmul.mubr.f32.gmra.mrb[0].mxu0 %v27
  %v236 = vpop.f32.mrb[0].mxu0
  %v237 = vadd.f32 %v121, %v236
  %v238 = vpop.f32.mrb[0].mxu0
  %v239 = vadd.f32 %v125, %v238
  %240 = vmatprep.mubr.f32.mxu0 0.0
  %241 = vmatmul.mubr.f32.gmra.mrb[0].mxu0 %v28
  %v242 = vpop.f32.mrb[0].mxu0
  %v243 = vadd.f32 %v121, %v242
  %v244 = vpop.f32.mrb[0].mxu0
  %v245 = vadd.f32 %v125, %v244
  %246 = vmatprep.mubr.f32.mxu0 0.0
  %247 = vmatmul.mubr.f32.gmra.mrb[0].mxu0 %v29
  %v248 = vpop.f32.mrb[0].mxu0
  %v249 = vadd.f32 %v121, %v248
  %v250 = vpop.f32.mrb[0].mxu0
  %v251 = vadd.f32 %v125, %v250
  %252 = vmatprep.mubr.f32.mxu0 0.0
  %253 = vmatmul.mubr.f32.gmra.mrb[0].mxu0 %v30
  %v254 = vpop.f32.mrb[0].mxu0
  %v255 = vadd.f32 %v121, %v254
  %v256 = vpop.f32.mrb[0].mxu0
  %v257 = vadd.f32 %v125, %v256
  %258 = vmatprep.mubr.f32.mxu0 0.0
  %259 = vmatmul.mubr.f32.gmra.mrb[0].mxu0 %v31
  %v260 = vpop.f32.mrb[0].mxu0
  %v261 = vadd.f32 %v121, %v260
  %v262 = vpop.f32.mrb[0].mxu0
  %v263 = vadd.f32 %v125, %v262
  %264 = vmatprep.mubr.f32.mxu0 0.0
  %265 = vmatmul.mubr.f32.gmra.mrb[0].mxu0 %v32
  %v266 = vpop.f32.mrb[0].mxu0
  %v267 = vadd.f32 %v121, %v266
  %v268 = vpop.f32.mrb[0].mxu0
  %v269 = vadd.f32 %v125, %v268
  %270 = vmatprep.mubr.f32.mxu0 0.0
  %271 = vmatmul.mubr.f32.gmra.mrb[0].mxu0 %v33
  %v272 = vpop.f32.mrb[0].mxu0
  %v273 = vadd.f32 %v121, %v272
  %v274 = vpop.f32.mrb[0].mxu0
  %v275 = vadd.f32 %v125, %v274
  %276 = vmatprep.mubr.f32.mxu0 0.0
  %277 = vmatmul.mubr.f32.gmra.mrb[0].mxu0 %v34
  %v278 = vpop.f32.mrb[0].mxu0
  %v279 = vadd.f32 %v121, %v278
  %v280 = vpop.f32.mrb[0].mxu0
  %v281 = vadd.f32 %v125, %v280
  %282 = vmatprep.mubr.f32.mxu0 0.0
  %283 = vmatmul.mubr.f32.gmra.mrb[0].mxu0 %v35
  %v284 = vpop.f32.mrb[0].mxu0
  %v285 = vadd.f32 %v121, %v284
  %v286 = vpop.f32.mrb[0].mxu0
  %v287 = vadd.f32 %v125, %v286
  %288 = vmatprep.mubr.f32.mxu0 0.0
  %289 = vmatmul.mubr.f32.gmra.mrb[0].mxu0 %v36
  %v290 = vpop.f32.mrb[0].mxu0
  %v291 = vadd.f32 %v121, %v290
  %v292 = vpop.f32.mrb[0].mxu0
  %v293 = vadd.f32 %v125, %v292
  %294 = vmatprep.mubr.f32.mxu0 0.0
  %295 = vmatmul.mubr.f32.gmra.mrb[0].mxu0 %v37
  %v296 = vpop.f32.mrb[0].mxu0
  %v297 = vadd.f32 %v121, %v296
  %v298 = vpop.f32.mrb[0].mxu0
  %v299 = vadd.f32 %v125, %v298
  %300 = vmatprep.mubr.f32.mxu0 0.0
  %301 = vmatmul.mubr.f32.gmra.mrb[0].mxu0 %v38
  %v302 = vpop.f32.mrb[0].mxu0
  %v303 = vadd.f32 %v121, %v302
  %v304 = vpop.f32.mrb[0].mxu0
  %v305 = vadd.f32 %v125, %v304
  %306 = vmatprep.mubr.f32.mxu0 0.0
  %307 = vmatmul.mubr.f32.gmra.mrb[0].mxu0 %v39
  %v308 = vpop.f32.mrb[0].mxu0
  %v309 = vadd.f32 %v121, %v308
  %v310 = vpop.f32.mrb[0].mxu0
  %v311 = vadd.f32 %v125, %v310
  %312 = vmatprep.mubr.f32.mxu0 0.0
  %313 = vmatmul.mubr.f32.gmra.mrb[0].mxu0 %v40
  %v314 = vpop.f32.mrb[0].mxu0
  %v315 = vadd.f32 %v121, %v314
  %v316 = vpop.f32.mrb[0].mxu0
  %v317 = vadd.f32 %v125, %v316
  %318 = vmatprep.mubr.f32.mxu0 0.0
  %319 = vmatmul.mubr.f32.gmra.mrb[0].mxu0 %v41
  %v320 = vpop.f32.mrb[0].mxu0
  %v321 = vadd.f32 %v121, %v320
  %v322 = vpop.f32.mrb[0].mxu0
  %v323 = vadd.f32 %v125, %v322
  %324 = vmatprep.mubr.f32.mxu0 0.0
  %325 = vmatmul.mubr.f32.gmra.mrb[0].mxu0 %v42
  %v326 = vpop.f32.mrb[0].mxu0
  %v327 = vadd.f32 %v121, %v326
  %v328 = vpop.f32.mrb[0].mxu0
  %v329 = vadd.f32 %v125, %v328
  %330 = vmatprep.mubr.f32.mxu0 0.0
  %331 = vmatmul.mubr.f32.gmra.mrb[0].mxu0 %v43
  %v332 = vpop.f32.mrb[0].mxu0
  %v333 = vadd.f32 %v121, %v332
  %v334 = vpop.f32.mrb[0].mxu0
  %v335 = vadd.f32 %v125, %v334
  %336 = vmatprep.mubr.f32.mxu0 0.0
  %337 = vmatmul.mubr.f32.gmra.mrb[0].mxu0 %v44
  %v338 = vpop.f32.mrb[0].mxu0
  %v339 = vadd.f32 %v121, %v338
  %v340 = vpop.f32.mrb[0].mxu0
  %v341 = vadd.f32 %v125, %v340
  %342 = vmatprep.mubr.f32.mxu0 0.0
  %343 = vmatmul.mubr.f32.gmra.mrb[0].mxu0 %v45
  %v344 = vpop.f32.mrb[0].mxu0
  %v345 = vadd.f32 %v121, %v344
  %v346 = vpop.f32.mrb[0].mxu0
  %v347 = vadd.f32 %v125, %v346
  %348 = vmatprep.mubr.f32.mxu0 0.0
  %349 = vmatmul.mubr.f32.gmra.mrb[0].mxu0 %v46
  %v350 = vpop.f32.mrb[0].mxu0
  %v351 = vadd.f32 %v121, %v350
  %v352 = vpop.f32.mrb[0].mxu0
  %v353 = vadd.f32 %v125, %v352
  %354 = vmatprep.mubr.f32.mxu0 0.0
  %355 = vmatmul.mubr.f32.gmra.mrb[0].mxu0 %v47
  %v356 = vpop.f32.mrb[0].mxu0
  %v357 = vadd.f32 %v121, %v356
  %v358 = vpop.f32.mrb[0].mxu0
  %v359 = vadd.f32 %v125, %v358
  %360 = vmatprep.mubr.f32.mxu0 0.0
  %361 = vmatmul.mubr.f32.gmra.mrb[0].mxu0 %v48
  %v362 = vpop.f32.mrb[0].mxu0
  %v363 = vadd.f32 %v121, %v362
  %v364 = vpop.f32.mrb[0].mxu0
  %v365 = vadd.f32 %v125, %v364
  %366 = vmatprep.mubr.f32.mxu0 0.0
  %367 = vmatmul.mubr.f32.gmra.mrb[0].mxu0 %v49
  %v368 = vpop.f32.mrb[0].mxu0
  %v369 = vadd.f32 %v121, %v368
  %v370 = vpop.f32.mrb[0].mxu0
  %v371 = vadd.f32 %v125, %v370
  %372 = vmatprep.mubr.f32.mxu0 0.0
  %373 = vmatmul.mubr.f32.gmra.mrb[0].mxu0 %v50
  %v374 = vpop.f32.mrb[0].mxu0
  %v375 = vadd.f32 %v121, %v374
  %v376 = vpop.f32.mrb[0].mxu0
  %v377 = vadd.f32 %v125, %v376
  %378 = vmatprep.mubr.f32.mxu0 0.0
  %379 = vmatmul.mubr.f32.gmra.mrb[0].mxu0 %v51
  %v380 = vpop.f32.mrb[0].mxu0
  %v381 = vadd.f32 %v121, %v380
  %v382 = vpop.f32.mrb[0].mxu0
  %v383 = vadd.f32 %v125, %v382
  %384 = vmatprep.mubr.f32.mxu0 0.0
  %385 = vmatmul.mubr.f32.gmra.mrb[0].mxu0 %v52
  %v386 = vpop.f32.mrb[0].mxu0
  %v387 = vadd.f32 %v121, %v386
  %v388 = vpop.f32.mrb[0].mxu0
  %v389 = vadd.f32 %v125, %v388
  %390 = vmatprep.mubr.f32.mxu0 0.0
  %391 = vmatmul.mubr.f32.gmra.mrb[0].mxu0 %v53
  %v392 = vpop.f32.mrb[0].mxu0
  %v393 = vadd.f32 %v121, %v392
  %v394 = vpop.f32.mrb[0].mxu0
  %v395 = vadd.f32 %v125, %v394
  %396 = vmatprep.mubr.f32.mxu0 0.0
  %397 = vmatmul.mubr.f32.gmra.mrb[0].mxu0 %v54
  %v398 = vpop.f32.mrb[0].mxu0
  %v399 = vadd.f32 %v121, %v398
  %v400 = vpop.f32.mrb[0].mxu0
  %v401 = vadd.f32 %v125, %v400
  %402 = vmatprep.mubr.f32.mxu0 0.0
  %403 = vmatmul.mubr.f32.gmra.mrb[0].mxu0 %v55
  %v404 = vpop.f32.mrb[0].mxu0
  %v405 = vadd.f32 %v121, %v404
  %v406 = vpop.f32.mrb[0].mxu0
  %v407 = vadd.f32 %v125, %v406
  %408 = vmatprep.mubr.f32.mxu0 0.0
  %409 = vmatmul.mubr.f32.gmra.mrb[0].mxu0 %v56
  %v410 = vpop.f32.mrb[0].mxu0
  %v411 = vadd.f32 %v121, %v410
  %v412 = vpop.f32.mrb[0].mxu0
  %v413 = vadd.f32 %v125, %v412
  %414 = vmatprep.mubr.f32.mxu0 0.0
  %415 = vmatmul.mubr.f32.gmra.mrb[0].mxu0 %v57
  %v416 = vpop.f32.mrb[0].mxu0
  %v417 = vadd.f32 %v121, %v416
  %v418 = vpop.f32.mrb[0].mxu0
  %v419 = vadd.f32 %v125, %v418
  %420 = vmatprep.mubr.f32.mxu0 0.0
  %421 = vmatmul.mubr.f32.gmra.mrb[0].mxu0 %v58
  %v422 = vpop.f32.mrb[0].mxu0
  %v423 = vadd.f32 %v121, %v422
  %v424 = vpop.f32.mrb[0].mxu0
  %v425 = vadd.f32 %v125, %v424
  %426 = vmatprep.mubr.f32.mxu0 0.0
  %427 = vmatmul.mubr.f32.gmra.mrb[0].mxu0 %v59
  %v428 = vpop.f32.mrb[0].mxu0
  %v429 = vadd.f32 %v121, %v428
  %v430 = vpop.f32.mrb[0].mxu0
  %v431 = vadd.f32 %v125, %v430
  %432 = vmatprep.mubr.f32.mxu0 0.0
  %433 = vmatmul.mubr.f32.gmra.mrb[0].mxu0 %v60
  %v434 = vpop.f32.mrb[0].mxu0
  %v435 = vadd.f32 %v121, %v434
  %v436 = vpop.f32.mrb[0].mxu0
  %v437 = vadd.f32 %v125, %v436
  %438 = vmatprep.mubr.f32.mxu0 0.0
  %439 = vmatmul.mubr.f32.gmra.mrb[0].mxu0 %v61
  %v440 = vpop.f32.mrb[0].mxu0
  %v441 = vadd.f32 %v121, %v440
  %v442 = vpop.f32.mrb[0].mxu0
  %v443 = vadd.f32 %v125, %v442
  %444 = vmatprep.mubr.f32.mxu0 0.0
  %445 = vmatmul.mubr.f32.gmra.mrb[0].mxu0 %v62
  %v446 = vpop.f32.mrb[0].mxu0
  %v447 = vadd.f32 %v121, %v446
  %v448 = vpop.f32.mrb[0].mxu0
  %v449 = vadd.f32 %v125, %v448
  %450 = vmatprep.mubr.f32.mxu0 0.0
  %451 = vmatmul.mubr.f32.gmra.mrb[0].mxu0 %v63
  %v452 = vpop.f32.mrb[0].mxu0
  %v453 = vadd.f32 %v121, %v452
  %v454 = vpop.f32.mrb[0].mxu0
  %v455 = vadd.f32 %v125, %v454
  %456 = vmatprep.mubr.f32.mxu0 0.0
  %457 = vmatmul.mubr.f32.gmra.mrb[0].mxu0 %v64
  %v458 = vpop.f32.mrb[0].mxu0
  %v459 = vadd.f32 %v121, %v458
  %v460 = vpop.f32.mrb[0].mxu0
  %v461 = vadd.f32 %v125, %v460
  %462 = vmatprep.mubr.f32.mxu0 0.0
  %463 = vmatmul.mubr.f32.gmra.mrb[0].mxu0 %v65
  %v464 = vpop.f32.mrb[0].mxu0
  %v465 = vadd.f32 %v121, %v464
  %v466 = vpop.f32.mrb[0].mxu0
  %v467 = vadd.f32 %v125, %v466
  %468 = vmatprep.mubr.f32.mxu0 0.0
  %469 = vmatmul.mubr.f32.gmra.mrb[0].mxu0 %v66
  %v470 = vpop.f32.mrb[0].mxu0
  %v471 = vadd.f32 %v121, %v470
  %v472 = vpop.f32.mrb[0].mxu0
  %v473 = vadd.f32 %v125, %v472
  %474 = vmatprep.mubr.f32.mxu0 0.0
  %475 = vmatmul.mubr.f32.gmra.mrb[0].mxu0 %v67
  %v476 = vpop.f32.mrb[0].mxu0
  %v477 = vadd.f32 %v121, %v476
  %v478 = vpop.f32.mrb[0].mxu0
  %v479 = vadd.f32 %v125, %v478
  %480 = vmatprep.mubr.f32.mxu0 0.0
  %481 = vmatmul.mubr.f32.gmra.mrb[0].mxu0 %v68
  %v482 = vpop.f32.mrb[0].mxu0
  %v483 = vadd.f32 %v121, %v482
  %v484 = vpop.f32.mrb[0].mxu0
  %v485 = vadd.f32 %v125, %v484
  %486 = vmatprep.mubr.f32.mxu0 0.0
  %487 = vmatmul.mubr.f32.gmra.mrb[0].mxu0 %v69
  %v488 = vpop.f32.mrb[0].mxu0
  %v489 = vadd.f32 %v121, %v488
  %v490 = vpop.f32.mrb[0].mxu0
  %v491 = vadd.f32 %v125, %v490
  %492 = vmatprep.mubr.f32.mxu0 0.0
  %493 = vmatmul.mubr.f32.gmra.mrb[0].mxu0 %v70
  %v494 = vpop.f32.mrb[0].mxu0
  %v495 = vadd.f32 %v121, %v494
  %v496 = vpop.f32.mrb[0].mxu0
  %v497 = vadd.f32 %v125, %v496
  %498 = vmatprep.mubr.f32.mxu0 0.0
  %499 = vmatmul.mubr.f32.gmra.mrb[0].mxu0 %v71
  %v500 = vpop.f32.mrb[0].mxu0
  %v501 = vadd.f32 %v121, %v500
  %v502 = vpop.f32.mrb[0].mxu0
  %v503 = vadd.f32 %v125, %v502
  %504 = vmatprep.mubr.f32.mxu0 0.0
  %505 = vmatmul.mubr.f32.gmra.mrb[0].mxu0 %v72
  %v506 = vpop.f32.mrb[0].mxu0
  %v507 = vadd.f32 %v121, %v506
  %v508 = vpop.f32.mrb[0].mxu0
  %v509 = vadd.f32 %v125, %v508
  %510 = vmatprep.mubr.f32.mxu0 0.0
  %511 = vmatmul.mubr.f32.gmra.mrb[0].mxu0 %v73
  %v512 = vpop.f32.mrb[0].mxu0
  %v513 = vadd.f32 %v121, %v512
  %v514 = vpop.f32.mrb[0].mxu0
  %v515 = vadd.f32 %v125, %v514
  %516 = vmatprep.mubr.f32.mxu0 0.0
  %517 = vmatmul.mubr.f32.gmra.mrb[0].mxu0 %v74
  %v518 = vpop.f32.mrb[0].mxu0
  %v519 = vadd.f32 %v121, %v518
  %v520 = vpop.f32.mrb[0].mxu0
  %v521 = vadd.f32 %v125, %v520
  %522 = vmatprep.mubr.f32.mxu0 0.0
  %523 = vmatmul.mubr.f32.gmra.mrb[0].mxu0 %v75
  %v524 = vpop.f32.mrb[0].mxu0
  %v525 = vadd.f32 %v121, %v524
  %v526 = vpop.f32.mrb[0].mxu0
  %v527 = vadd.f32 %v125, %v526
  %528 = vmatprep.mubr.f32.mxu0 0.0
  %529 = vmatmul.mubr.f32.gmra.mrb[0].mxu0 %v76
  %v530 = vpop.f32.mrb[0].mxu0
  %v531 = vadd.f32 %v121, %v530
  %v532 = vpop.f32.mrb[0].mxu0
  %v533 = vadd.f32 %v125, %v532
  %534 = vmatprep.mubr.f32.mxu0 0.0
  %535 = vmatmul.mubr.f32.gmra.mrb[0].mxu0 %v77
  %v536 = vpop.f32.mrb[0].mxu0
  %v537 = vadd.f32 %v121, %v536
  %v538 = vpop.f32.mrb[0].mxu0
  %v539 = vadd.f32 %v125, %v538
  %540 = vmatprep.mubr.f32.mxu0 0.0
  %541 = vmatmul.mubr.f32.gmra.mrb[0].mxu0 %v78
  %v542 = vpop.f32.mrb[0].mxu0
  %v543 = vadd.f32 %v121, %v542
  %v544 = vpop.f32.mrb[0].mxu0
  %v545 = vadd.f32 %v125, %v544
  %546 = vmatprep.mubr.f32.mxu0 0.0
  %547 = vmatmul.mubr.f32.gmra.mrb[0].mxu0 %v79
  %v548 = vpop.f32.mrb[0].mxu0
  %v549 = vadd.f32 %v121, %v548
  %v550 = vpop.f32.mrb[0].mxu0
  %v551 = vadd.f32 %v125, %v550
  %552 = vmatprep.mubr.f32.mxu0 0.0
  %553 = vmatmul.mubr.f32.gmra.mrb[0].mxu0 %v80
  %v554 = vpop.f32.mrb[0].mxu0
  %v555 = vadd.f32 %v121, %v554
  %v556 = vpop.f32.mrb[0].mxu0
  %v557 = vadd.f32 %v125, %v556
  %558 = vmatprep.mubr.f32.mxu0 0.0
  %559 = vmatmul.mubr.f32.gmra.mrb[0].mxu0 %v81
  %v560 = vpop.f32.mrb[0].mxu0
  %v561 = vadd.f32 %v121, %v560
  %v562 = vpop.f32.mrb[0].mxu0
  %v563 = vadd.f32 %v125, %v562
  %564 = vmatprep.mubr.f32.mxu0 0.0
  %565 = vmatmul.mubr.f32.gmra.mrb[0].mxu0 %v82
  %v566 = vpop.f32.mrb[0].mxu0
  %v567 = vadd.f32 %v121, %v566
  %v568 = vpop.f32.mrb[0].mxu0
  %v569 = vadd.f32 %v125, %v568
  %570 = vmatprep.mubr.f32.mxu0 0.0
  %571 = vmatmul.mubr.f32.gmra.mrb[0].mxu0 %v83
  %v572 = vpop.f32.mrb[0].mxu0
  %v573 = vadd.f32 %v121, %v572
  %v574 = vpop.f32.mrb[0].mxu0
  %v575 = vadd.f32 %v125, %v574
  %576 = vdwg.mxu0
  %v577 = vmax.f32 %v195, 0.0
  %v578 = vmax.f32 %v197, 0.0
  %v579 = vmax.f32 %v201, 0.0
  %v580 = vmax.f32 %v203, 0.0
  %v581 = vmax.f32 %v207, 0.0
  %v582 = vmax.f32 %v209, 0.0
  %v583 = vmax.f32 %v213, 0.0
  %v584 = vmax.f32 %v215, 0.0
  %v585 = vmax.f32 %v219, 0.0
  %v586 = vmax.f32 %v221, 0.0
  %v587 = vmax.f32 %v225, 0.0
  %v588 = vmax.f32 %v227, 0.0
  %v589 = vmax.f32 %v231, 0.0
  %v590 = vmax.f32 %v233, 0.0
  %v591 = vmax.f32 %v237, 0.0
  %v592 = vmax.f32 %v239, 0.0
  %v593 = vmax.f32 %v243, 0.0
  %v594 = vmax.f32 %v245, 0.0
  %v595 = vmax.f32 %v249, 0.0
  %v596 = vmax.f32 %v251, 0.0
  %v597 = vmax.f32 %v255, 0.0
  %v598 = vmax.f32 %v257, 0.0
  %v599 = vmax.f32 %v261, 0.0
  %v600 = vmax.f32 %v263, 0.0
  %v601 = vmax.f32 %v267, 0.0
  %v602 = vmax.f32 %v269, 0.0
  %v603 = vmax.f32 %v273, 0.0
  %v604 = vmax.f32 %v275, 0.0
  %v605 = vmax.f32 %v279, 0.0
  %v606 = vmax.f32 %v281, 0.0
  %v607 = vmax.f32 %v285, 0.0
  %v608 = vmax.f32 %v287, 0.0
  %v609 = vmax.f32 %v291, 0.0
  %v610 = vmax.f32 %v293, 0.0
  %v611 = vmax.f32 %v297, 0.0
  %v612 = vmax.f32 %v299, 0.0
  %v613 = vmax.f32 %v303, 0.0
  %v614 = vmax.f32 %v305, 0.0
  %v615 = vmax.f32 %v309, 0.0
  %v616 = vmax.f32 %v311, 0.0
  %v617 = vmax.f32 %v315, 0.0
  %v618 = vmax.f32 %v317, 0.0
  %v619 = vmax.f32 %v321, 0.0
  %v620 = vmax.f32 %v323, 0.0
  %v621 = vmax.f32 %v327, 0.0
  %v622 = vmax.f32 %v329, 0.0
  %v623 = vmax.f32 %v333, 0.0
  %v624 = vmax.f32 %v335, 0.0
  %v625 = vmax.f32 %v339, 0.0
  %v626 = vmax.f32 %v341, 0.0
  %v627 = vmax.f32 %v345, 0.0
  %v628 = vmax.f32 %v347, 0.0
  %v629 = vmax.f32 %v351, 0.0
  %v630 = vmax.f32 %v353, 0.0
  %v631 = vmax.f32 %v357, 0.0
  %v632 = vmax.f32 %v359, 0.0
  %v633 = vmax.f32 %v363, 0.0
  %v634 = vmax.f32 %v365, 0.0
  %v635 = vmax.f32 %v369, 0.0
  %v636 = vmax.f32 %v371, 0.0
  %v637 = vmax.f32 %v375, 0.0
  %v638 = vmax.f32 %v377, 0.0
  %v639 = vmax.f32 %v381, 0.0
  %v640 = vmax.f32 %v383, 0.0
  %v641 = vmax.f32 %v387, 0.0
  %v642 = vmax.f32 %v389, 0.0
  %v643 = vmax.f32 %v393, 0.0
  %v644 = vmax.f32 %v395, 0.0
  %v645 = vmax.f32 %v399, 0.0
  %v646 = vmax.f32 %v401, 0.0
  %v647 = vmax.f32 %v405, 0.0
  %v648 = vmax.f32 %v407, 0.0
  %v649 = vmax.f32 %v411, 0.0
  %v650 = vmax.f32 %v413, 0.0
  %v651 = vmax.f32 %v417, 0.0
  %v652 = vmax.f32 %v419, 0.0
  %v653 = vmax.f32 %v423, 0.0
  %v654 = vmax.f32 %v425, 0.0
  %v655 = vmax.f32 %v429, 0.0
  %v656 = vmax.f32 %v431, 0.0
  %v657 = vmax.f32 %v435, 0.0
  %v658 = vmax.f32 %v437, 0.0
  %v659 = vmax.f32 %v441, 0.0
  %v660 = vmax.f32 %v443, 0.0
  %v661 = vmax.f32 %v447, 0.0
  %v662 = vmax.f32 %v449, 0.0
  %v663 = vmax.f32 %v453, 0.0
  %v664 = vmax.f32 %v455, 0.0
  %v665 = vmax.f32 %v459, 0.0
  %v666 = vmax.f32 %v461, 0.0
  %v667 = vmax.f32 %v465, 0.0
  %v668 = vmax.f32 %v467, 0.0
  %v669 = vmax.f32 %v471, 0.0
  %v670 = vmax.f32 %v473, 0.0
  %v671 = vmax.f32 %v477, 0.0
  %v672 = vmax.f32 %v479, 0.0
  %v673 = vmax.f32 %v483, 0.0
  %v674 = vmax.f32 %v485, 0.0
  %v675 = vmax.f32 %v489, 0.0
  %v676 = vmax.f32 %v491, 0.0
  %v677 = vmax.f32 %v495, 0.0
  %v678 = vmax.f32 %v497, 0.0
  %v679 = vmax.f32 %v501, 0.0
  %v680 = vmax.f32 %v503, 0.0
  %v681 = vmax.f32 %v507, 0.0
  %v682 = vmax.f32 %v509, 0.0
  %v683 = vmax.f32 %v513, 0.0
  %v684 = vmax.f32 %v515, 0.0
  %v685 = vmax.f32 %v519, 0.0
  %v686 = vmax.f32 %v521, 0.0
  %v687 = vmax.f32 %v525, 0.0
  %v688 = vmax.f32 %v527, 0.0
  %v689 = vmax.f32 %v531, 0.0
  %v690 = vmax.f32 %v533, 0.0
  %v691 = vmax.f32 %v537, 0.0
  %v692 = vmax.f32 %v539, 0.0
  %v693 = vmax.f32 %v543, 0.0
  %v694 = vmax.f32 %v545, 0.0
  %v695 = vmax.f32 %v549, 0.0
  %v696 = vmax.f32 %v551, 0.0
  %v697 = vmax.f32 %v555, 0.0
  %v698 = vmax.f32 %v557, 0.0
  %v699 = vmax.f32 %v561, 0.0
  %v700 = vmax.f32 %v563, 0.0
  %v701 = vmax.f32 %v567, 0.0
  %v702 = vmax.f32 %v569, 0.0
  %v703 = vmax.f32 %v573, 0.0
  %v704 = vmax.f32 %v575, 0.0
  %v705 = vld [vmem:[%s3] sm:$0xff]
  %v706 = vld [vmem:[%s3 + $0x8] sm:$0xff]
  %v707 = vld [vmem:[%s3 + $0x10] sm:$0xff]
  %v708 = vld [vmem:[%s3 + $0x18] sm:$0xff]
  %v709 = vld [vmem:[%s3 + $0x20] sm:$0xff]
  %v710 = vld [vmem:[%s3 + $0x28] sm:$0xff]
  %v711 = vld [vmem:[%s3 + $0x30] sm:$0xff]
  %v712 = vld [vmem:[%s3 + $0x38] sm:$0xff]
  %v713 = vld [vmem:[%s3 + $0x40] sm:$0xff]
  %v714 = vld [vmem:[%s3 + $0x48] sm:$0xff]
  %v715 = vld [vmem:[%s3 + $0x50] sm:$0xff]
  %v716 = vld [vmem:[%s3 + $0x58] sm:$0xff]
  %v717 = vld [vmem:[%s3 + $0x60] sm:$0xff]
  %v718 = vld [vmem:[%s3 + $0x68] sm:$0xff]
  %v719 = vld [vmem:[%s3 + $0x70] sm:$0xff]
  %v720 = vld [vmem:[%s3 + $0x78] sm:$0xff]
  %v721 = vld [vmem:[%s3 + $0x80] sm:$0xff]
  %v722 = vld [vmem:[%s3 + $0x88] sm:$0xff]
  %v723 = vld [vmem:[%s3 + $0x90] sm:$0xff]
  %v724 = vld [vmem:[%s3 + $0x98] sm:$0xff]
  %v725 = vld [vmem:[%s3 + $0xa0] sm:$0xff]
  %v726 = vld [vmem:[%s3 + $0xa8] sm:$0xff]
  %v727 = vld [vmem:[%s3 + $0xb0] sm:$0xff]
  %v728 = vld [vmem:[%s3 + $0xb8] sm:$0xff]
  %v729 = vld [vmem:[%s3 + $0xc0] sm:$0xff]
  %v730 = vld [vmem:[%s3 + $0xc8] sm:$0xff]
  %v731 = vld [vmem:[%s3 + $0xd0] sm:$0xff]
  %v732 = vld [vmem:[%s3 + $0xd8] sm:$0xff]
  %v733 = vld [vmem:[%s3 + $0xe0] sm:$0xff]
  %v734 = vld [vmem:[%s3 + $0xe8] sm:$0xff]
  %v735 = vld [vmem:[%s3 + $0xf0] sm:$0xff]
  %v736 = vld [vmem:[%s3 + $0xf8] sm:$0xff]
  %v737 = vld [vmem:[%s4] sm:$0x1]
  %v739 = vlaneseq
  %v740 = vshrl.u32 %v739, 7
  %v741 = vsub.s32 0, %v740
  %v742 = vrot.slane %v737, %v741
  %744 = vmatprep.subr.mxu0 0.0
  %745 = vmatpush1.msra.mxu0 %v705
  %746 = vmatprep.subr.mxu0 0.0
  %747 = vmatpush1.msra.mxu0 %v706
  %748 = vmatprep.subr.mxu0 0.0
  %749 = vmatpush1.msra.mxu0 %v707
  %750 = vmatprep.subr.mxu0 0.0
  %751 = vmatpush1.msra.mxu0 %v708
  %752 = vmatprep.subr.mxu0 0.0
  %753 = vmatpush1.msra.mxu0 %v709
  %754 = vmatprep.subr.mxu0 0.0
  %755 = vmatpush1.msra.mxu0 %v710
  %756 = vmatprep.subr.mxu0 0.0
  %757 = vmatpush1.msra.mxu0 %v711
  %758 = vmatprep.subr.mxu0 0.0
  %759 = vmatpush1.msra.mxu0 %v712
  %760 = vmatprep.subr.mxu0 0.0
  %761 = vmatpush1.msra.mxu0 %v713
  %762 = vmatprep.subr.mxu0 0.0
  %763 = vmatpush1.msra.mxu0 %v714
  %764 = vmatprep.subr.mxu0 0.0
  %765 = vmatpush1.msra.mxu0 %v715
  %766 = vmatprep.subr.mxu0 0.0
  %767 = vmatpush1.msra.mxu0 %v716
  %768 = vmatprep.subr.mxu0 0.0
  %769 = vmatpush1.msra.mxu0 %v717
  %770 = vmatprep.subr.mxu0 0.0
  %771 = vmatpush1.msra.mxu0 %v718
  %772 = vmatprep.subr.mxu0 0.0
  %773 = vmatpush1.msra.mxu0 %v719
  %774 = vmatprep.subr.mxu0 0.0
  %775 = vmatpush1.msra.mxu0 %v720
  %776 = vmatprep.subr.mxu0 0.0
  %777 = vmatpush1.msra.mxu0 %v721
  %778 = vmatprep.subr.mxu0 0.0
  %779 = vmatpush1.msra.mxu0 %v722
  %780 = vmatprep.subr.mxu0 0.0
  %781 = vmatpush1.msra.mxu0 %v723
  %782 = vmatprep.subr.mxu0 0.0
  %783 = vmatpush1.msra.mxu0 %v724
  %784 = vmatprep.subr.mxu0 0.0
  %785 = vmatpush1.msra.mxu0 %v725
  %786 = vmatprep.subr.mxu0 0.0
  %787 = vmatpush1.msra.mxu0 %v726
  %788 = vmatprep.subr.mxu0 0.0
  %789 = vmatpush1.msra.mxu0 %v727
  %790 = vmatprep.subr.mxu0 0.0
  %791 = vmatpush1.msra.mxu0 %v728
  %792 = vmatprep.subr.mxu0 0.0
  %793 = vmatpush1.msra.mxu0 %v729
  %794 = vmatprep.subr.mxu0 0.0
  %795 = vmatpush1.msra.mxu0 %v730
  %796 = vmatprep.subr.mxu0 0.0
  %797 = vmatpush1.msra.mxu0 %v731
  %798 = vmatprep.subr.mxu0 0.0
  %799 = vmatpush1.msra.mxu0 %v732
  %800 = vmatprep.subr.mxu0 0.0
  %801 = vmatpush1.msra.mxu0 %v733
  %802 = vmatprep.subr.mxu0 0.0
  %803 = vmatpush1.msra.mxu0 %v734
  %804 = vmatprep.subr.mxu0 0.0
  %805 = vmatpush1.msra.mxu0 %v735
  %806 = vmatprep.subr.mxu0 0.0
  %807 = vmatpush1.msra.mxu0 %v736
  %808 = vmatprep.mubr.f32.mxu0 %v578
  %809 = vmatmul.mubr.f32.gmra.mrb[0].mxu0 %v577
  %v810 = vpop.f32.mrb[0].mxu0
  %v811 = vadd.f32 %v742, %v810
  %v812 = vpop.f32.mrb[0].mxu0
  %813 = vmatprep.mubr.f32.mxu0 %v580
  %814 = vmatmul.mubr.f32.gmra.mrb[0].mxu0 %v579
  %v815 = vpop.f32.mrb[0].mxu0
  %v816 = vadd.f32 %v742, %v815
  %v817 = vpop.f32.mrb[0].mxu0
  %818 = vmatprep.mubr.f32.mxu0 %v582
  %819 = vmatmul.mubr.f32.gmra.mrb[0].mxu0 %v581
  %v820 = vpop.f32.mrb[0].mxu0
  %v821 = vadd.f32 %v742, %v820
  %v822 = vpop.f32.mrb[0].mxu0
  %823 = vmatprep.mubr.f32.mxu0 %v584
  %824 = vmatmul.mubr.f32.gmra.mrb[0].mxu0 %v583
  %v825 = vpop.f32.mrb[0].mxu0
  %v826 = vadd.f32 %v742, %v825
  %v827 = vpop.f32.mrb[0].mxu0
  %828 = vmatprep.mubr.f32.mxu0 %v586
  %829 = vmatmul.mubr.f32.gmra.mrb[0].mxu0 %v585
  %v830 = vpop.f32.mrb[0].mxu0
  %v831 = vadd.f32 %v742, %v830
  %v832 = vpop.f32.mrb[0].mxu0
  %833 = vmatprep.mubr.f32.mxu0 %v588
  %834 = vmatmul.mubr.f32.gmra.mrb[0].mxu0 %v587
  %v835 = vpop.f32.mrb[0].mxu0
  %v836 = vadd.f32 %v742, %v835
  %v837 = vpop.f32.mrb[0].mxu0
  %838 = vmatprep.mubr.f32.mxu0 %v590
  %839 = vmatmul.mubr.f32.gmra.mrb[0].mxu0 %v589
  %v840 = vpop.f32.mrb[0].mxu0
  %v841 = vadd.f32 %v742, %v840
  %v842 = vpop.f32.mrb[0].mxu0
  %843 = vmatprep.mubr.f32.mxu0 %v592
  %844 = vmatmul.mubr.f32.gmra.mrb[0].mxu0 %v591
  %v845 = vpop.f32.mrb[0].mxu0
  %v846 = vadd.f32 %v742, %v845
  %v847 = vpop.f32.mrb[0].mxu0
  %848 = vmatprep.mubr.f32.mxu0 %v594
  %849 = vmatmul.mubr.f32.gmra.mrb[0].mxu0 %v593
  %v850 = vpop.f32.mrb[0].mxu0
  %v851 = vadd.f32 %v742, %v850
  %v852 = vpop.f32.mrb[0].mxu0
  %853 = vmatprep.mubr.f32.mxu0 %v596
  %854 = vmatmul.mubr.f32.gmra.mrb[0].mxu0 %v595
  %v855 = vpop.f32.mrb[0].mxu0
  %v856 = vadd.f32 %v742, %v855
  %v857 = vpop.f32.mrb[0].mxu0
  %858 = vmatprep.mubr.f32.mxu0 %v598
  %859 = vmatmul.mubr.f32.gmra.mrb[0].mxu0 %v597
  %v860 = vpop.f32.mrb[0].mxu0
  %v861 = vadd.f32 %v742, %v860
  %v862 = vpop.f32.mrb[0].mxu0
  %863 = vmatprep.mubr.f32.mxu0 %v600
  %864 = vmatmul.mubr.f32.gmra.mrb[0].mxu0 %v599
  %v865 = vpop.f32.mrb[0].mxu0
  %v866 = vadd.f32 %v742, %v865
  %v867 = vpop.f32.mrb[0].mxu0
  %868 = vmatprep.mubr.f32.mxu0 %v602
  %869 = vmatmul.mubr.f32.gmra.mrb[0].mxu0 %v601
  %v870 = vpop.f32.mrb[0].mxu0
  %v871 = vadd.f32 %v742, %v870
  %v872 = vpop.f32.mrb[0].mxu0
  %873 = vmatprep.mubr.f32.mxu0 %v604
  %874 = vmatmul.mubr.f32.gmra.mrb[0].mxu0 %v603
  %v875 = vpop.f32.mrb[0].mxu0
  %v876 = vadd.f32 %v742, %v875
  %v877 = vpop.f32.mrb[0].mxu0
  %878 = vmatprep.mubr.f32.mxu0 %v606
  %879 = vmatmul.mubr.f32.gmra.mrb[0].mxu0 %v605
  %v880 = vpop.f32.mrb[0].mxu0
  %v881 = vadd.f32 %v742, %v880
  %v882 = vpop.f32.mrb[0].mxu0
  %883 = vmatprep.mubr.f32.mxu0 %v608
  %884 = vmatmul.mubr.f32.gmra.mrb[0].mxu0 %v607
  %v885 = vpop.f32.mrb[0].mxu0
  %v886 = vadd.f32 %v742, %v885
  %v887 = vpop.f32.mrb[0].mxu0
  %888 = vmatprep.mubr.f32.mxu0 %v610
  %889 = vmatmul.mubr.f32.gmra.mrb[0].mxu0 %v609
  %v890 = vpop.f32.mrb[0].mxu0
  %v891 = vadd.f32 %v742, %v890
  %v892 = vpop.f32.mrb[0].mxu0
  %893 = vmatprep.mubr.f32.mxu0 %v612
  %894 = vmatmul.mubr.f32.gmra.mrb[0].mxu0 %v611
  %v895 = vpop.f32.mrb[0].mxu0
  %v896 = vadd.f32 %v742, %v895
  %v897 = vpop.f32.mrb[0].mxu0
  %898 = vmatprep.mubr.f32.mxu0 %v614
  %899 = vmatmul.mubr.f32.gmra.mrb[0].mxu0 %v613
  %v900 = vpop.f32.mrb[0].mxu0
  %v901 = vadd.f32 %v742, %v900
  %v902 = vpop.f32.mrb[0].mxu0
  %903 = vmatprep.mubr.f32.mxu0 %v616
  %904 = vmatmul.mubr.f32.gmra.mrb[0].mxu0 %v615
  %v905 = vpop.f32.mrb[0].mxu0
  %v906 = vadd.f32 %v742, %v905
  %v907 = vpop.f32.mrb[0].mxu0
  %908 = vmatprep.mubr.f32.mxu0 %v618
  %909 = vmatmul.mubr.f32.gmra.mrb[0].mxu0 %v617
  %v910 = vpop.f32.mrb[0].mxu0
  %v911 = vadd.f32 %v742, %v910
  %v912 = vpop.f32.mrb[0].mxu0
  %913 = vmatprep.mubr.f32.mxu0 %v620
  %914 = vmatmul.mubr.f32.gmra.mrb[0].mxu0 %v619
  %v915 = vpop.f32.mrb[0].mxu0
  %v916 = vadd.f32 %v742, %v915
  %v917 = vpop.f32.mrb[0].mxu0
  %918 = vmatprep.mubr.f32.mxu0 %v622
  %919 = vmatmul.mubr.f32.gmra.mrb[0].mxu0 %v621
  %v920 = vpop.f32.mrb[0].mxu0
  %v921 = vadd.f32 %v742, %v920
  %v922 = vpop.f32.mrb[0].mxu0
  %923 = vmatprep.mubr.f32.mxu0 %v624
  %924 = vmatmul.mubr.f32.gmra.mrb[0].mxu0 %v623
  %v925 = vpop.f32.mrb[0].mxu0
  %v926 = vadd.f32 %v742, %v925
  %v927 = vpop.f32.mrb[0].mxu0
  %928 = vmatprep.mubr.f32.mxu0 %v626
  %929 = vmatmul.mubr.f32.gmra.mrb[0].mxu0 %v625
  %v930 = vpop.f32.mrb[0].mxu0
  %v931 = vadd.f32 %v742, %v930
  %v932 = vpop.f32.mrb[0].mxu0
  %933 = vmatprep.mubr.f32.mxu0 %v628
  %934 = vmatmul.mubr.f32.gmra.mrb[0].mxu0 %v627
  %v935 = vpop.f32.mrb[0].mxu0
  %v936 = vadd.f32 %v742, %v935
  %v937 = vpop.f32.mrb[0].mxu0
  %938 = vmatprep.mubr.f32.mxu0 %v630
  %939 = vmatmul.mubr.f32.gmra.mrb[0].mxu0 %v629
  %v940 = vpop.f32.mrb[0].mxu0
  %v941 = vadd.f32 %v742, %v940
  %v942 = vpop.f32.mrb[0].mxu0
  %943 = vmatprep.mubr.f32.mxu0 %v632
  %944 = vmatmul.mubr.f32.gmra.mrb[0].mxu0 %v631
  %v945 = vpop.f32.mrb[0].mxu0
  %v946 = vadd.f32 %v742, %v945
  %v947 = vpop.f32.mrb[0].mxu0
  %948 = vmatprep.mubr.f32.mxu0 %v634
  %949 = vmatmul.mubr.f32.gmra.mrb[0].mxu0 %v633
  %v950 = vpop.f32.mrb[0].mxu0
  %v951 = vadd.f32 %v742, %v950
  %v952 = vpop.f32.mrb[0].mxu0
  %953 = vmatprep.mubr.f32.mxu0 %v636
  %954 = vmatmul.mubr.f32.gmra.mrb[0].mxu0 %v635
  %v955 = vpop.f32.mrb[0].mxu0
  %v956 = vadd.f32 %v742, %v955
  %v957 = vpop.f32.mrb[0].mxu0
  %958 = vmatprep.mubr.f32.mxu0 %v638
  %959 = vmatmul.mubr.f32.gmra.mrb[0].mxu0 %v637
  %v960 = vpop.f32.mrb[0].mxu0
  %v961 = vadd.f32 %v742, %v960
  %v962 = vpop.f32.mrb[0].mxu0
  %963 = vmatprep.mubr.f32.mxu0 %v640
  %964 = vmatmul.mubr.f32.gmra.mrb[0].mxu0 %v639
  %v965 = vpop.f32.mrb[0].mxu0
  %v966 = vadd.f32 %v742, %v965
  %v967 = vpop.f32.mrb[0].mxu0
  %968 = vmatprep.mubr.f32.mxu0 %v642
  %969 = vmatmul.mubr.f32.gmra.mrb[0].mxu0 %v641
  %v970 = vpop.f32.mrb[0].mxu0
  %v971 = vadd.f32 %v742, %v970
  %v972 = vpop.f32.mrb[0].mxu0
  %973 = vmatprep.mubr.f32.mxu0 %v644
  %974 = vmatmul.mubr.f32.gmra.mrb[0].mxu0 %v643
  %v975 = vpop.f32.mrb[0].mxu0
  %v976 = vadd.f32 %v742, %v975
  %v977 = vpop.f32.mrb[0].mxu0
  %978 = vmatprep.mubr.f32.mxu0 %v646
  %979 = vmatmul.mubr.f32.gmra.mrb[0].mxu0 %v645
  %v980 = vpop.f32.mrb[0].mxu0
  %v981 = vadd.f32 %v742, %v980
  %v982 = vpop.f32.mrb[0].mxu0
  %983 = vmatprep.mubr.f32.mxu0 %v648
  %984 = vmatmul.mubr.f32.gmra.mrb[0].mxu0 %v647
  %v985 = vpop.f32.mrb[0].mxu0
  %v986 = vadd.f32 %v742, %v985
  %v987 = vpop.f32.mrb[0].mxu0
  %988 = vmatprep.mubr.f32.mxu0 %v650
  %989 = vmatmul.mubr.f32.gmra.mrb[0].mxu0 %v649
  %v990 = vpop.f32.mrb[0].mxu0
  %v991 = vadd.f32 %v742, %v990
  %v992 = vpop.f32.mrb[0].mxu0
  %993 = vmatprep.mubr.f32.mxu0 %v652
  %994 = vmatmul.mubr.f32.gmra.mrb[0].mxu0 %v651
  %v995 = vpop.f32.mrb[0].mxu0
  %v996 = vadd.f32 %v742, %v995
  %v997 = vpop.f32.mrb[0].mxu0
  %998 = vmatprep.mubr.f32.mxu0 %v654
  %999 = vmatmul.mubr.f32.gmra.mrb[0].mxu0 %v653
  %v1000 = vpop.f32.mrb[0].mxu0
  %v1001 = vadd.f32 %v742, %v1000
  %v1002 = vpop.f32.mrb[0].mxu0
  %1003 = vmatprep.mubr.f32.mxu0 %v656
  %1004 = vmatmul.mubr.f32.gmra.mrb[0].mxu0 %v655
  %v1005 = vpop.f32.mrb[0].mxu0
  %v1006 = vadd.f32 %v742, %v1005
  %v1007 = vpop.f32.mrb[0].mxu0
  %1008 = vmatprep.mubr.f32.mxu0 %v658
  %1009 = vmatmul.mubr.f32.gmra.mrb[0].mxu0 %v657
  %v1010 = vpop.f32.mrb[0].mxu0
  %v1011 = vadd.f32 %v742, %v1010
  %v1012 = vpop.f32.mrb[0].mxu0
  %1013 = vmatprep.mubr.f32.mxu0 %v660
  %1014 = vmatmul.mubr.f32.gmra.mrb[0].mxu0 %v659
  %v1015 = vpop.f32.mrb[0].mxu0
  %v1016 = vadd.f32 %v742, %v1015
  %v1017 = vpop.f32.mrb[0].mxu0
  %1018 = vmatprep.mubr.f32.mxu0 %v662
  %1019 = vmatmul.mubr.f32.gmra.mrb[0].mxu0 %v661
  %v1020 = vpop.f32.mrb[0].mxu0
  %v1021 = vadd.f32 %v742, %v1020
  %v1022 = vpop.f32.mrb[0].mxu0
  %1023 = vmatprep.mubr.f32.mxu0 %v664
  %1024 = vmatmul.mubr.f32.gmra.mrb[0].mxu0 %v663
  %v1025 = vpop.f32.mrb[0].mxu0
  %v1026 = vadd.f32 %v742, %v1025
  %v1027 = vpop.f32.mrb[0].mxu0
  %1028 = vmatprep.mubr.f32.mxu0 %v666
  %1029 = vmatmul.mubr.f32.gmra.mrb[0].mxu0 %v665
  %v1030 = vpop.f32.mrb[0].mxu0
  %v1031 = vadd.f32 %v742, %v1030
  %v1032 = vpop.f32.mrb[0].mxu0
  %1033 = vmatprep.mubr.f32.mxu0 %v668
  %1034 = vmatmul.mubr.f32.gmra.mrb[0].mxu0 %v667
  %v1035 = vpop.f32.mrb[0].mxu0
  %v1036 = vadd.f32 %v742, %v1035
  %v1037 = vpop.f32.mrb[0].mxu0
  %1038 = vmatprep.mubr.f32.mxu0 %v670
  %1039 = vmatmul.mubr.f32.gmra.mrb[0].mxu0 %v669
  %v1040 = vpop.f32.mrb[0].mxu0
  %v1041 = vadd.f32 %v742, %v1040
  %v1042 = vpop.f32.mrb[0].mxu0
  %1043 = vmatprep.mubr.f32.mxu0 %v672
  %1044 = vmatmul.mubr.f32.gmra.mrb[0].mxu0 %v671
  %v1045 = vpop.f32.mrb[0].mxu0
  %v1046 = vadd.f32 %v742, %v1045
  %v1047 = vpop.f32.mrb[0].mxu0
  %1048 = vmatprep.mubr.f32.mxu0 %v674
  %1049 = vmatmul.mubr.f32.gmra.mrb[0].mxu0 %v673
  %v1050 = vpop.f32.mrb[0].mxu0
  %v1051 = vadd.f32 %v742, %v1050
  %v1052 = vpop.f32.mrb[0].mxu0
  %1053 = vmatprep.mubr.f32.mxu0 %v676
  %1054 = vmatmul.mubr.f32.gmra.mrb[0].mxu0 %v675
  %v1055 = vpop.f32.mrb[0].mxu0
  %v1056 = vadd.f32 %v742, %v1055
  %v1057 = vpop.f32.mrb[0].mxu0
  %1058 = vmatprep.mubr.f32.mxu0 %v678
  %1059 = vmatmul.mubr.f32.gmra.mrb[0].mxu0 %v677
  %v1060 = vpop.f32.mrb[0].mxu0
  %v1061 = vadd.f32 %v742, %v1060
  %v1062 = vpop.f32.mrb[0].mxu0
  %1063 = vmatprep.mubr.f32.mxu0 %v680
  %1064 = vmatmul.mubr.f32.gmra.mrb[0].mxu0 %v679
  %v1065 = vpop.f32.mrb[0].mxu0
  %v1066 = vadd.f32 %v742, %v1065
  %v1067 = vpop.f32.mrb[0].mxu0
  %1068 = vmatprep.mubr.f32.mxu0 %v682
  %1069 = vmatmul.mubr.f32.gmra.mrb[0].mxu0 %v681
  %v1070 = vpop.f32.mrb[0].mxu0
  %v1071 = vadd.f32 %v742, %v1070
  %v1072 = vpop.f32.mrb[0].mxu0
  %1073 = vmatprep.mubr.f32.mxu0 %v684
  %1074 = vmatmul.mubr.f32.gmra.mrb[0].mxu0 %v683
  %v1075 = vpop.f32.mrb[0].mxu0
  %v1076 = vadd.f32 %v742, %v1075
  %v1077 = vpop.f32.mrb[0].mxu0
  %1078 = vmatprep.mubr.f32.mxu0 %v686
  %1079 = vmatmul.mubr.f32.gmra.mrb[0].mxu0 %v685
  %v1080 = vpop.f32.mrb[0].mxu0
  %v1081 = vadd.f32 %v742, %v1080
  %v1082 = vpop.f32.mrb[0].mxu0
  %1083 = vmatprep.mubr.f32.mxu0 %v688
  %1084 = vmatmul.mubr.f32.gmra.mrb[0].mxu0 %v687
  %v1085 = vpop.f32.mrb[0].mxu0
  %v1086 = vadd.f32 %v742, %v1085
  %v1087 = vpop.f32.mrb[0].mxu0
  %1088 = vmatprep.mubr.f32.mxu0 %v690
  %1089 = vmatmul.mubr.f32.gmra.mrb[0].mxu0 %v689
  %v1090 = vpop.f32.mrb[0].mxu0
  %v1091 = vadd.f32 %v742, %v1090
  %v1092 = vpop.f32.mrb[0].mxu0
  %1093 = vmatprep.mubr.f32.mxu0 %v692
  %1094 = vmatmul.mubr.f32.gmra.mrb[0].mxu0 %v691
  %v1095 = vpop.f32.mrb[0].mxu0
  %v1096 = vadd.f32 %v742, %v1095
  %v1097 = vpop.f32.mrb[0].mxu0
  %1098 = vmatprep.mubr.f32.mxu0 %v694
  %1099 = vmatmul.mubr.f32.gmra.mrb[0].mxu0 %v693
  %v1100 = vpop.f32.mrb[0].mxu0
  %v1101 = vadd.f32 %v742, %v1100
  %v1102 = vpop.f32.mrb[0].mxu0
  %1103 = vmatprep.mubr.f32.mxu0 %v696
  %1104 = vmatmul.mubr.f32.gmra.mrb[0].mxu0 %v695
  %v1105 = vpop.f32.mrb[0].mxu0
  %v1106 = vadd.f32 %v742, %v1105
  %v1107 = vpop.f32.mrb[0].mxu0
  %1108 = vmatprep.mubr.f32.mxu0 %v698
  %1109 = vmatmul.mubr.f32.gmra.mrb[0].mxu0 %v697
  %v1110 = vpop.f32.mrb[0].mxu0
  %v1111 = vadd.f32 %v742, %v1110
  %v1112 = vpop.f32.mrb[0].mxu0
  %1113 = vmatprep.mubr.f32.mxu0 %v700
  %1114 = vmatmul.mubr.f32.gmra.mrb[0].mxu0 %v699
  %v1115 = vpop.f32.mrb[0].mxu0
  %v1116 = vadd.f32 %v742, %v1115
  %v1117 = vpop.f32.mrb[0].mxu0
  %1118 = vmatprep.mubr.f32.mxu0 %v702
  %1119 = vmatmul.mubr.f32.gmra.mrb[0].mxu0 %v701
  %v1120 = vpop.f32.mrb[0].mxu0
  %v1121 = vadd.f32 %v742, %v1120
  %v1122 = vpop.f32.mrb[0].mxu0
  %1123 = vmatprep.mubr.f32.mxu0 %v704
  %1124 = vmatmul.mubr.f32.gmra.mrb[0].mxu0 %v703
  %v1125 = vpop.f32.mrb[0].mxu0
  %v1126 = vadd.f32 %v742, %v1125
  %v1127 = vpop.f32.mrb[0].mxu0
  %1128 = vdwg.mxu0
  %1129 = vst [vmem:[%s5] sm:$0xff] %v811
  %1130 = vst [vmem:[%s5 + $0x8] sm:$0xff] %v816
  %1131 = vst [vmem:[%s5 + $0x10] sm:$0xff] %v821
  %1132 = vst [vmem:[%s5 + $0x18] sm:$0xff] %v826
  %1133 = vst [vmem:[%s5 + $0x20] sm:$0xff] %v831
  %1134 = vst [vmem:[%s5 + $0x28] sm:$0xff] %v836
  %1135 = vst [vmem:[%s5 + $0x30] sm:$0xff] %v841
  %1136 = vst [vmem:[%s5 + $0x38] sm:$0xff] %v846
  %1137 = vst [vmem:[%s5 + $0x40] sm:$0xff] %v851
  %1138 = vst [vmem:[%s5 + $0x48] sm:$0xff] %v856
  %1139 = vst [vmem:[%s5 + $0x50] sm:$0xff] %v861
  %1140 = vst [vmem:[%s5 + $0x58] sm:$0xff] %v866
  %1141 = vst [vmem:[%s5 + $0x60] sm:$0xff] %v871
  %1142 = vst [vmem:[%s5 + $0x68] sm:$0xff] %v876
  %1143 = vst [vmem:[%s5 + $0x70] sm:$0xff] %v881
  %1144 = vst [vmem:[%s5 + $0x78] sm:$0xff] %v886
  %1145 = vst [vmem:[%s5 + $0x80] sm:$0xff] %v891
  %1146 = vst [vmem:[%s5 + $0x88] sm:$0xff] %v896
  %1147 = vst [vmem:[%s5 + $0x90] sm:$0xff] %v901
  %1148 = vst [vmem:[%s5 + $0x98] sm:$0xff] %v906
  %1149 = vst [vmem:[%s5 + $0xa0] sm:$0xff] %v911
  %1150 = vst [vmem:[%s5 + $0xa8] sm:$0xff] %v916
  %1151 = vst [vmem:[%s5 + $0xb0] sm:$0xff] %v921
  %1152 = vst [vmem:[%s5 + $0xb8] sm:$0xff] %v926
  %1153 = vst [vmem:[%s5 + $0xc0] sm:$0xff] %v931
  %1154 = vst [vmem:[%s5 + $0xc8] sm:$0xff] %v936
  %1155 = vst [vmem:[%s5 + $0xd0] sm:$0xff] %v941
  %1156 = vst [vmem:[%s5 + $0xd8] sm:$0xff] %v946
  %1157 = vst [vmem:[%s5 + $0xe0] sm:$0xff] %v951
  %1158 = vst [vmem:[%s5 + $0xe8] sm:$0xff] %v956
  %1159 = vst [vmem:[%s5 + $0xf0] sm:$0xff] %v961
  %1160 = vst [vmem:[%s5 + $0xf8] sm:$0xff] %v966
  %1161 = vst [vmem:[%s5 + $0x100] sm:$0xff] %v971
  %1162 = vst [vmem:[%s5 + $0x108] sm:$0xff] %v976
  %1163 = vst [vmem:[%s5 + $0x110] sm:$0xff] %v981
  %1164 = vst [vmem:[%s5 + $0x118] sm:$0xff] %v986
  %1165 = vst [vmem:[%s5 + $0x120] sm:$0xff] %v991
  %1166 = vst [vmem:[%s5 + $0x128] sm:$0xff] %v996
  %1167 = vst [vmem:[%s5 + $0x130] sm:$0xff] %v1001
  %1168 = vst [vmem:[%s5 + $0x138] sm:$0xff] %v1006
  %1169 = vst [vmem:[%s5 + $0x140] sm:$0xff] %v1011
  %1170 = vst [vmem:[%s5 + $0x148] sm:$0xff] %v1016
  %1171 = vst [vmem:[%s5 + $0x150] sm:$0xff] %v1021
  %1172 = vst [vmem:[%s5 + $0x158] sm:$0xff] %v1026
  %1173 = vst [vmem:[%s5 + $0x160] sm:$0xff] %v1031
  %1174 = vst [vmem:[%s5 + $0x168] sm:$0xff] %v1036
  %1175 = vst [vmem:[%s5 + $0x170] sm:$0xff] %v1041
  %1176 = vst [vmem:[%s5 + $0x178] sm:$0xff] %v1046
  %1177 = vst [vmem:[%s5 + $0x180] sm:$0xff] %v1051
  %1178 = vst [vmem:[%s5 + $0x188] sm:$0xff] %v1056
  %1179 = vst [vmem:[%s5 + $0x190] sm:$0xff] %v1061
  %1180 = vst [vmem:[%s5 + $0x198] sm:$0xff] %v1066
  %1181 = vst [vmem:[%s5 + $0x1a0] sm:$0xff] %v1071
  %1182 = vst [vmem:[%s5 + $0x1a8] sm:$0xff] %v1076
  %1183 = vst [vmem:[%s5 + $0x1b0] sm:$0xff] %v1081
  %1184 = vst [vmem:[%s5 + $0x1b8] sm:$0xff] %v1086
  %1185 = vst [vmem:[%s5 + $0x1c0] sm:$0xff] %v1091
  %1186 = vst [vmem:[%s5 + $0x1c8] sm:$0xff] %v1096
  %1187 = vst [vmem:[%s5 + $0x1d0] sm:$0xff] %v1101
  %1188 = vst [vmem:[%s5 + $0x1d8] sm:$0xff] %v1106
  %1189 = vst [vmem:[%s5 + $0x1e0] sm:$0xff] %v1111
  %1190 = vst [vmem:[%s5 + $0x1e8] sm:$0xff] %v1116
  %1191 = vst [vmem:[%s5 + $0x1f0] sm:$0xff] %v1121
  %1192 = vst [vmem:[%s5 + $0x1f8] sm:$0xff] %v1126
  // Predicated region
  $region22: #{refinement_stage_forward.11} parent=0 // pred_check
    _
  $region23: #{refinement_stage_forward.11} parent=0 // pred_check_branch
    %1194 = sbr.rel (0) target = $region25
  $region24: #{refinement_stage_forward.11} parent=0 // pred_region
    _
  $region25: #{refinement_stage_forward.11} parent=0 // pred_fallthru
    _
  // Predicated region
  $region26: #{refinement_stage_forward.11} parent=0 // pred_check
    _
  $region27: #{refinement_stage_forward.11} parent=0 // pred_check_branch
    %1196 = sbr.rel (0) target = $region29
  $region28: #{refinement_stage_forward.11} parent=0 // pred_region
    _
  $region29: #{refinement_stage_forward.11} parent=0 // pred_fallthru
    _

// kernel: refinement_stage_forward.6
$region0: #{refinement_stage_forward.6}
  #allocation0 [shape = 'u32[]', space=smem, size = 0x4, offset = 0x4, fixed_abs, tag = 'smem constant byte address 0x4 - core index']
  #allocation1 [shape = 'u32[144,128]{1,0:T(1,128)}', space=vmem, size = 0x12000, scoped, tag = 'internal scratch']
  #allocation2 [shape = 'f32[18,18,128]{2,1,0:T(8,128)}', space=vmem, size = 0x36000, scoped, tag = 'scratch operand']
  #allocation3 [shape = 'f32[20,20,128]{2,1,0:T(8,128)}', space=vmem, size = 0x3c000, scoped, tag = 'scratch operand']
  %s0 = inlined_call_operand.vmem [shape: f32[2,16,16,128], index: 0, kind: input, shape index: {}]
  %s1 = inlined_call_operand.vmem [shape: f32[128,128], index: 1, kind: input, shape index: {}]
  %s2 = inlined_call_operand.vmem [shape: f32[1,128], index: 2, kind: input, shape index: {}]
  %s3 = inlined_call_operand.vmem [shape: f32[1152,128], index: 3, kind: input, shape index: {}]
  %s4 = inlined_call_operand.vmem [shape: f32[1,128], index: 4, kind: input, shape index: {}]
  %s5 = inlined_call_operand.hbm [shape: f32[1152,128], index: 5, kind: input, shape index: {}]
  %s6 = inlined_call_operand.vmem [shape: f32[1,128], index: 6, kind: input, shape index: {}]
  %s7 = inlined_call_operand.vmem [shape: f32[2,16,16,128], index: 7, kind: output, shape index: {}]
  %s8 = sld [smem:[#allocation0]]
  $region65: #{refinement_stage_forward.6} parent=0
    _
  %s10 = ssub.s32 1, %s8
  %s11 = scalar_select 0, %s10, %s8
  $region1: #{refinement_stage_forward.6} parent=0
    #allocation4 [shape = 'u8[589824]{0}', space=vmem, size = 0x90000, scoped, tag = 'input window, operand 5, single buffered']
    #allocation5 [shape = 's32[2]{0}', space=sflag, size = 0x8, scoped, tag = 'scoped memory for refinement_stage_forward.6']
    %12 = vsyncpa [#allocation5], 0
    loop: start=0, step=1, limit=4
    $region2: #{refinement_stage_forward.6} parent=1 // loop_pre_header
      _
    $region3: #{refinement_stage_forward.6} parent=1 // loop_header
      %s14 = sphi 0, %s18
      %p15 = scmp.ge.s32.totalorder %s14, 4
      %s24 = sphi 0, %s26
      %s27 = sphi 0, %s24
      %s28 = sphi 0, %s27
      %s44 = sphi 0, %s28
      %s48 = sphi 0, %s48
      %s50 = sphi 0, %s48
      %s51 = sphi 0, %s50
      %s65 = sphi 0, %s51
      %s69 = sphi 0, %s69
      %s71 = sphi 0, %s69
      %s72 = sphi 0, %s71
      %s86 = sphi 0, %s72
      %s90 = sphi 0, %s90
      %s92 = sphi 0, %s90
      %s93 = sphi 0, %s92
      %s107 = sphi 0, %s93
      %s111 = sphi 0, %s111
      %s113 = sphi 0, %s111
      %s114 = sphi 0, %s113
      %s128 = sphi 0, %s114
      %s132 = sphi 0, %s132
      %s134 = sphi 0, %s132
      %s135 = sphi 0, %s134
      %s149 = sphi 0, %s135
      %s153 = sphi 0, %s153
      %s155 = sphi 0, %s153
      %s156 = sphi 0, %s155
      %s170 = sphi 0, %s156
      %s176 = sphi 0, %s178
      %s179 = sphi 0, %s176
      %s180 = sphi 0, %s179
      %s196 = sphi 0, %s180
    $region4: #{refinement_stage_forward.6} parent=1 // loop_header_branch
      %17 = sbr.rel (%p15) target = $region8
    $region5: #{refinement_stage_forward.6} parent=1 // loop_body
      %s19 = ssub.s32 %s14, 1
      %s20 = ssub.s32 %s14, 2
      %s21 = sadd.s32 %s14, 1
      %s22 = ssub.s32 %s14, %s21
      %p23 = scmp.eq.s32.totalorder %s22, 0
      %s25 = sadd.s32 %s24, 1
      %s26 = scalar_select %p23, %s24, %s25
      %p29 = pneg %p23
      %p30 = scmp.eq.s32.totalorder %s14, 1
      %p31 = por %p29, %p30
      %p32 = scmp.ne.s32.totalorder %s24, %s27
      %p33 = scmp.eq.s32.totalorder %s14, 0
      %p34 = por %p32, %p33
      %p35 = scmp.ne.s32.totalorder %s24, %s27
      %p36 = scmp.eq.s32.totalorder %s19, 1
      %p37 = por %p35, %p36
      %p38 = scmp.ne.s32.totalorder %s27, %s28
      %p39 = scmp.eq.s32.totalorder %s19, 0
      %p40 = por %p38, %p39
      %p41 = scmp.ne.s32.totalorder %s27, %s28
      %p42 = scmp.eq.s32.totalorder %s20, 1
      %p43 = por %p41, %p42
      %p45 = scmp.ne.s32.totalorder %s28, %s44
      %p46 = scmp.eq.s32.totalorder %s20, 0
      %p47 = por %p45, %p46
      %s49 = sadd.s32 %s48, 1
      %p52 = scmp.eq.s32.totalorder %s14, 1
      %p53 = scmp.ne.s32.totalorder %s48, %s50
      %p54 = scmp.eq.s32.totalorder %s14, 0
      %p55 = por %p53, %p54
      %p56 = scmp.ne.s32.totalorder %s48, %s50
      %p57 = scmp.eq.s32.totalorder %s19, 1
      %p58 = por %p56, %p57
      %p59 = scmp.ne.s32.totalorder %s50, %s51
      %p60 = scmp.eq.s32.totalorder %s19, 0
      %p61 = por %p59, %p60
      %p62 = scmp.ne.s32.totalorder %s50, %s51
      %p63 = scmp.eq.s32.totalorder %s20, 1
      %p64 = por %p62, %p63
      %p66 = scmp.ne.s32.totalorder %s51, %s65
      %p67 = scmp.eq.s32.totalorder %s20, 0
      %p68 = por %p66, %p67
      %s70 = sadd.s32 %s69, 1
      %p73 = scmp.eq.s32.totalorder %s14, 1
      %p74 = scmp.ne.s32.totalorder %s69, %s71
      %p75 = scmp.eq.s32.totalorder %s14, 0
      %p76 = por %p74, %p75
      %p77 = scmp.ne.s32.totalorder %s69, %s71
      %p78 = scmp.eq.s32.totalorder %s19, 1
      %p79 = por %p77, %p78
      %p80 = scmp.ne.s32.totalorder %s71, %s72
      %p81 = scmp.eq.s32.totalorder %s19, 0
      %p82 = por %p80, %p81
      %p83 = scmp.ne.s32.totalorder %s71, %s72
      %p84 = scmp.eq.s32.totalorder %s20, 1
      %p85 = por %p83, %p84
      %p87 = scmp.ne.s32.totalorder %s72, %s86
      %p88 = scmp.eq.s32.totalorder %s20, 0
      %p89 = por %p87, %p88
      %s91 = sadd.s32 %s90, 1
      %p94 = scmp.eq.s32.totalorder %s14, 1
      %p95 = scmp.ne.s32.totalorder %s90, %s92
      %p96 = scmp.eq.s32.totalorder %s14, 0
      %p97 = por %p95, %p96
      %p98 = scmp.ne.s32.totalorder %s90, %s92
      %p99 = scmp.eq.s32.totalorder %s19, 1
      %p100 = por %p98, %p99
      %p101 = scmp.ne.s32.totalorder %s92, %s93
      %p102 = scmp.eq.s32.totalorder %s19, 0
      %p103 = por %p101, %p102
      %p104 = scmp.ne.s32.totalorder %s92, %s93
      %p105 = scmp.eq.s32.totalorder %s20, 1
      %p106 = por %p104, %p105
      %p108 = scmp.ne.s32.totalorder %s93, %s107
      %p109 = scmp.eq.s32.totalorder %s20, 0
      %p110 = por %p108, %p109
      %s112 = sadd.s32 %s111, 1
      %p115 = scmp.eq.s32.totalorder %s14, 1
      %p116 = scmp.ne.s32.totalorder %s111, %s113
      %p117 = scmp.eq.s32.totalorder %s14, 0
      %p118 = por %p116, %p117
      %p119 = scmp.ne.s32.totalorder %s111, %s113
      %p120 = scmp.eq.s32.totalorder %s19, 1
      %p121 = por %p119, %p120
      %p122 = scmp.ne.s32.totalorder %s113, %s114
      %p123 = scmp.eq.s32.totalorder %s19, 0
      %p124 = por %p122, %p123
      %p125 = scmp.ne.s32.totalorder %s113, %s114
      %p126 = scmp.eq.s32.totalorder %s20, 1
      %p127 = por %p125, %p126
      %p129 = scmp.ne.s32.totalorder %s114, %s128
      %p130 = scmp.eq.s32.totalorder %s20, 0
      %p131 = por %p129, %p130
      %s133 = sadd.s32 %s132, 1
      %p136 = scmp.eq.s32.totalorder %s14, 1
      %p137 = scmp.ne.s32.totalorder %s132, %s134
      %p138 = scmp.eq.s32.totalorder %s14, 0
      %p139 = por %p137, %p138
      %p140 = scmp.ne.s32.totalorder %s132, %s134
      %p141 = scmp.eq.s32.totalorder %s19, 1
      %p142 = por %p140, %p141
      %p143 = scmp.ne.s32.totalorder %s134, %s135
      %p144 = scmp.eq.s32.totalorder %s19, 0
      %p145 = por %p143, %p144
      %p146 = scmp.ne.s32.totalorder %s134, %s135
      %p147 = scmp.eq.s32.totalorder %s20, 1
      %p148 = por %p146, %p147
      %p150 = scmp.ne.s32.totalorder %s135, %s149
      %p151 = scmp.eq.s32.totalorder %s20, 0
      %p152 = por %p150, %p151
      %s154 = sadd.s32 %s153, 1
      %p157 = scmp.eq.s32.totalorder %s14, 1
      %p158 = scmp.ne.s32.totalorder %s153, %s155
      %p159 = scmp.eq.s32.totalorder %s14, 0
      %p160 = por %p158, %p159
      %p161 = scmp.ne.s32.totalorder %s153, %s155
      %p162 = scmp.eq.s32.totalorder %s19, 1
      %p163 = por %p161, %p162
      %p164 = scmp.ne.s32.totalorder %s155, %s156
      %p165 = scmp.eq.s32.totalorder %s19, 0
      %p166 = por %p164, %p165
      %p167 = scmp.ne.s32.totalorder %s155, %s156
      %p168 = scmp.eq.s32.totalorder %s20, 1
      %p169 = por %p167, %p168
      %p171 = scmp.ne.s32.totalorder %s156, %s170
      %p172 = scmp.eq.s32.totalorder %s20, 0
      %p173 = por %p171, %p172
      %s174 = ssub.s32 %s14, %s21
      %p175 = scmp.eq.s32.totalorder %s174, 0
      %s177 = sadd.s32 %s176, 1
      %s178 = scalar_select %p175, %s176, %s177
      %p181 = pneg %p175
      %p182 = scmp.eq.s32.totalorder %s14, 1
      %p183 = por %p181, %p182
      %p184 = scmp.ne.s32.totalorder %s176, %s179
      %p185 = scmp.eq.s32.totalorder %s14, 0
      %p186 = por %p184, %p185
      %p187 = scmp.ne.s32.totalorder %s176, %s179
      %p188 = scmp.eq.s32.totalorder %s19, 1
      %p189 = por %p187, %p188
      %p190 = scmp.ne.s32.totalorder %s179, %s180
      %p191 = scmp.eq.s32.totalorder %s19, 0
      %p192 = por %p190, %p191
      %p193 = scmp.ne.s32.totalorder %s179, %s180
      %p194 = scmp.eq.s32.totalorder %s20, 1
      %p195 = por %p193, %p194
      %p197 = scmp.ne.s32.totalorder %s180, %s196
      %p198 = scmp.eq.s32.totalorder %s20, 0
      %p199 = por %p197, %p198
      %p200 = scmp.le.s32.totalorder 1, %s14
      %p201 = scmp.lt.s32.totalorder %s14, 3
      %p202 = pnand %p200, %p201
      %p203 = pneg %p202
      // Predicated region
      $region9: #{refinement_stage_forward.6} parent=5 // pred_check
        _
      $region10: #{refinement_stage_forward.6} parent=5 // pred_check_branch
        %205 = sbr.rel (%p202) target = $region12
      $region11: #{refinement_stage_forward.6} parent=5 // pred_region
        %s206 = ssub.s32 %s14, 1
        // Predicated region
        $region13: #{refinement_stage_forward.6} parent=11 // pred_check
          %p207 = pneg %p61
        $region14: #{refinement_stage_forward.6} parent=11 // pred_check_branch
          %209 = sbr.rel (%p207) target = $region16
        $region15: #{refinement_stage_forward.6} parent=11 // pred_region
          _
        $region16: #{refinement_stage_forward.6} parent=11 // pred_fallthru
          _
        // Predicated region
        $region17: #{refinement_stage_forward.6} parent=11 // pred_check
          %p210 = pneg %p82
        $region18: #{refinement_stage_forward.6} parent=11 // pred_check_branch
          %212 = sbr.rel (%p210) target = $region20
        $region19: #{refinement_stage_forward.6} parent=11 // pred_region
          _
        $region20: #{refinement_stage_forward.6} parent=11 // pred_fallthru
          _
        // Predicated region
        $region21: #{refinement_stage_forward.6} parent=11 // pred_check
          %p213 = pneg %p103
        $region22: #{refinement_stage_forward.6} parent=11 // pred_check_branch
          %215 = sbr.rel (%p213) target = $region24
        $region23: #{refinement_stage_forward.6} parent=11 // pred_region
          _
        $region24: #{refinement_stage_forward.6} parent=11 // pred_fallthru
          _
        // Predicated region
        $region25: #{refinement_stage_forward.6} parent=11 // pred_check
          %p216 = pneg %p124
        $region26: #{refinement_stage_forward.6} parent=11 // pred_check_branch
          %218 = sbr.rel (%p216) target = $region28
        $region27: #{refinement_stage_forward.6} parent=11 // pred_region
          _
        $region28: #{refinement_stage_forward.6} parent=11 // pred_fallthru
          _
        // Predicated region
        $region29: #{refinement_stage_forward.6} parent=11 // pred_check
          %p219 = pneg %p145
        $region30: #{refinement_stage_forward.6} parent=11 // pred_check_branch
          %221 = sbr.rel (%p219) target = $region32
        $region31: #{refinement_stage_forward.6} parent=11 // pred_region
          %s223 = ssub.s32 18432, 18432
          %224 = vsyncadd [#allocation5], %s223
          %s225 = sshll.u32 [#allocation4], 4
          %s226 = int_to_ptr.vmem [resolvable:$true] %s225
          %231 = dma.hbm_to_vmem [thread:$0]  %s5, 18432, %s226, [#allocation5], 128, 128, 8
        $region32: #{refinement_stage_forward.6} parent=11 // pred_fallthru
          _
        // Predicated region
        $region33: #{refinement_stage_forward.6} parent=11 // pred_check
          %p232 = pneg %p166
        $region34: #{refinement_stage_forward.6} parent=11 // pred_check_branch
          %234 = sbr.rel (%p232) target = $region36
        $region35: #{refinement_stage_forward.6} parent=11 // pred_region
          _
        $region36: #{refinement_stage_forward.6} parent=11 // pred_fallthru
          _
      $region12: #{refinement_stage_forward.6} parent=5 // pred_fallthru
        _
      %p235 = scmp.lt.s32.totalorder %s14, 2
      // Predicated region
      $region37: #{refinement_stage_forward.6} parent=5 // pred_check
        %p236 = pneg %p235
      $region38: #{refinement_stage_forward.6} parent=5 // pred_check_branch
        %238 = sbr.rel (%p236) target = $region40
      $region39: #{refinement_stage_forward.6} parent=5 // pred_region
        // Predicated region
        $region41: #{refinement_stage_forward.6} parent=39 // pred_check
          %p239 = pneg %p34
        $region42: #{refinement_stage_forward.6} parent=39 // pred_check_branch
          %241 = sbr.rel (%p239) target = $region44
        $region43: #{refinement_stage_forward.6} parent=39 // pred_region
          %p242 = scmp.lt.s32.totalorder %s14, 1
          %s243 = scalar_select %p242, %s14, 1
          %s244 = smul.addr %s243, 32
          %s245 = smul.addr %s244, 8
          %s246 = scalar_lea.vmem %s0, %s245
        $region44: #{refinement_stage_forward.6} parent=39 // pred_fallthru
          _
      $region40: #{refinement_stage_forward.6} parent=5 // pred_fallthru
        _
      %p247 = scmp.le.s32.totalorder 1, %s14
      %p248 = scmp.lt.s32.totalorder %s14, 3
      %p249 = pnand %p247, %p248
      %p250 = pneg %p249
      // Predicated region
      $region45: #{refinement_stage_forward.6} parent=5 // pred_check
        _
      $region46: #{refinement_stage_forward.6} parent=5 // pred_check_branch
        %252 = sbr.rel (%p249) target = $region48
      $region47: #{refinement_stage_forward.6} parent=5 // pred_region
        %s253 = ssub.s32 %s14, 1
        // Predicated region
        $region49: #{refinement_stage_forward.6} parent=47 // pred_check
          %p254 = pneg %p145
        $region50: #{refinement_stage_forward.6} parent=47 // pred_check_branch
          %256 = sbr.rel (%p254) target = $region52
        $region51: #{refinement_stage_forward.6} parent=47 // pred_region
          %257 = dma.done [#allocation5], 18432
        $region52: #{refinement_stage_forward.6} parent=47 // pred_fallthru
          _
        %p258 = scmp.lt.s32.totalorder %s19, 1
        %s259 = scalar_select %p258, %s19, 1
        %s260 = smul.addr %s259, 32
        %s261 = smul.addr %s260, 8
        %s262 = scalar_lea.vmem %s0, %s261
        %p263 = pneg %p40
        %p264 = pneg %p37
        %p265 = pneg %p61
        %p266 = pneg %p58
        %p267 = pneg %p82
        %p268 = pneg %p79
        %p269 = pneg %p103
        %p270 = pneg %p100
        %p271 = pneg %p124
        %p272 = pneg %p121
        %p273 = pneg %p145
        %p274 = pneg %p142
        %p275 = pneg %p166
        %p276 = pneg %p163
        %p277 = pneg %p192
        %p278 = pneg %p189
        %p279 = scmp.lt.s32.totalorder %s19, 1
        %s280 = scalar_select %p279, %s19, 1
        %s281 = smul.addr %s280, 32
        %s282 = smul.addr %s281, 8
        %s283 = scalar_lea.vmem %s7, %s282
        %p284 = scmp.lt.s32.totalorder %s19, 1
        %s285 = scalar_select %p284, %s19, 1
        %s286 = smul.addr %s285, 32
        %s287 = smul.addr %s286, 8
        %s288 = scalar_lea.vmem %s0, %s287
        %p289 = scmp.lt.s32.totalorder %s19, 1
        %s290 = scalar_select %p289, %s19, 1
        %s291 = smul.addr %s290, 32
        %s292 = smul.addr %s291, 8
        %s293 = scalar_lea.vmem %s7, %s292
        %294 = vst [vmem:[#allocation2] sm:$0xff] 0.0
        %295 = vst [vmem:[#allocation2 + $0x8] sm:$0xff] 0.0
        %296 = vst [vmem:[#allocation2 + $0x10] sm:$0x3] 0.0
        %s297 = scalar_lea.vmem [#allocation2], 408
        %298 = vst [vmem:[%s297] sm:$0xff] 0.0
        %299 = vst [vmem:[%s297 + $0x8] sm:$0xff] 0.0
        %300 = vst [vmem:[%s297 + $0x10] sm:$0x3] 0.0
        %301 = vst [vmem:[#allocation2] sm:$0x1] 0.0
        %302 = vst [vmem:[#allocation2 + $0x18] sm:$0x1] 0.0
        %303 = vst [vmem:[#allocation2 + $0x30] sm:$0x1] 0.0
        %304 = vst [vmem:[#allocation2 + $0x48] sm:$0x1] 0.0
        %305 = vst [vmem:[#allocation2 + $0x60] sm:$0x1] 0.0
        %306 = vst [vmem:[#allocation2 + $0x78] sm:$0x1] 0.0
        %307 = vst [vmem:[#allocation2 + $0x90] sm:$0x1] 0.0
        %308 = vst [vmem:[#allocation2 + $0xa8] sm:$0x1] 0.0
        %309 = vst [vmem:[#allocation2 + $0xc0] sm:$0x1] 0.0
        %310 = vst [vmem:[#allocation2 + $0xd8] sm:$0x1] 0.0
        %311 = vst [vmem:[#allocation2 + $0xf0] sm:$0x1] 0.0
        %312 = vst [vmem:[#allocation2 + $0x108] sm:$0x1] 0.0
        %313 = vst [vmem:[#allocation2 + $0x120] sm:$0x1] 0.0
        %314 = vst [vmem:[#allocation2 + $0x138] sm:$0x1] 0.0
        %315 = vst [vmem:[#allocation2 + $0x150] sm:$0x1] 0.0
        %316 = vst [vmem:[#allocation2 + $0x168] sm:$0x1] 0.0
        %317 = vst [vmem:[#allocation2 + $0x180] sm:$0x1] 0.0
        %318 = vst [vmem:[#allocation2 + $0x198] sm:$0x1] 0.0
        %319 = vst [vmem:[#allocation2 + $0x11] sm:$0x1] 0.0
        %320 = vst [vmem:[#allocation2 + $0x29] sm:$0x1] 0.0
        %321 = vst [vmem:[#allocation2 + $0x41] sm:$0x1] 0.0
        %322 = vst [vmem:[#allocation2 + $0x59] sm:$0x1] 0.0
        %323 = vst [vmem:[#allocation2 + $0x71] sm:$0x1] 0.0
        %324 = vst [vmem:[#allocation2 + $0x89] sm:$0x1] 0.0
        %325 = vst [vmem:[#allocation2 + $0xa1] sm:$0x1] 0.0
        %326 = vst [vmem:[#allocation2 + $0xb9] sm:$0x1] 0.0
        %327 = vst [vmem:[#allocation2 + $0xd1] sm:$0x1] 0.0
        %328 = vst [vmem:[#allocation2 + $0xe9] sm:$0x1] 0.0
        %329 = vst [vmem:[#allocation2 + $0x101] sm:$0x1] 0.0
        %330 = vst [vmem:[#allocation2 + $0x119] sm:$0x1] 0.0
        %331 = vst [vmem:[#allocation2 + $0x131] sm:$0x1] 0.0
        %332 = vst [vmem:[#allocation2 + $0x149] sm:$0x1] 0.0
        %333 = vst [vmem:[#allocation2 + $0x161] sm:$0x1] 0.0
        %334 = vst [vmem:[#allocation2 + $0x179] sm:$0x1] 0.0
        %335 = vst [vmem:[#allocation2 + $0x191] sm:$0x1] 0.0
        %336 = vst [vmem:[#allocation2 + $0x1a9] sm:$0x1] 0.0
        %337 = vst [vmem:[#allocation3] sm:$0xff] 0.0
        %338 = vst [vmem:[#allocation3 + $0x8] sm:$0xff] 0.0
        %339 = vst [vmem:[#allocation3 + $0x10] sm:$0xf] 0.0
        %340 = vst [vmem:[#allocation3 + $0x18] sm:$0xff] 0.0
        %341 = vst [vmem:[#allocation3 + $0x20] sm:$0xff] 0.0
        %342 = vst [vmem:[#allocation3 + $0x28] sm:$0xf] 0.0
        %s343 = scalar_lea.vmem [#allocation3], 432
        %344 = vst [vmem:[%s343] sm:$0xff] 0.0
        %345 = vst [vmem:[%s343 + $0x8] sm:$0xff] 0.0
        %346 = vst [vmem:[%s343 + $0x10] sm:$0xf] 0.0
        %347 = vst [vmem:[%s343 + $0x18] sm:$0xff] 0.0
        %348 = vst [vmem:[%s343 + $0x20] sm:$0xff] 0.0
        %349 = vst [vmem:[%s343 + $0x28] sm:$0xf] 0.0
        %350 = vst [vmem:[#allocation3] sm:$0x3] 0.0
        %351 = vst [vmem:[#allocation3 + $0x18] sm:$0x3] 0.0
        %352 = vst [vmem:[#allocation3 + $0x30] sm:$0x3] 0.0
        %353 = vst [vmem:[#allocation3 + $0x48] sm:$0x3] 0.0
        %354 = vst [vmem:[#allocation3 + $0x60] sm:$0x3] 0.0
        %355 = vst [vmem:[#allocation3 + $0x78] sm:$0x3] 0.0
        %356 = vst [vmem:[#allocation3 + $0x90] sm:$0x3] 0.0
        %357 = vst [vmem:[#allocation3 + $0xa8] sm:$0x3] 0.0
        %358 = vst [vmem:[#allocation3 + $0xc0] sm:$0x3] 0.0
        %359 = vst [vmem:[#allocation3 + $0xd8] sm:$0x3] 0.0
        %360 = vst [vmem:[#allocation3 + $0xf0] sm:$0x3] 0.0
        %361 = vst [vmem:[#allocation3 + $0x108] sm:$0x3] 0.0
        %362 = vst [vmem:[#allocation3 + $0x120] sm:$0x3] 0.0
        %363 = vst [vmem:[#allocation3 + $0x138] sm:$0x3] 0.0
        %364 = vst [vmem:[#allocation3 + $0x150] sm:$0x3] 0.0
        %365 = vst [vmem:[#allocation3 + $0x168] sm:$0x3] 0.0
        %366 = vst [vmem:[#allocation3 + $0x180] sm:$0x3] 0.0
        %367 = vst [vmem:[#allocation3 + $0x198] sm:$0x3] 0.0
        %368 = vst [vmem:[#allocation3 + $0x1b0] sm:$0x3] 0.0
        %369 = vst [vmem:[#allocation3 + $0x1c8] sm:$0x3] 0.0
        %370 = vst [vmem:[#allocation3 + $0x12] sm:$0x3] 0.0
        %371 = vst [vmem:[#allocation3 + $0x2a] sm:$0x3] 0.0
        %372 = vst [vmem:[#allocation3 + $0x42] sm:$0x3] 0.0
        %373 = vst [vmem:[#allocation3 + $0x5a] sm:$0x3] 0.0
        %374 = vst [vmem:[#allocation3 + $0x72] sm:$0x3] 0.0
        %375 = vst [vmem:[#allocation3 + $0x8a] sm:$0x3] 0.0
        %376 = vst [vmem:[#allocation3 + $0xa2] sm:$0x3] 0.0
        %377 = vst [vmem:[#allocation3 + $0xba] sm:$0x3] 0.0
        %378 = vst [vmem:[#allocation3 + $0xd2] sm:$0x3] 0.0
        %379 = vst [vmem:[#allocation3 + $0xea] sm:$0x3] 0.0
        %380 = vst [vmem:[#allocation3 + $0x102] sm:$0x3] 0.0
        %381 = vst [vmem:[#allocation3 + $0x11a] sm:$0x3] 0.0
        %382 = vst [vmem:[#allocation3 + $0x132] sm:$0x3] 0.0
        %383 = vst [vmem:[#allocation3 + $0x14a] sm:$0x3] 0.0
        %384 = vst [vmem:[#allocation3 + $0x162] sm:$0x3] 0.0
        %385 = vst [vmem:[#allocation3 + $0x17a] sm:$0x3] 0.0
        %386 = vst [vmem:[#allocation3 + $0x192] sm:$0x3] 0.0
        %387 = vst [vmem:[#allocation3 + $0x1aa] sm:$0x3] 0.0
        %388 = vst [vmem:[#allocation3 + $0x1c2] sm:$0x3] 0.0
        %389 = vst [vmem:[#allocation3 + $0x1da] sm:$0x3] 0.0
        %v390 = vld [vmem:[%s288] sm:$0xff]
        %v391 = vld [vmem:[%s288 + $0x8] sm:$0xff]
        %v392 = vld [vmem:[%s288 + $0x10] sm:$0xff]
        %v393 = vld [vmem:[%s288 + $0x18] sm:$0xff]
        %v394 = vld [vmem:[%s288 + $0x20] sm:$0xff]
        %v395 = vld [vmem:[%s288 + $0x28] sm:$0xff]
        %v396 = vld [vmem:[%s288 + $0x30] sm:$0xff]
        %v397 = vld [vmem:[%s288 + $0x38] sm:$0xff]
        %v398 = vld [vmem:[%s288 + $0x40] sm:$0xff]
        %v399 = vld [vmem:[%s288 + $0x48] sm:$0xff]
        %v400 = vld [vmem:[%s288 + $0x50] sm:$0xff]
        %v401 = vld [vmem:[%s288 + $0x58] sm:$0xff]
        %v402 = vld [vmem:[%s288 + $0x60] sm:$0xff]
        %v403 = vld [vmem:[%s288 + $0x68] sm:$0xff]
        %v404 = vld [vmem:[%s288 + $0x70] sm:$0xff]
        %v405 = vld [vmem:[%s288 + $0x78] sm:$0xff]
        %v406 = vld [vmem:[%s288 + $0x80] sm:$0xff]
        %v407 = vld [vmem:[%s288 + $0x88] sm:$0xff]
        %v408 = vld [vmem:[%s288 + $0x90] sm:$0xff]
        %v409 = vld [vmem:[%s288 + $0x98] sm:$0xff]
        %v410 = vld [vmem:[%s288 + $0xa0] sm:$0xff]
        %v411 = vld [vmem:[%s288 + $0xa8] sm:$0xff]
        %v412 = vld [vmem:[%s288 + $0xb0] sm:$0xff]
        %v413 = vld [vmem:[%s288 + $0xb8] sm:$0xff]
        %v414 = vld [vmem:[%s288 + $0xc0] sm:$0xff]
        %v415 = vld [vmem:[%s288 + $0xc8] sm:$0xff]
        %v416 = vld [vmem:[%s288 + $0xd0] sm:$0xff]
        %v417 = vld [vmem:[%s288 + $0xd8] sm:$0xff]
        %v418 = vld [vmem:[%s288 + $0xe0] sm:$0xff]
        %v419 = vld [vmem:[%s288 + $0xe8] sm:$0xff]
        %v420 = vld [vmem:[%s288 + $0xf0] sm:$0xff]
        %v421 = vld [vmem:[%s288 + $0xf8] sm:$0xff]
        %v422 = vld [vmem:[%s1] sm:$0xff]
        %v423 = vld [vmem:[%s1 + $0x8] sm:$0xff]
        %v424 = vld [vmem:[%s1 + $0x10] sm:$0xff]
        %v425 = vld [vmem:[%s1 + $0x18] sm:$0xff]
        %v426 = vld [vmem:[%s1 + $0x20] sm:$0xff]
        %v427 = vld [vmem:[%s1 + $0x28] sm:$0xff]
        %v428 = vld [vmem:[%s1 + $0x30] sm:$0xff]
        %v429 = vld [vmem:[%s1 + $0x38] sm:$0xff]
        %v430 = vld [vmem:[%s1 + $0x40] sm:$0xff]
        %v431 = vld [vmem:[%s1 + $0x48] sm:$0xff]
        %v432 = vld [vmem:[%s1 + $0x50] sm:$0xff]
        %v433 = vld [vmem:[%s1 + $0x58] sm:$0xff]
        %v434 = vld [vmem:[%s1 + $0x60] sm:$0xff]
        %v435 = vld [vmem:[%s1 + $0x68] sm:$0xff]
        %v436 = vld [vmem:[%s1 + $0x70] sm:$0xff]
        %v437 = vld [vmem:[%s1 + $0x78] sm:$0xff]
        %v438 = vld [vmem:[%s2] sm:$0x1]
        %v440 = vlaneseq
        %v441 = vshrl.u32 %v440, 7
        %v442 = vsub.s32 0, %v441
        %v443 = vrot.slane %v438, %v442
        %445 = vmatprep.subr.mxu0 0.0
        %446 = vmatpush1.msra.mxu0 %v422
        %447 = vmatprep.subr.mxu0 0.0
        %448 = vmatpush1.msra.mxu0 %v423
        %449 = vmatprep.subr.mxu0 0.0
        %450 = vmatpush1.msra.mxu0 %v424
        %451 = vmatprep.subr.mxu0 0.0
        %452 = vmatpush1.msra.mxu0 %v425
        %453 = vmatprep.subr.mxu0 0.0
        %454 = vmatpush1.msra.mxu0 %v426
        %455 = vmatprep.subr.mxu0 0.0
        %456 = vmatpush1.msra.mxu0 %v427
        %457 = vmatprep.subr.mxu0 0.0
        %458 = vmatpush1.msra.mxu0 %v428
        %459 = vmatprep.subr.mxu0 0.0
        %460 = vmatpush1.msra.mxu0 %v429
        %461 = vmatprep.subr.mxu0 0.0
        %462 = vmatpush1.msra.mxu0 %v430
        %463 = vmatprep.subr.mxu0 0.0
        %464 = vmatpush1.msra.mxu0 %v431
        %465 = vmatprep.subr.mxu0 0.0
        %466 = vmatpush1.msra.mxu0 %v432
        %467 = vmatprep.subr.mxu0 0.0
        %468 = vmatpush1.msra.mxu0 %v433
        %469 = vmatprep.subr.mxu0 0.0
        %470 = vmatpush1.msra.mxu0 %v434
        %471 = vmatprep.subr.mxu0 0.0
        %472 = vmatpush1.msra.mxu0 %v435
        %473 = vmatprep.subr.mxu0 0.0
        %474 = vmatpush1.msra.mxu0 %v436
        %475 = vmatprep.subr.mxu0 0.0
        %476 = vmatpush1.msra.mxu0 %v437
        %477 = vmatprep.subr.mxu0 0.0
        %478 = vmatpush1.msra.mxu0 0.0
        %479 = vmatprep.subr.mxu0 0.0
        %480 = vmatpush1.msra.mxu0 0.0
        %481 = vmatprep.subr.mxu0 0.0
        %482 = vmatpush1.msra.mxu0 0.0
        %483 = vmatprep.subr.mxu0 0.0
        %484 = vmatpush1.msra.mxu0 0.0
        %485 = vmatprep.subr.mxu0 0.0
        %486 = vmatpush1.msra.mxu0 0.0
        %487 = vmatprep.subr.mxu0 0.0
        %488 = vmatpush1.msra.mxu0 0.0
        %489 = vmatprep.subr.mxu0 0.0
        %490 = vmatpush1.msra.mxu0 0.0
        %491 = vmatprep.subr.mxu0 0.0
        %492 = vmatpush1.msra.mxu0 0.0
        %493 = vmatprep.subr.mxu0 0.0
        %494 = vmatpush1.msra.mxu0 0.0
        %495 = vmatprep.subr.mxu0 0.0
        %496 = vmatpush1.msra.mxu0 0.0
        %497 = vmatprep.subr.mxu0 0.0
        %498 = vmatpush1.msra.mxu0 0.0
        %499 = vmatprep.subr.mxu0 0.0
        %500 = vmatpush1.msra.mxu0 0.0
        %501 = vmatprep.subr.mxu0 0.0
        %502 = vmatpush1.msra.mxu0 0.0
        %503 = vmatprep.subr.mxu0 0.0
        %504 = vmatpush1.msra.mxu0 0.0
        %505 = vmatprep.subr.mxu0 0.0
        %506 = vmatpush1.msra.mxu0 0.0
        %507 = vmatprep.subr.mxu0 0.0
        %508 = vmatpush1.msra.mxu0 0.0
        %509 = vmatprep.mubr.f32.mxu0 0.0
        %510 = vmatmul.mubr.f32.gmra.mrb[0].mxu0 %v390
        %v511 = vpop.f32.mrb[0].mxu0
        %v512 = vadd.f32 %v443, %v511
        %v513 = vpop.f32.mrb[0].mxu0
        %514 = vmatprep.mubr.f32.mxu0 0.0
        %515 = vmatmul.mubr.f32.gmra.mrb[0].mxu0 %v391
        %v516 = vpop.f32.mrb[0].mxu0
        %v517 = vadd.f32 %v443, %v516
        %v518 = vpop.f32.mrb[0].mxu0
        %519 = vmatprep.mubr.f32.mxu0 0.0
        %520 = vmatmul.mubr.f32.gmra.mrb[0].mxu0 %v392
        %v521 = vpop.f32.mrb[0].mxu0
        %v522 = vadd.f32 %v443, %v521
        %v523 = vpop.f32.mrb[0].mxu0
        %524 = vmatprep.mubr.f32.mxu0 0.0
        %525 = vmatmul.mubr.f32.gmra.mrb[0].mxu0 %v393
        %v526 = vpop.f32.mrb[0].mxu0
        %v527 = vadd.f32 %v443, %v526
        %v528 = vpop.f32.mrb[0].mxu0
        %529 = vmatprep.mubr.f32.mxu0 0.0
        %530 = vmatmul.mubr.f32.gmra.mrb[0].mxu0 %v394
        %v531 = vpop.f32.mrb[0].mxu0
        %v532 = vadd.f32 %v443, %v531
        %v533 = vpop.f32.mrb[0].mxu0
        %534 = vmatprep.mubr.f32.mxu0 0.0
        %535 = vmatmul.mubr.f32.gmra.mrb[0].mxu0 %v395
        %v536 = vpop.f32.mrb[0].mxu0
        %v537 = vadd.f32 %v443, %v536
        %v538 = vpop.f32.mrb[0].mxu0
        %539 = vmatprep.mubr.f32.mxu0 0.0
        %540 = vmatmul.mubr.f32.gmra.mrb[0].mxu0 %v396
        %v541 = vpop.f32.mrb[0].mxu0
        %v542 = vadd.f32 %v443, %v541
        %v543 = vpop.f32.mrb[0].mxu0
        %544 = vmatprep.mubr.f32.mxu0 0.0
        %545 = vmatmul.mubr.f32.gmra.mrb[0].mxu0 %v397
        %v546 = vpop.f32.mrb[0].mxu0
        %v547 = vadd.f32 %v443, %v546
        %v548 = vpop.f32.mrb[0].mxu0
        %549 = vmatprep.mubr.f32.mxu0 0.0
        %550 = vmatmul.mubr.f32.gmra.mrb[0].mxu0 %v398
        %v551 = vpop.f32.mrb[0].mxu0
        %v552 = vadd.f32 %v443, %v551
        %v553 = vpop.f32.mrb[0].mxu0
        %554 = vmatprep.mubr.f32.mxu0 0.0
        %555 = vmatmul.mubr.f32.gmra.mrb[0].mxu0 %v399
        %v556 = vpop.f32.mrb[0].mxu0
        %v557 = vadd.f32 %v443, %v556
        %v558 = vpop.f32.mrb[0].mxu0
        %559 = vmatprep.mubr.f32.mxu0 0.0
        %560 = vmatmul.mubr.f32.gmra.mrb[0].mxu0 %v400
        %v561 = vpop.f32.mrb[0].mxu0
        %v562 = vadd.f32 %v443, %v561
        %v563 = vpop.f32.mrb[0].mxu0
        %564 = vmatprep.mubr.f32.mxu0 0.0
        %565 = vmatmul.mubr.f32.gmra.mrb[0].mxu0 %v401
        %v566 = vpop.f32.mrb[0].mxu0
        %v567 = vadd.f32 %v443, %v566
        %v568 = vpop.f32.mrb[0].mxu0
        %569 = vmatprep.mubr.f32.mxu0 0.0
        %570 = vmatmul.mubr.f32.gmra.mrb[0].mxu0 %v402
        %v571 = vpop.f32.mrb[0].mxu0
        %v572 = vadd.f32 %v443, %v571
        %v573 = vpop.f32.mrb[0].mxu0
        %574 = vmatprep.mubr.f32.mxu0 0.0
        %575 = vmatmul.mubr.f32.gmra.mrb[0].mxu0 %v403
        %v576 = vpop.f32.mrb[0].mxu0
        %v577 = vadd.f32 %v443, %v576
        %v578 = vpop.f32.mrb[0].mxu0
        %579 = vmatprep.mubr.f32.mxu0 0.0
        %580 = vmatmul.mubr.f32.gmra.mrb[0].mxu0 %v404
        %v581 = vpop.f32.mrb[0].mxu0
        %v582 = vadd.f32 %v443, %v581
        %v583 = vpop.f32.mrb[0].mxu0
        %584 = vmatprep.mubr.f32.mxu0 0.0
        %585 = vmatmul.mubr.f32.gmra.mrb[0].mxu0 %v405
        %v586 = vpop.f32.mrb[0].mxu0
        %v587 = vadd.f32 %v443, %v586
        %v588 = vpop.f32.mrb[0].mxu0
        %589 = vmatprep.mubr.f32.mxu0 0.0
        %590 = vmatmul.mubr.f32.gmra.mrb[0].mxu0 %v406
        %v591 = vpop.f32.mrb[0].mxu0
        %v592 = vadd.f32 %v443, %v591
        %v593 = vpop.f32.mrb[0].mxu0
        %594 = vmatprep.mubr.f32.mxu0 0.0
        %595 = vmatmul.mubr.f32.gmra.mrb[0].mxu0 %v407
        %v596 = vpop.f32.mrb[0].mxu0
        %v597 = vadd.f32 %v443, %v596
        %v598 = vpop.f32.mrb[0].mxu0
        %599 = vmatprep.mubr.f32.mxu0 0.0
        %600 = vmatmul.mubr.f32.gmra.mrb[0].mxu0 %v408
        %v601 = vpop.f32.mrb[0].mxu0
        %v602 = vadd.f32 %v443, %v601
        %v603 = vpop.f32.mrb[0].mxu0
        %604 = vmatprep.mubr.f32.mxu0 0.0
        %605 = vmatmul.mubr.f32.gmra.mrb[0].mxu0 %v409
        %v606 = vpop.f32.mrb[0].mxu0
        %v607 = vadd.f32 %v443, %v606
        %v608 = vpop.f32.mrb[0].mxu0
        %609 = vmatprep.mubr.f32.mxu0 0.0
        %610 = vmatmul.mubr.f32.gmra.mrb[0].mxu0 %v410
        %v611 = vpop.f32.mrb[0].mxu0
        %v612 = vadd.f32 %v443, %v611
        %v613 = vpop.f32.mrb[0].mxu0
        %614 = vmatprep.mubr.f32.mxu0 0.0
        %615 = vmatmul.mubr.f32.gmra.mrb[0].mxu0 %v411
        %v616 = vpop.f32.mrb[0].mxu0
        %v617 = vadd.f32 %v443, %v616
        %v618 = vpop.f32.mrb[0].mxu0
        %619 = vmatprep.mubr.f32.mxu0 0.0
        %620 = vmatmul.mubr.f32.gmra.mrb[0].mxu0 %v412
        %v621 = vpop.f32.mrb[0].mxu0
        %v622 = vadd.f32 %v443, %v621
        %v623 = vpop.f32.mrb[0].mxu0
        %624 = vmatprep.mubr.f32.mxu0 0.0
        %625 = vmatmul.mubr.f32.gmra.mrb[0].mxu0 %v413
        %v626 = vpop.f32.mrb[0].mxu0
        %v627 = vadd.f32 %v443, %v626
        %v628 = vpop.f32.mrb[0].mxu0
        %629 = vmatprep.mubr.f32.mxu0 0.0
        %630 = vmatmul.mubr.f32.gmra.mrb[0].mxu0 %v414
        %v631 = vpop.f32.mrb[0].mxu0
        %v632 = vadd.f32 %v443, %v631
        %v633 = vpop.f32.mrb[0].mxu0
        %634 = vmatprep.mubr.f32.mxu0 0.0
        %635 = vmatmul.mubr.f32.gmra.mrb[0].mxu0 %v415
        %v636 = vpop.f32.mrb[0].mxu0
        %v637 = vadd.f32 %v443, %v636
        %v638 = vpop.f32.mrb[0].mxu0
        %639 = vmatprep.mubr.f32.mxu0 0.0
        %640 = vmatmul.mubr.f32.gmra.mrb[0].mxu0 %v416
        %v641 = vpop.f32.mrb[0].mxu0
        %v642 = vadd.f32 %v443, %v641
        %v643 = vpop.f32.mrb[0].mxu0
        %644 = vmatprep.mubr.f32.mxu0 0.0
        %645 = vmatmul.mubr.f32.gmra.mrb[0].mxu0 %v417
        %v646 = vpop.f32.mrb[0].mxu0
        %v647 = vadd.f32 %v443, %v646
        %v648 = vpop.f32.mrb[0].mxu0
        %649 = vmatprep.mubr.f32.mxu0 0.0
        %650 = vmatmul.mubr.f32.gmra.mrb[0].mxu0 %v418
        %v651 = vpop.f32.mrb[0].mxu0
        %v652 = vadd.f32 %v443, %v651
        %v653 = vpop.f32.mrb[0].mxu0
        %654 = vmatprep.mubr.f32.mxu0 0.0
        %655 = vmatmul.mubr.f32.gmra.mrb[0].mxu0 %v419
        %v656 = vpop.f32.mrb[0].mxu0
        %v657 = vadd.f32 %v443, %v656
        %v658 = vpop.f32.mrb[0].mxu0
        %659 = vmatprep.mubr.f32.mxu0 0.0
        %660 = vmatmul.mubr.f32.gmra.mrb[0].mxu0 %v420
        %v661 = vpop.f32.mrb[0].mxu0
        %v662 = vadd.f32 %v443, %v661
        %v663 = vpop.f32.mrb[0].mxu0
        %664 = vmatprep.mubr.f32.mxu0 0.0
        %665 = vmatmul.mubr.f32.gmra.mrb[0].mxu0 %v421
        %v666 = vpop.f32.mrb[0].mxu0
        %v667 = vadd.f32 %v443, %v666
        %v668 = vpop.f32.mrb[0].mxu0
        %669 = vdwg.mxu0
        %v670 = vmax.f32 %v512, 0.0
        %v671 = vmax.f32 %v517, 0.0
        %v672 = vmax.f32 %v522, 0.0
        %v673 = vmax.f32 %v527, 0.0
        %v674 = vmax.f32 %v532, 0.0
        %v675 = vmax.f32 %v537, 0.0
        %v676 = vmax.f32 %v542, 0.0
        %v677 = vmax.f32 %v547, 0.0
        %v678 = vmax.f32 %v552, 0.0
        %v679 = vmax.f32 %v557, 0.0
        %v680 = vmax.f32 %v562, 0.0
        %v681 = vmax.f32 %v567, 0.0
        %v682 = vmax.f32 %v572, 0.0
        %v683 = vmax.f32 %v577, 0.0
        %v684 = vmax.f32 %v582, 0.0
        %v685 = vmax.f32 %v587, 0.0
        %v686 = vmax.f32 %v592, 0.0
        %v687 = vmax.f32 %v597, 0.0
        %v688 = vmax.f32 %v602, 0.0
        %v689 = vmax.f32 %v607, 0.0
        %v690 = vmax.f32 %v612, 0.0
        %v691 = vmax.f32 %v617, 0.0
        %v692 = vmax.f32 %v622, 0.0
        %v693 = vmax.f32 %v627, 0.0
        %v694 = vmax.f32 %v632, 0.0
        %v695 = vmax.f32 %v637, 0.0
        %v696 = vmax.f32 %v642, 0.0
        %v697 = vmax.f32 %v647, 0.0
        %v698 = vmax.f32 %v652, 0.0
        %v699 = vmax.f32 %v657, 0.0
        %v700 = vmax.f32 %v662, 0.0
        %v701 = vmax.f32 %v667, 0.0
        %702 = vst [vmem:[%s293] sm:$0xff] %v670
        %703 = vst [vmem:[%s293 + $0x8] sm:$0xff] %v671
        %704 = vst [vmem:[%s293 + $0x10] sm:$0xff] %v672
        %705 = vst [vmem:[%s293 + $0x18] sm:$0xff] %v673
        %706 = vst [vmem:[%s293 + $0x20] sm:$0xff] %v674
        %707 = vst [vmem:[%s293 + $0x28] sm:$0xff] %v675
        %708 = vst [vmem:[%s293 + $0x30] sm:$0xff] %v676
        %709 = vst [vmem:[%s293 + $0x38] sm:$0xff] %v677
        %710 = vst [vmem:[%s293 + $0x40] sm:$0xff] %v678
        %711 = vst [vmem:[%s293 + $0x48] sm:$0xff] %v679
        %712 = vst [vmem:[%s293 + $0x50] sm:$0xff] %v680
        %713 = vst [vmem:[%s293 + $0x58] sm:$0xff] %v681
        %714 = vst [vmem:[%s293 + $0x60] sm:$0xff] %v682
        %715 = vst [vmem:[%s293 + $0x68] sm:$0xff] %v683
        %716 = vst [vmem:[%s293 + $0x70] sm:$0xff] %v684
        %717 = vst [vmem:[%s293 + $0x78] sm:$0xff] %v685
        %718 = vst [vmem:[%s293 + $0x80] sm:$0xff] %v686
        %719 = vst [vmem:[%s293 + $0x88] sm:$0xff] %v687
        %720 = vst [vmem:[%s293 + $0x90] sm:$0xff] %v688
        %721 = vst [vmem:[%s293 + $0x98] sm:$0xff] %v689
        %722 = vst [vmem:[%s293 + $0xa0] sm:$0xff] %v690
        %723 = vst [vmem:[%s293 + $0xa8] sm:$0xff] %v691
        %724 = vst [vmem:[%s293 + $0xb0] sm:$0xff] %v692
        %725 = vst [vmem:[%s293 + $0xb8] sm:$0xff] %v693
        %726 = vst [vmem:[%s293 + $0xc0] sm:$0xff] %v694
        %727 = vst [vmem:[%s293 + $0xc8] sm:$0xff] %v695
        %728 = vst [vmem:[%s293 + $0xd0] sm:$0xff] %v696
        %729 = vst [vmem:[%s293 + $0xd8] sm:$0xff] %v697
        %730 = vst [vmem:[%s293 + $0xe0] sm:$0xff] %v698
        %731 = vst [vmem:[%s293 + $0xe8] sm:$0xff] %v699
        %732 = vst [vmem:[%s293 + $0xf0] sm:$0xff] %v700
        %733 = vst [vmem:[%s293 + $0xf8] sm:$0xff] %v701
        %s734 = scalar_lea.vmem [#allocation2], 24
        %735 = vst [vmem:[%s734 + $0x1] sm:$0xff] %v670
        %736 = vst [vmem:[%s734 + $0x9] sm:$0xff] %v671
        %737 = vst [vmem:[%s734 + $0x19] sm:$0xff] %v672
        %738 = vst [vmem:[%s734 + $0x21] sm:$0xff] %v673
        %739 = vst [vmem:[%s734 + $0x31] sm:$0xff] %v674
        %740 = vst [vmem:[%s734 + $0x39] sm:$0xff] %v675
        %741 = vst [vmem:[%s734 + $0x49] sm:$0xff] %v676
        %742 = vst [vmem:[%s734 + $0x51] sm:$0xff] %v677
        %743 = vst [vmem:[%s734 + $0x61] sm:$0xff] %v678
        %744 = vst [vmem:[%s734 + $0x69] sm:$0xff] %v679
        %745 = vst [vmem:[%s734 + $0x79] sm:$0xff] %v680
        %746 = vst [vmem:[%s734 + $0x81] sm:$0xff] %v681
        %747 = vst [vmem:[%s734 + $0x91] sm:$0xff] %v682
        %748 = vst [vmem:[%s734 + $0x99] sm:$0xff] %v683
        %749 = vst [vmem:[%s734 + $0xa9] sm:$0xff] %v684
        %750 = vst [vmem:[%s734 + $0xb1] sm:$0xff] %v685
        %751 = vst [vmem:[%s734 + $0xc1] sm:$0xff] %v686
        %752 = vst [vmem:[%s734 + $0xc9] sm:$0xff] %v687
        %753 = vst [vmem:[%s734 + $0xd9] sm:$0xff] %v688
        %754 = vst [vmem:[%s734 + $0xe1] sm:$0xff] %v689
        %755 = vst [vmem:[%s734 + $0xf1] sm:$0xff] %v690
        %756 = vst [vmem:[%s734 + $0xf9] sm:$0xff] %v691
        %757 = vst [vmem:[%s734 + $0x109] sm:$0xff] %v692
        %758 = vst [vmem:[%s734 + $0x111] sm:$0xff] %v693
        %759 = vst [vmem:[%s734 + $0x121] sm:$0xff] %v694
        %760 = vst [vmem:[%s734 + $0x129] sm:$0xff] %v695
        %761 = vst [vmem:[%s734 + $0x139] sm:$0xff] %v696
        %762 = vst [vmem:[%s734 + $0x141] sm:$0xff] %v697
        %763 = vst [vmem:[%s734 + $0x151] sm:$0xff] %v698
        %764 = vst [vmem:[%s734 + $0x159] sm:$0xff] %v699
        %765 = vst [vmem:[%s734 + $0x169] sm:$0xff] %v700
        %766 = vst [vmem:[%s734 + $0x171] sm:$0xff] %v701
        %v767 = vld [vmem:[#allocation2] sm:$0xff]
        %v768 = vld [vmem:[#allocation2 + $0x8] sm:$0xff]
        %v769 = vld [vmem:[#allocation2 + $0x18] sm:$0xff]
        %v770 = vld [vmem:[#allocation2 + $0x20] sm:$0xff]
        %v771 = vld [vmem:[#allocation2 + $0x30] sm:$0xff]
        %v772 = vld [vmem:[#allocation2 + $0x38] sm:$0xff]
        %v773 = vld [vmem:[#allocation2 + $0x48] sm:$0xff]
        %v774 = vld [vmem:[#allocation2 + $0x50] sm:$0xff]
        %v775 = vld [vmem:[#allocation2 + $0x60] sm:$0xff]
        %v776 = vld [vmem:[#allocation2 + $0x68] sm:$0xff]
        %v777 = vld [vmem:[#allocation2 + $0x78] sm:$0xff]
        %v778 = vld [vmem:[#allocation2 + $0x80] sm:$0xff]
        %v779 = vld [vmem:[#allocation2 + $0x90] sm:$0xff]
        %v780 = vld [vmem:[#allocation2 + $0x98] sm:$0xff]
        %v781 = vld [vmem:[#allocation2 + $0xa8] sm:$0xff]
        %v782 = vld [vmem:[#allocation2 + $0xb0] sm:$0xff]
        %v783 = vld [vmem:[#allocation2 + $0xc0] sm:$0xff]
        %v784 = vld [vmem:[#allocation2 + $0xc8] sm:$0xff]
        %v785 = vld [vmem:[#allocation2 + $0xd8] sm:$0xff]
        %v786 = vld [vmem:[#allocation2 + $0xe0] sm:$0xff]
        %v787 = vld [vmem:[#allocation2 + $0xf0] sm:$0xff]
        %v788 = vld [vmem:[#allocation2 + $0xf8] sm:$0xff]
        %v789 = vld [vmem:[#allocation2 + $0x108] sm:$0xff]
        %v790 = vld [vmem:[#allocation2 + $0x110] sm:$0xff]
        %v791 = vld [vmem:[#allocation2 + $0x120] sm:$0xff]
        %v792 = vld [vmem:[#allocation2 + $0x128] sm:$0xff]
        %v793 = vld [vmem:[#allocation2 + $0x138] sm:$0xff]
        %v794 = vld [vmem:[#allocation2 + $0x140] sm:$0xff]
        %v795 = vld [vmem:[#allocation2 + $0x150] sm:$0xff]
        %v796 = vld [vmem:[#allocation2 + $0x158] sm:$0xff]
        %v797 = vld [vmem:[#allocation2 + $0x168] sm:$0xff]
        %v798 = vld [vmem:[#allocation2 + $0x170] sm:$0xff]
        %v799 = vld [vmem:[#allocation2 + $0x180] sm:$0xff]
        %v800 = vld [vmem:[#allocation2 + $0x188] sm:$0xff]
        %v801 = vld [vmem:[#allocation2 + $0x198] sm:$0xff]
        %v802 = vld [vmem:[#allocation2 + $0x1a0] sm:$0xff]
        %v803 = vld [vmem:[#allocation2 + $0x1] sm:$0xff]
        %v804 = vld [vmem:[#allocation2 + $0x9] sm:$0xff]
        %v805 = vld [vmem:[#allocation2 + $0x19] sm:$0xff]
        %v806 = vld [vmem:[#allocation2 + $0x21] sm:$0xff]
        %v807 = vld [vmem:[#allocation2 + $0x31] sm:$0xff]
        %v808 = vld [vmem:[#allocation2 + $0x39] sm:$0xff]
        %v809 = vld [vmem:[#allocation2 + $0x49] sm:$0xff]
        %v810 = vld [vmem:[#allocation2 + $0x51] sm:$0xff]
        %v811 = vld [vmem:[#allocation2 + $0x61] sm:$0xff]
        %v812 = vld [vmem:[#allocation2 + $0x69] sm:$0xff]
        %v813 = vld [vmem:[#allocation2 + $0x79] sm:$0xff]
        %v814 = vld [vmem:[#allocation2 + $0x81] sm:$0xff]
        %v815 = vld [vmem:[#allocation2 + $0x91] sm:$0xff]
        %v816 = vld [vmem:[#allocation2 + $0x99] sm:$0xff]
        %v817 = vld [vmem:[#allocation2 + $0xa9] sm:$0xff]
        %v818 = vld [vmem:[#allocation2 + $0xb1] sm:$0xff]
        %v819 = vld [vmem:[#allocation2 + $0xc1] sm:$0xff]
        %v820 = vld [vmem:[#allocation2 + $0xc9] sm:$0xff]
        %v821 = vld [vmem:[#allocation2 + $0xd9] sm:$0xff]
        %v822 = vld [vmem:[#allocation2 + $0xe1] sm:$0xff]
        %v823 = vld [vmem:[#allocation2 + $0xf1] sm:$0xff]
        %v824 = vld [vmem:[#allocation2 + $0xf9] sm:$0xff]
        %v825 = vld [vmem:[#allocation2 + $0x109] sm:$0xff]
        %v826 = vld [vmem:[#allocation2 + $0x111] sm:$0xff]
        %v827 = vld [vmem:[#allocation2 + $0x121] sm:$0xff]
        %v828 = vld [vmem:[#allocation2 + $0x129] sm:$0xff]
        %v829 = vld [vmem:[#allocation2 + $0x139] sm:$0xff]
        %v830 = vld [vmem:[#allocation2 + $0x141] sm:$0xff]
        %v831 = vld [vmem:[#allocation2 + $0x151] sm:$0xff]
        %v832 = vld [vmem:[#allocation2 + $0x159] sm:$0xff]
        %v833 = vld [vmem:[#allocation2 + $0x169] sm:$0xff]
        %v834 = vld [vmem:[#allocation2 + $0x171] sm:$0xff]
        %v835 = vld [vmem:[#allocation2 + $0x181] sm:$0xff]
        %v836 = vld [vmem:[#allocation2 + $0x189] sm:$0xff]
        %v837 = vld [vmem:[#allocation2 + $0x199] sm:$0xff]
        %v838 = vld [vmem:[#allocation2 + $0x1a1] sm:$0xff]
        %v839 = vld [vmem:[#allocation2 + $0x2] sm:$0xff]
        %v840 = vld [vmem:[#allocation2 + $0xa] sm:$0xff]
        %v841 = vld [vmem:[#allocation2 + $0x1a] sm:$0xff]
        %v842 = vld [vmem:[#allocation2 + $0x22] sm:$0xff]
        %v843 = vld [vmem:[#allocation2 + $0x32] sm:$0xff]
        %v844 = vld [vmem:[#allocation2 + $0x3a] sm:$0xff]
        %v845 = vld [vmem:[#allocation2 + $0x4a] sm:$0xff]
        %v846 = vld [vmem:[#allocation2 + $0x52] sm:$0xff]
        %v847 = vld [vmem:[#allocation2 + $0x62] sm:$0xff]
        %v848 = vld [vmem:[#allocation2 + $0x6a] sm:$0xff]
        %v849 = vld [vmem:[#allocation2 + $0x7a] sm:$0xff]
        %v850 = vld [vmem:[#allocation2 + $0x82] sm:$0xff]
        %v851 = vld [vmem:[#allocation2 + $0x92] sm:$0xff]
        %v852 = vld [vmem:[#allocation2 + $0x9a] sm:$0xff]
        %v853 = vld [vmem:[#allocation2 + $0xaa] sm:$0xff]
        %v854 = vld [vmem:[#allocation2 + $0xb2] sm:$0xff]
        %v855 = vld [vmem:[#allocation2 + $0xc2] sm:$0xff]
        %v856 = vld [vmem:[#allocation2 + $0xca] sm:$0xff]
        %v857 = vld [vmem:[#allocation2 + $0xda] sm:$0xff]
        %v858 = vld [vmem:[#allocation2 + $0xe2] sm:$0xff]
        %v859 = vld [vmem:[#allocation2 + $0xf2] sm:$0xff]
        %v860 = vld [vmem:[#allocation2 + $0xfa] sm:$0xff]
        %v861 = vld [vmem:[#allocation2 + $0x10a] sm:$0xff]
        %v862 = vld [vmem:[#allocation2 + $0x112] sm:$0xff]
        %v863 = vld [vmem:[#allocation2 + $0x122] sm:$0xff]
        %v864 = vld [vmem:[#allocation2 + $0x12a] sm:$0xff]
        %v865 = vld [vmem:[#allocation2 + $0x13a] sm:$0xff]
        %v866 = vld [vmem:[#allocation2 + $0x142] sm:$0xff]
        %v867 = vld [vmem:[#allocation2 + $0x152] sm:$0xff]
        %v868 = vld [vmem:[#allocation2 + $0x15a] sm:$0xff]
        %v869 = vld [vmem:[#allocation2 + $0x16a] sm:$0xff]
        %v870 = vld [vmem:[#allocation2 + $0x172] sm:$0xff]
        %v871 = vld [vmem:[#allocation2 + $0x182] sm:$0xff]
        %v872 = vld [vmem:[#allocation2 + $0x18a] sm:$0xff]
        %v873 = vld [vmem:[#allocation2 + $0x19a] sm:$0xff]
        %v874 = vld [vmem:[#allocation2 + $0x1a2] sm:$0xff]
        %v875 = vld [vmem:[%s3] sm:$0xff]
        %v876 = vld [vmem:[%s3 + $0x8] sm:$0xff]
        %v877 = vld [vmem:[%s3 + $0x10] sm:$0xff]
        %v878 = vld [vmem:[%s3 + $0x18] sm:$0xff]
        %v879 = vld [vmem:[%s3 + $0x20] sm:$0xff]
        %v880 = vld [vmem:[%s3 + $0x28] sm:$0xff]
        %v881 = vld [vmem:[%s3 + $0x30] sm:$0xff]
        %v882 = vld [vmem:[%s3 + $0x38] sm:$0xff]
        %v883 = vld [vmem:[%s3 + $0x40] sm:$0xff]
        %v884 = vld [vmem:[%s3 + $0x48] sm:$0xff]
        %v885 = vld [vmem:[%s3 + $0x50] sm:$0xff]
        %v886 = vld [vmem:[%s3 + $0x58] sm:$0xff]
        %v887 = vld [vmem:[%s3 + $0x60] sm:$0xff]
        %v888 = vld [vmem:[%s3 + $0x68] sm:$0xff]
        %v889 = vld [vmem:[%s3 + $0x70] sm:$0xff]
        %v890 = vld [vmem:[%s3 + $0x78] sm:$0xff]
        %v891 = vld [vmem:[%s3 + $0x80] sm:$0xff]
        %v892 = vld [vmem:[%s3 + $0x88] sm:$0xff]
        %v893 = vld [vmem:[%s3 + $0x90] sm:$0xff]
        %v894 = vld [vmem:[%s3 + $0x98] sm:$0xff]
        %v895 = vld [vmem:[%s3 + $0xa0] sm:$0xff]
        %v896 = vld [vmem:[%s3 + $0xa8] sm:$0xff]
        %v897 = vld [vmem:[%s3 + $0xb0] sm:$0xff]
        %v898 = vld [vmem:[%s3 + $0xb8] sm:$0xff]
        %v899 = vld [vmem:[%s3 + $0xc0] sm:$0xff]
        %v900 = vld [vmem:[%s3 + $0xc8] sm:$0xff]
        %v901 = vld [vmem:[%s3 + $0xd0] sm:$0xff]
        %v902 = vld [vmem:[%s3 + $0xd8] sm:$0xff]
        %v903 = vld [vmem:[%s3 + $0xe0] sm:$0xff]
        %v904 = vld [vmem:[%s3 + $0xe8] sm:$0xff]
        %v905 = vld [vmem:[%s3 + $0xf0] sm:$0xff]
        %v906 = vld [vmem:[%s3 + $0xf8] sm:$0xff]
        %v907 = vld [vmem:[%s3 + $0x100] sm:$0xff]
        %v908 = vld [vmem:[%s3 + $0x108] sm:$0xff]
        %v909 = vld [vmem:[%s3 + $0x110] sm:$0xff]
        %v910 = vld [vmem:[%s3 + $0x118] sm:$0xff]
        %v911 = vld [vmem:[%s3 + $0x120] sm:$0xff]
        %v912 = vld [vmem:[%s3 + $0x128] sm:$0xff]
        %v913 = vld [vmem:[%s3 + $0x130] sm:$0xff]
        %v914 = vld [vmem:[%s3 + $0x138] sm:$0xff]
        %v915 = vld [vmem:[%s3 + $0x140] sm:$0xff]
        %v916 = vld [vmem:[%s3 + $0x148] sm:$0xff]
        %v917 = vld [vmem:[%s3 + $0x150] sm:$0xff]
        %v918 = vld [vmem:[%s3 + $0x158] sm:$0xff]
        %v919 = vld [vmem:[%s3 + $0x160] sm:$0xff]
        %v920 = vld [vmem:[%s3 + $0x168] sm:$0xff]
        %v921 = vld [vmem:[%s3 + $0x170] sm:$0xff]
        %v922 = vld [vmem:[%s3 + $0x178] sm:$0xff]
        %v923 = vld [vmem:[%s3 + $0x180] sm:$0xff]
        %v924 = vld [vmem:[%s3 + $0x188] sm:$0xff]
        %v925 = vld [vmem:[%s3 + $0x190] sm:$0xff]
        %v926 = vld [vmem:[%s3 + $0x198] sm:$0xff]
        %v927 = vld [vmem:[%s3 + $0x1a0] sm:$0xff]
        %v928 = vld [vmem:[%s3 + $0x1a8] sm:$0xff]
        %v929 = vld [vmem:[%s3 + $0x1b0] sm:$0xff]
        %v930 = vld [vmem:[%s3 + $0x1b8] sm:$0xff]
        %v931 = vld [vmem:[%s3 + $0x1c0] sm:$0xff]
        %v932 = vld [vmem:[%s3 + $0x1c8] sm:$0xff]
        %v933 = vld [vmem:[%s3 + $0x1d0] sm:$0xff]
        %v934 = vld [vmem:[%s3 + $0x1d8] sm:$0xff]
        %v935 = vld [vmem:[%s3 + $0x1e0] sm:$0xff]
        %v936 = vld [vmem:[%s3 + $0x1e8] sm:$0xff]
        %v937 = vld [vmem:[%s3 + $0x1f0] sm:$0xff]
        %v938 = vld [vmem:[%s3 + $0x1f8] sm:$0xff]
        %v939 = vld [vmem:[%s3 + $0x200] sm:$0xff]
        %v940 = vld [vmem:[%s3 + $0x208] sm:$0xff]
        %v941 = vld [vmem:[%s3 + $0x210] sm:$0xff]
        %v942 = vld [vmem:[%s3 + $0x218] sm:$0xff]
        %v943 = vld [vmem:[%s3 + $0x220] sm:$0xff]
        %v944 = vld [vmem:[%s3 + $0x228] sm:$0xff]
        %v945 = vld [vmem:[%s3 + $0x230] sm:$0xff]
        %v946 = vld [vmem:[%s3 + $0x238] sm:$0xff]
        %v947 = vld [vmem:[%s3 + $0x240] sm:$0xff]
        %v948 = vld [vmem:[%s3 + $0x248] sm:$0xff]
        %v949 = vld [vmem:[%s3 + $0x250] sm:$0xff]
        %v950 = vld [vmem:[%s3 + $0x258] sm:$0xff]
        %v951 = vld [vmem:[%s3 + $0x260] sm:$0xff]
        %v952 = vld [vmem:[%s3 + $0x268] sm:$0xff]
        %v953 = vld [vmem:[%s3 + $0x270] sm:$0xff]
        %v954 = vld [vmem:[%s3 + $0x278] sm:$0xff]
        %v955 = vld [vmem:[%s3 + $0x280] sm:$0xff]
        %v956 = vld [vmem:[%s3 + $0x288] sm:$0xff]
        %v957 = vld [vmem:[%s3 + $0x290] sm:$0xff]
        %v958 = vld [vmem:[%s3 + $0x298] sm:$0xff]
        %v959 = vld [vmem:[%s3 + $0x2a0] sm:$0xff]
        %v960 = vld [vmem:[%s3 + $0x2a8] sm:$0xff]
        %v961 = vld [vmem:[%s3 + $0x2b0] sm:$0xff]
        %v962 = vld [vmem:[%s3 + $0x2b8] sm:$0xff]
        %v963 = vld [vmem:[%s3 + $0x2c0] sm:$0xff]
        %v964 = vld [vmem:[%s3 + $0x2c8] sm:$0xff]
        %v965 = vld [vmem:[%s3 + $0x2d0] sm:$0xff]
        %v966 = vld [vmem:[%s3 + $0x2d8] sm:$0xff]
        %v967 = vld [vmem:[%s3 + $0x2e0] sm:$0xff]
        %v968 = vld [vmem:[%s3 + $0x2e8] sm:$0xff]
        %v969 = vld [vmem:[%s3 + $0x2f0] sm:$0xff]
        %v970 = vld [vmem:[%s3 + $0x2f8] sm:$0xff]
        %971 = vmatprep.subr.mxu0 0.0
        %972 = vmatpush1.msra.mxu0 %v923
        %973 = vmatprep.subr.mxu0 0.0
        %974 = vmatpush1.msra.mxu0 %v924
        %975 = vmatprep.subr.mxu0 0.0
        %976 = vmatpush1.msra.mxu0 %v925
        %977 = vmatprep.subr.mxu0 0.0
        %978 = vmatpush1.msra.mxu0 %v926
        %979 = vmatprep.subr.mxu0 0.0
        %980 = vmatpush1.msra.mxu0 %v927
        %981 = vmatprep.subr.mxu0 0.0
        %982 = vmatpush1.msra.mxu0 %v928
        %983 = vmatprep.subr.mxu0 0.0
        %984 = vmatpush1.msra.mxu0 %v929
        %985 = vmatprep.subr.mxu0 0.0
        %986 = vmatpush1.msra.mxu0 %v930
        %987 = vmatprep.subr.mxu0 0.0
        %988 = vmatpush1.msra.mxu0 %v931
        %989 = vmatprep.subr.mxu0 0.0
        %990 = vmatpush1.msra.mxu0 %v932
        %991 = vmatprep.subr.mxu0 0.0
        %992 = vmatpush1.msra.mxu0 %v933
        %993 = vmatprep.subr.mxu0 0.0
        %994 = vmatpush1.msra.mxu0 %v934
        %995 = vmatprep.subr.mxu0 0.0
        %996 = vmatpush1.msra.mxu0 %v935
        %997 = vmatprep.subr.mxu0 0.0
        %998 = vmatpush1.msra.mxu0 %v936
        %999 = vmatprep.subr.mxu0 0.0
        %1000 = vmatpush1.msra.mxu0 %v937
        %1001 = vmatprep.subr.mxu0 0.0
        %1002 = vmatpush1.msra.mxu0 %v938
        %1003 = vmatprep.subr.mxu0 0.0
        %1004 = vmatpush1.msra.mxu0 %v939
        %1005 = vmatprep.subr.mxu0 0.0
        %1006 = vmatpush1.msra.mxu0 %v940
        %1007 = vmatprep.subr.mxu0 0.0
        %1008 = vmatpush1.msra.mxu0 %v941
        %1009 = vmatprep.subr.mxu0 0.0
        %1010 = vmatpush1.msra.mxu0 %v942
        %1011 = vmatprep.subr.mxu0 0.0
        %1012 = vmatpush1.msra.mxu0 %v943
        %1013 = vmatprep.subr.mxu0 0.0
        %1014 = vmatpush1.msra.mxu0 %v944
        %1015 = vmatprep.subr.mxu0 0.0
        %1016 = vmatpush1.msra.mxu0 %v945
        %1017 = vmatprep.subr.mxu0 0.0
        %1018 = vmatpush1.msra.mxu0 %v946
        %1019 = vmatprep.subr.mxu0 0.0
        %1020 = vmatpush1.msra.mxu0 %v947
        %1021 = vmatprep.subr.mxu0 0.0
        %1022 = vmatpush1.msra.mxu0 %v948
        %1023 = vmatprep.subr.mxu0 0.0
        %1024 = vmatpush1.msra.mxu0 %v949
        %1025 = vmatprep.subr.mxu0 0.0
        %1026 = vmatpush1.msra.mxu0 %v950
        %1027 = vmatprep.subr.mxu0 0.0
        %1028 = vmatpush1.msra.mxu0 %v951
        %1029 = vmatprep.subr.mxu0 0.0
        %1030 = vmatpush1.msra.mxu0 %v952
        %1031 = vmatprep.subr.mxu0 0.0
        %1032 = vmatpush1.msra.mxu0 %v953
        %1033 = vmatprep.subr.mxu0 0.0
        %1034 = vmatpush1.msra.mxu0 %v954
        %1035 = vmatprep.mubr.f32.mxu0 %v805
        %1036 = vmatmul.mubr.f32.gmra.mrb[0].mxu0 %v769
        %v1037 = vpop.f32.mrb[0].mxu0
        %v1038 = vadd.f32 0.0, %v1037
        %v1039 = vpop.f32.mrb[0].mxu0
        %1040 = vmatprep.mubr.f32.mxu0 %v806
        %1041 = vmatmul.mubr.f32.gmra.mrb[0].mxu0 %v770
        %v1042 = vpop.f32.mrb[0].mxu0
        %v1043 = vadd.f32 0.0, %v1042
        %v1044 = vpop.f32.mrb[0].mxu0
        %1045 = vmatprep.mubr.f32.mxu0 %v807
        %1046 = vmatmul.mubr.f32.gmra.mrb[0].mxu0 %v771
        %v1047 = vpop.f32.mrb[0].mxu0
        %v1048 = vadd.f32 0.0, %v1047
        %v1049 = vpop.f32.mrb[0].mxu0
        %1050 = vmatprep.mubr.f32.mxu0 %v808
        %1051 = vmatmul.mubr.f32.gmra.mrb[0].mxu0 %v772
        %v1052 = vpop.f32.mrb[0].mxu0
        %v1053 = vadd.f32 0.0, %v1052
        %v1054 = vpop.f32.mrb[0].mxu0
        %1055 = vmatprep.mubr.f32.mxu0 %v809
        %1056 = vmatmul.mubr.f32.gmra.mrb[0].mxu0 %v773
        %v1057 = vpop.f32.mrb[0].mxu0
        %v1058 = vadd.f32 0.0, %v1057
        %v1059 = vpop.f32.mrb[0].mxu0
        %1060 = vmatprep.mubr.f32.mxu0 %v810
        %1061 = vmatmul.mubr.f32.gmra.mrb[0].mxu0 %v774
        %v1062 = vpop.f32.mrb[0].mxu0
        %v1063 = vadd.f32 0.0, %v1062
        %v1064 = vpop.f32.mrb[0].mxu0
        %1065 = vmatprep.mubr.f32.mxu0 %v811
        %1066 = vmatmul.mubr.f32.gmra.mrb[0].mxu0 %v775
        %v1067 = vpop.f32.mrb[0].mxu0
        %v1068 = vadd.f32 0.0, %v1067
        %v1069 = vpop.f32.mrb[0].mxu0
        %1070 = vmatprep.mubr.f32.mxu0 %v812
        %1071 = vmatmul.mubr.f32.gmra.mrb[0].mxu0 %v776
        %v1072 = vpop.f32.mrb[0].mxu0
        %v1073 = vadd.f32 0.0, %v1072
        %v1074 = vpop.f32.mrb[0].mxu0
        %1075 = vmatprep.mubr.f32.mxu0 %v813
        %1076 = vmatmul.mubr.f32.gmra.mrb[0].mxu0 %v777
        %v1077 = vpop.f32.mrb[0].mxu0
        %v1078 = vadd.f32 0.0, %v1077
        %v1079 = vpop.f32.mrb[0].mxu0
        %1080 = vmatprep.mubr.f32.mxu0 %v814
        %1081 = vmatmul.mubr.f32.gmra.mrb[0].mxu0 %v778
        %v1082 = vpop.f32.mrb[0].mxu0
        %v1083 = vadd.f32 0.0, %v1082
        %v1084 = vpop.f32.mrb[0].mxu0
        %1085 = vmatprep.mubr.f32.mxu0 %v815
        %1086 = vmatmul.mubr.f32.gmra.mrb[0].mxu0 %v779
        %v1087 = vpop.f32.mrb[0].mxu0
        %v1088 = vadd.f32 0.0, %v1087
        %v1089 = vpop.f32.mrb[0].mxu0
        %1090 = vmatprep.mubr.f32.mxu0 %v816
        %1091 = vmatmul.mubr.f32.gmra.mrb[0].mxu0 %v780
        %v1092 = vpop.f32.mrb[0].mxu0
        %v1093 = vadd.f32 0.0, %v1092
        %v1094 = vpop.f32.mrb[0].mxu0
        %1095 = vmatprep.mubr.f32.mxu0 %v817
        %1096 = vmatmul.mubr.f32.gmra.mrb[0].mxu0 %v781
        %v1097 = vpop.f32.mrb[0].mxu0
        %v1098 = vadd.f32 0.0, %v1097
        %v1099 = vpop.f32.mrb[0].mxu0
        %1100 = vmatprep.mubr.f32.mxu0 %v818
        %1101 = vmatmul.mubr.f32.gmra.mrb[0].mxu0 %v782
        %v1102 = vpop.f32.mrb[0].mxu0
        %v1103 = vadd.f32 0.0, %v1102
        %v1104 = vpop.f32.mrb[0].mxu0
        %1105 = vmatprep.mubr.f32.mxu0 %v819
        %1106 = vmatmul.mubr.f32.gmra.mrb[0].mxu0 %v783
        %v1107 = vpop.f32.mrb[0].mxu0
        %v1108 = vadd.f32 0.0, %v1107
        %v1109 = vpop.f32.mrb[0].mxu0
        %1110 = vmatprep.mubr.f32.mxu0 %v820
        %1111 = vmatmul.mubr.f32.gmra.mrb[0].mxu0 %v784
        %v1112 = vpop.f32.mrb[0].mxu0
        %v1113 = vadd.f32 0.0, %v1112
        %v1114 = vpop.f32.mrb[0].mxu0
        %1115 = vmatprep.mubr.f32.mxu0 %v821
        %1116 = vmatmul.mubr.f32.gmra.mrb[0].mxu0 %v785
        %v1117 = vpop.f32.mrb[0].mxu0
        %v1118 = vadd.f32 0.0, %v1117
        %v1119 = vpop.f32.mrb[0].mxu0
        %1120 = vmatprep.mubr.f32.mxu0 %v822
        %1121 = vmatmul.mubr.f32.gmra.mrb[0].mxu0 %v786
        %v1122 = vpop.f32.mrb[0].mxu0
        %v1123 = vadd.f32 0.0, %v1122
        %v1124 = vpop.f32.mrb[0].mxu0
        %1125 = vmatprep.mubr.f32.mxu0 %v823
        %1126 = vmatmul.mubr.f32.gmra.mrb[0].mxu0 %v787
        %v1127 = vpop.f32.mrb[0].mxu0
        %v1128 = vadd.f32 0.0, %v1127
        %v1129 = vpop.f32.mrb[0].mxu0
        %1130 = vmatprep.mubr.f32.mxu0 %v824
        %1131 = vmatmul.mubr.f32.gmra.mrb[0].mxu0 %v788
        %v1132 = vpop.f32.mrb[0].mxu0
        %v1133 = vadd.f32 0.0, %v1132
        %v1134 = vpop.f32.mrb[0].mxu0
        %1135 = vmatprep.mubr.f32.mxu0 %v825
        %1136 = vmatmul.mubr.f32.gmra.mrb[0].mxu0 %v789
        %v1137 = vpop.f32.mrb[0].mxu0
        %v1138 = vadd.f32 0.0, %v1137
        %v1139 = vpop.f32.mrb[0].mxu0
        %1140 = vmatprep.mubr.f32.mxu0 %v826
        %1141 = vmatmul.mubr.f32.gmra.mrb[0].mxu0 %v790
        %v1142 = vpop.f32.mrb[0].mxu0
        %v1143 = vadd.f32 0.0, %v1142
        %v1144 = vpop.f32.mrb[0].mxu0
        %1145 = vmatprep.mubr.f32.mxu0 %v827
        %1146 = vmatmul.mubr.f32.gmra.mrb[0].mxu0 %v791
        %v1147 = vpop.f32.mrb[0].mxu0
        %v1148 = vadd.f32 0.0, %v1147
        %v1149 = vpop.f32.mrb[0].mxu0
        %1150 = vmatprep.mubr.f32.mxu0 %v828
        %1151 = vmatmul.mubr.f32.gmra.mrb[0].mxu0 %v792
        %v1152 = vpop.f32.mrb[0].mxu0
        %v1153 = vadd.f32 0.0, %v1152
        %v1154 = vpop.f32.mrb[0].mxu0
        %1155 = vmatprep.mubr.f32.mxu0 %v829
        %1156 = vmatmul.mubr.f32.gmra.mrb[0].mxu0 %v793
        %v1157 = vpop.f32.mrb[0].mxu0
        %v1158 = vadd.f32 0.0, %v1157
        %v1159 = vpop.f32.mrb[0].mxu0
        %1160 = vmatprep.mubr.f32.mxu0 %v830
        %1161 = vmatmul.mubr.f32.gmra.mrb[0].mxu0 %v794
        %v1162 = vpop.f32.mrb[0].mxu0
        %v1163 = vadd.f32 0.0, %v1162
        %v1164 = vpop.f32.mrb[0].mxu0
        %1165 = vmatprep.mubr.f32.mxu0 %v831
        %1166 = vmatmul.mubr.f32.gmra.mrb[0].mxu0 %v795
        %v1167 = vpop.f32.mrb[0].mxu0
        %v1168 = vadd.f32 0.0, %v1167
        %v1169 = vpop.f32.mrb[0].mxu0
        %1170 = vmatprep.mubr.f32.mxu0 %v832
        %1171 = vmatmul.mubr.f32.gmra.mrb[0].mxu0 %v796
        %v1172 = vpop.f32.mrb[0].mxu0
        %v1173 = vadd.f32 0.0, %v1172
        %v1174 = vpop.f32.mrb[0].mxu0
        %1175 = vmatprep.mubr.f32.mxu0 %v833
        %1176 = vmatmul.mubr.f32.gmra.mrb[0].mxu0 %v797
        %v1177 = vpop.f32.mrb[0].mxu0
        %v1178 = vadd.f32 0.0, %v1177
        %v1179 = vpop.f32.mrb[0].mxu0
        %1180 = vmatprep.mubr.f32.mxu0 %v834
        %1181 = vmatmul.mubr.f32.gmra.mrb[0].mxu0 %v798
        %v1182 = vpop.f32.mrb[0].mxu0
        %v1183 = vadd.f32 0.0, %v1182
        %v1184 = vpop.f32.mrb[0].mxu0
        %1185 = vmatprep.mubr.f32.mxu0 %v835
        %1186 = vmatmul.mubr.f32.gmra.mrb[0].mxu0 %v799
        %v1187 = vpop.f32.mrb[0].mxu0
        %v1188 = vadd.f32 0.0, %v1187
        %v1189 = vpop.f32.mrb[0].mxu0
        %1190 = vmatprep.mubr.f32.mxu0 %v836
        %1191 = vmatmul.mubr.f32.gmra.mrb[0].mxu0 %v800
        %v1192 = vpop.f32.mrb[0].mxu0
        %v1193 = vadd.f32 0.0, %v1192
        %v1194 = vpop.f32.mrb[0].mxu0
        %1195 = vdwg.mxu0
        %1196 = vmatprep.subr.mxu0 0.0
        %1197 = vmatpush1.msra.mxu0 %v955
        %1198 = vmatprep.subr.mxu0 0.0
        %1199 = vmatpush1.msra.mxu0 %v956
        %1200 = vmatprep.subr.mxu0 0.0
        %1201 = vmatpush1.msra.mxu0 %v957
        %1202 = vmatprep.subr.mxu0 0.0
        %1203 = vmatpush1.msra.mxu0 %v958
        %1204 = vmatprep.subr.mxu0 0.0
        %1205 = vmatpush1.msra.mxu0 %v959
        %1206 = vmatprep.subr.mxu0 0.0
        %1207 = vmatpush1.msra.mxu0 %v960
        %1208 = vmatprep.subr.mxu0 0.0
        %1209 = vmatpush1.msra.mxu0 %v961
        %1210 = vmatprep.subr.mxu0 0.0
        %1211 = vmatpush1.msra.mxu0 %v962
        %1212 = vmatprep.subr.mxu0 0.0
        %1213 = vmatpush1.msra.mxu0 %v963
        %1214 = vmatprep.subr.mxu0 0.0
        %1215 = vmatpush1.msra.mxu0 %v964
        %1216 = vmatprep.subr.mxu0 0.0
        %1217 = vmatpush1.msra.mxu0 %v965
        %1218 = vmatprep.subr.mxu0 0.0
        %1219 = vmatpush1.msra.mxu0 %v966
        %1220 = vmatprep.subr.mxu0 0.0
        %1221 = vmatpush1.msra.mxu0 %v967
        %1222 = vmatprep.subr.mxu0 0.0
        %1223 = vmatpush1.msra.mxu0 %v968
        %1224 = vmatprep.subr.mxu0 0.0
        %1225 = vmatpush1.msra.mxu0 %v969
        %1226 = vmatprep.subr.mxu0 0.0
        %1227 = vmatpush1.msra.mxu0 %v970
        %1228 = vmatprep.subr.mxu0 0.0
        %1229 = vmatpush1.msra.mxu0 0.0
        %1230 = vmatprep.subr.mxu0 0.0
        %1231 = vmatpush1.msra.mxu0 0.0
        %1232 = vmatprep.subr.mxu0 0.0
        %1233 = vmatpush1.msra.mxu0 0.0
        %1234 = vmatprep.subr.mxu0 0.0
        %1235 = vmatpush1.msra.mxu0 0.0
        %1236 = vmatprep.subr.mxu0 0.0
        %1237 = vmatpush1.msra.mxu0 0.0
        %1238 = vmatprep.subr.mxu0 0.0
        %1239 = vmatpush1.msra.mxu0 0.0
        %1240 = vmatprep.subr.mxu0 0.0
        %1241 = vmatpush1.msra.mxu0 0.0
        %1242 = vmatprep.subr.mxu0 0.0
        %1243 = vmatpush1.msra.mxu0 0.0
        %1244 = vmatprep.subr.mxu0 0.0
        %1245 = vmatpush1.msra.mxu0 0.0
        %1246 = vmatprep.subr.mxu0 0.0
        %1247 = vmatpush1.msra.mxu0 0.0
        %1248 = vmatprep.subr.mxu0 0.0
        %1249 = vmatpush1.msra.mxu0 0.0
        %1250 = vmatprep.subr.mxu0 0.0
        %1251 = vmatpush1.msra.mxu0 0.0
        %1252 = vmatprep.subr.mxu0 0.0
        %1253 = vmatpush1.msra.mxu0 0.0
        %1254 = vmatprep.subr.mxu0 0.0
        %1255 = vmatpush1.msra.mxu0 0.0
        %1256 = vmatprep.subr.mxu0 0.0
        %1257 = vmatpush1.msra.mxu0 0.0
        %1258 = vmatprep.subr.mxu0 0.0
        %1259 = vmatpush1.msra.mxu0 0.0
        %1260 = vmatprep.mubr.f32.mxu0 0.0
        %1261 = vmatmul.mubr.f32.gmra.mrb[0].mxu0 %v841
        %v1262 = vpop.f32.mrb[0].mxu0
        %v1263 = vadd.f32 %v1038, %v1262
        %v1264 = vpop.f32.mrb[0].mxu0
        %1265 = vmatprep.mubr.f32.mxu0 0.0
        %1266 = vmatmul.mubr.f32.gmra.mrb[0].mxu0 %v842
        %v1267 = vpop.f32.mrb[0].mxu0
        %v1268 = vadd.f32 %v1043, %v1267
        %v1269 = vpop.f32.mrb[0].mxu0
        %1270 = vmatprep.mubr.f32.mxu0 0.0
        %1271 = vmatmul.mubr.f32.gmra.mrb[0].mxu0 %v843
        %v1272 = vpop.f32.mrb[0].mxu0
        %v1273 = vadd.f32 %v1048, %v1272
        %v1274 = vpop.f32.mrb[0].mxu0
        %1275 = vmatprep.mubr.f32.mxu0 0.0
        %1276 = vmatmul.mubr.f32.gmra.mrb[0].mxu0 %v844
        %v1277 = vpop.f32.mrb[0].mxu0
        %v1278 = vadd.f32 %v1053, %v1277
        %v1279 = vpop.f32.mrb[0].mxu0
        %1280 = vmatprep.mubr.f32.mxu0 0.0
        %1281 = vmatmul.mubr.f32.gmra.mrb[0].mxu0 %v845
        %v1282 = vpop.f32.mrb[0].mxu0
        %v1283 = vadd.f32 %v1058, %v1282
        %v1284 = vpop.f32.mrb[0].mxu0
        %1285 = vmatprep.mubr.f32.mxu0 0.0
        %1286 = vmatmul.mubr.f32.gmra.mrb[0].mxu0 %v846
        %v1287 = vpop.f32.mrb[0].mxu0
        %v1288 = vadd.f32 %v1063, %v1287
        %v1289 = vpop.f32.mrb[0].mxu0
        %1290 = vmatprep.mubr.f32.mxu0 0.0
        %1291 = vmatmul.mubr.f32.gmra.mrb[0].mxu0 %v847
        %v1292 = vpop.f32.mrb[0].mxu0
        %v1293 = vadd.f32 %v1068, %v1292
        %v1294 = vpop.f32.mrb[0].mxu0
        %1295 = vmatprep.mubr.f32.mxu0 0.0
        %1296 = vmatmul.mubr.f32.gmra.mrb[0].mxu0 %v848
        %v1297 = vpop.f32.mrb[0].mxu0
        %v1298 = vadd.f32 %v1073, %v1297
        %v1299 = vpop.f32.mrb[0].mxu0
        %1300 = vmatprep.mubr.f32.mxu0 0.0
        %1301 = vmatmul.mubr.f32.gmra.mrb[0].mxu0 %v849
        %v1302 = vpop.f32.mrb[0].mxu0
        %v1303 = vadd.f32 %v1078, %v1302
        %v1304 = vpop.f32.mrb[0].mxu0
        %1305 = vmatprep.mubr.f32.mxu0 0.0
        %1306 = vmatmul.mubr.f32.gmra.mrb[0].mxu0 %v850
        %v1307 = vpop.f32.mrb[0].mxu0
        %v1308 = vadd.f32 %v1083, %v1307
        %v1309 = vpop.f32.mrb[0].mxu0
        %1310 = vmatprep.mubr.f32.mxu0 0.0
        %1311 = vmatmul.mubr.f32.gmra.mrb[0].mxu0 %v851
        %v1312 = vpop.f32.mrb[0].mxu0
        %v1313 = vadd.f32 %v1088, %v1312
        %v1314 = vpop.f32.mrb[0].mxu0
        %1315 = vmatprep.mubr.f32.mxu0 0.0
        %1316 = vmatmul.mubr.f32.gmra.mrb[0].mxu0 %v852
        %v1317 = vpop.f32.mrb[0].mxu0
        %v1318 = vadd.f32 %v1093, %v1317
        %v1319 = vpop.f32.mrb[0].mxu0
        %1320 = vmatprep.mubr.f32.mxu0 0.0
        %1321 = vmatmul.mubr.f32.gmra.mrb[0].mxu0 %v853
        %v1322 = vpop.f32.mrb[0].mxu0
        %v1323 = vadd.f32 %v1098, %v1322
        %v1324 = vpop.f32.mrb[0].mxu0
        %1325 = vmatprep.mubr.f32.mxu0 0.0
        %1326 = vmatmul.mubr.f32.gmra.mrb[0].mxu0 %v854
        %v1327 = vpop.f32.mrb[0].mxu0
        %v1328 = vadd.f32 %v1103, %v1327
        %v1329 = vpop.f32.mrb[0].mxu0
        %1330 = vmatprep.mubr.f32.mxu0 0.0
        %1331 = vmatmul.mubr.f32.gmra.mrb[0].mxu0 %v855
        %v1332 = vpop.f32.mrb[0].mxu0
        %v1333 = vadd.f32 %v1108, %v1332
        %v1334 = vpop.f32.mrb[0].mxu0
        %1335 = vmatprep.mubr.f32.mxu0 0.0
        %1336 = vmatmul.mubr.f32.gmra.mrb[0].mxu0 %v856
        %v1337 = vpop.f32.mrb[0].mxu0
        %v1338 = vadd.f32 %v1113, %v1337
        %v1339 = vpop.f32.mrb[0].mxu0
        %1340 = vmatprep.mubr.f32.mxu0 0.0
        %1341 = vmatmul.mubr.f32.gmra.mrb[0].mxu0 %v857
        %v1342 = vpop.f32.mrb[0].mxu0
        %v1343 = vadd.f32 %v1118, %v1342
        %v1344 = vpop.f32.mrb[0].mxu0
        %1345 = vmatprep.mubr.f32.mxu0 0.0
        %1346 = vmatmul.mubr.f32.gmra.mrb[0].mxu0 %v858
        %v1347 = vpop.f32.mrb[0].mxu0
        %v1348 = vadd.f32 %v1123, %v1347
        %v1349 = vpop.f32.mrb[0].mxu0
        %1350 = vmatprep.mubr.f32.mxu0 0.0
        %1351 = vmatmul.mubr.f32.gmra.mrb[0].mxu0 %v859
        %v1352 = vpop.f32.mrb[0].mxu0
        %v1353 = vadd.f32 %v1128, %v1352
        %v1354 = vpop.f32.mrb[0].mxu0
        %1355 = vmatprep.mubr.f32.mxu0 0.0
        %1356 = vmatmul.mubr.f32.gmra.mrb[0].mxu0 %v860
        %v1357 = vpop.f32.mrb[0].mxu0
        %v1358 = vadd.f32 %v1133, %v1357
        %v1359 = vpop.f32.mrb[0].mxu0
        %1360 = vmatprep.mubr.f32.mxu0 0.0
        %1361 = vmatmul.mubr.f32.gmra.mrb[0].mxu0 %v861
        %v1362 = vpop.f32.mrb[0].mxu0
        %v1363 = vadd.f32 %v1138, %v1362
        %v1364 = vpop.f32.mrb[0].mxu0
        %1365 = vmatprep.mubr.f32.mxu0 0.0
        %1366 = vmatmul.mubr.f32.gmra.mrb[0].mxu0 %v862
        %v1367 = vpop.f32.mrb[0].mxu0
        %v1368 = vadd.f32 %v1143, %v1367
        %v1369 = vpop.f32.mrb[0].mxu0
        %1370 = vmatprep.mubr.f32.mxu0 0.0
        %1371 = vmatmul.mubr.f32.gmra.mrb[0].mxu0 %v863
        %v1372 = vpop.f32.mrb[0].mxu0
        %v1373 = vadd.f32 %v1148, %v1372
        %v1374 = vpop.f32.mrb[0].mxu0
        %1375 = vmatprep.mubr.f32.mxu0 0.0
        %1376 = vmatmul.mubr.f32.gmra.mrb[0].mxu0 %v864
        %v1377 = vpop.f32.mrb[0].mxu0
        %v1378 = vadd.f32 %v1153, %v1377
        %v1379 = vpop.f32.mrb[0].mxu0
        %1380 = vmatprep.mubr.f32.mxu0 0.0
        %1381 = vmatmul.mubr.f32.gmra.mrb[0].mxu0 %v865
        %v1382 = vpop.f32.mrb[0].mxu0
        %v1383 = vadd.f32 %v1158, %v1382
        %v1384 = vpop.f32.mrb[0].mxu0
        %1385 = vmatprep.mubr.f32.mxu0 0.0
        %1386 = vmatmul.mubr.f32.gmra.mrb[0].mxu0 %v866
        %v1387 = vpop.f32.mrb[0].mxu0
        %v1388 = vadd.f32 %v1163, %v1387
        %v1389 = vpop.f32.mrb[0].mxu0
        %1390 = vmatprep.mubr.f32.mxu0 0.0
        %1391 = vmatmul.mubr.f32.gmra.mrb[0].mxu0 %v867
        %v1392 = vpop.f32.mrb[0].mxu0
        %v1393 = vadd.f32 %v1168, %v1392
        %v1394 = vpop.f32.mrb[0].mxu0
        %1395 = vmatprep.mubr.f32.mxu0 0.0
        %1396 = vmatmul.mubr.f32.gmra.mrb[0].mxu0 %v868
        %v1397 = vpop.f32.mrb[0].mxu0
        %v1398 = vadd.f32 %v1173, %v1397
        %v1399 = vpop.f32.mrb[0].mxu0
        %1400 = vmatprep.mubr.f32.mxu0 0.0
        %1401 = vmatmul.mubr.f32.gmra.mrb[0].mxu0 %v869
        %v1402 = vpop.f32.mrb[0].mxu0
        %v1403 = vadd.f32 %v1178, %v1402
        %v1404 = vpop.f32.mrb[0].mxu0
        %1405 = vmatprep.mubr.f32.mxu0 0.0
        %1406 = vmatmul.mubr.f32.gmra.mrb[0].mxu0 %v870
        %v1407 = vpop.f32.mrb[0].mxu0
        %v1408 = vadd.f32 %v1183, %v1407
        %v1409 = vpop.f32.mrb[0].mxu0
        %1410 = vmatprep.mubr.f32.mxu0 0.0
        %1411 = vmatmul.mubr.f32.gmra.mrb[0].mxu0 %v871
        %v1412 = vpop.f32.mrb[0].mxu0
        %v1413 = vadd.f32 %v1188, %v1412
        %v1414 = vpop.f32.mrb[0].mxu0
        %1415 = vmatprep.mubr.f32.mxu0 0.0
        %1416 = vmatmul.mubr.f32.gmra.mrb[0].mxu0 %v872
        %v1417 = vpop.f32.mrb[0].mxu0
        %v1418 = vadd.f32 %v1193, %v1417
        %v1419 = vpop.f32.mrb[0].mxu0
        %1420 = vdwg.mxu0
        %1421 = vmatprep.subr.mxu0 0.0
        %1422 = vmatpush1.msra.mxu0 %v875
        %1423 = vmatprep.subr.mxu0 0.0
        %1424 = vmatpush1.msra.mxu0 %v876
        %1425 = vmatprep.subr.mxu0 0.0
        %1426 = vmatpush1.msra.mxu0 %v877
        %1427 = vmatprep.subr.mxu0 0.0
        %1428 = vmatpush1.msra.mxu0 %v878
        %1429 = vmatprep.subr.mxu0 0.0
        %1430 = vmatpush1.msra.mxu0 %v879
        %1431 = vmatprep.subr.mxu0 0.0
        %1432 = vmatpush1.msra.mxu0 %v880
        %1433 = vmatprep.subr.mxu0 0.0
        %1434 = vmatpush1.msra.mxu0 %v881
        %1435 = vmatprep.subr.mxu0 0.0
        %1436 = vmatpush1.msra.mxu0 %v882
        %1437 = vmatprep.subr.mxu0 0.0
        %1438 = vmatpush1.msra.mxu0 %v883
        %1439 = vmatprep.subr.mxu0 0.0
        %1440 = vmatpush1.msra.mxu0 %v884
        %1441 = vmatprep.subr.mxu0 0.0
        %1442 = vmatpush1.msra.mxu0 %v885
        %1443 = vmatprep.subr.mxu0 0.0
        %1444 = vmatpush1.msra.mxu0 %v886
        %1445 = vmatprep.subr.mxu0 0.0
        %1446 = vmatpush1.msra.mxu0 %v887
        %1447 = vmatprep.subr.mxu0 0.0
        %1448 = vmatpush1.msra.mxu0 %v888
        %1449 = vmatprep.subr.mxu0 0.0
        %1450 = vmatpush1.msra.mxu0 %v889
        %1451 = vmatprep.subr.mxu0 0.0
        %1452 = vmatpush1.msra.mxu0 %v890
        %1453 = vmatprep.subr.mxu0 0.0
        %1454 = vmatpush1.msra.mxu0 %v891
        %1455 = vmatprep.subr.mxu0 0.0
        %1456 = vmatpush1.msra.mxu0 %v892
        %1457 = vmatprep.subr.mxu0 0.0
        %1458 = vmatpush1.msra.mxu0 %v893
        %1459 = vmatprep.subr.mxu0 0.0
        %1460 = vmatpush1.msra.mxu0 %v894
        %1461 = vmatprep.subr.mxu0 0.0
        %1462 = vmatpush1.msra.mxu0 %v895
        %1463 = vmatprep.subr.mxu0 0.0
        %1464 = vmatpush1.msra.mxu0 %v896
        %1465 = vmatprep.subr.mxu0 0.0
        %1466 = vmatpush1.msra.mxu0 %v897
        %1467 = vmatprep.subr.mxu0 0.0
        %1468 = vmatpush1.msra.mxu0 %v898
        %1469 = vmatprep.subr.mxu0 0.0
        %1470 = vmatpush1.msra.mxu0 %v899
        %1471 = vmatprep.subr.mxu0 0.0
        %1472 = vmatpush1.msra.mxu0 %v900
        %1473 = vmatprep.subr.mxu0 0.0
        %1474 = vmatpush1.msra.mxu0 %v901
        %1475 = vmatprep.subr.mxu0 0.0
        %1476 = vmatpush1.msra.mxu0 %v902
        %1477 = vmatprep.subr.mxu0 0.0
        %1478 = vmatpush1.msra.mxu0 %v903
        %1479 = vmatprep.subr.mxu0 0.0
        %1480 = vmatpush1.msra.mxu0 %v904
        %1481 = vmatprep.subr.mxu0 0.0
        %1482 = vmatpush1.msra.mxu0 %v905
        %1483 = vmatprep.subr.mxu0 0.0
        %1484 = vmatpush1.msra.mxu0 %v906
        %1485 = vmatprep.mubr.f32.mxu0 %v803
        %1486 = vmatmul.mubr.f32.gmra.mrb[0].mxu0 %v767
        %v1487 = vpop.f32.mrb[0].mxu0
        %v1488 = vadd.f32 %v1263, %v1487
        %v1489 = vpop.f32.mrb[0].mxu0
        %1490 = vmatprep.mubr.f32.mxu0 %v804
        %1491 = vmatmul.mubr.f32.gmra.mrb[0].mxu0 %v768
        %v1492 = vpop.f32.mrb[0].mxu0
        %v1493 = vadd.f32 %v1268, %v1492
        %v1494 = vpop.f32.mrb[0].mxu0
        %1495 = vmatprep.mubr.f32.mxu0 %v805
        %1496 = vmatmul.mubr.f32.gmra.mrb[0].mxu0 %v769
        %v1497 = vpop.f32.mrb[0].mxu0
        %v1498 = vadd.f32 %v1273, %v1497
        %v1499 = vpop.f32.mrb[0].mxu0
        %1500 = vmatprep.mubr.f32.mxu0 %v806
        %1501 = vmatmul.mubr.f32.gmra.mrb[0].mxu0 %v770
        %v1502 = vpop.f32.mrb[0].mxu0
        %v1503 = vadd.f32 %v1278, %v1502
        %v1504 = vpop.f32.mrb[0].mxu0
        %1505 = vmatprep.mubr.f32.mxu0 %v807
        %1506 = vmatmul.mubr.f32.gmra.mrb[0].mxu0 %v771
        %v1507 = vpop.f32.mrb[0].mxu0
        %v1508 = vadd.f32 %v1283, %v1507
        %v1509 = vpop.f32.mrb[0].mxu0
        %1510 = vmatprep.mubr.f32.mxu0 %v808
        %1511 = vmatmul.mubr.f32.gmra.mrb[0].mxu0 %v772
        %v1512 = vpop.f32.mrb[0].mxu0
        %v1513 = vadd.f32 %v1288, %v1512
        %v1514 = vpop.f32.mrb[0].mxu0
        %1515 = vmatprep.mubr.f32.mxu0 %v809
        %1516 = vmatmul.mubr.f32.gmra.mrb[0].mxu0 %v773
        %v1517 = vpop.f32.mrb[0].mxu0
        %v1518 = vadd.f32 %v1293, %v1517
        %v1519 = vpop.f32.mrb[0].mxu0
        %1520 = vmatprep.mubr.f32.mxu0 %v810
        %1521 = vmatmul.mubr.f32.gmra.mrb[0].mxu0 %v774
        %v1522 = vpop.f32.mrb[0].mxu0
        %v1523 = vadd.f32 %v1298, %v1522
        %v1524 = vpop.f32.mrb[0].mxu0
        %1525 = vmatprep.mubr.f32.mxu0 %v811
        %1526 = vmatmul.mubr.f32.gmra.mrb[0].mxu0 %v775
        %v1527 = vpop.f32.mrb[0].mxu0
        %v1528 = vadd.f32 %v1303, %v1527
        %v1529 = vpop.f32.mrb[0].mxu0
        %1530 = vmatprep.mubr.f32.mxu0 %v812
        %1531 = vmatmul.mubr.f32.gmra.mrb[0].mxu0 %v776
        %v1532 = vpop.f32.mrb[0].mxu0
        %v1533 = vadd.f32 %v1308, %v1532
        %v1534 = vpop.f32.mrb[0].mxu0
        %1535 = vmatprep.mubr.f32.mxu0 %v813
        %1536 = vmatmul.mubr.f32.gmra.mrb[0].mxu0 %v777
        %v1537 = vpop.f32.mrb[0].mxu0
        %v1538 = vadd.f32 %v1313, %v1537
        %v1539 = vpop.f32.mrb[0].mxu0
        %1540 = vmatprep.mubr.f32.mxu0 %v814
        %1541 = vmatmul.mubr.f32.gmra.mrb[0].mxu0 %v778
        %v1542 = vpop.f32.mrb[0].mxu0
        %v1543 = vadd.f32 %v1318, %v1542
        %v1544 = vpop.f32.mrb[0].mxu0
        %1545 = vmatprep.mubr.f32.mxu0 %v815
        %1546 = vmatmul.mubr.f32.gmra.mrb[0].mxu0 %v779
        %v1547 = vpop.f32.mrb[0].mxu0
        %v1548 = vadd.f32 %v1323, %v1547
        %v1549 = vpop.f32.mrb[0].mxu0
        %1550 = vmatprep.mubr.f32.mxu0 %v816
        %1551 = vmatmul.mubr.f32.gmra.mrb[0].mxu0 %v780
        %v1552 = vpop.f32.mrb[0].mxu0
        %v1553 = vadd.f32 %v1328, %v1552
        %v1554 = vpop.f32.mrb[0].mxu0
        %1555 = vmatprep.mubr.f32.mxu0 %v817
        %1556 = vmatmul.mubr.f32.gmra.mrb[0].mxu0 %v781
        %v1557 = vpop.f32.mrb[0].mxu0
        %v1558 = vadd.f32 %v1333, %v1557
        %v1559 = vpop.f32.mrb[0].mxu0
        %1560 = vmatprep.mubr.f32.mxu0 %v818
        %1561 = vmatmul.mubr.f32.gmra.mrb[0].mxu0 %v782
        %v1562 = vpop.f32.mrb[0].mxu0
        %v1563 = vadd.f32 %v1338, %v1562
        %v1564 = vpop.f32.mrb[0].mxu0
        %1565 = vmatprep.mubr.f32.mxu0 %v819
        %1566 = vmatmul.mubr.f32.gmra.mrb[0].mxu0 %v783
        %v1567 = vpop.f32.mrb[0].mxu0
        %v1568 = vadd.f32 %v1343, %v1567
        %v1569 = vpop.f32.mrb[0].mxu0
        %1570 = vmatprep.mubr.f32.mxu0 %v820
        %1571 = vmatmul.mubr.f32.gmra.mrb[0].mxu0 %v784
        %v1572 = vpop.f32.mrb[0].mxu0
        %v1573 = vadd.f32 %v1348, %v1572
        %v1574 = vpop.f32.mrb[0].mxu0
        %1575 = vmatprep.mubr.f32.mxu0 %v821
        %1576 = vmatmul.mubr.f32.gmra.mrb[0].mxu0 %v785
        %v1577 = vpop.f32.mrb[0].mxu0
        %v1578 = vadd.f32 %v1353, %v1577
        %v1579 = vpop.f32.mrb[0].mxu0
        %1580 = vmatprep.mubr.f32.mxu0 %v822
        %1581 = vmatmul.mubr.f32.gmra.mrb[0].mxu0 %v786
        %v1582 = vpop.f32.mrb[0].mxu0
        %v1583 = vadd.f32 %v1358, %v1582
        %v1584 = vpop.f32.mrb[0].mxu0
        %1585 = vmatprep.mubr.f32.mxu0 %v823
        %1586 = vmatmul.mubr.f32.gmra.mrb[0].mxu0 %v787
        %v1587 = vpop.f32.mrb[0].mxu0
        %v1588 = vadd.f32 %v1363, %v1587
        %v1589 = vpop.f32.mrb[0].mxu0
        %1590 = vmatprep.mubr.f32.mxu0 %v824
        %1591 = vmatmul.mubr.f32.gmra.mrb[0].mxu0 %v788
        %v1592 = vpop.f32.mrb[0].mxu0
        %v1593 = vadd.f32 %v1368, %v1592
        %v1594 = vpop.f32.mrb[0].mxu0
        %1595 = vmatprep.mubr.f32.mxu0 %v825
        %1596 = vmatmul.mubr.f32.gmra.mrb[0].mxu0 %v789
        %v1597 = vpop.f32.mrb[0].mxu0
        %v1598 = vadd.f32 %v1373, %v1597
        %v1599 = vpop.f32.mrb[0].mxu0
        %1600 = vmatprep.mubr.f32.mxu0 %v826
        %1601 = vmatmul.mubr.f32.gmra.mrb[0].mxu0 %v790
        %v1602 = vpop.f32.mrb[0].mxu0
        %v1603 = vadd.f32 %v1378, %v1602
        %v1604 = vpop.f32.mrb[0].mxu0
        %1605 = vmatprep.mubr.f32.mxu0 %v827
        %1606 = vmatmul.mubr.f32.gmra.mrb[0].mxu0 %v791
        %v1607 = vpop.f32.mrb[0].mxu0
        %v1608 = vadd.f32 %v1383, %v1607
        %v1609 = vpop.f32.mrb[0].mxu0
        %1610 = vmatprep.mubr.f32.mxu0 %v828
        %1611 = vmatmul.mubr.f32.gmra.mrb[0].mxu0 %v792
        %v1612 = vpop.f32.mrb[0].mxu0
        %v1613 = vadd.f32 %v1388, %v1612
        %v1614 = vpop.f32.mrb[0].mxu0
        %1615 = vmatprep.mubr.f32.mxu0 %v829
        %1616 = vmatmul.mubr.f32.gmra.mrb[0].mxu0 %v793
        %v1617 = vpop.f32.mrb[0].mxu0
        %v1618 = vadd.f32 %v1393, %v1617
        %v1619 = vpop.f32.mrb[0].mxu0
        %1620 = vmatprep.mubr.f32.mxu0 %v830
        %1621 = vmatmul.mubr.f32.gmra.mrb[0].mxu0 %v794
        %v1622 = vpop.f32.mrb[0].mxu0
        %v1623 = vadd.f32 %v1398, %v1622
        %v1624 = vpop.f32.mrb[0].mxu0
        %1625 = vmatprep.mubr.f32.mxu0 %v831
        %1626 = vmatmul.mubr.f32.gmra.mrb[0].mxu0 %v795
        %v1627 = vpop.f32.mrb[0].mxu0
        %v1628 = vadd.f32 %v1403, %v1627
        %v1629 = vpop.f32.mrb[0].mxu0
        %1630 = vmatprep.mubr.f32.mxu0 %v832
        %1631 = vmatmul.mubr.f32.gmra.mrb[0].mxu0 %v796
        %v1632 = vpop.f32.mrb[0].mxu0
        %v1633 = vadd.f32 %v1408, %v1632
        %v1634 = vpop.f32.mrb[0].mxu0
        %1635 = vmatprep.mubr.f32.mxu0 %v833
        %1636 = vmatmul.mubr.f32.gmra.mrb[0].mxu0 %v797
        %v1637 = vpop.f32.mrb[0].mxu0
        %v1638 = vadd.f32 %v1413, %v1637
        %v1639 = vpop.f32.mrb[0].mxu0
        %1640 = vmatprep.mubr.f32.mxu0 %v834
        %1641 = vmatmul.mubr.f32.gmra.mrb[0].mxu0 %v798
        %v1642 = vpop.f32.mrb[0].mxu0
        %v1643 = vadd.f32 %v1418, %v1642
        %v1644 = vpop.f32.mrb[0].mxu0
        %1645 = vdwg.mxu0
        %1646 = vmatprep.subr.mxu0 0.0
        %1647 = vmatpush1.msra.mxu0 %v907
        %1648 = vmatprep.subr.mxu0 0.0
        %1649 = vmatpush1.msra.mxu0 %v908
        %1650 = vmatprep.subr.mxu0 0.0
        %1651 = vmatpush1.msra.mxu0 %v909
        %1652 = vmatprep.subr.mxu0 0.0
        %1653 = vmatpush1.msra.mxu0 %v910
        %1654 = vmatprep.subr.mxu0 0.0
        %1655 = vmatpush1.msra.mxu0 %v911
        %1656 = vmatprep.subr.mxu0 0.0
        %1657 = vmatpush1.msra.mxu0 %v912
        %1658 = vmatprep.subr.mxu0 0.0
        %1659 = vmatpush1.msra.mxu0 %v913
        %1660 = vmatprep.subr.mxu0 0.0
        %1661 = vmatpush1.msra.mxu0 %v914
        %1662 = vmatprep.subr.mxu0 0.0
        %1663 = vmatpush1.msra.mxu0 %v915
        %1664 = vmatprep.subr.mxu0 0.0
        %1665 = vmatpush1.msra.mxu0 %v916
        %1666 = vmatprep.subr.mxu0 0.0
        %1667 = vmatpush1.msra.mxu0 %v917
        %1668 = vmatprep.subr.mxu0 0.0
        %1669 = vmatpush1.msra.mxu0 %v918
        %1670 = vmatprep.subr.mxu0 0.0
        %1671 = vmatpush1.msra.mxu0 %v919
        %1672 = vmatprep.subr.mxu0 0.0
        %1673 = vmatpush1.msra.mxu0 %v920
        %1674 = vmatprep.subr.mxu0 0.0
        %1675 = vmatpush1.msra.mxu0 %v921
        %1676 = vmatprep.subr.mxu0 0.0
        %1677 = vmatpush1.msra.mxu0 %v922
        %1678 = vmatprep.subr.mxu0 0.0
        %1679 = vmatpush1.msra.mxu0 0.0
        %1680 = vmatprep.subr.mxu0 0.0
        %1681 = vmatpush1.msra.mxu0 0.0
        %1682 = vmatprep.subr.mxu0 0.0
        %1683 = vmatpush1.msra.mxu0 0.0
        %1684 = vmatprep.subr.mxu0 0.0
        %1685 = vmatpush1.msra.mxu0 0.0
        %1686 = vmatprep.subr.mxu0 0.0
        %1687 = vmatpush1.msra.mxu0 0.0
        %1688 = vmatprep.subr.mxu0 0.0
        %1689 = vmatpush1.msra.mxu0 0.0
        %1690 = vmatprep.subr.mxu0 0.0
        %1691 = vmatpush1.msra.mxu0 0.0
        %1692 = vmatprep.subr.mxu0 0.0
        %1693 = vmatpush1.msra.mxu0 0.0
        %1694 = vmatprep.subr.mxu0 0.0
        %1695 = vmatpush1.msra.mxu0 0.0
        %1696 = vmatprep.subr.mxu0 0.0
        %1697 = vmatpush1.msra.mxu0 0.0
        %1698 = vmatprep.subr.mxu0 0.0
        %1699 = vmatpush1.msra.mxu0 0.0
        %1700 = vmatprep.subr.mxu0 0.0
        %1701 = vmatpush1.msra.mxu0 0.0
        %1702 = vmatprep.subr.mxu0 0.0
        %1703 = vmatpush1.msra.mxu0 0.0
        %1704 = vmatprep.subr.mxu0 0.0
        %1705 = vmatpush1.msra.mxu0 0.0
        %1706 = vmatprep.subr.mxu0 0.0
        %1707 = vmatpush1.msra.mxu0 0.0
        %1708 = vmatprep.subr.mxu0 0.0
        %1709 = vmatpush1.msra.mxu0 0.0
        %1710 = vmatprep.mubr.f32.mxu0 0.0
        %1711 = vmatmul.mubr.f32.gmra.mrb[0].mxu0 %v839
        %v1712 = vpop.f32.mrb[0].mxu0
        %v1713 = vadd.f32 %v1488, %v1712
        %v1714 = vpop.f32.mrb[0].mxu0
        %1715 = vmatprep.mubr.f32.mxu0 0.0
        %1716 = vmatmul.mubr.f32.gmra.mrb[0].mxu0 %v840
        %v1717 = vpop.f32.mrb[0].mxu0
        %v1718 = vadd.f32 %v1493, %v1717
        %v1719 = vpop.f32.mrb[0].mxu0
        %1720 = vmatprep.mubr.f32.mxu0 0.0
        %1721 = vmatmul.mubr.f32.gmra.mrb[0].mxu0 %v841
        %v1722 = vpop.f32.mrb[0].mxu0
        %v1723 = vadd.f32 %v1498, %v1722
        %v1724 = vpop.f32.mrb[0].mxu0
        %1725 = vmatprep.mubr.f32.mxu0 0.0
        %1726 = vmatmul.mubr.f32.gmra.mrb[0].mxu0 %v842
        %v1727 = vpop.f32.mrb[0].mxu0
        %v1728 = vadd.f32 %v1503, %v1727
        %v1729 = vpop.f32.mrb[0].mxu0
        %1730 = vmatprep.mubr.f32.mxu0 0.0
        %1731 = vmatmul.mubr.f32.gmra.mrb[0].mxu0 %v843
        %v1732 = vpop.f32.mrb[0].mxu0
        %v1733 = vadd.f32 %v1508, %v1732
        %v1734 = vpop.f32.mrb[0].mxu0
        %1735 = vmatprep.mubr.f32.mxu0 0.0
        %1736 = vmatmul.mubr.f32.gmra.mrb[0].mxu0 %v844
        %v1737 = vpop.f32.mrb[0].mxu0
        %v1738 = vadd.f32 %v1513, %v1737
        %v1739 = vpop.f32.mrb[0].mxu0
        %1740 = vmatprep.mubr.f32.mxu0 0.0
        %1741 = vmatmul.mubr.f32.gmra.mrb[0].mxu0 %v845
        %v1742 = vpop.f32.mrb[0].mxu0
        %v1743 = vadd.f32 %v1518, %v1742
        %v1744 = vpop.f32.mrb[0].mxu0
        %1745 = vmatprep.mubr.f32.mxu0 0.0
        %1746 = vmatmul.mubr.f32.gmra.mrb[0].mxu0 %v846
        %v1747 = vpop.f32.mrb[0].mxu0
        %v1748 = vadd.f32 %v1523, %v1747
        %v1749 = vpop.f32.mrb[0].mxu0
        %1750 = vmatprep.mubr.f32.mxu0 0.0
        %1751 = vmatmul.mubr.f32.gmra.mrb[0].mxu0 %v847
        %v1752 = vpop.f32.mrb[0].mxu0
        %v1753 = vadd.f32 %v1528, %v1752
        %v1754 = vpop.f32.mrb[0].mxu0
        %1755 = vmatprep.mubr.f32.mxu0 0.0
        %1756 = vmatmul.mubr.f32.gmra.mrb[0].mxu0 %v848
        %v1757 = vpop.f32.mrb[0].mxu0
        %v1758 = vadd.f32 %v1533, %v1757
        %v1759 = vpop.f32.mrb[0].mxu0
        %1760 = vmatprep.mubr.f32.mxu0 0.0
        %1761 = vmatmul.mubr.f32.gmra.mrb[0].mxu0 %v849
        %v1762 = vpop.f32.mrb[0].mxu0
        %v1763 = vadd.f32 %v1538, %v1762
        %v1764 = vpop.f32.mrb[0].mxu0
        %1765 = vmatprep.mubr.f32.mxu0 0.0
        %1766 = vmatmul.mubr.f32.gmra.mrb[0].mxu0 %v850
        %v1767 = vpop.f32.mrb[0].mxu0
        %v1768 = vadd.f32 %v1543, %v1767
        %v1769 = vpop.f32.mrb[0].mxu0
        %1770 = vmatprep.mubr.f32.mxu0 0.0
        %1771 = vmatmul.mubr.f32.gmra.mrb[0].mxu0 %v851
        %v1772 = vpop.f32.mrb[0].mxu0
        %v1773 = vadd.f32 %v1548, %v1772
        %v1774 = vpop.f32.mrb[0].mxu0
        %1775 = vmatprep.mubr.f32.mxu0 0.0
        %1776 = vmatmul.mubr.f32.gmra.mrb[0].mxu0 %v852
        %v1777 = vpop.f32.mrb[0].mxu0
        %v1778 = vadd.f32 %v1553, %v1777
        %v1779 = vpop.f32.mrb[0].mxu0
        %1780 = vmatprep.mubr.f32.mxu0 0.0
        %1781 = vmatmul.mubr.f32.gmra.mrb[0].mxu0 %v853
        %v1782 = vpop.f32.mrb[0].mxu0
        %v1783 = vadd.f32 %v1558, %v1782
        %v1784 = vpop.f32.mrb[0].mxu0
        %1785 = vmatprep.mubr.f32.mxu0 0.0
        %1786 = vmatmul.mubr.f32.gmra.mrb[0].mxu0 %v854
        %v1787 = vpop.f32.mrb[0].mxu0
        %v1788 = vadd.f32 %v1563, %v1787
        %v1789 = vpop.f32.mrb[0].mxu0
        %1790 = vmatprep.mubr.f32.mxu0 0.0
        %1791 = vmatmul.mubr.f32.gmra.mrb[0].mxu0 %v855
        %v1792 = vpop.f32.mrb[0].mxu0
        %v1793 = vadd.f32 %v1568, %v1792
        %v1794 = vpop.f32.mrb[0].mxu0
        %1795 = vmatprep.mubr.f32.mxu0 0.0
        %1796 = vmatmul.mubr.f32.gmra.mrb[0].mxu0 %v856
        %v1797 = vpop.f32.mrb[0].mxu0
        %v1798 = vadd.f32 %v1573, %v1797
        %v1799 = vpop.f32.mrb[0].mxu0
        %1800 = vmatprep.mubr.f32.mxu0 0.0
        %1801 = vmatmul.mubr.f32.gmra.mrb[0].mxu0 %v857
        %v1802 = vpop.f32.mrb[0].mxu0
        %v1803 = vadd.f32 %v1578, %v1802
        %v1804 = vpop.f32.mrb[0].mxu0
        %1805 = vmatprep.mubr.f32.mxu0 0.0
        %1806 = vmatmul.mubr.f32.gmra.mrb[0].mxu0 %v858
        %v1807 = vpop.f32.mrb[0].mxu0
        %v1808 = vadd.f32 %v1583, %v1807
        %v1809 = vpop.f32.mrb[0].mxu0
        %1810 = vmatprep.mubr.f32.mxu0 0.0
        %1811 = vmatmul.mubr.f32.gmra.mrb[0].mxu0 %v859
        %v1812 = vpop.f32.mrb[0].mxu0
        %v1813 = vadd.f32 %v1588, %v1812
        %v1814 = vpop.f32.mrb[0].mxu0
        %1815 = vmatprep.mubr.f32.mxu0 0.0
        %1816 = vmatmul.mubr.f32.gmra.mrb[0].mxu0 %v860
        %v1817 = vpop.f32.mrb[0].mxu0
        %v1818 = vadd.f32 %v1593, %v1817
        %v1819 = vpop.f32.mrb[0].mxu0
        %1820 = vmatprep.mubr.f32.mxu0 0.0
        %1821 = vmatmul.mubr.f32.gmra.mrb[0].mxu0 %v861
        %v1822 = vpop.f32.mrb[0].mxu0
        %v1823 = vadd.f32 %v1598, %v1822
        %v1824 = vpop.f32.mrb[0].mxu0
        %1825 = vmatprep.mubr.f32.mxu0 0.0
        %1826 = vmatmul.mubr.f32.gmra.mrb[0].mxu0 %v862
        %v1827 = vpop.f32.mrb[0].mxu0
        %v1828 = vadd.f32 %v1603, %v1827
        %v1829 = vpop.f32.mrb[0].mxu0
        %1830 = vmatprep.mubr.f32.mxu0 0.0
        %1831 = vmatmul.mubr.f32.gmra.mrb[0].mxu0 %v863
        %v1832 = vpop.f32.mrb[0].mxu0
        %v1833 = vadd.f32 %v1608, %v1832
        %v1834 = vpop.f32.mrb[0].mxu0
        %1835 = vmatprep.mubr.f32.mxu0 0.0
        %1836 = vmatmul.mubr.f32.gmra.mrb[0].mxu0 %v864
        %v1837 = vpop.f32.mrb[0].mxu0
        %v1838 = vadd.f32 %v1613, %v1837
        %v1839 = vpop.f32.mrb[0].mxu0
        %1840 = vmatprep.mubr.f32.mxu0 0.0
        %1841 = vmatmul.mubr.f32.gmra.mrb[0].mxu0 %v865
        %v1842 = vpop.f32.mrb[0].mxu0
        %v1843 = vadd.f32 %v1618, %v1842
        %v1844 = vpop.f32.mrb[0].mxu0
        %1845 = vmatprep.mubr.f32.mxu0 0.0
        %1846 = vmatmul.mubr.f32.gmra.mrb[0].mxu0 %v866
        %v1847 = vpop.f32.mrb[0].mxu0
        %v1848 = vadd.f32 %v1623, %v1847
        %v1849 = vpop.f32.mrb[0].mxu0
        %1850 = vmatprep.mubr.f32.mxu0 0.0
        %1851 = vmatmul.mubr.f32.gmra.mrb[0].mxu0 %v867
        %v1852 = vpop.f32.mrb[0].mxu0
        %v1853 = vadd.f32 %v1628, %v1852
        %v1854 = vpop.f32.mrb[0].mxu0
        %1855 = vmatprep.mubr.f32.mxu0 0.0
        %1856 = vmatmul.mubr.f32.gmra.mrb[0].mxu0 %v868
        %v1857 = vpop.f32.mrb[0].mxu0
        %v1858 = vadd.f32 %v1633, %v1857
        %v1859 = vpop.f32.mrb[0].mxu0
        %1860 = vmatprep.mubr.f32.mxu0 0.0
        %1861 = vmatmul.mubr.f32.gmra.mrb[0].mxu0 %v869
        %v1862 = vpop.f32.mrb[0].mxu0
        %v1863 = vadd.f32 %v1638, %v1862
        %v1864 = vpop.f32.mrb[0].mxu0
        %1865 = vmatprep.mubr.f32.mxu0 0.0
        %1866 = vmatmul.mubr.f32.gmra.mrb[0].mxu0 %v870
        %v1867 = vpop.f32.mrb[0].mxu0
        %v1868 = vadd.f32 %v1643, %v1867
        %v1869 = vpop.f32.mrb[0].mxu0
        %1870 = vdwg.mxu0
        %v1871 = vld [vmem:[%s3 + $0x300] sm:$0xff]
        %v1872 = vld [vmem:[%s3 + $0x308] sm:$0xff]
        %v1873 = vld [vmem:[%s3 + $0x310] sm:$0xff]
        %v1874 = vld [vmem:[%s3 + $0x318] sm:$0xff]
        %v1875 = vld [vmem:[%s3 + $0x320] sm:$0xff]
        %v1876 = vld [vmem:[%s3 + $0x328] sm:$0xff]
        %v1877 = vld [vmem:[%s3 + $0x330] sm:$0xff]
        %v1878 = vld [vmem:[%s3 + $0x338] sm:$0xff]
        %v1879 = vld [vmem:[%s3 + $0x340] sm:$0xff]
        %v1880 = vld [vmem:[%s3 + $0x348] sm:$0xff]
        %v1881 = vld [vmem:[%s3 + $0x350] sm:$0xff]
        %v1882 = vld [vmem:[%s3 + $0x358] sm:$0xff]
        %v1883 = vld [vmem:[%s3 + $0x360] sm:$0xff]
        %v1884 = vld [vmem:[%s3 + $0x368] sm:$0xff]
        %v1885 = vld [vmem:[%s3 + $0x370] sm:$0xff]
        %v1886 = vld [vmem:[%s3 + $0x378] sm:$0xff]
        %v1887 = vld [vmem:[%s3 + $0x380] sm:$0xff]
        %v1888 = vld [vmem:[%s3 + $0x388] sm:$0xff]
        %v1889 = vld [vmem:[%s3 + $0x390] sm:$0xff]
        %v1890 = vld [vmem:[%s3 + $0x398] sm:$0xff]
        %v1891 = vld [vmem:[%s3 + $0x3a0] sm:$0xff]
        %v1892 = vld [vmem:[%s3 + $0x3a8] sm:$0xff]
        %v1893 = vld [vmem:[%s3 + $0x3b0] sm:$0xff]
        %v1894 = vld [vmem:[%s3 + $0x3b8] sm:$0xff]
        %v1895 = vld [vmem:[%s3 + $0x3c0] sm:$0xff]
        %v1896 = vld [vmem:[%s3 + $0x3c8] sm:$0xff]
        %v1897 = vld [vmem:[%s3 + $0x3d0] sm:$0xff]
        %v1898 = vld [vmem:[%s3 + $0x3d8] sm:$0xff]
        %v1899 = vld [vmem:[%s3 + $0x3e0] sm:$0xff]
        %v1900 = vld [vmem:[%s3 + $0x3e8] sm:$0xff]
        %v1901 = vld [vmem:[%s3 + $0x3f0] sm:$0xff]
        %v1902 = vld [vmem:[%s3 + $0x3f8] sm:$0xff]
        %v1903 = vld [vmem:[%s3 + $0x400] sm:$0xff]
        %v1904 = vld [vmem:[%s3 + $0x408] sm:$0xff]
        %v1905 = vld [vmem:[%s3 + $0x410] sm:$0xff]
        %v1906 = vld [vmem:[%s3 + $0x418] sm:$0xff]
        %v1907 = vld [vmem:[%s3 + $0x420] sm:$0xff]
        %v1908 = vld [vmem:[%s3 + $0x428] sm:$0xff]
        %v1909 = vld [vmem:[%s3 + $0x430] sm:$0xff]
        %v1910 = vld [vmem:[%s3 + $0x438] sm:$0xff]
        %v1911 = vld [vmem:[%s3 + $0x440] sm:$0xff]
        %v1912 = vld [vmem:[%s3 + $0x448] sm:$0xff]
        %v1913 = vld [vmem:[%s3 + $0x450] sm:$0xff]
        %v1914 = vld [vmem:[%s3 + $0x458] sm:$0xff]
        %v1915 = vld [vmem:[%s3 + $0x460] sm:$0xff]
        %v1916 = vld [vmem:[%s3 + $0x468] sm:$0xff]
        %v1917 = vld [vmem:[%s3 + $0x470] sm:$0xff]
        %v1918 = vld [vmem:[%s3 + $0x478] sm:$0xff]
        %1919 = vmatprep.subr.mxu0 0.0
        %1920 = vmatpush1.msra.mxu0 %v1871
        %1921 = vmatprep.subr.mxu0 0.0
        %1922 = vmatpush1.msra.mxu0 %v1872
        %1923 = vmatprep.subr.mxu0 0.0
        %1924 = vmatpush1.msra.mxu0 %v1873
        %1925 = vmatprep.subr.mxu0 0.0
        %1926 = vmatpush1.msra.mxu0 %v1874
        %1927 = vmatprep.subr.mxu0 0.0
        %1928 = vmatpush1.msra.mxu0 %v1875
        %1929 = vmatprep.subr.mxu0 0.0
        %1930 = vmatpush1.msra.mxu0 %v1876
        %1931 = vmatprep.subr.mxu0 0.0
        %1932 = vmatpush1.msra.mxu0 %v1877
        %1933 = vmatprep.subr.mxu0 0.0
        %1934 = vmatpush1.msra.mxu0 %v1878
        %1935 = vmatprep.subr.mxu0 0.0
        %1936 = vmatpush1.msra.mxu0 %v1879
        %1937 = vmatprep.subr.mxu0 0.0
        %1938 = vmatpush1.msra.mxu0 %v1880
        %1939 = vmatprep.subr.mxu0 0.0
        %1940 = vmatpush1.msra.mxu0 %v1881
        %1941 = vmatprep.subr.mxu0 0.0
        %1942 = vmatpush1.msra.mxu0 %v1882
        %1943 = vmatprep.subr.mxu0 0.0
        %1944 = vmatpush1.msra.mxu0 %v1883
        %1945 = vmatprep.subr.mxu0 0.0
        %1946 = vmatpush1.msra.mxu0 %v1884
        %1947 = vmatprep.subr.mxu0 0.0
        %1948 = vmatpush1.msra.mxu0 %v1885
        %1949 = vmatprep.subr.mxu0 0.0
        %1950 = vmatpush1.msra.mxu0 %v1886
        %1951 = vmatprep.subr.mxu0 0.0
        %1952 = vmatpush1.msra.mxu0 %v1887
        %1953 = vmatprep.subr.mxu0 0.0
        %1954 = vmatpush1.msra.mxu0 %v1888
        %1955 = vmatprep.subr.mxu0 0.0
        %1956 = vmatpush1.msra.mxu0 %v1889
        %1957 = vmatprep.subr.mxu0 0.0
        %1958 = vmatpush1.msra.mxu0 %v1890
        %1959 = vmatprep.subr.mxu0 0.0
        %1960 = vmatpush1.msra.mxu0 %v1891
        %1961 = vmatprep.subr.mxu0 0.0
        %1962 = vmatpush1.msra.mxu0 %v1892
        %1963 = vmatprep.subr.mxu0 0.0
        %1964 = vmatpush1.msra.mxu0 %v1893
        %1965 = vmatprep.subr.mxu0 0.0
        %1966 = vmatpush1.msra.mxu0 %v1894
        %1967 = vmatprep.subr.mxu0 0.0
        %1968 = vmatpush1.msra.mxu0 %v1895
        %1969 = vmatprep.subr.mxu0 0.0
        %1970 = vmatpush1.msra.mxu0 %v1896
        %1971 = vmatprep.subr.mxu0 0.0
        %1972 = vmatpush1.msra.mxu0 %v1897
        %1973 = vmatprep.subr.mxu0 0.0
        %1974 = vmatpush1.msra.mxu0 %v1898
        %1975 = vmatprep.subr.mxu0 0.0
        %1976 = vmatpush1.msra.mxu0 %v1899
        %1977 = vmatprep.subr.mxu0 0.0
        %1978 = vmatpush1.msra.mxu0 %v1900
        %1979 = vmatprep.subr.mxu0 0.0
        %1980 = vmatpush1.msra.mxu0 %v1901
        %1981 = vmatprep.subr.mxu0 0.0
        %1982 = vmatpush1.msra.mxu0 %v1902
        %1983 = vmatprep.mubr.f32.mxu0 %v807
        %1984 = vmatmul.mubr.f32.gmra.mrb[0].mxu0 %v771
        %v1985 = vpop.f32.mrb[0].mxu0
        %v1986 = vadd.f32 0.0, %v1985
        %v1987 = vpop.f32.mrb[0].mxu0
        %1988 = vmatprep.mubr.f32.mxu0 %v808
        %1989 = vmatmul.mubr.f32.gmra.mrb[0].mxu0 %v772
        %v1990 = vpop.f32.mrb[0].mxu0
        %v1991 = vadd.f32 0.0, %v1990
        %v1992 = vpop.f32.mrb[0].mxu0
        %1993 = vmatprep.mubr.f32.mxu0 %v809
        %1994 = vmatmul.mubr.f32.gmra.mrb[0].mxu0 %v773
        %v1995 = vpop.f32.mrb[0].mxu0
        %v1996 = vadd.f32 0.0, %v1995
        %v1997 = vpop.f32.mrb[0].mxu0
        %1998 = vmatprep.mubr.f32.mxu0 %v810
        %1999 = vmatmul.mubr.f32.gmra.mrb[0].mxu0 %v774
        %v2000 = vpop.f32.mrb[0].mxu0
        %v2001 = vadd.f32 0.0, %v2000
        %v2002 = vpop.f32.mrb[0].mxu0
        %2003 = vmatprep.mubr.f32.mxu0 %v811
        %2004 = vmatmul.mubr.f32.gmra.mrb[0].mxu0 %v775
        %v2005 = vpop.f32.mrb[0].mxu0
        %v2006 = vadd.f32 0.0, %v2005
        %v2007 = vpop.f32.mrb[0].mxu0
        %2008 = vmatprep.mubr.f32.mxu0 %v812
        %2009 = vmatmul.mubr.f32.gmra.mrb[0].mxu0 %v776
        %v2010 = vpop.f32.mrb[0].mxu0
        %v2011 = vadd.f32 0.0, %v2010
        %v2012 = vpop.f32.mrb[0].mxu0
        %2013 = vmatprep.mubr.f32.mxu0 %v813
        %2014 = vmatmul.mubr.f32.gmra.mrb[0].mxu0 %v777
        %v2015 = vpop.f32.mrb[0].mxu0
        %v2016 = vadd.f32 0.0, %v2015
        %v2017 = vpop.f32.mrb[0].mxu0
        %2018 = vmatprep.mubr.f32.mxu0 %v814
        %2019 = vmatmul.mubr.f32.gmra.mrb[0].mxu0 %v778
        %v2020 = vpop.f32.mrb[0].mxu0
        %v2021 = vadd.f32 0.0, %v2020
        %v2022 = vpop.f32.mrb[0].mxu0
        %2023 = vmatprep.mubr.f32.mxu0 %v815
        %2024 = vmatmul.mubr.f32.gmra.mrb[0].mxu0 %v779
        %v2025 = vpop.f32.mrb[0].mxu0
        %v2026 = vadd.f32 0.0, %v2025
        %v2027 = vpop.f32.mrb[0].mxu0
        %2028 = vmatprep.mubr.f32.mxu0 %v816
        %2029 = vmatmul.mubr.f32.gmra.mrb[0].mxu0 %v780
        %v2030 = vpop.f32.mrb[0].mxu0
        %v2031 = vadd.f32 0.0, %v2030
        %v2032 = vpop.f32.mrb[0].mxu0
        %2033 = vmatprep.mubr.f32.mxu0 %v817
        %2034 = vmatmul.mubr.f32.gmra.mrb[0].mxu0 %v781
        %v2035 = vpop.f32.mrb[0].mxu0
        %v2036 = vadd.f32 0.0, %v2035
        %v2037 = vpop.f32.mrb[0].mxu0
        %2038 = vmatprep.mubr.f32.mxu0 %v818
        %2039 = vmatmul.mubr.f32.gmra.mrb[0].mxu0 %v782
        %v2040 = vpop.f32.mrb[0].mxu0
        %v2041 = vadd.f32 0.0, %v2040
        %v2042 = vpop.f32.mrb[0].mxu0
        %2043 = vmatprep.mubr.f32.mxu0 %v819
        %2044 = vmatmul.mubr.f32.gmra.mrb[0].mxu0 %v783
        %v2045 = vpop.f32.mrb[0].mxu0
        %v2046 = vadd.f32 0.0, %v2045
        %v2047 = vpop.f32.mrb[0].mxu0
        %2048 = vmatprep.mubr.f32.mxu0 %v820
        %2049 = vmatmul.mubr.f32.gmra.mrb[0].mxu0 %v784
        %v2050 = vpop.f32.mrb[0].mxu0
        %v2051 = vadd.f32 0.0, %v2050
        %v2052 = vpop.f32.mrb[0].mxu0
        %2053 = vmatprep.mubr.f32.mxu0 %v821
        %2054 = vmatmul.mubr.f32.gmra.mrb[0].mxu0 %v785
        %v2055 = vpop.f32.mrb[0].mxu0
        %v2056 = vadd.f32 0.0, %v2055
        %v2057 = vpop.f32.mrb[0].mxu0
        %2058 = vmatprep.mubr.f32.mxu0 %v822
        %2059 = vmatmul.mubr.f32.gmra.mrb[0].mxu0 %v786
        %v2060 = vpop.f32.mrb[0].mxu0
        %v2061 = vadd.f32 0.0, %v2060
        %v2062 = vpop.f32.mrb[0].mxu0
        %2063 = vmatprep.mubr.f32.mxu0 %v823
        %2064 = vmatmul.mubr.f32.gmra.mrb[0].mxu0 %v787
        %v2065 = vpop.f32.mrb[0].mxu0
        %v2066 = vadd.f32 0.0, %v2065
        %v2067 = vpop.f32.mrb[0].mxu0
        %2068 = vmatprep.mubr.f32.mxu0 %v824
        %2069 = vmatmul.mubr.f32.gmra.mrb[0].mxu0 %v788
        %v2070 = vpop.f32.mrb[0].mxu0
        %v2071 = vadd.f32 0.0, %v2070
        %v2072 = vpop.f32.mrb[0].mxu0
        %2073 = vmatprep.mubr.f32.mxu0 %v825
        %2074 = vmatmul.mubr.f32.gmra.mrb[0].mxu0 %v789
        %v2075 = vpop.f32.mrb[0].mxu0
        %v2076 = vadd.f32 0.0, %v2075
        %v2077 = vpop.f32.mrb[0].mxu0
        %2078 = vmatprep.mubr.f32.mxu0 %v826
        %2079 = vmatmul.mubr.f32.gmra.mrb[0].mxu0 %v790
        %v2080 = vpop.f32.mrb[0].mxu0
        %v2081 = vadd.f32 0.0, %v2080
        %v2082 = vpop.f32.mrb[0].mxu0
        %2083 = vmatprep.mubr.f32.mxu0 %v827
        %2084 = vmatmul.mubr.f32.gmra.mrb[0].mxu0 %v791
        %v2085 = vpop.f32.mrb[0].mxu0
        %v2086 = vadd.f32 0.0, %v2085
        %v2087 = vpop.f32.mrb[0].mxu0
        %2088 = vmatprep.mubr.f32.mxu0 %v828
        %2089 = vmatmul.mubr.f32.gmra.mrb[0].mxu0 %v792
        %v2090 = vpop.f32.mrb[0].mxu0
        %v2091 = vadd.f32 0.0, %v2090
        %v2092 = vpop.f32.mrb[0].mxu0
        %2093 = vmatprep.mubr.f32.mxu0 %v829
        %2094 = vmatmul.mubr.f32.gmra.mrb[0].mxu0 %v793
        %v2095 = vpop.f32.mrb[0].mxu0
        %v2096 = vadd.f32 0.0, %v2095
        %v2097 = vpop.f32.mrb[0].mxu0
        %2098 = vmatprep.mubr.f32.mxu0 %v830
        %2099 = vmatmul.mubr.f32.gmra.mrb[0].mxu0 %v794
        %v2100 = vpop.f32.mrb[0].mxu0
        %v2101 = vadd.f32 0.0, %v2100
        %v2102 = vpop.f32.mrb[0].mxu0
        %2103 = vmatprep.mubr.f32.mxu0 %v831
        %2104 = vmatmul.mubr.f32.gmra.mrb[0].mxu0 %v795
        %v2105 = vpop.f32.mrb[0].mxu0
        %v2106 = vadd.f32 0.0, %v2105
        %v2107 = vpop.f32.mrb[0].mxu0
        %2108 = vmatprep.mubr.f32.mxu0 %v832
        %2109 = vmatmul.mubr.f32.gmra.mrb[0].mxu0 %v796
        %v2110 = vpop.f32.mrb[0].mxu0
        %v2111 = vadd.f32 0.0, %v2110
        %v2112 = vpop.f32.mrb[0].mxu0
        %2113 = vmatprep.mubr.f32.mxu0 %v833
        %2114 = vmatmul.mubr.f32.gmra.mrb[0].mxu0 %v797
        %v2115 = vpop.f32.mrb[0].mxu0
        %v2116 = vadd.f32 0.0, %v2115
        %v2117 = vpop.f32.mrb[0].mxu0
        %2118 = vmatprep.mubr.f32.mxu0 %v834
        %2119 = vmatmul.mubr.f32.gmra.mrb[0].mxu0 %v798
        %v2120 = vpop.f32.mrb[0].mxu0
        %v2121 = vadd.f32 0.0, %v2120
        %v2122 = vpop.f32.mrb[0].mxu0
        %2123 = vmatprep.mubr.f32.mxu0 %v835
        %2124 = vmatmul.mubr.f32.gmra.mrb[0].mxu0 %v799
        %v2125 = vpop.f32.mrb[0].mxu0
        %v2126 = vadd.f32 0.0, %v2125
        %v2127 = vpop.f32.mrb[0].mxu0
        %2128 = vmatprep.mubr.f32.mxu0 %v836
        %2129 = vmatmul.mubr.f32.gmra.mrb[0].mxu0 %v800
        %v2130 = vpop.f32.mrb[0].mxu0
        %v2131 = vadd.f32 0.0, %v2130
        %v2132 = vpop.f32.mrb[0].mxu0
        %2133 = vmatprep.mubr.f32.mxu0 %v837
        %2134 = vmatmul.mubr.f32.gmra.mrb[0].mxu0 %v801
        %v2135 = vpop.f32.mrb[0].mxu0
        %v2136 = vadd.f32 0.0, %v2135
        %v2137 = vpop.f32.mrb[0].mxu0
        %2138 = vmatprep.mubr.f32.mxu0 %v838
        %2139 = vmatmul.mubr.f32.gmra.mrb[0].mxu0 %v802
        %v2140 = vpop.f32.mrb[0].mxu0
        %v2141 = vadd.f32 0.0, %v2140
        %v2142 = vpop.f32.mrb[0].mxu0
        %2143 = vdwg.mxu0
        %2144 = vmatprep.subr.mxu0 0.0
        %2145 = vmatpush1.msra.mxu0 %v1903
        %2146 = vmatprep.subr.mxu0 0.0
        %2147 = vmatpush1.msra.mxu0 %v1904
        %2148 = vmatprep.subr.mxu0 0.0
        %2149 = vmatpush1.msra.mxu0 %v1905
        %2150 = vmatprep.subr.mxu0 0.0
        %2151 = vmatpush1.msra.mxu0 %v1906
        %2152 = vmatprep.subr.mxu0 0.0
        %2153 = vmatpush1.msra.mxu0 %v1907
        %2154 = vmatprep.subr.mxu0 0.0
        %2155 = vmatpush1.msra.mxu0 %v1908
        %2156 = vmatprep.subr.mxu0 0.0
        %2157 = vmatpush1.msra.mxu0 %v1909
        %2158 = vmatprep.subr.mxu0 0.0
        %2159 = vmatpush1.msra.mxu0 %v1910
        %2160 = vmatprep.subr.mxu0 0.0
        %2161 = vmatpush1.msra.mxu0 %v1911
        %2162 = vmatprep.subr.mxu0 0.0
        %2163 = vmatpush1.msra.mxu0 %v1912
        %2164 = vmatprep.subr.mxu0 0.0
        %2165 = vmatpush1.msra.mxu0 %v1913
        %2166 = vmatprep.subr.mxu0 0.0
        %2167 = vmatpush1.msra.mxu0 %v1914
        %2168 = vmatprep.subr.mxu0 0.0
        %2169 = vmatpush1.msra.mxu0 %v1915
        %2170 = vmatprep.subr.mxu0 0.0
        %2171 = vmatpush1.msra.mxu0 %v1916
        %2172 = vmatprep.subr.mxu0 0.0
        %2173 = vmatpush1.msra.mxu0 %v1917
        %2174 = vmatprep.subr.mxu0 0.0
        %2175 = vmatpush1.msra.mxu0 %v1918
        %2176 = vmatprep.subr.mxu0 0.0
        %2177 = vmatpush1.msra.mxu0 0.0
        %2178 = vmatprep.subr.mxu0 0.0
        %2179 = vmatpush1.msra.mxu0 0.0
        %2180 = vmatprep.subr.mxu0 0.0
        %2181 = vmatpush1.msra.mxu0 0.0
        %2182 = vmatprep.subr.mxu0 0.0
        %2183 = vmatpush1.msra.mxu0 0.0
        %2184 = vmatprep.subr.mxu0 0.0
        %2185 = vmatpush1.msra.mxu0 0.0
        %2186 = vmatprep.subr.mxu0 0.0
        %2187 = vmatpush1.msra.mxu0 0.0
        %2188 = vmatprep.subr.mxu0 0.0
        %2189 = vmatpush1.msra.mxu0 0.0
        %2190 = vmatprep.subr.mxu0 0.0
        %2191 = vmatpush1.msra.mxu0 0.0
        %2192 = vmatprep.subr.mxu0 0.0
        %2193 = vmatpush1.msra.mxu0 0.0
        %2194 = vmatprep.subr.mxu0 0.0
        %2195 = vmatpush1.msra.mxu0 0.0
        %2196 = vmatprep.subr.mxu0 0.0
        %2197 = vmatpush1.msra.mxu0 0.0
        %2198 = vmatprep.subr.mxu0 0.0
        %2199 = vmatpush1.msra.mxu0 0.0
        %2200 = vmatprep.subr.mxu0 0.0
        %2201 = vmatpush1.msra.mxu0 0.0
        %2202 = vmatprep.subr.mxu0 0.0
        %2203 = vmatpush1.msra.mxu0 0.0
        %2204 = vmatprep.subr.mxu0 0.0
        %2205 = vmatpush1.msra.mxu0 0.0
        %2206 = vmatprep.subr.mxu0 0.0
        %2207 = vmatpush1.msra.mxu0 0.0
        %2208 = vmatprep.mubr.f32.mxu0 0.0
        %2209 = vmatmul.mubr.f32.gmra.mrb[0].mxu0 %v843
        %v2210 = vpop.f32.mrb[0].mxu0
        %v2211 = vadd.f32 %v1986, %v2210
        %v2212 = vpop.f32.mrb[0].mxu0
        %2213 = vmatprep.mubr.f32.mxu0 0.0
        %2214 = vmatmul.mubr.f32.gmra.mrb[0].mxu0 %v844
        %v2215 = vpop.f32.mrb[0].mxu0
        %v2216 = vadd.f32 %v1991, %v2215
        %v2217 = vpop.f32.mrb[0].mxu0
        %2218 = vmatprep.mubr.f32.mxu0 0.0
        %2219 = vmatmul.mubr.f32.gmra.mrb[0].mxu0 %v845
        %v2220 = vpop.f32.mrb[0].mxu0
        %v2221 = vadd.f32 %v1996, %v2220
        %v2222 = vpop.f32.mrb[0].mxu0
        %2223 = vmatprep.mubr.f32.mxu0 0.0
        %2224 = vmatmul.mubr.f32.gmra.mrb[0].mxu0 %v846
        %v2225 = vpop.f32.mrb[0].mxu0
        %v2226 = vadd.f32 %v2001, %v2225
        %v2227 = vpop.f32.mrb[0].mxu0
        %2228 = vmatprep.mubr.f32.mxu0 0.0
        %2229 = vmatmul.mubr.f32.gmra.mrb[0].mxu0 %v847
        %v2230 = vpop.f32.mrb[0].mxu0
        %v2231 = vadd.f32 %v2006, %v2230
        %v2232 = vpop.f32.mrb[0].mxu0
        %2233 = vmatprep.mubr.f32.mxu0 0.0
        %2234 = vmatmul.mubr.f32.gmra.mrb[0].mxu0 %v848
        %v2235 = vpop.f32.mrb[0].mxu0
        %v2236 = vadd.f32 %v2011, %v2235
        %v2237 = vpop.f32.mrb[0].mxu0
        %2238 = vmatprep.mubr.f32.mxu0 0.0
        %2239 = vmatmul.mubr.f32.gmra.mrb[0].mxu0 %v849
        %v2240 = vpop.f32.mrb[0].mxu0
        %v2241 = vadd.f32 %v2016, %v2240
        %v2242 = vpop.f32.mrb[0].mxu0
        %2243 = vmatprep.mubr.f32.mxu0 0.0
        %2244 = vmatmul.mubr.f32.gmra.mrb[0].mxu0 %v850
        %v2245 = vpop.f32.mrb[0].mxu0
        %v2246 = vadd.f32 %v2021, %v2245
        %v2247 = vpop.f32.mrb[0].mxu0
        %2248 = vmatprep.mubr.f32.mxu0 0.0
        %2249 = vmatmul.mubr.f32.gmra.mrb[0].mxu0 %v851
        %v2250 = vpop.f32.mrb[0].mxu0
        %v2251 = vadd.f32 %v2026, %v2250
        %v2252 = vpop.f32.mrb[0].mxu0
        %2253 = vmatprep.mubr.f32.mxu0 0.0
        %2254 = vmatmul.mubr.f32.gmra.mrb[0].mxu0 %v852
        %v2255 = vpop.f32.mrb[0].mxu0
        %v2256 = vadd.f32 %v2031, %v2255
        %v2257 = vpop.f32.mrb[0].mxu0
        %2258 = vmatprep.mubr.f32.mxu0 0.0
        %2259 = vmatmul.mubr.f32.gmra.mrb[0].mxu0 %v853
        %v2260 = vpop.f32.mrb[0].mxu0
        %v2261 = vadd.f32 %v2036, %v2260
        %v2262 = vpop.f32.mrb[0].mxu0
        %2263 = vmatprep.mubr.f32.mxu0 0.0
        %2264 = vmatmul.mubr.f32.gmra.mrb[0].mxu0 %v854
        %v2265 = vpop.f32.mrb[0].mxu0
        %v2266 = vadd.f32 %v2041, %v2265
        %v2267 = vpop.f32.mrb[0].mxu0
        %2268 = vmatprep.mubr.f32.mxu0 0.0
        %2269 = vmatmul.mubr.f32.gmra.mrb[0].mxu0 %v855
        %v2270 = vpop.f32.mrb[0].mxu0
        %v2271 = vadd.f32 %v2046, %v2270
        %v2272 = vpop.f32.mrb[0].mxu0
        %2273 = vmatprep.mubr.f32.mxu0 0.0
        %2274 = vmatmul.mubr.f32.gmra.mrb[0].mxu0 %v856
        %v2275 = vpop.f32.mrb[0].mxu0
        %v2276 = vadd.f32 %v2051, %v2275
        %v2277 = vpop.f32.mrb[0].mxu0
        %2278 = vmatprep.mubr.f32.mxu0 0.0
        %2279 = vmatmul.mubr.f32.gmra.mrb[0].mxu0 %v857
        %v2280 = vpop.f32.mrb[0].mxu0
        %v2281 = vadd.f32 %v2056, %v2280
        %v2282 = vpop.f32.mrb[0].mxu0
        %2283 = vmatprep.mubr.f32.mxu0 0.0
        %2284 = vmatmul.mubr.f32.gmra.mrb[0].mxu0 %v858
        %v2285 = vpop.f32.mrb[0].mxu0
        %v2286 = vadd.f32 %v2061, %v2285
        %v2287 = vpop.f32.mrb[0].mxu0
        %2288 = vmatprep.mubr.f32.mxu0 0.0
        %2289 = vmatmul.mubr.f32.gmra.mrb[0].mxu0 %v859
        %v2290 = vpop.f32.mrb[0].mxu0
        %v2291 = vadd.f32 %v2066, %v2290
        %v2292 = vpop.f32.mrb[0].mxu0
        %2293 = vmatprep.mubr.f32.mxu0 0.0
        %2294 = vmatmul.mubr.f32.gmra.mrb[0].mxu0 %v860
        %v2295 = vpop.f32.mrb[0].mxu0
        %v2296 = vadd.f32 %v2071, %v2295
        %v2297 = vpop.f32.mrb[0].mxu0
        %2298 = vmatprep.mubr.f32.mxu0 0.0
        %2299 = vmatmul.mubr.f32.gmra.mrb[0].mxu0 %v861
        %v2300 = vpop.f32.mrb[0].mxu0
        %v2301 = vadd.f32 %v2076, %v2300
        %v2302 = vpop.f32.mrb[0].mxu0
        %2303 = vmatprep.mubr.f32.mxu0 0.0
        %2304 = vmatmul.mubr.f32.gmra.mrb[0].mxu0 %v862
        %v2305 = vpop.f32.mrb[0].mxu0
        %v2306 = vadd.f32 %v2081, %v2305
        %v2307 = vpop.f32.mrb[0].mxu0
        %2308 = vmatprep.mubr.f32.mxu0 0.0
        %2309 = vmatmul.mubr.f32.gmra.mrb[0].mxu0 %v863
        %v2310 = vpop.f32.mrb[0].mxu0
        %v2311 = vadd.f32 %v2086, %v2310
        %v2312 = vpop.f32.mrb[0].mxu0
        %2313 = vmatprep.mubr.f32.mxu0 0.0
        %2314 = vmatmul.mubr.f32.gmra.mrb[0].mxu0 %v864
        %v2315 = vpop.f32.mrb[0].mxu0
        %v2316 = vadd.f32 %v2091, %v2315
        %v2317 = vpop.f32.mrb[0].mxu0
        %2318 = vmatprep.mubr.f32.mxu0 0.0
        %2319 = vmatmul.mubr.f32.gmra.mrb[0].mxu0 %v865
        %v2320 = vpop.f32.mrb[0].mxu0
        %v2321 = vadd.f32 %v2096, %v2320
        %v2322 = vpop.f32.mrb[0].mxu0
        %2323 = vmatprep.mubr.f32.mxu0 0.0
        %2324 = vmatmul.mubr.f32.gmra.mrb[0].mxu0 %v866
        %v2325 = vpop.f32.mrb[0].mxu0
        %v2326 = vadd.f32 %v2101, %v2325
        %v2327 = vpop.f32.mrb[0].mxu0
        %2328 = vmatprep.mubr.f32.mxu0 0.0
        %2329 = vmatmul.mubr.f32.gmra.mrb[0].mxu0 %v867
        %v2330 = vpop.f32.mrb[0].mxu0
        %v2331 = vadd.f32 %v2106, %v2330
        %v2332 = vpop.f32.mrb[0].mxu0
        %2333 = vmatprep.mubr.f32.mxu0 0.0
        %2334 = vmatmul.mubr.f32.gmra.mrb[0].mxu0 %v868
        %v2335 = vpop.f32.mrb[0].mxu0
        %v2336 = vadd.f32 %v2111, %v2335
        %v2337 = vpop.f32.mrb[0].mxu0
        %2338 = vmatprep.mubr.f32.mxu0 0.0
        %2339 = vmatmul.mubr.f32.gmra.mrb[0].mxu0 %v869
        %v2340 = vpop.f32.mrb[0].mxu0
        %v2341 = vadd.f32 %v2116, %v2340
        %v2342 = vpop.f32.mrb[0].mxu0
        %2343 = vmatprep.mubr.f32.mxu0 0.0
        %2344 = vmatmul.mubr.f32.gmra.mrb[0].mxu0 %v870
        %v2345 = vpop.f32.mrb[0].mxu0
        %v2346 = vadd.f32 %v2121, %v2345
        %v2347 = vpop.f32.mrb[0].mxu0
        %2348 = vmatprep.mubr.f32.mxu0 0.0
        %2349 = vmatmul.mubr.f32.gmra.mrb[0].mxu0 %v871
        %v2350 = vpop.f32.mrb[0].mxu0
        %v2351 = vadd.f32 %v2126, %v2350
        %v2352 = vpop.f32.mrb[0].mxu0
        %2353 = vmatprep.mubr.f32.mxu0 0.0
        %2354 = vmatmul.mubr.f32.gmra.mrb[0].mxu0 %v872
        %v2355 = vpop.f32.mrb[0].mxu0
        %v2356 = vadd.f32 %v2131, %v2355
        %v2357 = vpop.f32.mrb[0].mxu0
        %2358 = vmatprep.mubr.f32.mxu0 0.0
        %2359 = vmatmul.mubr.f32.gmra.mrb[0].mxu0 %v873
        %v2360 = vpop.f32.mrb[0].mxu0
        %v2361 = vadd.f32 %v2136, %v2360
        %v2362 = vpop.f32.mrb[0].mxu0
        %2363 = vmatprep.mubr.f32.mxu0 0.0
        %2364 = vmatmul.mubr.f32.gmra.mrb[0].mxu0 %v874
        %v2365 = vpop.f32.mrb[0].mxu0
        %v2366 = vadd.f32 %v2141, %v2365
        %v2367 = vpop.f32.mrb[0].mxu0
        %2368 = vdwg.mxu0
        %v2369 = vadd.f32 %v1713, %v2211
        %v2370 = vadd.f32 %v1718, %v2216
        %v2371 = vadd.f32 %v1723, %v2221
        %v2372 = vadd.f32 %v1728, %v2226
        %v2373 = vadd.f32 %v1733, %v2231
        %v2374 = vadd.f32 %v1738, %v2236
        %v2375 = vadd.f32 %v1743, %v2241
        %v2376 = vadd.f32 %v1748, %v2246
        %v2377 = vadd.f32 %v1753, %v2251
        %v2378 = vadd.f32 %v1758, %v2256
        %v2379 = vadd.f32 %v1763, %v2261
        %v2380 = vadd.f32 %v1768, %v2266
        %v2381 = vadd.f32 %v1773, %v2271
        %v2382 = vadd.f32 %v1778, %v2276
        %v2383 = vadd.f32 %v1783, %v2281
        %v2384 = vadd.f32 %v1788, %v2286
        %v2385 = vadd.f32 %v1793, %v2291
        %v2386 = vadd.f32 %v1798, %v2296
        %v2387 = vadd.f32 %v1803, %v2301
        %v2388 = vadd.f32 %v1808, %v2306
        %v2389 = vadd.f32 %v1813, %v2311
        %v2390 = vadd.f32 %v1818, %v2316
        %v2391 = vadd.f32 %v1823, %v2321
        %v2392 = vadd.f32 %v1828, %v2326
        %v2393 = vadd.f32 %v1833, %v2331
        %v2394 = vadd.f32 %v1838, %v2336
        %v2395 = vadd.f32 %v1843, %v2341
        %v2396 = vadd.f32 %v1848, %v2346
        %v2397 = vadd.f32 %v1853, %v2351
        %v2398 = vadd.f32 %v1858, %v2356
        %v2399 = vadd.f32 %v1863, %v2361
        %v2400 = vadd.f32 %v1868, %v2366
        %v2401 = vld [vmem:[%s4] sm:$0x1]
        %v2403 = vlaneseq
        %v2404 = vshrl.u32 %v2403, 7
        %v2405 = vsub.s32 0, %v2404
        %v2406 = vrot.slane %v2401, %v2405
        %v2408 = vadd.f32 %v2369, %v2406
        %v2409 = vadd.f32 %v2370, %v2406
        %v2410 = vadd.f32 %v2371, %v2406
        %v2411 = vadd.f32 %v2372, %v2406
        %v2412 = vadd.f32 %v2373, %v2406
        %v2413 = vadd.f32 %v2374, %v2406
        %v2414 = vadd.f32 %v2375, %v2406
        %v2415 = vadd.f32 %v2376, %v2406
        %v2416 = vadd.f32 %v2377, %v2406
        %v2417 = vadd.f32 %v2378, %v2406
        %v2418 = vadd.f32 %v2379, %v2406
        %v2419 = vadd.f32 %v2380, %v2406
        %v2420 = vadd.f32 %v2381, %v2406
        %v2421 = vadd.f32 %v2382, %v2406
        %v2422 = vadd.f32 %v2383, %v2406
        %v2423 = vadd.f32 %v2384, %v2406
        %v2424 = vadd.f32 %v2385, %v2406
        %v2425 = vadd.f32 %v2386, %v2406
        %v2426 = vadd.f32 %v2387, %v2406
        %v2427 = vadd.f32 %v2388, %v2406
        %v2428 = vadd.f32 %v2389, %v2406
        %v2429 = vadd.f32 %v2390, %v2406
        %v2430 = vadd.f32 %v2391, %v2406
        %v2431 = vadd.f32 %v2392, %v2406
        %v2432 = vadd.f32 %v2393, %v2406
        %v2433 = vadd.f32 %v2394, %v2406
        %v2434 = vadd.f32 %v2395, %v2406
        %v2435 = vadd.f32 %v2396, %v2406
        %v2436 = vadd.f32 %v2397, %v2406
        %v2437 = vadd.f32 %v2398, %v2406
        %v2438 = vadd.f32 %v2399, %v2406
        %v2439 = vadd.f32 %v2400, %v2406
        %v2440 = vmax.f32 %v2408, 0.0
        %v2441 = vmax.f32 %v2409, 0.0
        %v2442 = vmax.f32 %v2410, 0.0
        %v2443 = vmax.f32 %v2411, 0.0
        %v2444 = vmax.f32 %v2412, 0.0
        %v2445 = vmax.f32 %v2413, 0.0
        %v2446 = vmax.f32 %v2414, 0.0
        %v2447 = vmax.f32 %v2415, 0.0
        %v2448 = vmax.f32 %v2416, 0.0
        %v2449 = vmax.f32 %v2417, 0.0
        %v2450 = vmax.f32 %v2418, 0.0
        %v2451 = vmax.f32 %v2419, 0.0
        %v2452 = vmax.f32 %v2420, 0.0
        %v2453 = vmax.f32 %v2421, 0.0
        %v2454 = vmax.f32 %v2422, 0.0
        %v2455 = vmax.f32 %v2423, 0.0
        %v2456 = vmax.f32 %v2424, 0.0
        %v2457 = vmax.f32 %v2425, 0.0
        %v2458 = vmax.f32 %v2426, 0.0
        %v2459 = vmax.f32 %v2427, 0.0
        %v2460 = vmax.f32 %v2428, 0.0
        %v2461 = vmax.f32 %v2429, 0.0
        %v2462 = vmax.f32 %v2430, 0.0
        %v2463 = vmax.f32 %v2431, 0.0
        %v2464 = vmax.f32 %v2432, 0.0
        %v2465 = vmax.f32 %v2433, 0.0
        %v2466 = vmax.f32 %v2434, 0.0
        %v2467 = vmax.f32 %v2435, 0.0
        %v2468 = vmax.f32 %v2436, 0.0
        %v2469 = vmax.f32 %v2437, 0.0
        %v2470 = vmax.f32 %v2438, 0.0
        %v2471 = vmax.f32 %v2439, 0.0
        %s2472 = scalar_lea.vmem [#allocation3], 48
        %2473 = vst [vmem:[%s2472 + $0x2] sm:$0xff] %v2440
        %2474 = vst [vmem:[%s2472 + $0xa] sm:$0xff] %v2441
        %2475 = vst [vmem:[%s2472 + $0x1a] sm:$0xff] %v2442
        %2476 = vst [vmem:[%s2472 + $0x22] sm:$0xff] %v2443
        %2477 = vst [vmem:[%s2472 + $0x32] sm:$0xff] %v2444
        %2478 = vst [vmem:[%s2472 + $0x3a] sm:$0xff] %v2445
        %2479 = vst [vmem:[%s2472 + $0x4a] sm:$0xff] %v2446
        %2480 = vst [vmem:[%s2472 + $0x52] sm:$0xff] %v2447
        %2481 = vst [vmem:[%s2472 + $0x62] sm:$0xff] %v2448
        %2482 = vst [vmem:[%s2472 + $0x6a] sm:$0xff] %v2449
        %2483 = vst [vmem:[%s2472 + $0x7a] sm:$0xff] %v2450
        %2484 = vst [vmem:[%s2472 + $0x82] sm:$0xff] %v2451
        %2485 = vst [vmem:[%s2472 + $0x92] sm:$0xff] %v2452
        %2486 = vst [vmem:[%s2472 + $0x9a] sm:$0xff] %v2453
        %2487 = vst [vmem:[%s2472 + $0xaa] sm:$0xff] %v2454
        %2488 = vst [vmem:[%s2472 + $0xb2] sm:$0xff] %v2455
        %2489 = vst [vmem:[%s2472 + $0xc2] sm:$0xff] %v2456
        %2490 = vst [vmem:[%s2472 + $0xca] sm:$0xff] %v2457
        %2491 = vst [vmem:[%s2472 + $0xda] sm:$0xff] %v2458
        %2492 = vst [vmem:[%s2472 + $0xe2] sm:$0xff] %v2459
        %2493 = vst [vmem:[%s2472 + $0xf2] sm:$0xff] %v2460
        %2494 = vst [vmem:[%s2472 + $0xfa] sm:$0xff] %v2461
        %2495 = vst [vmem:[%s2472 + $0x10a] sm:$0xff] %v2462
        %2496 = vst [vmem:[%s2472 + $0x112] sm:$0xff] %v2463
        %2497 = vst [vmem:[%s2472 + $0x122] sm:$0xff] %v2464
        %2498 = vst [vmem:[%s2472 + $0x12a] sm:$0xff] %v2465
        %2499 = vst [vmem:[%s2472 + $0x13a] sm:$0xff] %v2466
        %2500 = vst [vmem:[%s2472 + $0x142] sm:$0xff] %v2467
        %2501 = vst [vmem:[%s2472 + $0x152] sm:$0xff] %v2468
        %2502 = vst [vmem:[%s2472 + $0x15a] sm:$0xff] %v2469
        %2503 = vst [vmem:[%s2472 + $0x16a] sm:$0xff] %v2470
        %2504 = vst [vmem:[%s2472 + $0x172] sm:$0xff] %v2471
        %v2505 = vld [vmem:[#allocation3] sm:$0xff]
        %v2506 = vld [vmem:[#allocation3 + $0x8] sm:$0xff]
        %v2507 = vld [vmem:[#allocation3 + $0x18] sm:$0xff]
        %v2508 = vld [vmem:[#allocation3 + $0x20] sm:$0xff]
        %v2509 = vld [vmem:[#allocation3 + $0x30] sm:$0xff]
        %v2510 = vld [vmem:[#allocation3 + $0x38] sm:$0xff]
        %v2511 = vld [vmem:[#allocation3 + $0x48] sm:$0xff]
        %v2512 = vld [vmem:[#allocation3 + $0x50] sm:$0xff]
        %v2513 = vld [vmem:[#allocation3 + $0x60] sm:$0xff]
        %v2514 = vld [vmem:[#allocation3 + $0x68] sm:$0xff]
        %v2515 = vld [vmem:[#allocation3 + $0x78] sm:$0xff]
        %v2516 = vld [vmem:[#allocation3 + $0x80] sm:$0xff]
        %v2517 = vld [vmem:[#allocation3 + $0x90] sm:$0xff]
        %v2518 = vld [vmem:[#allocation3 + $0x98] sm:$0xff]
        %v2519 = vld [vmem:[#allocation3 + $0xa8] sm:$0xff]
        %v2520 = vld [vmem:[#allocation3 + $0xb0] sm:$0xff]
        %v2521 = vld [vmem:[#allocation3 + $0xc0] sm:$0xff]
        %v2522 = vld [vmem:[#allocation3 + $0xc8] sm:$0xff]
        %v2523 = vld [vmem:[#allocation3 + $0xd8] sm:$0xff]
        %v2524 = vld [vmem:[#allocation3 + $0xe0] sm:$0xff]
        %v2525 = vld [vmem:[#allocation3 + $0xf0] sm:$0xff]
        %v2526 = vld [vmem:[#allocation3 + $0xf8] sm:$0xff]
        %v2527 = vld [vmem:[#allocation3 + $0x108] sm:$0xff]
        %v2528 = vld [vmem:[#allocation3 + $0x110] sm:$0xff]
        %v2529 = vld [vmem:[#allocation3 + $0x120] sm:$0xff]
        %v2530 = vld [vmem:[#allocation3 + $0x128] sm:$0xff]
        %v2531 = vld [vmem:[#allocation3 + $0x138] sm:$0xff]
        %v2532 = vld [vmem:[#allocation3 + $0x140] sm:$0xff]
        %v2533 = vld [vmem:[#allocation3 + $0x150] sm:$0xff]
        %v2534 = vld [vmem:[#allocation3 + $0x158] sm:$0xff]
        %v2535 = vld [vmem:[#allocation3 + $0x168] sm:$0xff]
        %v2536 = vld [vmem:[#allocation3 + $0x170] sm:$0xff]
        %v2537 = vld [vmem:[#allocation3 + $0x180] sm:$0xff]
        %v2538 = vld [vmem:[#allocation3 + $0x188] sm:$0xff]
        %v2539 = vld [vmem:[#allocation3 + $0x198] sm:$0xff]
        %v2540 = vld [vmem:[#allocation3 + $0x1a0] sm:$0xff]
        %v2541 = vld [vmem:[#allocation3 + $0x1b0] sm:$0xff]
        %v2542 = vld [vmem:[#allocation3 + $0x1b8] sm:$0xff]
        %v2543 = vld [vmem:[#allocation3 + $0x1c8] sm:$0xff]
        %v2544 = vld [vmem:[#allocation3 + $0x1d0] sm:$0xff]
        %v2545 = vld [vmem:[#allocation3 + $0x2] sm:$0xff]
        %v2546 = vld [vmem:[#allocation3 + $0xa] sm:$0xff]
        %v2547 = vld [vmem:[#allocation3 + $0x1a] sm:$0xff]
        %v2548 = vld [vmem:[#allocation3 + $0x22] sm:$0xff]
        %v2549 = vld [vmem:[#allocation3 + $0x32] sm:$0xff]
        %v2550 = vld [vmem:[#allocation3 + $0x3a] sm:$0xff]
        %v2551 = vld [vmem:[#allocation3 + $0x4a] sm:$0xff]
        %v2552 = vld [vmem:[#allocation3 + $0x52] sm:$0xff]
        %v2553 = vld [vmem:[#allocation3 + $0x62] sm:$0xff]
        %v2554 = vld [vmem:[#allocation3 + $0x6a] sm:$0xff]
        %v2555 = vld [vmem:[#allocation3 + $0x7a] sm:$0xff]
        %v2556 = vld [vmem:[#allocation3 + $0x82] sm:$0xff]
        %v2557 = vld [vmem:[#allocation3 + $0x92] sm:$0xff]
        %v2558 = vld [vmem:[#allocation3 + $0x9a] sm:$0xff]
        %v2559 = vld [vmem:[#allocation3 + $0xaa] sm:$0xff]
        %v2560 = vld [vmem:[#allocation3 + $0xb2] sm:$0xff]
        %v2561 = vld [vmem:[#allocation3 + $0xc2] sm:$0xff]
        %v2562 = vld [vmem:[#allocation3 + $0xca] sm:$0xff]
        %v2563 = vld [vmem:[#allocation3 + $0xda] sm:$0xff]
        %v2564 = vld [vmem:[#allocation3 + $0xe2] sm:$0xff]
        %v2565 = vld [vmem:[#allocation3 + $0xf2] sm:$0xff]
        %v2566 = vld [vmem:[#allocation3 + $0xfa] sm:$0xff]
        %v2567 = vld [vmem:[#allocation3 + $0x10a] sm:$0xff]
        %v2568 = vld [vmem:[#allocation3 + $0x112] sm:$0xff]
        %v2569 = vld [vmem:[#allocation3 + $0x122] sm:$0xff]
        %v2570 = vld [vmem:[#allocation3 + $0x12a] sm:$0xff]
        %v2571 = vld [vmem:[#allocation3 + $0x13a] sm:$0xff]
        %v2572 = vld [vmem:[#allocation3 + $0x142] sm:$0xff]
        %v2573 = vld [vmem:[#allocation3 + $0x152] sm:$0xff]
        %v2574 = vld [vmem:[#allocation3 + $0x15a] sm:$0xff]
        %v2575 = vld [vmem:[#allocation3 + $0x16a] sm:$0xff]
        %v2576 = vld [vmem:[#allocation3 + $0x172] sm:$0xff]
        %v2577 = vld [vmem:[#allocation3 + $0x182] sm:$0xff]
        %v2578 = vld [vmem:[#allocation3 + $0x18a] sm:$0xff]
        %v2579 = vld [vmem:[#allocation3 + $0x19a] sm:$0xff]
        %v2580 = vld [vmem:[#allocation3 + $0x1a2] sm:$0xff]
        %v2581 = vld [vmem:[#allocation3 + $0x1b2] sm:$0xff]
        %v2582 = vld [vmem:[#allocation3 + $0x1ba] sm:$0xff]
        %v2583 = vld [vmem:[#allocation3 + $0x1ca] sm:$0xff]
        %v2584 = vld [vmem:[#allocation3 + $0x1d2] sm:$0xff]
        %v2585 = vld [vmem:[#allocation3 + $0x4] sm:$0xff]
        %v2586 = vld [vmem:[#allocation3 + $0xc] sm:$0xff]
        %v2587 = vld [vmem:[#allocation3 + $0x1c] sm:$0xff]
        %v2588 = vld [vmem:[#allocation3 + $0x24] sm:$0xff]
        %v2589 = vld [vmem:[#allocation3 + $0x34] sm:$0xff]
        %v2590 = vld [vmem:[#allocation3 + $0x3c] sm:$0xff]
        %v2591 = vld [vmem:[#allocation3 + $0x4c] sm:$0xff]
        %v2592 = vld [vmem:[#allocation3 + $0x54] sm:$0xff]
        %v2593 = vld [vmem:[#allocation3 + $0x64] sm:$0xff]
        %v2594 = vld [vmem:[#allocation3 + $0x6c] sm:$0xff]
        %v2595 = vld [vmem:[#allocation3 + $0x7c] sm:$0xff]
        %v2596 = vld [vmem:[#allocation3 + $0x84] sm:$0xff]
        %v2597 = vld [vmem:[#allocation3 + $0x94] sm:$0xff]
        %v2598 = vld [vmem:[#allocation3 + $0x9c] sm:$0xff]
        %v2599 = vld [vmem:[#allocation3 + $0xac] sm:$0xff]
        %v2600 = vld [vmem:[#allocation3 + $0xb4] sm:$0xff]
        %v2601 = vld [vmem:[#allocation3 + $0xc4] sm:$0xff]
        %v2602 = vld [vmem:[#allocation3 + $0xcc] sm:$0xff]
        %v2603 = vld [vmem:[#allocation3 + $0xdc] sm:$0xff]
        %v2604 = vld [vmem:[#allocation3 + $0xe4] sm:$0xff]
        %v2605 = vld [vmem:[#allocation3 + $0xf4] sm:$0xff]
        %v2606 = vld [vmem:[#allocation3 + $0xfc] sm:$0xff]
        %v2607 = vld [vmem:[#allocation3 + $0x10c] sm:$0xff]
        %v2608 = vld [vmem:[#allocation3 + $0x114] sm:$0xff]
        %v2609 = vld [vmem:[#allocation3 + $0x124] sm:$0xff]
        %v2610 = vld [vmem:[#allocation3 + $0x12c] sm:$0xff]
        %v2611 = vld [vmem:[#allocation3 + $0x13c] sm:$0xff]
        %v2612 = vld [vmem:[#allocation3 + $0x144] sm:$0xff]
        %v2613 = vld [vmem:[#allocation3 + $0x154] sm:$0xff]
        %v2614 = vld [vmem:[#allocation3 + $0x15c] sm:$0xff]
        %v2615 = vld [vmem:[#allocation3 + $0x16c] sm:$0xff]
        %v2616 = vld [vmem:[#allocation3 + $0x174] sm:$0xff]
        %v2617 = vld [vmem:[#allocation3 + $0x184] sm:$0xff]
        %v2618 = vld [vmem:[#allocation3 + $0x18c] sm:$0xff]
        %v2619 = vld [vmem:[#allocation3 + $0x19c] sm:$0xff]
        %v2620 = vld [vmem:[#allocation3 + $0x1a4] sm:$0xff]
        %v2621 = vld [vmem:[#allocation3 + $0x1b4] sm:$0xff]
        %v2622 = vld [vmem:[#allocation3 + $0x1bc] sm:$0xff]
        %v2623 = vld [vmem:[#allocation3 + $0x1cc] sm:$0xff]
        %v2624 = vld [vmem:[#allocation3 + $0x1d4] sm:$0xff]
        %v2625 = vld [vmem:[#allocation4] sm:$0xff]
        %v2626 = vld [vmem:[#allocation4 + $0x8] sm:$0xff]
        %v2627 = vld [vmem:[#allocation4 + $0x10] sm:$0xff]
        %v2628 = vld [vmem:[#allocation4 + $0x18] sm:$0xff]
        %v2629 = vld [vmem:[#allocation4 + $0x20] sm:$0xff]
        %v2630 = vld [vmem:[#allocation4 + $0x28] sm:$0xff]
        %v2631 = vld [vmem:[#allocation4 + $0x30] sm:$0xff]
        %v2632 = vld [vmem:[#allocation4 + $0x38] sm:$0xff]
        %v2633 = vld [vmem:[#allocation4 + $0x40] sm:$0xff]
        %v2634 = vld [vmem:[#allocation4 + $0x48] sm:$0xff]
        %v2635 = vld [vmem:[#allocation4 + $0x50] sm:$0xff]
        %v2636 = vld [vmem:[#allocation4 + $0x58] sm:$0xff]
        %v2637 = vld [vmem:[#allocation4 + $0x60] sm:$0xff]
        %v2638 = vld [vmem:[#allocation4 + $0x68] sm:$0xff]
        %v2639 = vld [vmem:[#allocation4 + $0x70] sm:$0xff]
        %v2640 = vld [vmem:[#allocation4 + $0x78] sm:$0xff]
        %v2641 = vld [vmem:[#allocation4 + $0x80] sm:$0xff]
        %v2642 = vld [vmem:[#allocation4 + $0x88] sm:$0xff]
        %v2643 = vld [vmem:[#allocation4 + $0x90] sm:$0xff]
        %v2644 = vld [vmem:[#allocation4 + $0x98] sm:$0xff]
        %v2645 = vld [vmem:[#allocation4 + $0xa0] sm:$0xff]
        %v2646 = vld [vmem:[#allocation4 + $0xa8] sm:$0xff]
        %v2647 = vld [vmem:[#allocation4 + $0xb0] sm:$0xff]
        %v2648 = vld [vmem:[#allocation4 + $0xb8] sm:$0xff]
        %v2649 = vld [vmem:[#allocation4 + $0xc0] sm:$0xff]
        %v2650 = vld [vmem:[#allocation4 + $0xc8] sm:$0xff]
        %v2651 = vld [vmem:[#allocation4 + $0xd0] sm:$0xff]
        %v2652 = vld [vmem:[#allocation4 + $0xd8] sm:$0xff]
        %v2653 = vld [vmem:[#allocation4 + $0xe0] sm:$0xff]
        %v2654 = vld [vmem:[#allocation4 + $0xe8] sm:$0xff]
        %v2655 = vld [vmem:[#allocation4 + $0xf0] sm:$0xff]
        %v2656 = vld [vmem:[#allocation4 + $0xf8] sm:$0xff]
        %v2657 = vld [vmem:[#allocation4 + $0x100] sm:$0xff]
        %v2658 = vld [vmem:[#allocation4 + $0x108] sm:$0xff]
        %v2659 = vld [vmem:[#allocation4 + $0x110] sm:$0xff]
        %v2660 = vld [vmem:[#allocation4 + $0x118] sm:$0xff]
        %v2661 = vld [vmem:[#allocation4 + $0x120] sm:$0xff]
        %v2662 = vld [vmem:[#allocation4 + $0x128] sm:$0xff]
        %v2663 = vld [vmem:[#allocation4 + $0x130] sm:$0xff]
        %v2664 = vld [vmem:[#allocation4 + $0x138] sm:$0xff]
        %v2665 = vld [vmem:[#allocation4 + $0x140] sm:$0xff]
        %v2666 = vld [vmem:[#allocation4 + $0x148] sm:$0xff]
        %v2667 = vld [vmem:[#allocation4 + $0x150] sm:$0xff]
        %v2668 = vld [vmem:[#allocation4 + $0x158] sm:$0xff]
        %v2669 = vld [vmem:[#allocation4 + $0x160] sm:$0xff]
        %v2670 = vld [vmem:[#allocation4 + $0x168] sm:$0xff]
        %v2671 = vld [vmem:[#allocation4 + $0x170] sm:$0xff]
        %v2672 = vld [vmem:[#allocation4 + $0x178] sm:$0xff]
        %v2673 = vld [vmem:[#allocation4 + $0x180] sm:$0xff]
        %v2674 = vld [vmem:[#allocation4 + $0x188] sm:$0xff]
        %v2675 = vld [vmem:[#allocation4 + $0x190] sm:$0xff]
        %v2676 = vld [vmem:[#allocation4 + $0x198] sm:$0xff]
        %v2677 = vld [vmem:[#allocation4 + $0x1a0] sm:$0xff]
        %v2678 = vld [vmem:[#allocation4 + $0x1a8] sm:$0xff]
        %v2679 = vld [vmem:[#allocation4 + $0x1b0] sm:$0xff]
        %v2680 = vld [vmem:[#allocation4 + $0x1b8] sm:$0xff]
        %v2681 = vld [vmem:[#allocation4 + $0x1c0] sm:$0xff]
        %v2682 = vld [vmem:[#allocation4 + $0x1c8] sm:$0xff]
        %v2683 = vld [vmem:[#allocation4 + $0x1d0] sm:$0xff]
        %v2684 = vld [vmem:[#allocation4 + $0x1d8] sm:$0xff]
        %v2685 = vld [vmem:[#allocation4 + $0x1e0] sm:$0xff]
        %v2686 = vld [vmem:[#allocation4 + $0x1e8] sm:$0xff]
        %v2687 = vld [vmem:[#allocation4 + $0x1f0] sm:$0xff]
        %v2688 = vld [vmem:[#allocation4 + $0x1f8] sm:$0xff]
        %v2689 = vld [vmem:[#allocation4 + $0x200] sm:$0xff]
        %v2690 = vld [vmem:[#allocation4 + $0x208] sm:$0xff]
        %v2691 = vld [vmem:[#allocation4 + $0x210] sm:$0xff]
        %v2692 = vld [vmem:[#allocation4 + $0x218] sm:$0xff]
        %v2693 = vld [vmem:[#allocation4 + $0x220] sm:$0xff]
        %v2694 = vld [vmem:[#allocation4 + $0x228] sm:$0xff]
        %v2695 = vld [vmem:[#allocation4 + $0x230] sm:$0xff]
        %v2696 = vld [vmem:[#allocation4 + $0x238] sm:$0xff]
        %v2697 = vld [vmem:[#allocation4 + $0x240] sm:$0xff]
        %v2698 = vld [vmem:[#allocation4 + $0x248] sm:$0xff]
        %v2699 = vld [vmem:[#allocation4 + $0x250] sm:$0xff]
        %v2700 = vld [vmem:[#allocation4 + $0x258] sm:$0xff]
        %v2701 = vld [vmem:[#allocation4 + $0x260] sm:$0xff]
        %v2702 = vld [vmem:[#allocation4 + $0x268] sm:$0xff]
        %v2703 = vld [vmem:[#allocation4 + $0x270] sm:$0xff]
        %v2704 = vld [vmem:[#allocation4 + $0x278] sm:$0xff]
        %v2705 = vld [vmem:[#allocation4 + $0x280] sm:$0xff]
        %v2706 = vld [vmem:[#allocation4 + $0x288] sm:$0xff]
        %v2707 = vld [vmem:[#allocation4 + $0x290] sm:$0xff]
        %v2708 = vld [vmem:[#allocation4 + $0x298] sm:$0xff]
        %v2709 = vld [vmem:[#allocation4 + $0x2a0] sm:$0xff]
        %v2710 = vld [vmem:[#allocation4 + $0x2a8] sm:$0xff]
        %v2711 = vld [vmem:[#allocation4 + $0x2b0] sm:$0xff]
        %v2712 = vld [vmem:[#allocation4 + $0x2b8] sm:$0xff]
        %v2713 = vld [vmem:[#allocation4 + $0x2c0] sm:$0xff]
        %v2714 = vld [vmem:[#allocation4 + $0x2c8] sm:$0xff]
        %v2715 = vld [vmem:[#allocation4 + $0x2d0] sm:$0xff]
        %v2716 = vld [vmem:[#allocation4 + $0x2d8] sm:$0xff]
        %v2717 = vld [vmem:[#allocation4 + $0x2e0] sm:$0xff]
        %v2718 = vld [vmem:[#allocation4 + $0x2e8] sm:$0xff]
        %v2719 = vld [vmem:[#allocation4 + $0x2f0] sm:$0xff]
        %v2720 = vld [vmem:[#allocation4 + $0x2f8] sm:$0xff]
        %2721 = vmatprep.subr.mxu0 0.0
        %2722 = vmatpush1.msra.mxu0 %v2673
        %2723 = vmatprep.subr.mxu0 0.0
        %2724 = vmatpush1.msra.mxu0 %v2674
        %2725 = vmatprep.subr.mxu0 0.0
        %2726 = vmatpush1.msra.mxu0 %v2675
        %2727 = vmatprep.subr.mxu0 0.0
        %2728 = vmatpush1.msra.mxu0 %v2676
        %2729 = vmatprep.subr.mxu0 0.0
        %2730 = vmatpush1.msra.mxu0 %v2677
        %2731 = vmatprep.subr.mxu0 0.0
        %2732 = vmatpush1.msra.mxu0 %v2678
        %2733 = vmatprep.subr.mxu0 0.0
        %2734 = vmatpush1.msra.mxu0 %v2679
        %2735 = vmatprep.subr.mxu0 0.0
        %2736 = vmatpush1.msra.mxu0 %v2680
        %2737 = vmatprep.subr.mxu0 0.0
        %2738 = vmatpush1.msra.mxu0 %v2681
        %2739 = vmatprep.subr.mxu0 0.0
        %2740 = vmatpush1.msra.mxu0 %v2682
        %2741 = vmatprep.subr.mxu0 0.0
        %2742 = vmatpush1.msra.mxu0 %v2683
        %2743 = vmatprep.subr.mxu0 0.0
        %2744 = vmatpush1.msra.mxu0 %v2684
        %2745 = vmatprep.subr.mxu0 0.0
        %2746 = vmatpush1.msra.mxu0 %v2685
        %2747 = vmatprep.subr.mxu0 0.0
        %2748 = vmatpush1.msra.mxu0 %v2686
        %2749 = vmatprep.subr.mxu0 0.0
        %2750 = vmatpush1.msra.mxu0 %v2687
        %2751 = vmatprep.subr.mxu0 0.0
        %2752 = vmatpush1.msra.mxu0 %v2688
        %2753 = vmatprep.subr.mxu0 0.0
        %2754 = vmatpush1.msra.mxu0 %v2689
        %2755 = vmatprep.subr.mxu0 0.0
        %2756 = vmatpush1.msra.mxu0 %v2690
        %2757 = vmatprep.subr.mxu0 0.0
        %2758 = vmatpush1.msra.mxu0 %v2691
        %2759 = vmatprep.subr.mxu0 0.0
        %2760 = vmatpush1.msra.mxu0 %v2692
        %2761 = vmatprep.subr.mxu0 0.0
        %2762 = vmatpush1.msra.mxu0 %v2693
        %2763 = vmatprep.subr.mxu0 0.0
        %2764 = vmatpush1.msra.mxu0 %v2694
        %2765 = vmatprep.subr.mxu0 0.0
        %2766 = vmatpush1.msra.mxu0 %v2695
        %2767 = vmatprep.subr.mxu0 0.0
        %2768 = vmatpush1.msra.mxu0 %v2696
        %2769 = vmatprep.subr.mxu0 0.0
        %2770 = vmatpush1.msra.mxu0 %v2697
        %2771 = vmatprep.subr.mxu0 0.0
        %2772 = vmatpush1.msra.mxu0 %v2698
        %2773 = vmatprep.subr.mxu0 0.0
        %2774 = vmatpush1.msra.mxu0 %v2699
        %2775 = vmatprep.subr.mxu0 0.0
        %2776 = vmatpush1.msra.mxu0 %v2700
        %2777 = vmatprep.subr.mxu0 0.0
        %2778 = vmatpush1.msra.mxu0 %v2701
        %2779 = vmatprep.subr.mxu0 0.0
        %2780 = vmatpush1.msra.mxu0 %v2702
        %2781 = vmatprep.subr.mxu0 0.0
        %2782 = vmatpush1.msra.mxu0 %v2703
        %2783 = vmatprep.subr.mxu0 0.0
        %2784 = vmatpush1.msra.mxu0 %v2704
        %2785 = vmatprep.mubr.f32.mxu0 %v2549
        %2786 = vmatmul.mubr.f32.gmra.mrb[0].mxu0 %v2509
        %v2787 = vpop.f32.mrb[0].mxu0
        %v2788 = vadd.f32 0.0, %v2787
        %v2789 = vpop.f32.mrb[0].mxu0
        %2790 = vmatprep.mubr.f32.mxu0 %v2550
        %2791 = vmatmul.mubr.f32.gmra.mrb[0].mxu0 %v2510
        %v2792 = vpop.f32.mrb[0].mxu0
        %v2793 = vadd.f32 0.0, %v2792
        %v2794 = vpop.f32.mrb[0].mxu0
        %2795 = vmatprep.mubr.f32.mxu0 %v2551
        %2796 = vmatmul.mubr.f32.gmra.mrb[0].mxu0 %v2511
        %v2797 = vpop.f32.mrb[0].mxu0
        %v2798 = vadd.f32 0.0, %v2797
        %v2799 = vpop.f32.mrb[0].mxu0
        %2800 = vmatprep.mubr.f32.mxu0 %v2552
        %2801 = vmatmul.mubr.f32.gmra.mrb[0].mxu0 %v2512
        %v2802 = vpop.f32.mrb[0].mxu0
        %v2803 = vadd.f32 0.0, %v2802
        %v2804 = vpop.f32.mrb[0].mxu0
        %2805 = vmatprep.mubr.f32.mxu0 %v2553
        %2806 = vmatmul.mubr.f32.gmra.mrb[0].mxu0 %v2513
        %v2807 = vpop.f32.mrb[0].mxu0
        %v2808 = vadd.f32 0.0, %v2807
        %v2809 = vpop.f32.mrb[0].mxu0
        %2810 = vmatprep.mubr.f32.mxu0 %v2554
        %2811 = vmatmul.mubr.f32.gmra.mrb[0].mxu0 %v2514
        %v2812 = vpop.f32.mrb[0].mxu0
        %v2813 = vadd.f32 0.0, %v2812
        %v2814 = vpop.f32.mrb[0].mxu0
        %2815 = vmatprep.mubr.f32.mxu0 %v2555
        %2816 = vmatmul.mubr.f32.gmra.mrb[0].mxu0 %v2515
        %v2817 = vpop.f32.mrb[0].mxu0
        %v2818 = vadd.f32 0.0, %v2817
        %v2819 = vpop.f32.mrb[0].mxu0
        %2820 = vmatprep.mubr.f32.mxu0 %v2556
        %2821 = vmatmul.mubr.f32.gmra.mrb[0].mxu0 %v2516
        %v2822 = vpop.f32.mrb[0].mxu0
        %v2823 = vadd.f32 0.0, %v2822
        %v2824 = vpop.f32.mrb[0].mxu0
        %2825 = vmatprep.mubr.f32.mxu0 %v2557
        %2826 = vmatmul.mubr.f32.gmra.mrb[0].mxu0 %v2517
        %v2827 = vpop.f32.mrb[0].mxu0
        %v2828 = vadd.f32 0.0, %v2827
        %v2829 = vpop.f32.mrb[0].mxu0
        %2830 = vmatprep.mubr.f32.mxu0 %v2558
        %2831 = vmatmul.mubr.f32.gmra.mrb[0].mxu0 %v2518
        %v2832 = vpop.f32.mrb[0].mxu0
        %v2833 = vadd.f32 0.0, %v2832
        %v2834 = vpop.f32.mrb[0].mxu0
        %2835 = vmatprep.mubr.f32.mxu0 %v2559
        %2836 = vmatmul.mubr.f32.gmra.mrb[0].mxu0 %v2519
        %v2837 = vpop.f32.mrb[0].mxu0
        %v2838 = vadd.f32 0.0, %v2837
        %v2839 = vpop.f32.mrb[0].mxu0
        %2840 = vmatprep.mubr.f32.mxu0 %v2560
        %2841 = vmatmul.mubr.f32.gmra.mrb[0].mxu0 %v2520
        %v2842 = vpop.f32.mrb[0].mxu0
        %v2843 = vadd.f32 0.0, %v2842
        %v2844 = vpop.f32.mrb[0].mxu0
        %2845 = vmatprep.mubr.f32.mxu0 %v2561
        %2846 = vmatmul.mubr.f32.gmra.mrb[0].mxu0 %v2521
        %v2847 = vpop.f32.mrb[0].mxu0
        %v2848 = vadd.f32 0.0, %v2847
        %v2849 = vpop.f32.mrb[0].mxu0
        %2850 = vmatprep.mubr.f32.mxu0 %v2562
        %2851 = vmatmul.mubr.f32.gmra.mrb[0].mxu0 %v2522
        %v2852 = vpop.f32.mrb[0].mxu0
        %v2853 = vadd.f32 0.0, %v2852
        %v2854 = vpop.f32.mrb[0].mxu0
        %2855 = vmatprep.mubr.f32.mxu0 %v2563
        %2856 = vmatmul.mubr.f32.gmra.mrb[0].mxu0 %v2523
        %v2857 = vpop.f32.mrb[0].mxu0
        %v2858 = vadd.f32 0.0, %v2857
        %v2859 = vpop.f32.mrb[0].mxu0
        %2860 = vmatprep.mubr.f32.mxu0 %v2564
        %2861 = vmatmul.mubr.f32.gmra.mrb[0].mxu0 %v2524
        %v2862 = vpop.f32.mrb[0].mxu0
        %v2863 = vadd.f32 0.0, %v2862
        %v2864 = vpop.f32.mrb[0].mxu0
        %2865 = vmatprep.mubr.f32.mxu0 %v2565
        %2866 = vmatmul.mubr.f32.gmra.mrb[0].mxu0 %v2525
        %v2867 = vpop.f32.mrb[0].mxu0
        %v2868 = vadd.f32 0.0, %v2867
        %v2869 = vpop.f32.mrb[0].mxu0
        %2870 = vmatprep.mubr.f32.mxu0 %v2566
        %2871 = vmatmul.mubr.f32.gmra.mrb[0].mxu0 %v2526
        %v2872 = vpop.f32.mrb[0].mxu0
        %v2873 = vadd.f32 0.0, %v2872
        %v2874 = vpop.f32.mrb[0].mxu0
        %2875 = vmatprep.mubr.f32.mxu0 %v2567
        %2876 = vmatmul.mubr.f32.gmra.mrb[0].mxu0 %v2527
        %v2877 = vpop.f32.mrb[0].mxu0
        %v2878 = vadd.f32 0.0, %v2877
        %v2879 = vpop.f32.mrb[0].mxu0
        %2880 = vmatprep.mubr.f32.mxu0 %v2568
        %2881 = vmatmul.mubr.f32.gmra.mrb[0].mxu0 %v2528
        %v2882 = vpop.f32.mrb[0].mxu0
        %v2883 = vadd.f32 0.0, %v2882
        %v2884 = vpop.f32.mrb[0].mxu0
        %2885 = vmatprep.mubr.f32.mxu0 %v2569
        %2886 = vmatmul.mubr.f32.gmra.mrb[0].mxu0 %v2529
        %v2887 = vpop.f32.mrb[0].mxu0
        %v2888 = vadd.f32 0.0, %v2887
        %v2889 = vpop.f32.mrb[0].mxu0
        %2890 = vmatprep.mubr.f32.mxu0 %v2570
        %2891 = vmatmul.mubr.f32.gmra.mrb[0].mxu0 %v2530
        %v2892 = vpop.f32.mrb[0].mxu0
        %v2893 = vadd.f32 0.0, %v2892
        %v2894 = vpop.f32.mrb[0].mxu0
        %2895 = vmatprep.mubr.f32.mxu0 %v2571
        %2896 = vmatmul.mubr.f32.gmra.mrb[0].mxu0 %v2531
        %v2897 = vpop.f32.mrb[0].mxu0
        %v2898 = vadd.f32 0.0, %v2897
        %v2899 = vpop.f32.mrb[0].mxu0
        %2900 = vmatprep.mubr.f32.mxu0 %v2572
        %2901 = vmatmul.mubr.f32.gmra.mrb[0].mxu0 %v2532
        %v2902 = vpop.f32.mrb[0].mxu0
        %v2903 = vadd.f32 0.0, %v2902
        %v2904 = vpop.f32.mrb[0].mxu0
        %2905 = vmatprep.mubr.f32.mxu0 %v2573
        %2906 = vmatmul.mubr.f32.gmra.mrb[0].mxu0 %v2533
        %v2907 = vpop.f32.mrb[0].mxu0
        %v2908 = vadd.f32 0.0, %v2907
        %v2909 = vpop.f32.mrb[0].mxu0
        %2910 = vmatprep.mubr.f32.mxu0 %v2574
        %2911 = vmatmul.mubr.f32.gmra.mrb[0].mxu0 %v2534
        %v2912 = vpop.f32.mrb[0].mxu0
        %v2913 = vadd.f32 0.0, %v2912
        %v2914 = vpop.f32.mrb[0].mxu0
        %2915 = vmatprep.mubr.f32.mxu0 %v2575
        %2916 = vmatmul.mubr.f32.gmra.mrb[0].mxu0 %v2535
        %v2917 = vpop.f32.mrb[0].mxu0
        %v2918 = vadd.f32 0.0, %v2917
        %v2919 = vpop.f32.mrb[0].mxu0
        %2920 = vmatprep.mubr.f32.mxu0 %v2576
        %2921 = vmatmul.mubr.f32.gmra.mrb[0].mxu0 %v2536
        %v2922 = vpop.f32.mrb[0].mxu0
        %v2923 = vadd.f32 0.0, %v2922
        %v2924 = vpop.f32.mrb[0].mxu0
        %2925 = vmatprep.mubr.f32.mxu0 %v2577
        %2926 = vmatmul.mubr.f32.gmra.mrb[0].mxu0 %v2537
        %v2927 = vpop.f32.mrb[0].mxu0
        %v2928 = vadd.f32 0.0, %v2927
        %v2929 = vpop.f32.mrb[0].mxu0
        %2930 = vmatprep.mubr.f32.mxu0 %v2578
        %2931 = vmatmul.mubr.f32.gmra.mrb[0].mxu0 %v2538
        %v2932 = vpop.f32.mrb[0].mxu0
        %v2933 = vadd.f32 0.0, %v2932
        %v2934 = vpop.f32.mrb[0].mxu0
        %2935 = vmatprep.mubr.f32.mxu0 %v2579
        %2936 = vmatmul.mubr.f32.gmra.mrb[0].mxu0 %v2539
        %v2937 = vpop.f32.mrb[0].mxu0
        %v2938 = vadd.f32 0.0, %v2937
        %v2939 = vpop.f32.mrb[0].mxu0
        %2940 = vmatprep.mubr.f32.mxu0 %v2580
        %2941 = vmatmul.mubr.f32.gmra.mrb[0].mxu0 %v2540
        %v2942 = vpop.f32.mrb[0].mxu0
        %v2943 = vadd.f32 0.0, %v2942
        %v2944 = vpop.f32.mrb[0].mxu0
        %2945 = vdwg.mxu0
        %2946 = vmatprep.subr.mxu0 0.0
        %2947 = vmatpush1.msra.mxu0 %v2705
        %2948 = vmatprep.subr.mxu0 0.0
        %2949 = vmatpush1.msra.mxu0 %v2706
        %2950 = vmatprep.subr.mxu0 0.0
        %2951 = vmatpush1.msra.mxu0 %v2707
        %2952 = vmatprep.subr.mxu0 0.0
        %2953 = vmatpush1.msra.mxu0 %v2708
        %2954 = vmatprep.subr.mxu0 0.0
        %2955 = vmatpush1.msra.mxu0 %v2709
        %2956 = vmatprep.subr.mxu0 0.0
        %2957 = vmatpush1.msra.mxu0 %v2710
        %2958 = vmatprep.subr.mxu0 0.0
        %2959 = vmatpush1.msra.mxu0 %v2711
        %2960 = vmatprep.subr.mxu0 0.0
        %2961 = vmatpush1.msra.mxu0 %v2712
        %2962 = vmatprep.subr.mxu0 0.0
        %2963 = vmatpush1.msra.mxu0 %v2713
        %2964 = vmatprep.subr.mxu0 0.0
        %2965 = vmatpush1.msra.mxu0 %v2714
        %2966 = vmatprep.subr.mxu0 0.0
        %2967 = vmatpush1.msra.mxu0 %v2715
        %2968 = vmatprep.subr.mxu0 0.0
        %2969 = vmatpush1.msra.mxu0 %v2716
        %2970 = vmatprep.subr.mxu0 0.0
        %2971 = vmatpush1.msra.mxu0 %v2717
        %2972 = vmatprep.subr.mxu0 0.0
        %2973 = vmatpush1.msra.mxu0 %v2718
        %2974 = vmatprep.subr.mxu0 0.0
        %2975 = vmatpush1.msra.mxu0 %v2719
        %2976 = vmatprep.subr.mxu0 0.0
        %2977 = vmatpush1.msra.mxu0 %v2720
        %2978 = vmatprep.subr.mxu0 0.0
        %2979 = vmatpush1.msra.mxu0 0.0
        %2980 = vmatprep.subr.mxu0 0.0
        %2981 = vmatpush1.msra.mxu0 0.0
        %2982 = vmatprep.subr.mxu0 0.0
        %2983 = vmatpush1.msra.mxu0 0.0
        %2984 = vmatprep.subr.mxu0 0.0
        %2985 = vmatpush1.msra.mxu0 0.0
        %2986 = vmatprep.subr.mxu0 0.0
        %2987 = vmatpush1.msra.mxu0 0.0
        %2988 = vmatprep.subr.mxu0 0.0
        %2989 = vmatpush1.msra.mxu0 0.0
        %2990 = vmatprep.subr.mxu0 0.0
        %2991 = vmatpush1.msra.mxu0 0.0
        %2992 = vmatprep.subr.mxu0 0.0
        %2993 = vmatpush1.msra.mxu0 0.0
        %2994 = vmatprep.subr.mxu0 0.0
        %2995 = vmatpush1.msra.mxu0 0.0
        %2996 = vmatprep.subr.mxu0 0.0
        %2997 = vmatpush1.msra.mxu0 0.0
        %2998 = vmatprep.subr.mxu0 0.0
        %2999 = vmatpush1.msra.mxu0 0.0
        %3000 = vmatprep.subr.mxu0 0.0
        %3001 = vmatpush1.msra.mxu0 0.0
        %3002 = vmatprep.subr.mxu0 0.0
        %3003 = vmatpush1.msra.mxu0 0.0
        %3004 = vmatprep.subr.mxu0 0.0
        %3005 = vmatpush1.msra.mxu0 0.0
        %3006 = vmatprep.subr.mxu0 0.0
        %3007 = vmatpush1.msra.mxu0 0.0
        %3008 = vmatprep.subr.mxu0 0.0
        %3009 = vmatpush1.msra.mxu0 0.0
        %3010 = vmatprep.mubr.f32.mxu0 0.0
        %3011 = vmatmul.mubr.f32.gmra.mrb[0].mxu0 %v2589
        %v3012 = vpop.f32.mrb[0].mxu0
        %v3013 = vadd.f32 %v2788, %v3012
        %v3014 = vpop.f32.mrb[0].mxu0
        %3015 = vmatprep.mubr.f32.mxu0 0.0
        %3016 = vmatmul.mubr.f32.gmra.mrb[0].mxu0 %v2590
        %v3017 = vpop.f32.mrb[0].mxu0
        %v3018 = vadd.f32 %v2793, %v3017
        %v3019 = vpop.f32.mrb[0].mxu0
        %3020 = vmatprep.mubr.f32.mxu0 0.0
        %3021 = vmatmul.mubr.f32.gmra.mrb[0].mxu0 %v2591
        %v3022 = vpop.f32.mrb[0].mxu0
        %v3023 = vadd.f32 %v2798, %v3022
        %v3024 = vpop.f32.mrb[0].mxu0
        %3025 = vmatprep.mubr.f32.mxu0 0.0
        %3026 = vmatmul.mubr.f32.gmra.mrb[0].mxu0 %v2592
        %v3027 = vpop.f32.mrb[0].mxu0
        %v3028 = vadd.f32 %v2803, %v3027
        %v3029 = vpop.f32.mrb[0].mxu0
        %3030 = vmatprep.mubr.f32.mxu0 0.0
        %3031 = vmatmul.mubr.f32.gmra.mrb[0].mxu0 %v2593
        %v3032 = vpop.f32.mrb[0].mxu0
        %v3033 = vadd.f32 %v2808, %v3032
        %v3034 = vpop.f32.mrb[0].mxu0
        %3035 = vmatprep.mubr.f32.mxu0 0.0
        %3036 = vmatmul.mubr.f32.gmra.mrb[0].mxu0 %v2594
        %v3037 = vpop.f32.mrb[0].mxu0
        %v3038 = vadd.f32 %v2813, %v3037
        %v3039 = vpop.f32.mrb[0].mxu0
        %3040 = vmatprep.mubr.f32.mxu0 0.0
        %3041 = vmatmul.mubr.f32.gmra.mrb[0].mxu0 %v2595
        %v3042 = vpop.f32.mrb[0].mxu0
        %v3043 = vadd.f32 %v2818, %v3042
        %v3044 = vpop.f32.mrb[0].mxu0
        %3045 = vmatprep.mubr.f32.mxu0 0.0
        %3046 = vmatmul.mubr.f32.gmra.mrb[0].mxu0 %v2596
        %v3047 = vpop.f32.mrb[0].mxu0
        %v3048 = vadd.f32 %v2823, %v3047
        %v3049 = vpop.f32.mrb[0].mxu0
        %3050 = vmatprep.mubr.f32.mxu0 0.0
        %3051 = vmatmul.mubr.f32.gmra.mrb[0].mxu0 %v2597
        %v3052 = vpop.f32.mrb[0].mxu0
        %v3053 = vadd.f32 %v2828, %v3052
        %v3054 = vpop.f32.mrb[0].mxu0
        %3055 = vmatprep.mubr.f32.mxu0 0.0
        %3056 = vmatmul.mubr.f32.gmra.mrb[0].mxu0 %v2598
        %v3057 = vpop.f32.mrb[0].mxu0
        %v3058 = vadd.f32 %v2833, %v3057
        %v3059 = vpop.f32.mrb[0].mxu0
        %3060 = vmatprep.mubr.f32.mxu0 0.0
        %3061 = vmatmul.mubr.f32.gmra.mrb[0].mxu0 %v2599
        %v3062 = vpop.f32.mrb[0].mxu0
        %v3063 = vadd.f32 %v2838, %v3062
        %v3064 = vpop.f32.mrb[0].mxu0
        %3065 = vmatprep.mubr.f32.mxu0 0.0
        %3066 = vmatmul.mubr.f32.gmra.mrb[0].mxu0 %v2600
        %v3067 = vpop.f32.mrb[0].mxu0
        %v3068 = vadd.f32 %v2843, %v3067
        %v3069 = vpop.f32.mrb[0].mxu0
        %3070 = vmatprep.mubr.f32.mxu0 0.0
        %3071 = vmatmul.mubr.f32.gmra.mrb[0].mxu0 %v2601
        %v3072 = vpop.f32.mrb[0].mxu0
        %v3073 = vadd.f32 %v2848, %v3072
        %v3074 = vpop.f32.mrb[0].mxu0
        %3075 = vmatprep.mubr.f32.mxu0 0.0
        %3076 = vmatmul.mubr.f32.gmra.mrb[0].mxu0 %v2602
        %v3077 = vpop.f32.mrb[0].mxu0
        %v3078 = vadd.f32 %v2853, %v3077
        %v3079 = vpop.f32.mrb[0].mxu0
        %3080 = vmatprep.mubr.f32.mxu0 0.0
        %3081 = vmatmul.mubr.f32.gmra.mrb[0].mxu0 %v2603
        %v3082 = vpop.f32.mrb[0].mxu0
        %v3083 = vadd.f32 %v2858, %v3082
        %v3084 = vpop.f32.mrb[0].mxu0
        %3085 = vmatprep.mubr.f32.mxu0 0.0
        %3086 = vmatmul.mubr.f32.gmra.mrb[0].mxu0 %v2604
        %v3087 = vpop.f32.mrb[0].mxu0
        %v3088 = vadd.f32 %v2863, %v3087
        %v3089 = vpop.f32.mrb[0].mxu0
        %3090 = vmatprep.mubr.f32.mxu0 0.0
        %3091 = vmatmul.mubr.f32.gmra.mrb[0].mxu0 %v2605
        %v3092 = vpop.f32.mrb[0].mxu0
        %v3093 = vadd.f32 %v2868, %v3092
        %v3094 = vpop.f32.mrb[0].mxu0
        %3095 = vmatprep.mubr.f32.mxu0 0.0
        %3096 = vmatmul.mubr.f32.gmra.mrb[0].mxu0 %v2606
        %v3097 = vpop.f32.mrb[0].mxu0
        %v3098 = vadd.f32 %v2873, %v3097
        %v3099 = vpop.f32.mrb[0].mxu0
        %3100 = vmatprep.mubr.f32.mxu0 0.0
        %3101 = vmatmul.mubr.f32.gmra.mrb[0].mxu0 %v2607
        %v3102 = vpop.f32.mrb[0].mxu0
        %v3103 = vadd.f32 %v2878, %v3102
        %v3104 = vpop.f32.mrb[0].mxu0
        %3105 = vmatprep.mubr.f32.mxu0 0.0
        %3106 = vmatmul.mubr.f32.gmra.mrb[0].mxu0 %v2608
        %v3107 = vpop.f32.mrb[0].mxu0
        %v3108 = vadd.f32 %v2883, %v3107
        %v3109 = vpop.f32.mrb[0].mxu0
        %3110 = vmatprep.mubr.f32.mxu0 0.0
        %3111 = vmatmul.mubr.f32.gmra.mrb[0].mxu0 %v2609
        %v3112 = vpop.f32.mrb[0].mxu0
        %v3113 = vadd.f32 %v2888, %v3112
        %v3114 = vpop.f32.mrb[0].mxu0
        %3115 = vmatprep.mubr.f32.mxu0 0.0
        %3116 = vmatmul.mubr.f32.gmra.mrb[0].mxu0 %v2610
        %v3117 = vpop.f32.mrb[0].mxu0
        %v3118 = vadd.f32 %v2893, %v3117
        %v3119 = vpop.f32.mrb[0].mxu0
        %3120 = vmatprep.mubr.f32.mxu0 0.0
        %3121 = vmatmul.mubr.f32.gmra.mrb[0].mxu0 %v2611
        %v3122 = vpop.f32.mrb[0].mxu0
        %v3123 = vadd.f32 %v2898, %v3122
        %v3124 = vpop.f32.mrb[0].mxu0
        %3125 = vmatprep.mubr.f32.mxu0 0.0
        %3126 = vmatmul.mubr.f32.gmra.mrb[0].mxu0 %v2612
        %v3127 = vpop.f32.mrb[0].mxu0
        %v3128 = vadd.f32 %v2903, %v3127
        %v3129 = vpop.f32.mrb[0].mxu0
        %3130 = vmatprep.mubr.f32.mxu0 0.0
        %3131 = vmatmul.mubr.f32.gmra.mrb[0].mxu0 %v2613
        %v3132 = vpop.f32.mrb[0].mxu0
        %v3133 = vadd.f32 %v2908, %v3132
        %v3134 = vpop.f32.mrb[0].mxu0
        %3135 = vmatprep.mubr.f32.mxu0 0.0
        %3136 = vmatmul.mubr.f32.gmra.mrb[0].mxu0 %v2614
        %v3137 = vpop.f32.mrb[0].mxu0
        %v3138 = vadd.f32 %v2913, %v3137
        %v3139 = vpop.f32.mrb[0].mxu0
        %3140 = vmatprep.mubr.f32.mxu0 0.0
        %3141 = vmatmul.mubr.f32.gmra.mrb[0].mxu0 %v2615
        %v3142 = vpop.f32.mrb[0].mxu0
        %v3143 = vadd.f32 %v2918, %v3142
        %v3144 = vpop.f32.mrb[0].mxu0
        %3145 = vmatprep.mubr.f32.mxu0 0.0
        %3146 = vmatmul.mubr.f32.gmra.mrb[0].mxu0 %v2616
        %v3147 = vpop.f32.mrb[0].mxu0
        %v3148 = vadd.f32 %v2923, %v3147
        %v3149 = vpop.f32.mrb[0].mxu0
        %3150 = vmatprep.mubr.f32.mxu0 0.0
        %3151 = vmatmul.mubr.f32.gmra.mrb[0].mxu0 %v2617
        %v3152 = vpop.f32.mrb[0].mxu0
        %v3153 = vadd.f32 %v2928, %v3152
        %v3154 = vpop.f32.mrb[0].mxu0
        %3155 = vmatprep.mubr.f32.mxu0 0.0
        %3156 = vmatmul.mubr.f32.gmra.mrb[0].mxu0 %v2618
        %v3157 = vpop.f32.mrb[0].mxu0
        %v3158 = vadd.f32 %v2933, %v3157
        %v3159 = vpop.f32.mrb[0].mxu0
        %3160 = vmatprep.mubr.f32.mxu0 0.0
        %3161 = vmatmul.mubr.f32.gmra.mrb[0].mxu0 %v2619
        %v3162 = vpop.f32.mrb[0].mxu0
        %v3163 = vadd.f32 %v2938, %v3162
        %v3164 = vpop.f32.mrb[0].mxu0
        %3165 = vmatprep.mubr.f32.mxu0 0.0
        %3166 = vmatmul.mubr.f32.gmra.mrb[0].mxu0 %v2620
        %v3167 = vpop.f32.mrb[0].mxu0
        %v3168 = vadd.f32 %v2943, %v3167
        %v3169 = vpop.f32.mrb[0].mxu0
        %3170 = vdwg.mxu0
        %3171 = vmatprep.subr.mxu0 0.0
        %3172 = vmatpush1.msra.mxu0 %v2625
        %3173 = vmatprep.subr.mxu0 0.0
        %3174 = vmatpush1.msra.mxu0 %v2626
        %3175 = vmatprep.subr.mxu0 0.0
        %3176 = vmatpush1.msra.mxu0 %v2627
        %3177 = vmatprep.subr.mxu0 0.0
        %3178 = vmatpush1.msra.mxu0 %v2628
        %3179 = vmatprep.subr.mxu0 0.0
        %3180 = vmatpush1.msra.mxu0 %v2629
        %3181 = vmatprep.subr.mxu0 0.0
        %3182 = vmatpush1.msra.mxu0 %v2630
        %3183 = vmatprep.subr.mxu0 0.0
        %3184 = vmatpush1.msra.mxu0 %v2631
        %3185 = vmatprep.subr.mxu0 0.0
        %3186 = vmatpush1.msra.mxu0 %v2632
        %3187 = vmatprep.subr.mxu0 0.0
        %3188 = vmatpush1.msra.mxu0 %v2633
        %3189 = vmatprep.subr.mxu0 0.0
        %3190 = vmatpush1.msra.mxu0 %v2634
        %3191 = vmatprep.subr.mxu0 0.0
        %3192 = vmatpush1.msra.mxu0 %v2635
        %3193 = vmatprep.subr.mxu0 0.0
        %3194 = vmatpush1.msra.mxu0 %v2636
        %3195 = vmatprep.subr.mxu0 0.0
        %3196 = vmatpush1.msra.mxu0 %v2637
        %3197 = vmatprep.subr.mxu0 0.0
        %3198 = vmatpush1.msra.mxu0 %v2638
        %3199 = vmatprep.subr.mxu0 0.0
        %3200 = vmatpush1.msra.mxu0 %v2639
        %3201 = vmatprep.subr.mxu0 0.0
        %3202 = vmatpush1.msra.mxu0 %v2640
        %3203 = vmatprep.subr.mxu0 0.0
        %3204 = vmatpush1.msra.mxu0 %v2641
        %3205 = vmatprep.subr.mxu0 0.0
        %3206 = vmatpush1.msra.mxu0 %v2642
        %3207 = vmatprep.subr.mxu0 0.0
        %3208 = vmatpush1.msra.mxu0 %v2643
        %3209 = vmatprep.subr.mxu0 0.0
        %3210 = vmatpush1.msra.mxu0 %v2644
        %3211 = vmatprep.subr.mxu0 0.0
        %3212 = vmatpush1.msra.mxu0 %v2645
        %3213 = vmatprep.subr.mxu0 0.0
        %3214 = vmatpush1.msra.mxu0 %v2646
        %3215 = vmatprep.subr.mxu0 0.0
        %3216 = vmatpush1.msra.mxu0 %v2647
        %3217 = vmatprep.subr.mxu0 0.0
        %3218 = vmatpush1.msra.mxu0 %v2648
        %3219 = vmatprep.subr.mxu0 0.0
        %3220 = vmatpush1.msra.mxu0 %v2649
        %3221 = vmatprep.subr.mxu0 0.0
        %3222 = vmatpush1.msra.mxu0 %v2650
        %3223 = vmatprep.subr.mxu0 0.0
        %3224 = vmatpush1.msra.mxu0 %v2651
        %3225 = vmatprep.subr.mxu0 0.0
        %3226 = vmatpush1.msra.mxu0 %v2652
        %3227 = vmatprep.subr.mxu0 0.0
        %3228 = vmatpush1.msra.mxu0 %v2653
        %3229 = vmatprep.subr.mxu0 0.0
        %3230 = vmatpush1.msra.mxu0 %v2654
        %3231 = vmatprep.subr.mxu0 0.0
        %3232 = vmatpush1.msra.mxu0 %v2655
        %3233 = vmatprep.subr.mxu0 0.0
        %3234 = vmatpush1.msra.mxu0 %v2656
        %3235 = vmatprep.mubr.f32.mxu0 %v2545
        %3236 = vmatmul.mubr.f32.gmra.mrb[0].mxu0 %v2505
        %v3237 = vpop.f32.mrb[0].mxu0
        %v3238 = vadd.f32 %v3013, %v3237
        %v3239 = vpop.f32.mrb[0].mxu0
        %3240 = vmatprep.mubr.f32.mxu0 %v2546
        %3241 = vmatmul.mubr.f32.gmra.mrb[0].mxu0 %v2506
        %v3242 = vpop.f32.mrb[0].mxu0
        %v3243 = vadd.f32 %v3018, %v3242
        %v3244 = vpop.f32.mrb[0].mxu0
        %3245 = vmatprep.mubr.f32.mxu0 %v2547
        %3246 = vmatmul.mubr.f32.gmra.mrb[0].mxu0 %v2507
        %v3247 = vpop.f32.mrb[0].mxu0
        %v3248 = vadd.f32 %v3023, %v3247
        %v3249 = vpop.f32.mrb[0].mxu0
        %3250 = vmatprep.mubr.f32.mxu0 %v2548
        %3251 = vmatmul.mubr.f32.gmra.mrb[0].mxu0 %v2508
        %v3252 = vpop.f32.mrb[0].mxu0
        %v3253 = vadd.f32 %v3028, %v3252
        %v3254 = vpop.f32.mrb[0].mxu0
        %3255 = vmatprep.mubr.f32.mxu0 %v2549
        %3256 = vmatmul.mubr.f32.gmra.mrb[0].mxu0 %v2509
        %v3257 = vpop.f32.mrb[0].mxu0
        %v3258 = vadd.f32 %v3033, %v3257
        %v3259 = vpop.f32.mrb[0].mxu0
        %3260 = vmatprep.mubr.f32.mxu0 %v2550
        %3261 = vmatmul.mubr.f32.gmra.mrb[0].mxu0 %v2510
        %v3262 = vpop.f32.mrb[0].mxu0
        %v3263 = vadd.f32 %v3038, %v3262
        %v3264 = vpop.f32.mrb[0].mxu0
        %3265 = vmatprep.mubr.f32.mxu0 %v2551
        %3266 = vmatmul.mubr.f32.gmra.mrb[0].mxu0 %v2511
        %v3267 = vpop.f32.mrb[0].mxu0
        %v3268 = vadd.f32 %v3043, %v3267
        %v3269 = vpop.f32.mrb[0].mxu0
        %3270 = vmatprep.mubr.f32.mxu0 %v2552
        %3271 = vmatmul.mubr.f32.gmra.mrb[0].mxu0 %v2512
        %v3272 = vpop.f32.mrb[0].mxu0
        %v3273 = vadd.f32 %v3048, %v3272
        %v3274 = vpop.f32.mrb[0].mxu0
        %3275 = vmatprep.mubr.f32.mxu0 %v2553
        %3276 = vmatmul.mubr.f32.gmra.mrb[0].mxu0 %v2513
        %v3277 = vpop.f32.mrb[0].mxu0
        %v3278 = vadd.f32 %v3053, %v3277
        %v3279 = vpop.f32.mrb[0].mxu0
        %3280 = vmatprep.mubr.f32.mxu0 %v2554
        %3281 = vmatmul.mubr.f32.gmra.mrb[0].mxu0 %v2514
        %v3282 = vpop.f32.mrb[0].mxu0
        %v3283 = vadd.f32 %v3058, %v3282
        %v3284 = vpop.f32.mrb[0].mxu0
        %3285 = vmatprep.mubr.f32.mxu0 %v2555
        %3286 = vmatmul.mubr.f32.gmra.mrb[0].mxu0 %v2515
        %v3287 = vpop.f32.mrb[0].mxu0
        %v3288 = vadd.f32 %v3063, %v3287
        %v3289 = vpop.f32.mrb[0].mxu0
        %3290 = vmatprep.mubr.f32.mxu0 %v2556
        %3291 = vmatmul.mubr.f32.gmra.mrb[0].mxu0 %v2516
        %v3292 = vpop.f32.mrb[0].mxu0
        %v3293 = vadd.f32 %v3068, %v3292
        %v3294 = vpop.f32.mrb[0].mxu0
        %3295 = vmatprep.mubr.f32.mxu0 %v2557
        %3296 = vmatmul.mubr.f32.gmra.mrb[0].mxu0 %v2517
        %v3297 = vpop.f32.mrb[0].mxu0
        %v3298 = vadd.f32 %v3073, %v3297
        %v3299 = vpop.f32.mrb[0].mxu0
        %3300 = vmatprep.mubr.f32.mxu0 %v2558
        %3301 = vmatmul.mubr.f32.gmra.mrb[0].mxu0 %v2518
        %v3302 = vpop.f32.mrb[0].mxu0
        %v3303 = vadd.f32 %v3078, %v3302
        %v3304 = vpop.f32.mrb[0].mxu0
        %3305 = vmatprep.mubr.f32.mxu0 %v2559
        %3306 = vmatmul.mubr.f32.gmra.mrb[0].mxu0 %v2519
        %v3307 = vpop.f32.mrb[0].mxu0
        %v3308 = vadd.f32 %v3083, %v3307
        %v3309 = vpop.f32.mrb[0].mxu0
        %3310 = vmatprep.mubr.f32.mxu0 %v2560
        %3311 = vmatmul.mubr.f32.gmra.mrb[0].mxu0 %v2520
        %v3312 = vpop.f32.mrb[0].mxu0
        %v3313 = vadd.f32 %v3088, %v3312
        %v3314 = vpop.f32.mrb[0].mxu0
        %3315 = vmatprep.mubr.f32.mxu0 %v2561
        %3316 = vmatmul.mubr.f32.gmra.mrb[0].mxu0 %v2521
        %v3317 = vpop.f32.mrb[0].mxu0
        %v3318 = vadd.f32 %v3093, %v3317
        %v3319 = vpop.f32.mrb[0].mxu0
        %3320 = vmatprep.mubr.f32.mxu0 %v2562
        %3321 = vmatmul.mubr.f32.gmra.mrb[0].mxu0 %v2522
        %v3322 = vpop.f32.mrb[0].mxu0
        %v3323 = vadd.f32 %v3098, %v3322
        %v3324 = vpop.f32.mrb[0].mxu0
        %3325 = vmatprep.mubr.f32.mxu0 %v2563
        %3326 = vmatmul.mubr.f32.gmra.mrb[0].mxu0 %v2523
        %v3327 = vpop.f32.mrb[0].mxu0
        %v3328 = vadd.f32 %v3103, %v3327
        %v3329 = vpop.f32.mrb[0].mxu0
        %3330 = vmatprep.mubr.f32.mxu0 %v2564
        %3331 = vmatmul.mubr.f32.gmra.mrb[0].mxu0 %v2524
        %v3332 = vpop.f32.mrb[0].mxu0
        %v3333 = vadd.f32 %v3108, %v3332
        %v3334 = vpop.f32.mrb[0].mxu0
        %3335 = vmatprep.mubr.f32.mxu0 %v2565
        %3336 = vmatmul.mubr.f32.gmra.mrb[0].mxu0 %v2525
        %v3337 = vpop.f32.mrb[0].mxu0
        %v3338 = vadd.f32 %v3113, %v3337
        %v3339 = vpop.f32.mrb[0].mxu0
        %3340 = vmatprep.mubr.f32.mxu0 %v2566
        %3341 = vmatmul.mubr.f32.gmra.mrb[0].mxu0 %v2526
        %v3342 = vpop.f32.mrb[0].mxu0
        %v3343 = vadd.f32 %v3118, %v3342
        %v3344 = vpop.f32.mrb[0].mxu0
        %3345 = vmatprep.mubr.f32.mxu0 %v2567
        %3346 = vmatmul.mubr.f32.gmra.mrb[0].mxu0 %v2527
        %v3347 = vpop.f32.mrb[0].mxu0
        %v3348 = vadd.f32 %v3123, %v3347
        %v3349 = vpop.f32.mrb[0].mxu0
        %3350 = vmatprep.mubr.f32.mxu0 %v2568
        %3351 = vmatmul.mubr.f32.gmra.mrb[0].mxu0 %v2528
        %v3352 = vpop.f32.mrb[0].mxu0
        %v3353 = vadd.f32 %v3128, %v3352
        %v3354 = vpop.f32.mrb[0].mxu0
        %3355 = vmatprep.mubr.f32.mxu0 %v2569
        %3356 = vmatmul.mubr.f32.gmra.mrb[0].mxu0 %v2529
        %v3357 = vpop.f32.mrb[0].mxu0
        %v3358 = vadd.f32 %v3133, %v3357
        %v3359 = vpop.f32.mrb[0].mxu0
        %3360 = vmatprep.mubr.f32.mxu0 %v2570
        %3361 = vmatmul.mubr.f32.gmra.mrb[0].mxu0 %v2530
        %v3362 = vpop.f32.mrb[0].mxu0
        %v3363 = vadd.f32 %v3138, %v3362
        %v3364 = vpop.f32.mrb[0].mxu0
        %3365 = vmatprep.mubr.f32.mxu0 %v2571
        %3366 = vmatmul.mubr.f32.gmra.mrb[0].mxu0 %v2531
        %v3367 = vpop.f32.mrb[0].mxu0
        %v3368 = vadd.f32 %v3143, %v3367
        %v3369 = vpop.f32.mrb[0].mxu0
        %3370 = vmatprep.mubr.f32.mxu0 %v2572
        %3371 = vmatmul.mubr.f32.gmra.mrb[0].mxu0 %v2532
        %v3372 = vpop.f32.mrb[0].mxu0
        %v3373 = vadd.f32 %v3148, %v3372
        %v3374 = vpop.f32.mrb[0].mxu0
        %3375 = vmatprep.mubr.f32.mxu0 %v2573
        %3376 = vmatmul.mubr.f32.gmra.mrb[0].mxu0 %v2533
        %v3377 = vpop.f32.mrb[0].mxu0
        %v3378 = vadd.f32 %v3153, %v3377
        %v3379 = vpop.f32.mrb[0].mxu0
        %3380 = vmatprep.mubr.f32.mxu0 %v2574
        %3381 = vmatmul.mubr.f32.gmra.mrb[0].mxu0 %v2534
        %v3382 = vpop.f32.mrb[0].mxu0
        %v3383 = vadd.f32 %v3158, %v3382
        %v3384 = vpop.f32.mrb[0].mxu0
        %3385 = vmatprep.mubr.f32.mxu0 %v2575
        %3386 = vmatmul.mubr.f32.gmra.mrb[0].mxu0 %v2535
        %v3387 = vpop.f32.mrb[0].mxu0
        %v3388 = vadd.f32 %v3163, %v3387
        %v3389 = vpop.f32.mrb[0].mxu0
        %3390 = vmatprep.mubr.f32.mxu0 %v2576
        %3391 = vmatmul.mubr.f32.gmra.mrb[0].mxu0 %v2536
        %v3392 = vpop.f32.mrb[0].mxu0
        %v3393 = vadd.f32 %v3168, %v3392
        %v3394 = vpop.f32.mrb[0].mxu0
        %3395 = vdwg.mxu0
        %3396 = vmatprep.subr.mxu0 0.0
        %3397 = vmatpush1.msra.mxu0 %v2657
        %3398 = vmatprep.subr.mxu0 0.0
        %3399 = vmatpush1.msra.mxu0 %v2658
        %3400 = vmatprep.subr.mxu0 0.0
        %3401 = vmatpush1.msra.mxu0 %v2659
        %3402 = vmatprep.subr.mxu0 0.0
        %3403 = vmatpush1.msra.mxu0 %v2660
        %3404 = vmatprep.subr.mxu0 0.0
        %3405 = vmatpush1.msra.mxu0 %v2661
        %3406 = vmatprep.subr.mxu0 0.0
        %3407 = vmatpush1.msra.mxu0 %v2662
        %3408 = vmatprep.subr.mxu0 0.0
        %3409 = vmatpush1.msra.mxu0 %v2663
        %3410 = vmatprep.subr.mxu0 0.0
        %3411 = vmatpush1.msra.mxu0 %v2664
        %3412 = vmatprep.subr.mxu0 0.0
        %3413 = vmatpush1.msra.mxu0 %v2665
        %3414 = vmatprep.subr.mxu0 0.0
        %3415 = vmatpush1.msra.mxu0 %v2666
        %3416 = vmatprep.subr.mxu0 0.0
        %3417 = vmatpush1.msra.mxu0 %v2667
        %3418 = vmatprep.subr.mxu0 0.0
        %3419 = vmatpush1.msra.mxu0 %v2668
        %3420 = vmatprep.subr.mxu0 0.0
        %3421 = vmatpush1.msra.mxu0 %v2669
        %3422 = vmatprep.subr.mxu0 0.0
        %3423 = vmatpush1.msra.mxu0 %v2670
        %3424 = vmatprep.subr.mxu0 0.0
        %3425 = vmatpush1.msra.mxu0 %v2671
        %3426 = vmatprep.subr.mxu0 0.0
        %3427 = vmatpush1.msra.mxu0 %v2672
        %3428 = vmatprep.subr.mxu0 0.0
        %3429 = vmatpush1.msra.mxu0 0.0
        %3430 = vmatprep.subr.mxu0 0.0
        %3431 = vmatpush1.msra.mxu0 0.0
        %3432 = vmatprep.subr.mxu0 0.0
        %3433 = vmatpush1.msra.mxu0 0.0
        %3434 = vmatprep.subr.mxu0 0.0
        %3435 = vmatpush1.msra.mxu0 0.0
        %3436 = vmatprep.subr.mxu0 0.0
        %3437 = vmatpush1.msra.mxu0 0.0
        %3438 = vmatprep.subr.mxu0 0.0
        %3439 = vmatpush1.msra.mxu0 0.0
        %3440 = vmatprep.subr.mxu0 0.0
        %3441 = vmatpush1.msra.mxu0 0.0
        %3442 = vmatprep.subr.mxu0 0.0
        %3443 = vmatpush1.msra.mxu0 0.0
        %3444 = vmatprep.subr.mxu0 0.0
        %3445 = vmatpush1.msra.mxu0 0.0
        %3446 = vmatprep.subr.mxu0 0.0
        %3447 = vmatpush1.msra.mxu0 0.0
        %3448 = vmatprep.subr.mxu0 0.0
        %3449 = vmatpush1.msra.mxu0 0.0
        %3450 = vmatprep.subr.mxu0 0.0
        %3451 = vmatpush1.msra.mxu0 0.0
        %3452 = vmatprep.subr.mxu0 0.0
        %3453 = vmatpush1.msra.mxu0 0.0
        %3454 = vmatprep.subr.mxu0 0.0
        %3455 = vmatpush1.msra.mxu0 0.0
        %3456 = vmatprep.subr.mxu0 0.0
        %3457 = vmatpush1.msra.mxu0 0.0
        %3458 = vmatprep.subr.mxu0 0.0
        %3459 = vmatpush1.msra.mxu0 0.0
        %3460 = vmatprep.mubr.f32.mxu0 0.0
        %3461 = vmatmul.mubr.f32.gmra.mrb[0].mxu0 %v2585
        %v3462 = vpop.f32.mrb[0].mxu0
        %v3463 = vadd.f32 %v3238, %v3462
        %v3464 = vpop.f32.mrb[0].mxu0
        %3465 = vmatprep.mubr.f32.mxu0 0.0
        %3466 = vmatmul.mubr.f32.gmra.mrb[0].mxu0 %v2586
        %v3467 = vpop.f32.mrb[0].mxu0
        %v3468 = vadd.f32 %v3243, %v3467
        %v3469 = vpop.f32.mrb[0].mxu0
        %3470 = vmatprep.mubr.f32.mxu0 0.0
        %3471 = vmatmul.mubr.f32.gmra.mrb[0].mxu0 %v2587
        %v3472 = vpop.f32.mrb[0].mxu0
        %v3473 = vadd.f32 %v3248, %v3472
        %v3474 = vpop.f32.mrb[0].mxu0
        %3475 = vmatprep.mubr.f32.mxu0 0.0
        %3476 = vmatmul.mubr.f32.gmra.mrb[0].mxu0 %v2588
        %v3477 = vpop.f32.mrb[0].mxu0
        %v3478 = vadd.f32 %v3253, %v3477
        %v3479 = vpop.f32.mrb[0].mxu0
        %3480 = vmatprep.mubr.f32.mxu0 0.0
        %3481 = vmatmul.mubr.f32.gmra.mrb[0].mxu0 %v2589
        %v3482 = vpop.f32.mrb[0].mxu0
        %v3483 = vadd.f32 %v3258, %v3482
        %v3484 = vpop.f32.mrb[0].mxu0
        %3485 = vmatprep.mubr.f32.mxu0 0.0
        %3486 = vmatmul.mubr.f32.gmra.mrb[0].mxu0 %v2590
        %v3487 = vpop.f32.mrb[0].mxu0
        %v3488 = vadd.f32 %v3263, %v3487
        %v3489 = vpop.f32.mrb[0].mxu0
        %3490 = vmatprep.mubr.f32.mxu0 0.0
        %3491 = vmatmul.mubr.f32.gmra.mrb[0].mxu0 %v2591
        %v3492 = vpop.f32.mrb[0].mxu0
        %v3493 = vadd.f32 %v3268, %v3492
        %v3494 = vpop.f32.mrb[0].mxu0
        %3495 = vmatprep.mubr.f32.mxu0 0.0
        %3496 = vmatmul.mubr.f32.gmra.mrb[0].mxu0 %v2592
        %v3497 = vpop.f32.mrb[0].mxu0
        %v3498 = vadd.f32 %v3273, %v3497
        %v3499 = vpop.f32.mrb[0].mxu0
        %3500 = vmatprep.mubr.f32.mxu0 0.0
        %3501 = vmatmul.mubr.f32.gmra.mrb[0].mxu0 %v2593
        %v3502 = vpop.f32.mrb[0].mxu0
        %v3503 = vadd.f32 %v3278, %v3502
        %v3504 = vpop.f32.mrb[0].mxu0
        %3505 = vmatprep.mubr.f32.mxu0 0.0
        %3506 = vmatmul.mubr.f32.gmra.mrb[0].mxu0 %v2594
        %v3507 = vpop.f32.mrb[0].mxu0
        %v3508 = vadd.f32 %v3283, %v3507
        %v3509 = vpop.f32.mrb[0].mxu0
        %3510 = vmatprep.mubr.f32.mxu0 0.0
        %3511 = vmatmul.mubr.f32.gmra.mrb[0].mxu0 %v2595
        %v3512 = vpop.f32.mrb[0].mxu0
        %v3513 = vadd.f32 %v3288, %v3512
        %v3514 = vpop.f32.mrb[0].mxu0
        %3515 = vmatprep.mubr.f32.mxu0 0.0
        %3516 = vmatmul.mubr.f32.gmra.mrb[0].mxu0 %v2596
        %v3517 = vpop.f32.mrb[0].mxu0
        %v3518 = vadd.f32 %v3293, %v3517
        %v3519 = vpop.f32.mrb[0].mxu0
        %3520 = vmatprep.mubr.f32.mxu0 0.0
        %3521 = vmatmul.mubr.f32.gmra.mrb[0].mxu0 %v2597
        %v3522 = vpop.f32.mrb[0].mxu0
        %v3523 = vadd.f32 %v3298, %v3522
        %v3524 = vpop.f32.mrb[0].mxu0
        %3525 = vmatprep.mubr.f32.mxu0 0.0
        %3526 = vmatmul.mubr.f32.gmra.mrb[0].mxu0 %v2598
        %v3527 = vpop.f32.mrb[0].mxu0
        %v3528 = vadd.f32 %v3303, %v3527
        %v3529 = vpop.f32.mrb[0].mxu0
        %3530 = vmatprep.mubr.f32.mxu0 0.0
        %3531 = vmatmul.mubr.f32.gmra.mrb[0].mxu0 %v2599
        %v3532 = vpop.f32.mrb[0].mxu0
        %v3533 = vadd.f32 %v3308, %v3532
        %v3534 = vpop.f32.mrb[0].mxu0
        %3535 = vmatprep.mubr.f32.mxu0 0.0
        %3536 = vmatmul.mubr.f32.gmra.mrb[0].mxu0 %v2600
        %v3537 = vpop.f32.mrb[0].mxu0
        %v3538 = vadd.f32 %v3313, %v3537
        %v3539 = vpop.f32.mrb[0].mxu0
        %3540 = vmatprep.mubr.f32.mxu0 0.0
        %3541 = vmatmul.mubr.f32.gmra.mrb[0].mxu0 %v2601
        %v3542 = vpop.f32.mrb[0].mxu0
        %v3543 = vadd.f32 %v3318, %v3542
        %v3544 = vpop.f32.mrb[0].mxu0
        %3545 = vmatprep.mubr.f32.mxu0 0.0
        %3546 = vmatmul.mubr.f32.gmra.mrb[0].mxu0 %v2602
        %v3547 = vpop.f32.mrb[0].mxu0
        %v3548 = vadd.f32 %v3323, %v3547
        %v3549 = vpop.f32.mrb[0].mxu0
        %3550 = vmatprep.mubr.f32.mxu0 0.0
        %3551 = vmatmul.mubr.f32.gmra.mrb[0].mxu0 %v2603
        %v3552 = vpop.f32.mrb[0].mxu0
        %v3553 = vadd.f32 %v3328, %v3552
        %v3554 = vpop.f32.mrb[0].mxu0
        %3555 = vmatprep.mubr.f32.mxu0 0.0
        %3556 = vmatmul.mubr.f32.gmra.mrb[0].mxu0 %v2604
        %v3557 = vpop.f32.mrb[0].mxu0
        %v3558 = vadd.f32 %v3333, %v3557
        %v3559 = vpop.f32.mrb[0].mxu0
        %3560 = vmatprep.mubr.f32.mxu0 0.0
        %3561 = vmatmul.mubr.f32.gmra.mrb[0].mxu0 %v2605
        %v3562 = vpop.f32.mrb[0].mxu0
        %v3563 = vadd.f32 %v3338, %v3562
        %v3564 = vpop.f32.mrb[0].mxu0
        %3565 = vmatprep.mubr.f32.mxu0 0.0
        %3566 = vmatmul.mubr.f32.gmra.mrb[0].mxu0 %v2606
        %v3567 = vpop.f32.mrb[0].mxu0
        %v3568 = vadd.f32 %v3343, %v3567
        %v3569 = vpop.f32.mrb[0].mxu0
        %3570 = vmatprep.mubr.f32.mxu0 0.0
        %3571 = vmatmul.mubr.f32.gmra.mrb[0].mxu0 %v2607
        %v3572 = vpop.f32.mrb[0].mxu0
        %v3573 = vadd.f32 %v3348, %v3572
        %v3574 = vpop.f32.mrb[0].mxu0
        %3575 = vmatprep.mubr.f32.mxu0 0.0
        %3576 = vmatmul.mubr.f32.gmra.mrb[0].mxu0 %v2608
        %v3577 = vpop.f32.mrb[0].mxu0
        %v3578 = vadd.f32 %v3353, %v3577
        %v3579 = vpop.f32.mrb[0].mxu0
        %3580 = vmatprep.mubr.f32.mxu0 0.0
        %3581 = vmatmul.mubr.f32.gmra.mrb[0].mxu0 %v2609
        %v3582 = vpop.f32.mrb[0].mxu0
        %v3583 = vadd.f32 %v3358, %v3582
        %v3584 = vpop.f32.mrb[0].mxu0
        %3585 = vmatprep.mubr.f32.mxu0 0.0
        %3586 = vmatmul.mubr.f32.gmra.mrb[0].mxu0 %v2610
        %v3587 = vpop.f32.mrb[0].mxu0
        %v3588 = vadd.f32 %v3363, %v3587
        %v3589 = vpop.f32.mrb[0].mxu0
        %3590 = vmatprep.mubr.f32.mxu0 0.0
        %3591 = vmatmul.mubr.f32.gmra.mrb[0].mxu0 %v2611
        %v3592 = vpop.f32.mrb[0].mxu0
        %v3593 = vadd.f32 %v3368, %v3592
        %v3594 = vpop.f32.mrb[0].mxu0
        %3595 = vmatprep.mubr.f32.mxu0 0.0
        %3596 = vmatmul.mubr.f32.gmra.mrb[0].mxu0 %v2612
        %v3597 = vpop.f32.mrb[0].mxu0
        %v3598 = vadd.f32 %v3373, %v3597
        %v3599 = vpop.f32.mrb[0].mxu0
        %3600 = vmatprep.mubr.f32.mxu0 0.0
        %3601 = vmatmul.mubr.f32.gmra.mrb[0].mxu0 %v2613
        %v3602 = vpop.f32.mrb[0].mxu0
        %v3603 = vadd.f32 %v3378, %v3602
        %v3604 = vpop.f32.mrb[0].mxu0
        %3605 = vmatprep.mubr.f32.mxu0 0.0
        %3606 = vmatmul.mubr.f32.gmra.mrb[0].mxu0 %v2614
        %v3607 = vpop.f32.mrb[0].mxu0
        %v3608 = vadd.f32 %v3383, %v3607
        %v3609 = vpop.f32.mrb[0].mxu0
        %3610 = vmatprep.mubr.f32.mxu0 0.0
        %3611 = vmatmul.mubr.f32.gmra.mrb[0].mxu0 %v2615
        %v3612 = vpop.f32.mrb[0].mxu0
        %v3613 = vadd.f32 %v3388, %v3612
        %v3614 = vpop.f32.mrb[0].mxu0
        %3615 = vmatprep.mubr.f32.mxu0 0.0
        %3616 = vmatmul.mubr.f32.gmra.mrb[0].mxu0 %v2616
        %v3617 = vpop.f32.mrb[0].mxu0
        %v3618 = vadd.f32 %v3393, %v3617
        %v3619 = vpop.f32.mrb[0].mxu0
        %3620 = vdwg.mxu0
        %v3621 = vld [vmem:[#allocation4 + $0x300] sm:$0xff]
        %v3622 = vld [vmem:[#allocation4 + $0x308] sm:$0xff]
        %v3623 = vld [vmem:[#allocation4 + $0x310] sm:$0xff]
        %v3624 = vld [vmem:[#allocation4 + $0x318] sm:$0xff]
        %v3625 = vld [vmem:[#allocation4 + $0x320] sm:$0xff]
        %v3626 = vld [vmem:[#allocation4 + $0x328] sm:$0xff]
        %v3627 = vld [vmem:[#allocation4 + $0x330] sm:$0xff]
        %v3628 = vld [vmem:[#allocation4 + $0x338] sm:$0xff]
        %v3629 = vld [vmem:[#allocation4 + $0x340] sm:$0xff]
        %v3630 = vld [vmem:[#allocation4 + $0x348] sm:$0xff]
        %v3631 = vld [vmem:[#allocation4 + $0x350] sm:$0xff]
        %v3632 = vld [vmem:[#allocation4 + $0x358] sm:$0xff]
        %v3633 = vld [vmem:[#allocation4 + $0x360] sm:$0xff]
        %v3634 = vld [vmem:[#allocation4 + $0x368] sm:$0xff]
        %v3635 = vld [vmem:[#allocation4 + $0x370] sm:$0xff]
        %v3636 = vld [vmem:[#allocation4 + $0x378] sm:$0xff]
        %v3637 = vld [vmem:[#allocation4 + $0x380] sm:$0xff]
        %v3638 = vld [vmem:[#allocation4 + $0x388] sm:$0xff]
        %v3639 = vld [vmem:[#allocation4 + $0x390] sm:$0xff]
        %v3640 = vld [vmem:[#allocation4 + $0x398] sm:$0xff]
        %v3641 = vld [vmem:[#allocation4 + $0x3a0] sm:$0xff]
        %v3642 = vld [vmem:[#allocation4 + $0x3a8] sm:$0xff]
        %v3643 = vld [vmem:[#allocation4 + $0x3b0] sm:$0xff]
        %v3644 = vld [vmem:[#allocation4 + $0x3b8] sm:$0xff]
        %v3645 = vld [vmem:[#allocation4 + $0x3c0] sm:$0xff]
        %v3646 = vld [vmem:[#allocation4 + $0x3c8] sm:$0xff]
        %v3647 = vld [vmem:[#allocation4 + $0x3d0] sm:$0xff]
        %v3648 = vld [vmem:[#allocation4 + $0x3d8] sm:$0xff]
        %v3649 = vld [vmem:[#allocation4 + $0x3e0] sm:$0xff]
        %v3650 = vld [vmem:[#allocation4 + $0x3e8] sm:$0xff]
        %v3651 = vld [vmem:[#allocation4 + $0x3f0] sm:$0xff]
        %v3652 = vld [vmem:[#allocation4 + $0x3f8] sm:$0xff]
        %v3653 = vld [vmem:[#allocation4 + $0x400] sm:$0xff]
        %v3654 = vld [vmem:[#allocation4 + $0x408] sm:$0xff]
        %v3655 = vld [vmem:[#allocation4 + $0x410] sm:$0xff]
        %v3656 = vld [vmem:[#allocation4 + $0x418] sm:$0xff]
        %v3657 = vld [vmem:[#allocation4 + $0x420] sm:$0xff]
        %v3658 = vld [vmem:[#allocation4 + $0x428] sm:$0xff]
        %v3659 = vld [vmem:[#allocation4 + $0x430] sm:$0xff]
        %v3660 = vld [vmem:[#allocation4 + $0x438] sm:$0xff]
        %v3661 = vld [vmem:[#allocation4 + $0x440] sm:$0xff]
        %v3662 = vld [vmem:[#allocation4 + $0x448] sm:$0xff]
        %v3663 = vld [vmem:[#allocation4 + $0x450] sm:$0xff]
        %v3664 = vld [vmem:[#allocation4 + $0x458] sm:$0xff]
        %v3665 = vld [vmem:[#allocation4 + $0x460] sm:$0xff]
        %v3666 = vld [vmem:[#allocation4 + $0x468] sm:$0xff]
        %v3667 = vld [vmem:[#allocation4 + $0x470] sm:$0xff]
        %v3668 = vld [vmem:[#allocation4 + $0x478] sm:$0xff]
        %3669 = vmatprep.subr.mxu0 0.0
        %3670 = vmatpush1.msra.mxu0 %v3621
        %3671 = vmatprep.subr.mxu0 0.0
        %3672 = vmatpush1.msra.mxu0 %v3622
        %3673 = vmatprep.subr.mxu0 0.0
        %3674 = vmatpush1.msra.mxu0 %v3623
        %3675 = vmatprep.subr.mxu0 0.0
        %3676 = vmatpush1.msra.mxu0 %v3624
        %3677 = vmatprep.subr.mxu0 0.0
        %3678 = vmatpush1.msra.mxu0 %v3625
        %3679 = vmatprep.subr.mxu0 0.0
        %3680 = vmatpush1.msra.mxu0 %v3626
        %3681 = vmatprep.subr.mxu0 0.0
        %3682 = vmatpush1.msra.mxu0 %v3627
        %3683 = vmatprep.subr.mxu0 0.0
        %3684 = vmatpush1.msra.mxu0 %v3628
        %3685 = vmatprep.subr.mxu0 0.0
        %3686 = vmatpush1.msra.mxu0 %v3629
        %3687 = vmatprep.subr.mxu0 0.0
        %3688 = vmatpush1.msra.mxu0 %v3630
        %3689 = vmatprep.subr.mxu0 0.0
        %3690 = vmatpush1.msra.mxu0 %v3631
        %3691 = vmatprep.subr.mxu0 0.0
        %3692 = vmatpush1.msra.mxu0 %v3632
        %3693 = vmatprep.subr.mxu0 0.0
        %3694 = vmatpush1.msra.mxu0 %v3633
        %3695 = vmatprep.subr.mxu0 0.0
        %3696 = vmatpush1.msra.mxu0 %v3634
        %3697 = vmatprep.subr.mxu0 0.0
        %3698 = vmatpush1.msra.mxu0 %v3635
        %3699 = vmatprep.subr.mxu0 0.0
        %3700 = vmatpush1.msra.mxu0 %v3636
        %3701 = vmatprep.subr.mxu0 0.0
        %3702 = vmatpush1.msra.mxu0 %v3637
        %3703 = vmatprep.subr.mxu0 0.0
        %3704 = vmatpush1.msra.mxu0 %v3638
        %3705 = vmatprep.subr.mxu0 0.0
        %3706 = vmatpush1.msra.mxu0 %v3639
        %3707 = vmatprep.subr.mxu0 0.0
        %3708 = vmatpush1.msra.mxu0 %v3640
        %3709 = vmatprep.subr.mxu0 0.0
        %3710 = vmatpush1.msra.mxu0 %v3641
        %3711 = vmatprep.subr.mxu0 0.0
        %3712 = vmatpush1.msra.mxu0 %v3642
        %3713 = vmatprep.subr.mxu0 0.0
        %3714 = vmatpush1.msra.mxu0 %v3643
        %3715 = vmatprep.subr.mxu0 0.0
        %3716 = vmatpush1.msra.mxu0 %v3644
        %3717 = vmatprep.subr.mxu0 0.0
        %3718 = vmatpush1.msra.mxu0 %v3645
        %3719 = vmatprep.subr.mxu0 0.0
        %3720 = vmatpush1.msra.mxu0 %v3646
        %3721 = vmatprep.subr.mxu0 0.0
        %3722 = vmatpush1.msra.mxu0 %v3647
        %3723 = vmatprep.subr.mxu0 0.0
        %3724 = vmatpush1.msra.mxu0 %v3648
        %3725 = vmatprep.subr.mxu0 0.0
        %3726 = vmatpush1.msra.mxu0 %v3649
        %3727 = vmatprep.subr.mxu0 0.0
        %3728 = vmatpush1.msra.mxu0 %v3650
        %3729 = vmatprep.subr.mxu0 0.0
        %3730 = vmatpush1.msra.mxu0 %v3651
        %3731 = vmatprep.subr.mxu0 0.0
        %3732 = vmatpush1.msra.mxu0 %v3652
        %3733 = vmatprep.mubr.f32.mxu0 %v2553
        %3734 = vmatmul.mubr.f32.gmra.mrb[0].mxu0 %v2513
        %v3735 = vpop.f32.mrb[0].mxu0
        %v3736 = vadd.f32 0.0, %v3735
        %v3737 = vpop.f32.mrb[0].mxu0
        %3738 = vmatprep.mubr.f32.mxu0 %v2554
        %3739 = vmatmul.mubr.f32.gmra.mrb[0].mxu0 %v2514
        %v3740 = vpop.f32.mrb[0].mxu0
        %v3741 = vadd.f32 0.0, %v3740
        %v3742 = vpop.f32.mrb[0].mxu0
        %3743 = vmatprep.mubr.f32.mxu0 %v2555
        %3744 = vmatmul.mubr.f32.gmra.mrb[0].mxu0 %v2515
        %v3745 = vpop.f32.mrb[0].mxu0
        %v3746 = vadd.f32 0.0, %v3745
        %v3747 = vpop.f32.mrb[0].mxu0
        %3748 = vmatprep.mubr.f32.mxu0 %v2556
        %3749 = vmatmul.mubr.f32.gmra.mrb[0].mxu0 %v2516
        %v3750 = vpop.f32.mrb[0].mxu0
        %v3751 = vadd.f32 0.0, %v3750
        %v3752 = vpop.f32.mrb[0].mxu0
        %3753 = vmatprep.mubr.f32.mxu0 %v2557
        %3754 = vmatmul.mubr.f32.gmra.mrb[0].mxu0 %v2517
        %v3755 = vpop.f32.mrb[0].mxu0
        %v3756 = vadd.f32 0.0, %v3755
        %v3757 = vpop.f32.mrb[0].mxu0
        %3758 = vmatprep.mubr.f32.mxu0 %v2558
        %3759 = vmatmul.mubr.f32.gmra.mrb[0].mxu0 %v2518
        %v3760 = vpop.f32.mrb[0].mxu0
        %v3761 = vadd.f32 0.0, %v3760
        %v3762 = vpop.f32.mrb[0].mxu0
        %3763 = vmatprep.mubr.f32.mxu0 %v2559
        %3764 = vmatmul.mubr.f32.gmra.mrb[0].mxu0 %v2519
        %v3765 = vpop.f32.mrb[0].mxu0
        %v3766 = vadd.f32 0.0, %v3765
        %v3767 = vpop.f32.mrb[0].mxu0
        %3768 = vmatprep.mubr.f32.mxu0 %v2560
        %3769 = vmatmul.mubr.f32.gmra.mrb[0].mxu0 %v2520
        %v3770 = vpop.f32.mrb[0].mxu0
        %v3771 = vadd.f32 0.0, %v3770
        %v3772 = vpop.f32.mrb[0].mxu0
        %3773 = vmatprep.mubr.f32.mxu0 %v2561
        %3774 = vmatmul.mubr.f32.gmra.mrb[0].mxu0 %v2521
        %v3775 = vpop.f32.mrb[0].mxu0
        %v3776 = vadd.f32 0.0, %v3775
        %v3777 = vpop.f32.mrb[0].mxu0
        %3778 = vmatprep.mubr.f32.mxu0 %v2562
        %3779 = vmatmul.mubr.f32.gmra.mrb[0].mxu0 %v2522
        %v3780 = vpop.f32.mrb[0].mxu0
        %v3781 = vadd.f32 0.0, %v3780
        %v3782 = vpop.f32.mrb[0].mxu0
        %3783 = vmatprep.mubr.f32.mxu0 %v2563
        %3784 = vmatmul.mubr.f32.gmra.mrb[0].mxu0 %v2523
        %v3785 = vpop.f32.mrb[0].mxu0
        %v3786 = vadd.f32 0.0, %v3785
        %v3787 = vpop.f32.mrb[0].mxu0
        %3788 = vmatprep.mubr.f32.mxu0 %v2564
        %3789 = vmatmul.mubr.f32.gmra.mrb[0].mxu0 %v2524
        %v3790 = vpop.f32.mrb[0].mxu0
        %v3791 = vadd.f32 0.0, %v3790
        %v3792 = vpop.f32.mrb[0].mxu0
        %3793 = vmatprep.mubr.f32.mxu0 %v2565
        %3794 = vmatmul.mubr.f32.gmra.mrb[0].mxu0 %v2525
        %v3795 = vpop.f32.mrb[0].mxu0
        %v3796 = vadd.f32 0.0, %v3795
        %v3797 = vpop.f32.mrb[0].mxu0
        %3798 = vmatprep.mubr.f32.mxu0 %v2566
        %3799 = vmatmul.mubr.f32.gmra.mrb[0].mxu0 %v2526
        %v3800 = vpop.f32.mrb[0].mxu0
        %v3801 = vadd.f32 0.0, %v3800
        %v3802 = vpop.f32.mrb[0].mxu0
        %3803 = vmatprep.mubr.f32.mxu0 %v2567
        %3804 = vmatmul.mubr.f32.gmra.mrb[0].mxu0 %v2527
        %v3805 = vpop.f32.mrb[0].mxu0
        %v3806 = vadd.f32 0.0, %v3805
        %v3807 = vpop.f32.mrb[0].mxu0
        %3808 = vmatprep.mubr.f32.mxu0 %v2568
        %3809 = vmatmul.mubr.f32.gmra.mrb[0].mxu0 %v2528
        %v3810 = vpop.f32.mrb[0].mxu0
        %v3811 = vadd.f32 0.0, %v3810
        %v3812 = vpop.f32.mrb[0].mxu0
        %3813 = vmatprep.mubr.f32.mxu0 %v2569
        %3814 = vmatmul.mubr.f32.gmra.mrb[0].mxu0 %v2529
        %v3815 = vpop.f32.mrb[0].mxu0
        %v3816 = vadd.f32 0.0, %v3815
        %v3817 = vpop.f32.mrb[0].mxu0
        %3818 = vmatprep.mubr.f32.mxu0 %v2570
        %3819 = vmatmul.mubr.f32.gmra.mrb[0].mxu0 %v2530
        %v3820 = vpop.f32.mrb[0].mxu0
        %v3821 = vadd.f32 0.0, %v3820
        %v3822 = vpop.f32.mrb[0].mxu0
        %3823 = vmatprep.mubr.f32.mxu0 %v2571
        %3824 = vmatmul.mubr.f32.gmra.mrb[0].mxu0 %v2531
        %v3825 = vpop.f32.mrb[0].mxu0
        %v3826 = vadd.f32 0.0, %v3825
        %v3827 = vpop.f32.mrb[0].mxu0
        %3828 = vmatprep.mubr.f32.mxu0 %v2572
        %3829 = vmatmul.mubr.f32.gmra.mrb[0].mxu0 %v2532
        %v3830 = vpop.f32.mrb[0].mxu0
        %v3831 = vadd.f32 0.0, %v3830
        %v3832 = vpop.f32.mrb[0].mxu0
        %3833 = vmatprep.mubr.f32.mxu0 %v2573
        %3834 = vmatmul.mubr.f32.gmra.mrb[0].mxu0 %v2533
        %v3835 = vpop.f32.mrb[0].mxu0
        %v3836 = vadd.f32 0.0, %v3835
        %v3837 = vpop.f32.mrb[0].mxu0
        %3838 = vmatprep.mubr.f32.mxu0 %v2574
        %3839 = vmatmul.mubr.f32.gmra.mrb[0].mxu0 %v2534
        %v3840 = vpop.f32.mrb[0].mxu0
        %v3841 = vadd.f32 0.0, %v3840
        %v3842 = vpop.f32.mrb[0].mxu0
        %3843 = vmatprep.mubr.f32.mxu0 %v2575
        %3844 = vmatmul.mubr.f32.gmra.mrb[0].mxu0 %v2535
        %v3845 = vpop.f32.mrb[0].mxu0
        %v3846 = vadd.f32 0.0, %v3845
        %v3847 = vpop.f32.mrb[0].mxu0
        %3848 = vmatprep.mubr.f32.mxu0 %v2576
        %3849 = vmatmul.mubr.f32.gmra.mrb[0].mxu0 %v2536
        %v3850 = vpop.f32.mrb[0].mxu0
        %v3851 = vadd.f32 0.0, %v3850
        %v3852 = vpop.f32.mrb[0].mxu0
        %3853 = vmatprep.mubr.f32.mxu0 %v2577
        %3854 = vmatmul.mubr.f32.gmra.mrb[0].mxu0 %v2537
        %v3855 = vpop.f32.mrb[0].mxu0
        %v3856 = vadd.f32 0.0, %v3855
        %v3857 = vpop.f32.mrb[0].mxu0
        %3858 = vmatprep.mubr.f32.mxu0 %v2578
        %3859 = vmatmul.mubr.f32.gmra.mrb[0].mxu0 %v2538
        %v3860 = vpop.f32.mrb[0].mxu0
        %v3861 = vadd.f32 0.0, %v3860
        %v3862 = vpop.f32.mrb[0].mxu0
        %3863 = vmatprep.mubr.f32.mxu0 %v2579
        %3864 = vmatmul.mubr.f32.gmra.mrb[0].mxu0 %v2539
        %v3865 = vpop.f32.mrb[0].mxu0
        %v3866 = vadd.f32 0.0, %v3865
        %v3867 = vpop.f32.mrb[0].mxu0
        %3868 = vmatprep.mubr.f32.mxu0 %v2580
        %3869 = vmatmul.mubr.f32.gmra.mrb[0].mxu0 %v2540
        %v3870 = vpop.f32.mrb[0].mxu0
        %v3871 = vadd.f32 0.0, %v3870
        %v3872 = vpop.f32.mrb[0].mxu0
        %3873 = vmatprep.mubr.f32.mxu0 %v2581
        %3874 = vmatmul.mubr.f32.gmra.mrb[0].mxu0 %v2541
        %v3875 = vpop.f32.mrb[0].mxu0
        %v3876 = vadd.f32 0.0, %v3875
        %v3877 = vpop.f32.mrb[0].mxu0
        %3878 = vmatprep.mubr.f32.mxu0 %v2582
        %3879 = vmatmul.mubr.f32.gmra.mrb[0].mxu0 %v2542
        %v3880 = vpop.f32.mrb[0].mxu0
        %v3881 = vadd.f32 0.0, %v3880
        %v3882 = vpop.f32.mrb[0].mxu0
        %3883 = vmatprep.mubr.f32.mxu0 %v2583
        %3884 = vmatmul.mubr.f32.gmra.mrb[0].mxu0 %v2543
        %v3885 = vpop.f32.mrb[0].mxu0
        %v3886 = vadd.f32 0.0, %v3885
        %v3887 = vpop.f32.mrb[0].mxu0
        %3888 = vmatprep.mubr.f32.mxu0 %v2584
        %3889 = vmatmul.mubr.f32.gmra.mrb[0].mxu0 %v2544
        %v3890 = vpop.f32.mrb[0].mxu0
        %v3891 = vadd.f32 0.0, %v3890
        %v3892 = vpop.f32.mrb[0].mxu0
        %3893 = vdwg.mxu0
        %3894 = vmatprep.subr.mxu0 0.0
        %3895 = vmatpush1.msra.mxu0 %v3653
        %3896 = vmatprep.subr.mxu0 0.0
        %3897 = vmatpush1.msra.mxu0 %v3654
        %3898 = vmatprep.subr.mxu0 0.0
        %3899 = vmatpush1.msra.mxu0 %v3655
        %3900 = vmatprep.subr.mxu0 0.0
        %3901 = vmatpush1.msra.mxu0 %v3656
        %3902 = vmatprep.subr.mxu0 0.0
        %3903 = vmatpush1.msra.mxu0 %v3657
        %3904 = vmatprep.subr.mxu0 0.0
        %3905 = vmatpush1.msra.mxu0 %v3658
        %3906 = vmatprep.subr.mxu0 0.0
        %3907 = vmatpush1.msra.mxu0 %v3659
        %3908 = vmatprep.subr.mxu0 0.0
        %3909 = vmatpush1.msra.mxu0 %v3660
        %3910 = vmatprep.subr.mxu0 0.0
        %3911 = vmatpush1.msra.mxu0 %v3661
        %3912 = vmatprep.subr.mxu0 0.0
        %3913 = vmatpush1.msra.mxu0 %v3662
        %3914 = vmatprep.subr.mxu0 0.0
        %3915 = vmatpush1.msra.mxu0 %v3663
        %3916 = vmatprep.subr.mxu0 0.0
        %3917 = vmatpush1.msra.mxu0 %v3664
        %3918 = vmatprep.subr.mxu0 0.0
        %3919 = vmatpush1.msra.mxu0 %v3665
        %3920 = vmatprep.subr.mxu0 0.0
        %3921 = vmatpush1.msra.mxu0 %v3666
        %3922 = vmatprep.subr.mxu0 0.0
        %3923 = vmatpush1.msra.mxu0 %v3667
        %3924 = vmatprep.subr.mxu0 0.0
        %3925 = vmatpush1.msra.mxu0 %v3668
        %3926 = vmatprep.subr.mxu0 0.0
        %3927 = vmatpush1.msra.mxu0 0.0
        %3928 = vmatprep.subr.mxu0 0.0
        %3929 = vmatpush1.msra.mxu0 0.0
        %3930 = vmatprep.subr.mxu0 0.0
        %3931 = vmatpush1.msra.mxu0 0.0
        %3932 = vmatprep.subr.mxu0 0.0
        %3933 = vmatpush1.msra.mxu0 0.0
        %3934 = vmatprep.subr.mxu0 0.0
        %3935 = vmatpush1.msra.mxu0 0.0
        %3936 = vmatprep.subr.mxu0 0.0
        %3937 = vmatpush1.msra.mxu0 0.0
        %3938 = vmatprep.subr.mxu0 0.0
        %3939 = vmatpush1.msra.mxu0 0.0
        %3940 = vmatprep.subr.mxu0 0.0
        %3941 = vmatpush1.msra.mxu0 0.0
        %3942 = vmatprep.subr.mxu0 0.0
        %3943 = vmatpush1.msra.mxu0 0.0
        %3944 = vmatprep.subr.mxu0 0.0
        %3945 = vmatpush1.msra.mxu0 0.0
        %3946 = vmatprep.subr.mxu0 0.0
        %3947 = vmatpush1.msra.mxu0 0.0
        %3948 = vmatprep.subr.mxu0 0.0
        %3949 = vmatpush1.msra.mxu0 0.0
        %3950 = vmatprep.subr.mxu0 0.0
        %3951 = vmatpush1.msra.mxu0 0.0
        %3952 = vmatprep.subr.mxu0 0.0
        %3953 = vmatpush1.msra.mxu0 0.0
        %3954 = vmatprep.subr.mxu0 0.0
        %3955 = vmatpush1.msra.mxu0 0.0
        %3956 = vmatprep.subr.mxu0 0.0
        %3957 = vmatpush1.msra.mxu0 0.0
        %3958 = vmatprep.mubr.f32.mxu0 0.0
        %3959 = vmatmul.mubr.f32.gmra.mrb[0].mxu0 %v2593
        %v3960 = vpop.f32.mrb[0].mxu0
        %v3961 = vadd.f32 %v3736, %v3960
        %v3962 = vpop.f32.mrb[0].mxu0
        %3963 = vmatprep.mubr.f32.mxu0 0.0
        %3964 = vmatmul.mubr.f32.gmra.mrb[0].mxu0 %v2594
        %v3965 = vpop.f32.mrb[0].mxu0
        %v3966 = vadd.f32 %v3741, %v3965
        %v3967 = vpop.f32.mrb[0].mxu0
        %3968 = vmatprep.mubr.f32.mxu0 0.0
        %3969 = vmatmul.mubr.f32.gmra.mrb[0].mxu0 %v2595
        %v3970 = vpop.f32.mrb[0].mxu0
        %v3971 = vadd.f32 %v3746, %v3970
        %v3972 = vpop.f32.mrb[0].mxu0
        %3973 = vmatprep.mubr.f32.mxu0 0.0
        %3974 = vmatmul.mubr.f32.gmra.mrb[0].mxu0 %v2596
        %v3975 = vpop.f32.mrb[0].mxu0
        %v3976 = vadd.f32 %v3751, %v3975
        %v3977 = vpop.f32.mrb[0].mxu0
        %3978 = vmatprep.mubr.f32.mxu0 0.0
        %3979 = vmatmul.mubr.f32.gmra.mrb[0].mxu0 %v2597
        %v3980 = vpop.f32.mrb[0].mxu0
        %v3981 = vadd.f32 %v3756, %v3980
        %v3982 = vpop.f32.mrb[0].mxu0
        %3983 = vmatprep.mubr.f32.mxu0 0.0
        %3984 = vmatmul.mubr.f32.gmra.mrb[0].mxu0 %v2598
        %v3985 = vpop.f32.mrb[0].mxu0
        %v3986 = vadd.f32 %v3761, %v3985
        %v3987 = vpop.f32.mrb[0].mxu0
        %3988 = vmatprep.mubr.f32.mxu0 0.0
        %3989 = vmatmul.mubr.f32.gmra.mrb[0].mxu0 %v2599
        %v3990 = vpop.f32.mrb[0].mxu0
        %v3991 = vadd.f32 %v3766, %v3990
        %v3992 = vpop.f32.mrb[0].mxu0
        %3993 = vmatprep.mubr.f32.mxu0 0.0
        %3994 = vmatmul.mubr.f32.gmra.mrb[0].mxu0 %v2600
        %v3995 = vpop.f32.mrb[0].mxu0
        %v3996 = vadd.f32 %v3771, %v3995
        %v3997 = vpop.f32.mrb[0].mxu0
        %3998 = vmatprep.mubr.f32.mxu0 0.0
        %3999 = vmatmul.mubr.f32.gmra.mrb[0].mxu0 %v2601
        %v4000 = vpop.f32.mrb[0].mxu0
        %v4001 = vadd.f32 %v3776, %v4000
        %v4002 = vpop.f32.mrb[0].mxu0
        %4003 = vmatprep.mubr.f32.mxu0 0.0
        %4004 = vmatmul.mubr.f32.gmra.mrb[0].mxu0 %v2602
        %v4005 = vpop.f32.mrb[0].mxu0
        %v4006 = vadd.f32 %v3781, %v4005
        %v4007 = vpop.f32.mrb[0].mxu0
        %4008 = vmatprep.mubr.f32.mxu0 0.0
        %4009 = vmatmul.mubr.f32.gmra.mrb[0].mxu0 %v2603
        %v4010 = vpop.f32.mrb[0].mxu0
        %v4011 = vadd.f32 %v3786, %v4010
        %v4012 = vpop.f32.mrb[0].mxu0
        %4013 = vmatprep.mubr.f32.mxu0 0.0
        %4014 = vmatmul.mubr.f32.gmra.mrb[0].mxu0 %v2604
        %v4015 = vpop.f32.mrb[0].mxu0
        %v4016 = vadd.f32 %v3791, %v4015
        %v4017 = vpop.f32.mrb[0].mxu0
        %4018 = vmatprep.mubr.f32.mxu0 0.0
        %4019 = vmatmul.mubr.f32.gmra.mrb[0].mxu0 %v2605
        %v4020 = vpop.f32.mrb[0].mxu0
        %v4021 = vadd.f32 %v3796, %v4020
        %v4022 = vpop.f32.mrb[0].mxu0
        %4023 = vmatprep.mubr.f32.mxu0 0.0
        %4024 = vmatmul.mubr.f32.gmra.mrb[0].mxu0 %v2606
        %v4025 = vpop.f32.mrb[0].mxu0
        %v4026 = vadd.f32 %v3801, %v4025
        %v4027 = vpop.f32.mrb[0].mxu0
        %4028 = vmatprep.mubr.f32.mxu0 0.0
        %4029 = vmatmul.mubr.f32.gmra.mrb[0].mxu0 %v2607
        %v4030 = vpop.f32.mrb[0].mxu0
        %v4031 = vadd.f32 %v3806, %v4030
        %v4032 = vpop.f32.mrb[0].mxu0
        %4033 = vmatprep.mubr.f32.mxu0 0.0
        %4034 = vmatmul.mubr.f32.gmra.mrb[0].mxu0 %v2608
        %v4035 = vpop.f32.mrb[0].mxu0
        %v4036 = vadd.f32 %v3811, %v4035
        %v4037 = vpop.f32.mrb[0].mxu0
        %4038 = vmatprep.mubr.f32.mxu0 0.0
        %4039 = vmatmul.mubr.f32.gmra.mrb[0].mxu0 %v2609
        %v4040 = vpop.f32.mrb[0].mxu0
        %v4041 = vadd.f32 %v3816, %v4040
        %v4042 = vpop.f32.mrb[0].mxu0
        %4043 = vmatprep.mubr.f32.mxu0 0.0
        %4044 = vmatmul.mubr.f32.gmra.mrb[0].mxu0 %v2610
        %v4045 = vpop.f32.mrb[0].mxu0
        %v4046 = vadd.f32 %v3821, %v4045
        %v4047 = vpop.f32.mrb[0].mxu0
        %4048 = vmatprep.mubr.f32.mxu0 0.0
        %4049 = vmatmul.mubr.f32.gmra.mrb[0].mxu0 %v2611
        %v4050 = vpop.f32.mrb[0].mxu0
        %v4051 = vadd.f32 %v3826, %v4050
        %v4052 = vpop.f32.mrb[0].mxu0
        %4053 = vmatprep.mubr.f32.mxu0 0.0
        %4054 = vmatmul.mubr.f32.gmra.mrb[0].mxu0 %v2612
        %v4055 = vpop.f32.mrb[0].mxu0
        %v4056 = vadd.f32 %v3831, %v4055
        %v4057 = vpop.f32.mrb[0].mxu0
        %4058 = vmatprep.mubr.f32.mxu0 0.0
        %4059 = vmatmul.mubr.f32.gmra.mrb[0].mxu0 %v2613
        %v4060 = vpop.f32.mrb[0].mxu0
        %v4061 = vadd.f32 %v3836, %v4060
        %v4062 = vpop.f32.mrb[0].mxu0
        %4063 = vmatprep.mubr.f32.mxu0 0.0
        %4064 = vmatmul.mubr.f32.gmra.mrb[0].mxu0 %v2614
        %v4065 = vpop.f32.mrb[0].mxu0
        %v4066 = vadd.f32 %v3841, %v4065
        %v4067 = vpop.f32.mrb[0].mxu0
        %4068 = vmatprep.mubr.f32.mxu0 0.0
        %4069 = vmatmul.mubr.f32.gmra.mrb[0].mxu0 %v2615
        %v4070 = vpop.f32.mrb[0].mxu0
        %v4071 = vadd.f32 %v3846, %v4070
        %v4072 = vpop.f32.mrb[0].mxu0
        %4073 = vmatprep.mubr.f32.mxu0 0.0
        %4074 = vmatmul.mubr.f32.gmra.mrb[0].mxu0 %v2616
        %v4075 = vpop.f32.mrb[0].mxu0
        %v4076 = vadd.f32 %v3851, %v4075
        %v4077 = vpop.f32.mrb[0].mxu0
        %4078 = vmatprep.mubr.f32.mxu0 0.0
        %4079 = vmatmul.mubr.f32.gmra.mrb[0].mxu0 %v2617
        %v4080 = vpop.f32.mrb[0].mxu0
        %v4081 = vadd.f32 %v3856, %v4080
        %v4082 = vpop.f32.mrb[0].mxu0
        %4083 = vmatprep.mubr.f32.mxu0 0.0
        %4084 = vmatmul.mubr.f32.gmra.mrb[0].mxu0 %v2618
        %v4085 = vpop.f32.mrb[0].mxu0
        %v4086 = vadd.f32 %v3861, %v4085
        %v4087 = vpop.f32.mrb[0].mxu0
        %4088 = vmatprep.mubr.f32.mxu0 0.0
        %4089 = vmatmul.mubr.f32.gmra.mrb[0].mxu0 %v2619
        %v4090 = vpop.f32.mrb[0].mxu0
        %v4091 = vadd.f32 %v3866, %v4090
        %v4092 = vpop.f32.mrb[0].mxu0
        %4093 = vmatprep.mubr.f32.mxu0 0.0
        %4094 = vmatmul.mubr.f32.gmra.mrb[0].mxu0 %v2620
        %v4095 = vpop.f32.mrb[0].mxu0
        %v4096 = vadd.f32 %v3871, %v4095
        %v4097 = vpop.f32.mrb[0].mxu0
        %4098 = vmatprep.mubr.f32.mxu0 0.0
        %4099 = vmatmul.mubr.f32.gmra.mrb[0].mxu0 %v2621
        %v4100 = vpop.f32.mrb[0].mxu0
        %v4101 = vadd.f32 %v3876, %v4100
        %v4102 = vpop.f32.mrb[0].mxu0
        %4103 = vmatprep.mubr.f32.mxu0 0.0
        %4104 = vmatmul.mubr.f32.gmra.mrb[0].mxu0 %v2622
        %v4105 = vpop.f32.mrb[0].mxu0
        %v4106 = vadd.f32 %v3881, %v4105
        %v4107 = vpop.f32.mrb[0].mxu0
        %4108 = vmatprep.mubr.f32.mxu0 0.0
        %4109 = vmatmul.mubr.f32.gmra.mrb[0].mxu0 %v2623
        %v4110 = vpop.f32.mrb[0].mxu0
        %v4111 = vadd.f32 %v3886, %v4110
        %v4112 = vpop.f32.mrb[0].mxu0
        %4113 = vmatprep.mubr.f32.mxu0 0.0
        %4114 = vmatmul.mubr.f32.gmra.mrb[0].mxu0 %v2624
        %v4115 = vpop.f32.mrb[0].mxu0
        %v4116 = vadd.f32 %v3891, %v4115
        %v4117 = vpop.f32.mrb[0].mxu0
        %4118 = vdwg.mxu0
        %v4119 = vadd.f32 %v3463, %v3961
        %v4120 = vadd.f32 %v3468, %v3966
        %v4121 = vadd.f32 %v3473, %v3971
        %v4122 = vadd.f32 %v3478, %v3976
        %v4123 = vadd.f32 %v3483, %v3981
        %v4124 = vadd.f32 %v3488, %v3986
        %v4125 = vadd.f32 %v3493, %v3991
        %v4126 = vadd.f32 %v3498, %v3996
        %v4127 = vadd.f32 %v3503, %v4001
        %v4128 = vadd.f32 %v3508, %v4006
        %v4129 = vadd.f32 %v3513, %v4011
        %v4130 = vadd.f32 %v3518, %v4016
        %v4131 = vadd.f32 %v3523, %v4021
        %v4132 = vadd.f32 %v3528, %v4026
        %v4133 = vadd.f32 %v3533, %v4031
        %v4134 = vadd.f32 %v3538, %v4036
        %v4135 = vadd.f32 %v3543, %v4041
        %v4136 = vadd.f32 %v3548, %v4046
        %v4137 = vadd.f32 %v3553, %v4051
        %v4138 = vadd.f32 %v3558, %v4056
        %v4139 = vadd.f32 %v3563, %v4061
        %v4140 = vadd.f32 %v3568, %v4066
        %v4141 = vadd.f32 %v3573, %v4071
        %v4142 = vadd.f32 %v3578, %v4076
        %v4143 = vadd.f32 %v3583, %v4081
        %v4144 = vadd.f32 %v3588, %v4086
        %v4145 = vadd.f32 %v3593, %v4091
        %v4146 = vadd.f32 %v3598, %v4096
        %v4147 = vadd.f32 %v3603, %v4101
        %v4148 = vadd.f32 %v3608, %v4106
        %v4149 = vadd.f32 %v3613, %v4111
        %v4150 = vadd.f32 %v3618, %v4116
        %v4151 = vld [vmem:[%s6] sm:$0x1]
        %v4153 = vlaneseq
        %v4154 = vshrl.u32 %v4153, 7
        %v4155 = vsub.s32 0, %v4154
        %v4156 = vrot.slane %v4151, %v4155
        %v4158 = vadd.f32 %v4119, %v4156
        %v4159 = vadd.f32 %v4120, %v4156
        %v4160 = vadd.f32 %v4121, %v4156
        %v4161 = vadd.f32 %v4122, %v4156
        %v4162 = vadd.f32 %v4123, %v4156
        %v4163 = vadd.f32 %v4124, %v4156
        %v4164 = vadd.f32 %v4125, %v4156
        %v4165 = vadd.f32 %v4126, %v4156
        %v4166 = vadd.f32 %v4127, %v4156
        %v4167 = vadd.f32 %v4128, %v4156
        %v4168 = vadd.f32 %v4129, %v4156
        %v4169 = vadd.f32 %v4130, %v4156
        %v4170 = vadd.f32 %v4131, %v4156
        %v4171 = vadd.f32 %v4132, %v4156
        %v4172 = vadd.f32 %v4133, %v4156
        %v4173 = vadd.f32 %v4134, %v4156
        %v4174 = vadd.f32 %v4135, %v4156
        %v4175 = vadd.f32 %v4136, %v4156
        %v4176 = vadd.f32 %v4137, %v4156
        %v4177 = vadd.f32 %v4138, %v4156
        %v4178 = vadd.f32 %v4139, %v4156
        %v4179 = vadd.f32 %v4140, %v4156
        %v4180 = vadd.f32 %v4141, %v4156
        %v4181 = vadd.f32 %v4142, %v4156
        %v4182 = vadd.f32 %v4143, %v4156
        %v4183 = vadd.f32 %v4144, %v4156
        %v4184 = vadd.f32 %v4145, %v4156
        %v4185 = vadd.f32 %v4146, %v4156
        %v4186 = vadd.f32 %v4147, %v4156
        %v4187 = vadd.f32 %v4148, %v4156
        %v4188 = vadd.f32 %v4149, %v4156
        %v4189 = vadd.f32 %v4150, %v4156
        %v4190 = vmax.f32 %v4158, 0.0
        %v4191 = vmax.f32 %v4159, 0.0
        %v4192 = vmax.f32 %v4160, 0.0
        %v4193 = vmax.f32 %v4161, 0.0
        %v4194 = vmax.f32 %v4162, 0.0
        %v4195 = vmax.f32 %v4163, 0.0
        %v4196 = vmax.f32 %v4164, 0.0
        %v4197 = vmax.f32 %v4165, 0.0
        %v4198 = vmax.f32 %v4166, 0.0
        %v4199 = vmax.f32 %v4167, 0.0
        %v4200 = vmax.f32 %v4168, 0.0
        %v4201 = vmax.f32 %v4169, 0.0
        %v4202 = vmax.f32 %v4170, 0.0
        %v4203 = vmax.f32 %v4171, 0.0
        %v4204 = vmax.f32 %v4172, 0.0
        %v4205 = vmax.f32 %v4173, 0.0
        %v4206 = vmax.f32 %v4174, 0.0
        %v4207 = vmax.f32 %v4175, 0.0
        %v4208 = vmax.f32 %v4176, 0.0
        %v4209 = vmax.f32 %v4177, 0.0
        %v4210 = vmax.f32 %v4178, 0.0
        %v4211 = vmax.f32 %v4179, 0.0
        %v4212 = vmax.f32 %v4180, 0.0
        %v4213 = vmax.f32 %v4181, 0.0
        %v4214 = vmax.f32 %v4182, 0.0
        %v4215 = vmax.f32 %v4183, 0.0
        %v4216 = vmax.f32 %v4184, 0.0
        %v4217 = vmax.f32 %v4185, 0.0
        %v4218 = vmax.f32 %v4186, 0.0
        %v4219 = vmax.f32 %v4187, 0.0
        %v4220 = vmax.f32 %v4188, 0.0
        %v4221 = vmax.f32 %v4189, 0.0
        %v4222 = vld [vmem:[%s293] sm:$0xff]
        %v4223 = vld [vmem:[%s293 + $0x8] sm:$0xff]
        %v4224 = vld [vmem:[%s293 + $0x10] sm:$0xff]
        %v4225 = vld [vmem:[%s293 + $0x18] sm:$0xff]
        %v4226 = vld [vmem:[%s293 + $0x20] sm:$0xff]
        %v4227 = vld [vmem:[%s293 + $0x28] sm:$0xff]
        %v4228 = vld [vmem:[%s293 + $0x30] sm:$0xff]
        %v4229 = vld [vmem:[%s293 + $0x38] sm:$0xff]
        %v4230 = vld [vmem:[%s293 + $0x40] sm:$0xff]
        %v4231 = vld [vmem:[%s293 + $0x48] sm:$0xff]
        %v4232 = vld [vmem:[%s293 + $0x50] sm:$0xff]
        %v4233 = vld [vmem:[%s293 + $0x58] sm:$0xff]
        %v4234 = vld [vmem:[%s293 + $0x60] sm:$0xff]
        %v4235 = vld [vmem:[%s293 + $0x68] sm:$0xff]
        %v4236 = vld [vmem:[%s293 + $0x70] sm:$0xff]
        %v4237 = vld [vmem:[%s293 + $0x78] sm:$0xff]
        %v4238 = vld [vmem:[%s293 + $0x80] sm:$0xff]
        %v4239 = vld [vmem:[%s293 + $0x88] sm:$0xff]
        %v4240 = vld [vmem:[%s293 + $0x90] sm:$0xff]
        %v4241 = vld [vmem:[%s293 + $0x98] sm:$0xff]
        %v4242 = vld [vmem:[%s293 + $0xa0] sm:$0xff]
        %v4243 = vld [vmem:[%s293 + $0xa8] sm:$0xff]
        %v4244 = vld [vmem:[%s293 + $0xb0] sm:$0xff]
        %v4245 = vld [vmem:[%s293 + $0xb8] sm:$0xff]
        %v4246 = vld [vmem:[%s293 + $0xc0] sm:$0xff]
        %v4247 = vld [vmem:[%s293 + $0xc8] sm:$0xff]
        %v4248 = vld [vmem:[%s293 + $0xd0] sm:$0xff]
        %v4249 = vld [vmem:[%s293 + $0xd8] sm:$0xff]
        %v4250 = vld [vmem:[%s293 + $0xe0] sm:$0xff]
        %v4251 = vld [vmem:[%s293 + $0xe8] sm:$0xff]
        %v4252 = vld [vmem:[%s293 + $0xf0] sm:$0xff]
        %v4253 = vld [vmem:[%s293 + $0xf8] sm:$0xff]
        %v4254 = vadd.f32 %v4190, %v4222
        %v4255 = vadd.f32 %v4191, %v4223
        %v4256 = vadd.f32 %v4192, %v4224
        %v4257 = vadd.f32 %v4193, %v4225
        %v4258 = vadd.f32 %v4194, %v4226
        %v4259 = vadd.f32 %v4195, %v4227
        %v4260 = vadd.f32 %v4196, %v4228
        %v4261 = vadd.f32 %v4197, %v4229
        %v4262 = vadd.f32 %v4198, %v4230
        %v4263 = vadd.f32 %v4199, %v4231
        %v4264 = vadd.f32 %v4200, %v4232
        %v4265 = vadd.f32 %v4201, %v4233
        %v4266 = vadd.f32 %v4202, %v4234
        %v4267 = vadd.f32 %v4203, %v4235
        %v4268 = vadd.f32 %v4204, %v4236
        %v4269 = vadd.f32 %v4205, %v4237
        %v4270 = vadd.f32 %v4206, %v4238
        %v4271 = vadd.f32 %v4207, %v4239
        %v4272 = vadd.f32 %v4208, %v4240
        %v4273 = vadd.f32 %v4209, %v4241
        %v4274 = vadd.f32 %v4210, %v4242
        %v4275 = vadd.f32 %v4211, %v4243
        %v4276 = vadd.f32 %v4212, %v4244
        %v4277 = vadd.f32 %v4213, %v4245
        %v4278 = vadd.f32 %v4214, %v4246
        %v4279 = vadd.f32 %v4215, %v4247
        %v4280 = vadd.f32 %v4216, %v4248
        %v4281 = vadd.f32 %v4217, %v4249
        %v4282 = vadd.f32 %v4218, %v4250
        %v4283 = vadd.f32 %v4219, %v4251
        %v4284 = vadd.f32 %v4220, %v4252
        %v4285 = vadd.f32 %v4221, %v4253
        %4286 = vst [vmem:[%s293] sm:$0xff] %v4254
        %4287 = vst [vmem:[%s293 + $0x8] sm:$0xff] %v4255
        %4288 = vst [vmem:[%s293 + $0x10] sm:$0xff] %v4256
        %4289 = vst [vmem:[%s293 + $0x18] sm:$0xff] %v4257
        %4290 = vst [vmem:[%s293 + $0x20] sm:$0xff] %v4258
        %4291 = vst [vmem:[%s293 + $0x28] sm:$0xff] %v4259
        %4292 = vst [vmem:[%s293 + $0x30] sm:$0xff] %v4260
        %4293 = vst [vmem:[%s293 + $0x38] sm:$0xff] %v4261
        %4294 = vst [vmem:[%s293 + $0x40] sm:$0xff] %v4262
        %4295 = vst [vmem:[%s293 + $0x48] sm:$0xff] %v4263
        %4296 = vst [vmem:[%s293 + $0x50] sm:$0xff] %v4264
        %4297 = vst [vmem:[%s293 + $0x58] sm:$0xff] %v4265
        %4298 = vst [vmem:[%s293 + $0x60] sm:$0xff] %v4266
        %4299 = vst [vmem:[%s293 + $0x68] sm:$0xff] %v4267
        %4300 = vst [vmem:[%s293 + $0x70] sm:$0xff] %v4268
        %4301 = vst [vmem:[%s293 + $0x78] sm:$0xff] %v4269
        %4302 = vst [vmem:[%s293 + $0x80] sm:$0xff] %v4270
        %4303 = vst [vmem:[%s293 + $0x88] sm:$0xff] %v4271
        %4304 = vst [vmem:[%s293 + $0x90] sm:$0xff] %v4272
        %4305 = vst [vmem:[%s293 + $0x98] sm:$0xff] %v4273
        %4306 = vst [vmem:[%s293 + $0xa0] sm:$0xff] %v4274
        %4307 = vst [vmem:[%s293 + $0xa8] sm:$0xff] %v4275
        %4308 = vst [vmem:[%s293 + $0xb0] sm:$0xff] %v4276
        %4309 = vst [vmem:[%s293 + $0xb8] sm:$0xff] %v4277
        %4310 = vst [vmem:[%s293 + $0xc0] sm:$0xff] %v4278
        %4311 = vst [vmem:[%s293 + $0xc8] sm:$0xff] %v4279
        %4312 = vst [vmem:[%s293 + $0xd0] sm:$0xff] %v4280
        %4313 = vst [vmem:[%s293 + $0xd8] sm:$0xff] %v4281
        %4314 = vst [vmem:[%s293 + $0xe0] sm:$0xff] %v4282
        %4315 = vst [vmem:[%s293 + $0xe8] sm:$0xff] %v4283
        %4316 = vst [vmem:[%s293 + $0xf0] sm:$0xff] %v4284
        %4317 = vst [vmem:[%s293 + $0xf8] sm:$0xff] %v4285
        %p4318 = scmp.lt.s32.totalorder %s19, 1
        %s4319 = scalar_select %p4318, %s19, 1
        %s4320 = smul.addr %s4319, 32
        %s4321 = smul.addr %s4320, 8
        %s4322 = scalar_lea.vmem %s7, %s4321
        // Predicated region
        $region53: #{refinement_stage_forward.6} parent=47 // pred_check
          %p4323 = pneg %p189
        $region54: #{refinement_stage_forward.6} parent=47 // pred_check_branch
          %4325 = sbr.rel (%p4323) target = $region56
        $region55: #{refinement_stage_forward.6} parent=47 // pred_region
          _
        $region56: #{refinement_stage_forward.6} parent=47 // pred_fallthru
          _
      $region48: #{refinement_stage_forward.6} parent=5 // pred_fallthru
        _
      %p4326 = scmp.le.s32.totalorder 2, %s14
      // Predicated region
      $region57: #{refinement_stage_forward.6} parent=5 // pred_check
        %p4327 = pneg %p4326
      $region58: #{refinement_stage_forward.6} parent=5 // pred_check_branch
        %4329 = sbr.rel (%p4327) target = $region60
      $region59: #{refinement_stage_forward.6} parent=5 // pred_region
        %s4330 = ssub.s32 %s14, 2
        // Predicated region
        $region61: #{refinement_stage_forward.6} parent=59 // pred_check
          %p4331 = pneg %p195
        $region62: #{refinement_stage_forward.6} parent=59 // pred_check_branch
          %4333 = sbr.rel (%p4331) target = $region64
        $region63: #{refinement_stage_forward.6} parent=59 // pred_region
          %p4334 = scmp.lt.s32.totalorder %s20, 1
          %s4335 = scalar_select %p4334, %s20, 1
          %s4336 = smul.addr %s4335, 32
          %s4337 = smul.addr %s4336, 8
          %s4338 = scalar_lea.vmem %s7, %s4337
        $region64: #{refinement_stage_forward.6} parent=59 // pred_fallthru
          _
      $region60: #{refinement_stage_forward.6} parent=5 // pred_fallthru
        _
    $region6: #{refinement_stage_forward.6} parent=1 // loop_footer
      %s18 = sadd.s32 1, %s14
    $region7: #{refinement_stage_forward.6} parent=1 // loop_footer_branch
      %13 = sbr.rel target = $region3
    $region8: #{refinement_stage_forward.6} parent=1 // loop_exit
      _
    %4339 = vsyncpa [#allocation5], 1
    %s4340 = scalar_lea.sflag [#allocation5], 1
    %4341 = vsyncpa %s4340, 1

// kernel: refinement_stage_forward.7
$region0: #{refinement_stage_forward.7}
  #allocation0 [shape = 'u32[]', space=smem, size = 0x4, offset = 0x4, fixed_abs, tag = 'smem constant byte address 0x4 - core index']
  #allocation1 [shape = 'u32[144,128]{1,0:T(1,128)}', space=vmem, size = 0x12000, scoped, tag = 'internal scratch']
  #allocation2 [shape = 'f32[18,18,128]{2,1,0:T(8,128)}', space=vmem, size = 0x36000, scoped, tag = 'scratch operand']
  #allocation3 [shape = 'f32[20,20,128]{2,1,0:T(8,128)}', space=vmem, size = 0x3c000, scoped, tag = 'scratch operand']
  %s0 = inlined_call_operand.vmem [shape: f32[2,16,16,128], index: 0, kind: input, shape index: {}]
  %s1 = inlined_call_operand.vmem [shape: f32[128,128], index: 1, kind: input, shape index: {}]
  %s2 = inlined_call_operand.vmem [shape: f32[1,128], index: 2, kind: input, shape index: {}]
  %s3 = inlined_call_operand.vmem [shape: f32[1152,128], index: 3, kind: input, shape index: {}]
  %s4 = inlined_call_operand.vmem [shape: f32[1,128], index: 4, kind: input, shape index: {}]
  %s5 = inlined_call_operand.vmem [shape: f32[1152,128], index: 5, kind: input, shape index: {}]
  %s6 = inlined_call_operand.vmem [shape: f32[1,128], index: 6, kind: input, shape index: {}]
  %s7 = inlined_call_operand.vmem [shape: f32[2,16,16,128], index: 7, kind: output, shape index: {}]
  %s8 = sld [smem:[#allocation0]]
  $region61: #{refinement_stage_forward.7} parent=0
    _
  %s10 = ssub.s32 1, %s8
  %s11 = scalar_select 0, %s10, %s8
  loop: start=0, step=1, limit=4
  $region2: #{refinement_stage_forward.7} parent=0 // loop_pre_header
    _
  $region3: #{refinement_stage_forward.7} parent=0 // loop_header
    %s13 = sphi 0, %s17
    %p14 = scmp.ge.s32.totalorder %s13, 4
    %s23 = sphi 0, %s25
    %s26 = sphi 0, %s23
    %s27 = sphi 0, %s26
    %s43 = sphi 0, %s27
    %s47 = sphi 0, %s47
    %s49 = sphi 0, %s47
    %s50 = sphi 0, %s49
    %s64 = sphi 0, %s50
    %s68 = sphi 0, %s68
    %s70 = sphi 0, %s68
    %s71 = sphi 0, %s70
    %s85 = sphi 0, %s71
    %s89 = sphi 0, %s89
    %s91 = sphi 0, %s89
    %s92 = sphi 0, %s91
    %s106 = sphi 0, %s92
    %s110 = sphi 0, %s110
    %s112 = sphi 0, %s110
    %s113 = sphi 0, %s112
    %s127 = sphi 0, %s113
    %s131 = sphi 0, %s131
    %s133 = sphi 0, %s131
    %s134 = sphi 0, %s133
    %s148 = sphi 0, %s134
    %s152 = sphi 0, %s152
    %s154 = sphi 0, %s152
    %s155 = sphi 0, %s154
    %s169 = sphi 0, %s155
    %s175 = sphi 0, %s177
    %s178 = sphi 0, %s175
    %s179 = sphi 0, %s178
    %s195 = sphi 0, %s179
  $region4: #{refinement_stage_forward.7} parent=0 // loop_header_branch
    %16 = sbr.rel (%p14) target = $region8
  $region5: #{refinement_stage_forward.7} parent=0 // loop_body
    %s18 = ssub.s32 %s13, 1
    %s19 = ssub.s32 %s13, 2
    %s20 = sadd.s32 %s13, 1
    %s21 = ssub.s32 %s13, %s20
    %p22 = scmp.eq.s32.totalorder %s21, 0
    %s24 = sadd.s32 %s23, 1
    %s25 = scalar_select %p22, %s23, %s24
    %p28 = pneg %p22
    %p29 = scmp.eq.s32.totalorder %s13, 1
    %p30 = por %p28, %p29
    %p31 = scmp.ne.s32.totalorder %s23, %s26
    %p32 = scmp.eq.s32.totalorder %s13, 0
    %p33 = por %p31, %p32
    %p34 = scmp.ne.s32.totalorder %s23, %s26
    %p35 = scmp.eq.s32.totalorder %s18, 1
    %p36 = por %p34, %p35
    %p37 = scmp.ne.s32.totalorder %s26, %s27
    %p38 = scmp.eq.s32.totalorder %s18, 0
    %p39 = por %p37, %p38
    %p40 = scmp.ne.s32.totalorder %s26, %s27
    %p41 = scmp.eq.s32.totalorder %s19, 1
    %p42 = por %p40, %p41
    %p44 = scmp.ne.s32.totalorder %s27, %s43
    %p45 = scmp.eq.s32.totalorder %s19, 0
    %p46 = por %p44, %p45
    %s48 = sadd.s32 %s47, 1
    %p51 = scmp.eq.s32.totalorder %s13, 1
    %p52 = scmp.ne.s32.totalorder %s47, %s49
    %p53 = scmp.eq.s32.totalorder %s13, 0
    %p54 = por %p52, %p53
    %p55 = scmp.ne.s32.totalorder %s47, %s49
    %p56 = scmp.eq.s32.totalorder %s18, 1
    %p57 = por %p55, %p56
    %p58 = scmp.ne.s32.totalorder %s49, %s50
    %p59 = scmp.eq.s32.totalorder %s18, 0
    %p60 = por %p58, %p59
    %p61 = scmp.ne.s32.totalorder %s49, %s50
    %p62 = scmp.eq.s32.totalorder %s19, 1
    %p63 = por %p61, %p62
    %p65 = scmp.ne.s32.totalorder %s50, %s64
    %p66 = scmp.eq.s32.totalorder %s19, 0
    %p67 = por %p65, %p66
    %s69 = sadd.s32 %s68, 1
    %p72 = scmp.eq.s32.totalorder %s13, 1
    %p73 = scmp.ne.s32.totalorder %s68, %s70
    %p74 = scmp.eq.s32.totalorder %s13, 0
    %p75 = por %p73, %p74
    %p76 = scmp.ne.s32.totalorder %s68, %s70
    %p77 = scmp.eq.s32.totalorder %s18, 1
    %p78 = por %p76, %p77
    %p79 = scmp.ne.s32.totalorder %s70, %s71
    %p80 = scmp.eq.s32.totalorder %s18, 0
    %p81 = por %p79, %p80
    %p82 = scmp.ne.s32.totalorder %s70, %s71
    %p83 = scmp.eq.s32.totalorder %s19, 1
    %p84 = por %p82, %p83
    %p86 = scmp.ne.s32.totalorder %s71, %s85
    %p87 = scmp.eq.s32.totalorder %s19, 0
    %p88 = por %p86, %p87
    %s90 = sadd.s32 %s89, 1
    %p93 = scmp.eq.s32.totalorder %s13, 1
    %p94 = scmp.ne.s32.totalorder %s89, %s91
    %p95 = scmp.eq.s32.totalorder %s13, 0
    %p96 = por %p94, %p95
    %p97 = scmp.ne.s32.totalorder %s89, %s91
    %p98 = scmp.eq.s32.totalorder %s18, 1
    %p99 = por %p97, %p98
    %p100 = scmp.ne.s32.totalorder %s91, %s92
    %p101 = scmp.eq.s32.totalorder %s18, 0
    %p102 = por %p100, %p101
    %p103 = scmp.ne.s32.totalorder %s91, %s92
    %p104 = scmp.eq.s32.totalorder %s19, 1
    %p105 = por %p103, %p104
    %p107 = scmp.ne.s32.totalorder %s92, %s106
    %p108 = scmp.eq.s32.totalorder %s19, 0
    %p109 = por %p107, %p108
    %s111 = sadd.s32 %s110, 1
    %p114 = scmp.eq.s32.totalorder %s13, 1
    %p115 = scmp.ne.s32.totalorder %s110, %s112
    %p116 = scmp.eq.s32.totalorder %s13, 0
    %p117 = por %p115, %p116
    %p118 = scmp.ne.s32.totalorder %s110, %s112
    %p119 = scmp.eq.s32.totalorder %s18, 1
    %p120 = por %p118, %p119
    %p121 = scmp.ne.s32.totalorder %s112, %s113
    %p122 = scmp.eq.s32.totalorder %s18, 0
    %p123 = por %p121, %p122
    %p124 = scmp.ne.s32.totalorder %s112, %s113
    %p125 = scmp.eq.s32.totalorder %s19, 1
    %p126 = por %p124, %p125
    %p128 = scmp.ne.s32.totalorder %s113, %s127
    %p129 = scmp.eq.s32.totalorder %s19, 0
    %p130 = por %p128, %p129
    %s132 = sadd.s32 %s131, 1
    %p135 = scmp.eq.s32.totalorder %s13, 1
    %p136 = scmp.ne.s32.totalorder %s131, %s133
    %p137 = scmp.eq.s32.totalorder %s13, 0
    %p138 = por %p136, %p137
    %p139 = scmp.ne.s32.totalorder %s131, %s133
    %p140 = scmp.eq.s32.totalorder %s18, 1
    %p141 = por %p139, %p140
    %p142 = scmp.ne.s32.totalorder %s133, %s134
    %p143 = scmp.eq.s32.totalorder %s18, 0
    %p144 = por %p142, %p143
    %p145 = scmp.ne.s32.totalorder %s133, %s134
    %p146 = scmp.eq.s32.totalorder %s19, 1
    %p147 = por %p145, %p146
    %p149 = scmp.ne.s32.totalorder %s134, %s148
    %p150 = scmp.eq.s32.totalorder %s19, 0
    %p151 = por %p149, %p150
    %s153 = sadd.s32 %s152, 1
    %p156 = scmp.eq.s32.totalorder %s13, 1
    %p157 = scmp.ne.s32.totalorder %s152, %s154
    %p158 = scmp.eq.s32.totalorder %s13, 0
    %p159 = por %p157, %p158
    %p160 = scmp.ne.s32.totalorder %s152, %s154
    %p161 = scmp.eq.s32.totalorder %s18, 1
    %p162 = por %p160, %p161
    %p163 = scmp.ne.s32.totalorder %s154, %s155
    %p164 = scmp.eq.s32.totalorder %s18, 0
    %p165 = por %p163, %p164
    %p166 = scmp.ne.s32.totalorder %s154, %s155
    %p167 = scmp.eq.s32.totalorder %s19, 1
    %p168 = por %p166, %p167
    %p170 = scmp.ne.s32.totalorder %s155, %s169
    %p171 = scmp.eq.s32.totalorder %s19, 0
    %p172 = por %p170, %p171
    %s173 = ssub.s32 %s13, %s20
    %p174 = scmp.eq.s32.totalorder %s173, 0
    %s176 = sadd.s32 %s175, 1
    %s177 = scalar_select %p174, %s175, %s176
    %p180 = pneg %p174
    %p181 = scmp.eq.s32.totalorder %s13, 1
    %p182 = por %p180, %p181
    %p183 = scmp.ne.s32.totalorder %s175, %s178
    %p184 = scmp.eq.s32.totalorder %s13, 0
    %p185 = por %p183, %p184
    %p186 = scmp.ne.s32.totalorder %s175, %s178
    %p187 = scmp.eq.s32.totalorder %s18, 1
    %p188 = por %p186, %p187
    %p189 = scmp.ne.s32.totalorder %s178, %s179
    %p190 = scmp.eq.s32.totalorder %s18, 0
    %p191 = por %p189, %p190
    %p192 = scmp.ne.s32.totalorder %s178, %s179
    %p193 = scmp.eq.s32.totalorder %s19, 1
    %p194 = por %p192, %p193
    %p196 = scmp.ne.s32.totalorder %s179, %s195
    %p197 = scmp.eq.s32.totalorder %s19, 0
    %p198 = por %p196, %p197
    %p199 = scmp.le.s32.totalorder 1, %s13
    %p200 = scmp.lt.s32.totalorder %s13, 3
    %p201 = pnand %p199, %p200
    %p202 = pneg %p201
    // Predicated region
    $region9: #{refinement_stage_forward.7} parent=5 // pred_check
      _
    $region10: #{refinement_stage_forward.7} parent=5 // pred_check_branch
      %204 = sbr.rel (%p201) target = $region12
    $region11: #{refinement_stage_forward.7} parent=5 // pred_region
      %s205 = ssub.s32 %s13, 1
      // Predicated region
      $region13: #{refinement_stage_forward.7} parent=11 // pred_check
        %p206 = pneg %p60
      $region14: #{refinement_stage_forward.7} parent=11 // pred_check_branch
        %208 = sbr.rel (%p206) target = $region16
      $region15: #{refinement_stage_forward.7} parent=11 // pred_region
        _
      $region16: #{refinement_stage_forward.7} parent=11 // pred_fallthru
        _
      // Predicated region
      $region17: #{refinement_stage_forward.7} parent=11 // pred_check
        %p209 = pneg %p81
      $region18: #{refinement_stage_forward.7} parent=11 // pred_check_branch
        %211 = sbr.rel (%p209) target = $region20
      $region19: #{refinement_stage_forward.7} parent=11 // pred_region
        _
      $region20: #{refinement_stage_forward.7} parent=11 // pred_fallthru
        _
      // Predicated region
      $region21: #{refinement_stage_forward.7} parent=11 // pred_check
        %p212 = pneg %p102
      $region22: #{refinement_stage_forward.7} parent=11 // pred_check_branch
        %214 = sbr.rel (%p212) target = $region24
      $region23: #{refinement_stage_forward.7} parent=11 // pred_region
        _
      $region24: #{refinement_stage_forward.7} parent=11 // pred_fallthru
        _
      // Predicated region
      $region25: #{refinement_stage_forward.7} parent=11 // pred_check
        %p215 = pneg %p123
      $region26: #{refinement_stage_forward.7} parent=11 // pred_check_branch
        %217 = sbr.rel (%p215) target = $region28
      $region27: #{refinement_stage_forward.7} parent=11 // pred_region
        _
      $region28: #{refinement_stage_forward.7} parent=11 // pred_fallthru
        _
      // Predicated region
      $region29: #{refinement_stage_forward.7} parent=11 // pred_check
        %p218 = pneg %p144
      $region30: #{refinement_stage_forward.7} parent=11 // pred_check_branch
        %220 = sbr.rel (%p218) target = $region32
      $region31: #{refinement_stage_forward.7} parent=11 // pred_region
        _
      $region32: #{refinement_stage_forward.7} parent=11 // pred_fallthru
        _
      // Predicated region
      $region33: #{refinement_stage_forward.7} parent=11 // pred_check
        %p221 = pneg %p165
      $region34: #{refinement_stage_forward.7} parent=11 // pred_check_branch
        %223 = sbr.rel (%p221) target = $region36
      $region35: #{refinement_stage_forward.7} parent=11 // pred_region
        _
      $region36: #{refinement_stage_forward.7} parent=11 // pred_fallthru
        _
    $region12: #{refinement_stage_forward.7} parent=5 // pred_fallthru
      _
    %p224 = scmp.lt.s32.totalorder %s13, 2
    // Predicated region
    $region37: #{refinement_stage_forward.7} parent=5 // pred_check
      %p225 = pneg %p224
    $region38: #{refinement_stage_forward.7} parent=5 // pred_check_branch
      %227 = sbr.rel (%p225) target = $region40
    $region39: #{refinement_stage_forward.7} parent=5 // pred_region
      // Predicated region
      $region41: #{refinement_stage_forward.7} parent=39 // pred_check
        %p228 = pneg %p33
      $region42: #{refinement_stage_forward.7} parent=39 // pred_check_branch
        %230 = sbr.rel (%p228) target = $region44
      $region43: #{refinement_stage_forward.7} parent=39 // pred_region
        %p231 = scmp.lt.s32.totalorder %s13, 1
        %s232 = scalar_select %p231, %s13, 1
        %s233 = smul.addr %s232, 32
        %s234 = smul.addr %s233, 8
        %s235 = scalar_lea.vmem %s0, %s234
      $region44: #{refinement_stage_forward.7} parent=39 // pred_fallthru
        _
    $region40: #{refinement_stage_forward.7} parent=5 // pred_fallthru
      _
    %p236 = scmp.le.s32.totalorder 1, %s13
    %p237 = scmp.lt.s32.totalorder %s13, 3
    %p238 = pnand %p236, %p237
    %p239 = pneg %p238
    // Predicated region
    $region45: #{refinement_stage_forward.7} parent=5 // pred_check
      _
    $region46: #{refinement_stage_forward.7} parent=5 // pred_check_branch
      %241 = sbr.rel (%p238) target = $region48
    $region47: #{refinement_stage_forward.7} parent=5 // pred_region
      %s242 = ssub.s32 %s13, 1
      %p243 = scmp.lt.s32.totalorder %s18, 1
      %s244 = scalar_select %p243, %s18, 1
      %s245 = smul.addr %s244, 32
      %s246 = smul.addr %s245, 8
      %s247 = scalar_lea.vmem %s0, %s246
      %p248 = pneg %p39
      %p249 = pneg %p36
      %p250 = pneg %p60
      %p251 = pneg %p57
      %p252 = pneg %p81
      %p253 = pneg %p78
      %p254 = pneg %p102
      %p255 = pneg %p99
      %p256 = pneg %p123
      %p257 = pneg %p120
      %p258 = pneg %p144
      %p259 = pneg %p141
      %p260 = pneg %p165
      %p261 = pneg %p162
      %p262 = pneg %p191
      %p263 = pneg %p188
      %p264 = scmp.lt.s32.totalorder %s18, 1
      %s265 = scalar_select %p264, %s18, 1
      %s266 = smul.addr %s265, 32
      %s267 = smul.addr %s266, 8
      %s268 = scalar_lea.vmem %s7, %s267
      %p269 = scmp.lt.s32.totalorder %s18, 1
      %s270 = scalar_select %p269, %s18, 1
      %s271 = smul.addr %s270, 32
      %s272 = smul.addr %s271, 8
      %s273 = scalar_lea.vmem %s0, %s272
      %p274 = scmp.lt.s32.totalorder %s18, 1
      %s275 = scalar_select %p274, %s18, 1
      %s276 = smul.addr %s275, 32
      %s277 = smul.addr %s276, 8
      %s278 = scalar_lea.vmem %s7, %s277
      %279 = vst [vmem:[#allocation2] sm:$0xff] 0.0
      %280 = vst [vmem:[#allocation2 + $0x8] sm:$0xff] 0.0
      %281 = vst [vmem:[#allocation2 + $0x10] sm:$0x3] 0.0
      %s282 = scalar_lea.vmem [#allocation2], 408
      %283 = vst [vmem:[%s282] sm:$0xff] 0.0
      %284 = vst [vmem:[%s282 + $0x8] sm:$0xff] 0.0
      %285 = vst [vmem:[%s282 + $0x10] sm:$0x3] 0.0
      %286 = vst [vmem:[#allocation2] sm:$0x1] 0.0
      %287 = vst [vmem:[#allocation2 + $0x18] sm:$0x1] 0.0
      %288 = vst [vmem:[#allocation2 + $0x30] sm:$0x1] 0.0
      %289 = vst [vmem:[#allocation2 + $0x48] sm:$0x1] 0.0
      %290 = vst [vmem:[#allocation2 + $0x60] sm:$0x1] 0.0
      %291 = vst [vmem:[#allocation2 + $0x78] sm:$0x1] 0.0
      %292 = vst [vmem:[#allocation2 + $0x90] sm:$0x1] 0.0
      %293 = vst [vmem:[#allocation2 + $0xa8] sm:$0x1] 0.0
      %294 = vst [vmem:[#allocation2 + $0xc0] sm:$0x1] 0.0
      %295 = vst [vmem:[#allocation2 + $0xd8] sm:$0x1] 0.0
      %296 = vst [vmem:[#allocation2 + $0xf0] sm:$0x1] 0.0
      %297 = vst [vmem:[#allocation2 + $0x108] sm:$0x1] 0.0
      %298 = vst [vmem:[#allocation2 + $0x120] sm:$0x1] 0.0
      %299 = vst [vmem:[#allocation2 + $0x138] sm:$0x1] 0.0
      %300 = vst [vmem:[#allocation2 + $0x150] sm:$0x1] 0.0
      %301 = vst [vmem:[#allocation2 + $0x168] sm:$0x1] 0.0
      %302 = vst [vmem:[#allocation2 + $0x180] sm:$0x1] 0.0
      %303 = vst [vmem:[#allocation2 + $0x198] sm:$0x1] 0.0
      %304 = vst [vmem:[#allocation2 + $0x11] sm:$0x1] 0.0
      %305 = vst [vmem:[#allocation2 + $0x29] sm:$0x1] 0.0
      %306 = vst [vmem:[#allocation2 + $0x41] sm:$0x1] 0.0
      %307 = vst [vmem:[#allocation2 + $0x59] sm:$0x1] 0.0
      %308 = vst [vmem:[#allocation2 + $0x71] sm:$0x1] 0.0
      %309 = vst [vmem:[#allocation2 + $0x89] sm:$0x1] 0.0
      %310 = vst [vmem:[#allocation2 + $0xa1] sm:$0x1] 0.0
      %311 = vst [vmem:[#allocation2 + $0xb9] sm:$0x1] 0.0
      %312 = vst [vmem:[#allocation2 + $0xd1] sm:$0x1] 0.0
      %313 = vst [vmem:[#allocation2 + $0xe9] sm:$0x1] 0.0
      %314 = vst [vmem:[#allocation2 + $0x101] sm:$0x1] 0.0
      %315 = vst [vmem:[#allocation2 + $0x119] sm:$0x1] 0.0
      %316 = vst [vmem:[#allocation2 + $0x131] sm:$0x1] 0.0
      %317 = vst [vmem:[#allocation2 + $0x149] sm:$0x1] 0.0
      %318 = vst [vmem:[#allocation2 + $0x161] sm:$0x1] 0.0
      %319 = vst [vmem:[#allocation2 + $0x179] sm:$0x1] 0.0
      %320 = vst [vmem:[#allocation2 + $0x191] sm:$0x1] 0.0
      %321 = vst [vmem:[#allocation2 + $0x1a9] sm:$0x1] 0.0
      %322 = vst [vmem:[#allocation3] sm:$0xff] 0.0
      %323 = vst [vmem:[#allocation3 + $0x8] sm:$0xff] 0.0
      %324 = vst [vmem:[#allocation3 + $0x10] sm:$0xf] 0.0
      %325 = vst [vmem:[#allocation3 + $0x18] sm:$0xff] 0.0
      %326 = vst [vmem:[#allocation3 + $0x20] sm:$0xff] 0.0
      %327 = vst [vmem:[#allocation3 + $0x28] sm:$0xf] 0.0
      %s328 = scalar_lea.vmem [#allocation3], 432
      %329 = vst [vmem:[%s328] sm:$0xff] 0.0
      %330 = vst [vmem:[%s328 + $0x8] sm:$0xff] 0.0
      %331 = vst [vmem:[%s328 + $0x10] sm:$0xf] 0.0
      %332 = vst [vmem:[%s328 + $0x18] sm:$0xff] 0.0
      %333 = vst [vmem:[%s328 + $0x20] sm:$0xff] 0.0
      %334 = vst [vmem:[%s328 + $0x28] sm:$0xf] 0.0
      %335 = vst [vmem:[#allocation3] sm:$0x3] 0.0
      %336 = vst [vmem:[#allocation3 + $0x18] sm:$0x3] 0.0
      %337 = vst [vmem:[#allocation3 + $0x30] sm:$0x3] 0.0
      %338 = vst [vmem:[#allocation3 + $0x48] sm:$0x3] 0.0
      %339 = vst [vmem:[#allocation3 + $0x60] sm:$0x3] 0.0
      %340 = vst [vmem:[#allocation3 + $0x78] sm:$0x3] 0.0
      %341 = vst [vmem:[#allocation3 + $0x90] sm:$0x3] 0.0
      %342 = vst [vmem:[#allocation3 + $0xa8] sm:$0x3] 0.0
      %343 = vst [vmem:[#allocation3 + $0xc0] sm:$0x3] 0.0
      %344 = vst [vmem:[#allocation3 + $0xd8] sm:$0x3] 0.0
      %345 = vst [vmem:[#allocation3 + $0xf0] sm:$0x3] 0.0
      %346 = vst [vmem:[#allocation3 + $0x108] sm:$0x3] 0.0
      %347 = vst [vmem:[#allocation3 + $0x120] sm:$0x3] 0.0
      %348 = vst [vmem:[#allocation3 + $0x138] sm:$0x3] 0.0
      %349 = vst [vmem:[#allocation3 + $0x150] sm:$0x3] 0.0
      %350 = vst [vmem:[#allocation3 + $0x168] sm:$0x3] 0.0
      %351 = vst [vmem:[#allocation3 + $0x180] sm:$0x3] 0.0
      %352 = vst [vmem:[#allocation3 + $0x198] sm:$0x3] 0.0
      %353 = vst [vmem:[#allocation3 + $0x1b0] sm:$0x3] 0.0
      %354 = vst [vmem:[#allocation3 + $0x1c8] sm:$0x3] 0.0
      %355 = vst [vmem:[#allocation3 + $0x12] sm:$0x3] 0.0
      %356 = vst [vmem:[#allocation3 + $0x2a] sm:$0x3] 0.0
      %357 = vst [vmem:[#allocation3 + $0x42] sm:$0x3] 0.0
      %358 = vst [vmem:[#allocation3 + $0x5a] sm:$0x3] 0.0
      %359 = vst [vmem:[#allocation3 + $0x72] sm:$0x3] 0.0
      %360 = vst [vmem:[#allocation3 + $0x8a] sm:$0x3] 0.0
      %361 = vst [vmem:[#allocation3 + $0xa2] sm:$0x3] 0.0
      %362 = vst [vmem:[#allocation3 + $0xba] sm:$0x3] 0.0
      %363 = vst [vmem:[#allocation3 + $0xd2] sm:$0x3] 0.0
      %364 = vst [vmem:[#allocation3 + $0xea] sm:$0x3] 0.0
      %365 = vst [vmem:[#allocation3 + $0x102] sm:$0x3] 0.0
      %366 = vst [vmem:[#allocation3 + $0x11a] sm:$0x3] 0.0
      %367 = vst [vmem:[#allocation3 + $0x132] sm:$0x3] 0.0
      %368 = vst [vmem:[#allocation3 + $0x14a] sm:$0x3] 0.0
      %369 = vst [vmem:[#allocation3 + $0x162] sm:$0x3] 0.0
      %370 = vst [vmem:[#allocation3 + $0x17a] sm:$0x3] 0.0
      %371 = vst [vmem:[#allocation3 + $0x192] sm:$0x3] 0.0
      %372 = vst [vmem:[#allocation3 + $0x1aa] sm:$0x3] 0.0
      %373 = vst [vmem:[#allocation3 + $0x1c2] sm:$0x3] 0.0
      %374 = vst [vmem:[#allocation3 + $0x1da] sm:$0x3] 0.0
      %v375 = vld [vmem:[%s273] sm:$0xff]
      %v376 = vld [vmem:[%s273 + $0x8] sm:$0xff]
      %v377 = vld [vmem:[%s273 + $0x10] sm:$0xff]
      %v378 = vld [vmem:[%s273 + $0x18] sm:$0xff]
      %v379 = vld [vmem:[%s273 + $0x20] sm:$0xff]
      %v380 = vld [vmem:[%s273 + $0x28] sm:$0xff]
      %v381 = vld [vmem:[%s273 + $0x30] sm:$0xff]
      %v382 = vld [vmem:[%s273 + $0x38] sm:$0xff]
      %v383 = vld [vmem:[%s273 + $0x40] sm:$0xff]
      %v384 = vld [vmem:[%s273 + $0x48] sm:$0xff]
      %v385 = vld [vmem:[%s273 + $0x50] sm:$0xff]
      %v386 = vld [vmem:[%s273 + $0x58] sm:$0xff]
      %v387 = vld [vmem:[%s273 + $0x60] sm:$0xff]
      %v388 = vld [vmem:[%s273 + $0x68] sm:$0xff]
      %v389 = vld [vmem:[%s273 + $0x70] sm:$0xff]
      %v390 = vld [vmem:[%s273 + $0x78] sm:$0xff]
      %v391 = vld [vmem:[%s273 + $0x80] sm:$0xff]
      %v392 = vld [vmem:[%s273 + $0x88] sm:$0xff]
      %v393 = vld [vmem:[%s273 + $0x90] sm:$0xff]
      %v394 = vld [vmem:[%s273 + $0x98] sm:$0xff]
      %v395 = vld [vmem:[%s273 + $0xa0] sm:$0xff]
      %v396 = vld [vmem:[%s273 + $0xa8] sm:$0xff]
      %v397 = vld [vmem:[%s273 + $0xb0] sm:$0xff]
      %v398 = vld [vmem:[%s273 + $0xb8] sm:$0xff]
      %v399 = vld [vmem:[%s273 + $0xc0] sm:$0xff]
      %v400 = vld [vmem:[%s273 + $0xc8] sm:$0xff]
      %v401 = vld [vmem:[%s273 + $0xd0] sm:$0xff]
      %v402 = vld [vmem:[%s273 + $0xd8] sm:$0xff]
      %v403 = vld [vmem:[%s273 + $0xe0] sm:$0xff]
      %v404 = vld [vmem:[%s273 + $0xe8] sm:$0xff]
      %v405 = vld [vmem:[%s273 + $0xf0] sm:$0xff]
      %v406 = vld [vmem:[%s273 + $0xf8] sm:$0xff]
      %v407 = vld [vmem:[%s1] sm:$0xff]
      %v408 = vld [vmem:[%s1 + $0x8] sm:$0xff]
      %v409 = vld [vmem:[%s1 + $0x10] sm:$0xff]
      %v410 = vld [vmem:[%s1 + $0x18] sm:$0xff]
      %v411 = vld [vmem:[%s1 + $0x20] sm:$0xff]
      %v412 = vld [vmem:[%s1 + $0x28] sm:$0xff]
      %v413 = vld [vmem:[%s1 + $0x30] sm:$0xff]
      %v414 = vld [vmem:[%s1 + $0x38] sm:$0xff]
      %v415 = vld [vmem:[%s1 + $0x40] sm:$0xff]
      %v416 = vld [vmem:[%s1 + $0x48] sm:$0xff]
      %v417 = vld [vmem:[%s1 + $0x50] sm:$0xff]
      %v418 = vld [vmem:[%s1 + $0x58] sm:$0xff]
      %v419 = vld [vmem:[%s1 + $0x60] sm:$0xff]
      %v420 = vld [vmem:[%s1 + $0x68] sm:$0xff]
      %v421 = vld [vmem:[%s1 + $0x70] sm:$0xff]
      %v422 = vld [vmem:[%s1 + $0x78] sm:$0xff]
      %v423 = vld [vmem:[%s2] sm:$0x1]
      %v425 = vlaneseq
      %v426 = vshrl.u32 %v425, 7
      %v427 = vsub.s32 0, %v426
      %v428 = vrot.slane %v423, %v427
      %430 = vmatprep.subr.mxu0 0.0
      %431 = vmatpush1.msra.mxu0 %v407
      %432 = vmatprep.subr.mxu0 0.0
      %433 = vmatpush1.msra.mxu0 %v408
      %434 = vmatprep.subr.mxu0 0.0
      %435 = vmatpush1.msra.mxu0 %v409
      %436 = vmatprep.subr.mxu0 0.0
      %437 = vmatpush1.msra.mxu0 %v410
      %438 = vmatprep.subr.mxu0 0.0
      %439 = vmatpush1.msra.mxu0 %v411
      %440 = vmatprep.subr.mxu0 0.0
      %441 = vmatpush1.msra.mxu0 %v412
      %442 = vmatprep.subr.mxu0 0.0
      %443 = vmatpush1.msra.mxu0 %v413
      %444 = vmatprep.subr.mxu0 0.0
      %445 = vmatpush1.msra.mxu0 %v414
      %446 = vmatprep.subr.mxu0 0.0
      %447 = vmatpush1.msra.mxu0 %v415
      %448 = vmatprep.subr.mxu0 0.0
      %449 = vmatpush1.msra.mxu0 %v416
      %450 = vmatprep.subr.mxu0 0.0
      %451 = vmatpush1.msra.mxu0 %v417
      %452 = vmatprep.subr.mxu0 0.0
      %453 = vmatpush1.msra.mxu0 %v418
      %454 = vmatprep.subr.mxu0 0.0
      %455 = vmatpush1.msra.mxu0 %v419
      %456 = vmatprep.subr.mxu0 0.0
      %457 = vmatpush1.msra.mxu0 %v420
      %458 = vmatprep.subr.mxu0 0.0
      %459 = vmatpush1.msra.mxu0 %v421
      %460 = vmatprep.subr.mxu0 0.0
      %461 = vmatpush1.msra.mxu0 %v422
      %462 = vmatprep.subr.mxu0 0.0
      %463 = vmatpush1.msra.mxu0 0.0
      %464 = vmatprep.subr.mxu0 0.0
      %465 = vmatpush1.msra.mxu0 0.0
      %466 = vmatprep.subr.mxu0 0.0
      %467 = vmatpush1.msra.mxu0 0.0
      %468 = vmatprep.subr.mxu0 0.0
      %469 = vmatpush1.msra.mxu0 0.0
      %470 = vmatprep.subr.mxu0 0.0
      %471 = vmatpush1.msra.mxu0 0.0
      %472 = vmatprep.subr.mxu0 0.0
      %473 = vmatpush1.msra.mxu0 0.0
      %474 = vmatprep.subr.mxu0 0.0
      %475 = vmatpush1.msra.mxu0 0.0
      %476 = vmatprep.subr.mxu0 0.0
      %477 = vmatpush1.msra.mxu0 0.0
      %478 = vmatprep.subr.mxu0 0.0
      %479 = vmatpush1.msra.mxu0 0.0
      %480 = vmatprep.subr.mxu0 0.0
      %481 = vmatpush1.msra.mxu0 0.0
      %482 = vmatprep.subr.mxu0 0.0
      %483 = vmatpush1.msra.mxu0 0.0
      %484 = vmatprep.subr.mxu0 0.0
      %485 = vmatpush1.msra.mxu0 0.0
      %486 = vmatprep.subr.mxu0 0.0
      %487 = vmatpush1.msra.mxu0 0.0
      %488 = vmatprep.subr.mxu0 0.0
      %489 = vmatpush1.msra.mxu0 0.0
      %490 = vmatprep.subr.mxu0 0.0
      %491 = vmatpush1.msra.mxu0 0.0
      %492 = vmatprep.subr.mxu0 0.0
      %493 = vmatpush1.msra.mxu0 0.0
      %494 = vmatprep.mubr.f32.mxu0 0.0
      %495 = vmatmul.mubr.f32.gmra.mrb[0].mxu0 %v375
      %v496 = vpop.f32.mrb[0].mxu0
      %v497 = vadd.f32 %v428, %v496
      %v498 = vpop.f32.mrb[0].mxu0
      %499 = vmatprep.mubr.f32.mxu0 0.0
      %500 = vmatmul.mubr.f32.gmra.mrb[0].mxu0 %v376
      %v501 = vpop.f32.mrb[0].mxu0
      %v502 = vadd.f32 %v428, %v501
      %v503 = vpop.f32.mrb[0].mxu0
      %504 = vmatprep.mubr.f32.mxu0 0.0
      %505 = vmatmul.mubr.f32.gmra.mrb[0].mxu0 %v377
      %v506 = vpop.f32.mrb[0].mxu0
      %v507 = vadd.f32 %v428, %v506
      %v508 = vpop.f32.mrb[0].mxu0
      %509 = vmatprep.mubr.f32.mxu0 0.0
      %510 = vmatmul.mubr.f32.gmra.mrb[0].mxu0 %v378
      %v511 = vpop.f32.mrb[0].mxu0
      %v512 = vadd.f32 %v428, %v511
      %v513 = vpop.f32.mrb[0].mxu0
      %514 = vmatprep.mubr.f32.mxu0 0.0
      %515 = vmatmul.mubr.f32.gmra.mrb[0].mxu0 %v379
      %v516 = vpop.f32.mrb[0].mxu0
      %v517 = vadd.f32 %v428, %v516
      %v518 = vpop.f32.mrb[0].mxu0
      %519 = vmatprep.mubr.f32.mxu0 0.0
      %520 = vmatmul.mubr.f32.gmra.mrb[0].mxu0 %v380
      %v521 = vpop.f32.mrb[0].mxu0
      %v522 = vadd.f32 %v428, %v521
      %v523 = vpop.f32.mrb[0].mxu0
      %524 = vmatprep.mubr.f32.mxu0 0.0
      %525 = vmatmul.mubr.f32.gmra.mrb[0].mxu0 %v381
      %v526 = vpop.f32.mrb[0].mxu0
      %v527 = vadd.f32 %v428, %v526
      %v528 = vpop.f32.mrb[0].mxu0
      %529 = vmatprep.mubr.f32.mxu0 0.0
      %530 = vmatmul.mubr.f32.gmra.mrb[0].mxu0 %v382
      %v531 = vpop.f32.mrb[0].mxu0
      %v532 = vadd.f32 %v428, %v531
      %v533 = vpop.f32.mrb[0].mxu0
      %534 = vmatprep.mubr.f32.mxu0 0.0
      %535 = vmatmul.mubr.f32.gmra.mrb[0].mxu0 %v383
      %v536 = vpop.f32.mrb[0].mxu0
      %v537 = vadd.f32 %v428, %v536
      %v538 = vpop.f32.mrb[0].mxu0
      %539 = vmatprep.mubr.f32.mxu0 0.0
      %540 = vmatmul.mubr.f32.gmra.mrb[0].mxu0 %v384
      %v541 = vpop.f32.mrb[0].mxu0
      %v542 = vadd.f32 %v428, %v541
      %v543 = vpop.f32.mrb[0].mxu0
      %544 = vmatprep.mubr.f32.mxu0 0.0
      %545 = vmatmul.mubr.f32.gmra.mrb[0].mxu0 %v385
      %v546 = vpop.f32.mrb[0].mxu0
      %v547 = vadd.f32 %v428, %v546
      %v548 = vpop.f32.mrb[0].mxu0
      %549 = vmatprep.mubr.f32.mxu0 0.0
      %550 = vmatmul.mubr.f32.gmra.mrb[0].mxu0 %v386
      %v551 = vpop.f32.mrb[0].mxu0
      %v552 = vadd.f32 %v428, %v551
      %v553 = vpop.f32.mrb[0].mxu0
      %554 = vmatprep.mubr.f32.mxu0 0.0
      %555 = vmatmul.mubr.f32.gmra.mrb[0].mxu0 %v387
      %v556 = vpop.f32.mrb[0].mxu0
      %v557 = vadd.f32 %v428, %v556
      %v558 = vpop.f32.mrb[0].mxu0
      %559 = vmatprep.mubr.f32.mxu0 0.0
      %560 = vmatmul.mubr.f32.gmra.mrb[0].mxu0 %v388
      %v561 = vpop.f32.mrb[0].mxu0
      %v562 = vadd.f32 %v428, %v561
      %v563 = vpop.f32.mrb[0].mxu0
      %564 = vmatprep.mubr.f32.mxu0 0.0
      %565 = vmatmul.mubr.f32.gmra.mrb[0].mxu0 %v389
      %v566 = vpop.f32.mrb[0].mxu0
      %v567 = vadd.f32 %v428, %v566
      %v568 = vpop.f32.mrb[0].mxu0
      %569 = vmatprep.mubr.f32.mxu0 0.0
      %570 = vmatmul.mubr.f32.gmra.mrb[0].mxu0 %v390
      %v571 = vpop.f32.mrb[0].mxu0
      %v572 = vadd.f32 %v428, %v571
      %v573 = vpop.f32.mrb[0].mxu0
      %574 = vmatprep.mubr.f32.mxu0 0.0
      %575 = vmatmul.mubr.f32.gmra.mrb[0].mxu0 %v391
      %v576 = vpop.f32.mrb[0].mxu0
      %v577 = vadd.f32 %v428, %v576
      %v578 = vpop.f32.mrb[0].mxu0
      %579 = vmatprep.mubr.f32.mxu0 0.0
      %580 = vmatmul.mubr.f32.gmra.mrb[0].mxu0 %v392
      %v581 = vpop.f32.mrb[0].mxu0
      %v582 = vadd.f32 %v428, %v581
      %v583 = vpop.f32.mrb[0].mxu0
      %584 = vmatprep.mubr.f32.mxu0 0.0
      %585 = vmatmul.mubr.f32.gmra.mrb[0].mxu0 %v393
      %v586 = vpop.f32.mrb[0].mxu0
      %v587 = vadd.f32 %v428, %v586
      %v588 = vpop.f32.mrb[0].mxu0
      %589 = vmatprep.mubr.f32.mxu0 0.0
      %590 = vmatmul.mubr.f32.gmra.mrb[0].mxu0 %v394
      %v591 = vpop.f32.mrb[0].mxu0
      %v592 = vadd.f32 %v428, %v591
      %v593 = vpop.f32.mrb[0].mxu0
      %594 = vmatprep.mubr.f32.mxu0 0.0
      %595 = vmatmul.mubr.f32.gmra.mrb[0].mxu0 %v395
      %v596 = vpop.f32.mrb[0].mxu0
      %v597 = vadd.f32 %v428, %v596
      %v598 = vpop.f32.mrb[0].mxu0
      %599 = vmatprep.mubr.f32.mxu0 0.0
      %600 = vmatmul.mubr.f32.gmra.mrb[0].mxu0 %v396
      %v601 = vpop.f32.mrb[0].mxu0
      %v602 = vadd.f32 %v428, %v601
      %v603 = vpop.f32.mrb[0].mxu0
      %604 = vmatprep.mubr.f32.mxu0 0.0
      %605 = vmatmul.mubr.f32.gmra.mrb[0].mxu0 %v397
      %v606 = vpop.f32.mrb[0].mxu0
      %v607 = vadd.f32 %v428, %v606
      %v608 = vpop.f32.mrb[0].mxu0
      %609 = vmatprep.mubr.f32.mxu0 0.0
      %610 = vmatmul.mubr.f32.gmra.mrb[0].mxu0 %v398
      %v611 = vpop.f32.mrb[0].mxu0
      %v612 = vadd.f32 %v428, %v611
      %v613 = vpop.f32.mrb[0].mxu0
      %614 = vmatprep.mubr.f32.mxu0 0.0
      %615 = vmatmul.mubr.f32.gmra.mrb[0].mxu0 %v399
      %v616 = vpop.f32.mrb[0].mxu0
      %v617 = vadd.f32 %v428, %v616
      %v618 = vpop.f32.mrb[0].mxu0
      %619 = vmatprep.mubr.f32.mxu0 0.0
      %620 = vmatmul.mubr.f32.gmra.mrb[0].mxu0 %v400
      %v621 = vpop.f32.mrb[0].mxu0
      %v622 = vadd.f32 %v428, %v621
      %v623 = vpop.f32.mrb[0].mxu0
      %624 = vmatprep.mubr.f32.mxu0 0.0
      %625 = vmatmul.mubr.f32.gmra.mrb[0].mxu0 %v401
      %v626 = vpop.f32.mrb[0].mxu0
      %v627 = vadd.f32 %v428, %v626
      %v628 = vpop.f32.mrb[0].mxu0
      %629 = vmatprep.mubr.f32.mxu0 0.0
      %630 = vmatmul.mubr.f32.gmra.mrb[0].mxu0 %v402
      %v631 = vpop.f32.mrb[0].mxu0
      %v632 = vadd.f32 %v428, %v631
      %v633 = vpop.f32.mrb[0].mxu0
      %634 = vmatprep.mubr.f32.mxu0 0.0
      %635 = vmatmul.mubr.f32.gmra.mrb[0].mxu0 %v403
      %v636 = vpop.f32.mrb[0].mxu0
      %v637 = vadd.f32 %v428, %v636
      %v638 = vpop.f32.mrb[0].mxu0
      %639 = vmatprep.mubr.f32.mxu0 0.0
      %640 = vmatmul.mubr.f32.gmra.mrb[0].mxu0 %v404
      %v641 = vpop.f32.mrb[0].mxu0
      %v642 = vadd.f32 %v428, %v641
      %v643 = vpop.f32.mrb[0].mxu0
      %644 = vmatprep.mubr.f32.mxu0 0.0
      %645 = vmatmul.mubr.f32.gmra.mrb[0].mxu0 %v405
      %v646 = vpop.f32.mrb[0].mxu0
      %v647 = vadd.f32 %v428, %v646
      %v648 = vpop.f32.mrb[0].mxu0
      %649 = vmatprep.mubr.f32.mxu0 0.0
      %650 = vmatmul.mubr.f32.gmra.mrb[0].mxu0 %v406
      %v651 = vpop.f32.mrb[0].mxu0
      %v652 = vadd.f32 %v428, %v651
      %v653 = vpop.f32.mrb[0].mxu0
      %654 = vdwg.mxu0
      %v655 = vmax.f32 %v497, 0.0
      %v656 = vmax.f32 %v502, 0.0
      %v657 = vmax.f32 %v507, 0.0
      %v658 = vmax.f32 %v512, 0.0
      %v659 = vmax.f32 %v517, 0.0
      %v660 = vmax.f32 %v522, 0.0
      %v661 = vmax.f32 %v527, 0.0
      %v662 = vmax.f32 %v532, 0.0
      %v663 = vmax.f32 %v537, 0.0
      %v664 = vmax.f32 %v542, 0.0
      %v665 = vmax.f32 %v547, 0.0
      %v666 = vmax.f32 %v552, 0.0
      %v667 = vmax.f32 %v557, 0.0
      %v668 = vmax.f32 %v562, 0.0
      %v669 = vmax.f32 %v567, 0.0
      %v670 = vmax.f32 %v572, 0.0
      %v671 = vmax.f32 %v577, 0.0
      %v672 = vmax.f32 %v582, 0.0
      %v673 = vmax.f32 %v587, 0.0
      %v674 = vmax.f32 %v592, 0.0
      %v675 = vmax.f32 %v597, 0.0
      %v676 = vmax.f32 %v602, 0.0
      %v677 = vmax.f32 %v607, 0.0
      %v678 = vmax.f32 %v612, 0.0
      %v679 = vmax.f32 %v617, 0.0
      %v680 = vmax.f32 %v622, 0.0
      %v681 = vmax.f32 %v627, 0.0
      %v682 = vmax.f32 %v632, 0.0
      %v683 = vmax.f32 %v637, 0.0
      %v684 = vmax.f32 %v642, 0.0
      %v685 = vmax.f32 %v647, 0.0
      %v686 = vmax.f32 %v652, 0.0
      %687 = vst [vmem:[%s278] sm:$0xff] %v655
      %688 = vst [vmem:[%s278 + $0x8] sm:$0xff] %v656
      %689 = vst [vmem:[%s278 + $0x10] sm:$0xff] %v657
      %690 = vst [vmem:[%s278 + $0x18] sm:$0xff] %v658
      %691 = vst [vmem:[%s278 + $0x20] sm:$0xff] %v659
      %692 = vst [vmem:[%s278 + $0x28] sm:$0xff] %v660
      %693 = vst [vmem:[%s278 + $0x30] sm:$0xff] %v661
      %694 = vst [vmem:[%s278 + $0x38] sm:$0xff] %v662
      %695 = vst [vmem:[%s278 + $0x40] sm:$0xff] %v663
      %696 = vst [vmem:[%s278 + $0x48] sm:$0xff] %v664
      %697 = vst [vmem:[%s278 + $0x50] sm:$0xff] %v665
      %698 = vst [vmem:[%s278 + $0x58] sm:$0xff] %v666
      %699 = vst [vmem:[%s278 + $0x60] sm:$0xff] %v667
      %700 = vst [vmem:[%s278 + $0x68] sm:$0xff] %v668
      %701 = vst [vmem:[%s278 + $0x70] sm:$0xff] %v669
      %702 = vst [vmem:[%s278 + $0x78] sm:$0xff] %v670
      %703 = vst [vmem:[%s278 + $0x80] sm:$0xff] %v671
      %704 = vst [vmem:[%s278 + $0x88] sm:$0xff] %v672
      %705 = vst [vmem:[%s278 + $0x90] sm:$0xff] %v673
      %706 = vst [vmem:[%s278 + $0x98] sm:$0xff] %v674
      %707 = vst [vmem:[%s278 + $0xa0] sm:$0xff] %v675
      %708 = vst [vmem:[%s278 + $0xa8] sm:$0xff] %v676
      %709 = vst [vmem:[%s278 + $0xb0] sm:$0xff] %v677
      %710 = vst [vmem:[%s278 + $0xb8] sm:$0xff] %v678
      %711 = vst [vmem:[%s278 + $0xc0] sm:$0xff] %v679
      %712 = vst [vmem:[%s278 + $0xc8] sm:$0xff] %v680
      %713 = vst [vmem:[%s278 + $0xd0] sm:$0xff] %v681
      %714 = vst [vmem:[%s278 + $0xd8] sm:$0xff] %v682
      %715 = vst [vmem:[%s278 + $0xe0] sm:$0xff] %v683
      %716 = vst [vmem:[%s278 + $0xe8] sm:$0xff] %v684
      %717 = vst [vmem:[%s278 + $0xf0] sm:$0xff] %v685
      %718 = vst [vmem:[%s278 + $0xf8] sm:$0xff] %v686
      %s719 = scalar_lea.vmem [#allocation2], 24
      %720 = vst [vmem:[%s719 + $0x1] sm:$0xff] %v655
      %721 = vst [vmem:[%s719 + $0x9] sm:$0xff] %v656
      %722 = vst [vmem:[%s719 + $0x19] sm:$0xff] %v657
      %723 = vst [vmem:[%s719 + $0x21] sm:$0xff] %v658
      %724 = vst [vmem:[%s719 + $0x31] sm:$0xff] %v659
      %725 = vst [vmem:[%s719 + $0x39] sm:$0xff] %v660
      %726 = vst [vmem:[%s719 + $0x49] sm:$0xff] %v661
      %727 = vst [vmem:[%s719 + $0x51] sm:$0xff] %v662
      %728 = vst [vmem:[%s719 + $0x61] sm:$0xff] %v663
      %729 = vst [vmem:[%s719 + $0x69] sm:$0xff] %v664
      %730 = vst [vmem:[%s719 + $0x79] sm:$0xff] %v665
      %731 = vst [vmem:[%s719 + $0x81] sm:$0xff] %v666
      %732 = vst [vmem:[%s719 + $0x91] sm:$0xff] %v667
      %733 = vst [vmem:[%s719 + $0x99] sm:$0xff] %v668
      %734 = vst [vmem:[%s719 + $0xa9] sm:$0xff] %v669
      %735 = vst [vmem:[%s719 + $0xb1] sm:$0xff] %v670
      %736 = vst [vmem:[%s719 + $0xc1] sm:$0xff] %v671
      %737 = vst [vmem:[%s719 + $0xc9] sm:$0xff] %v672
      %738 = vst [vmem:[%s719 + $0xd9] sm:$0xff] %v673
      %739 = vst [vmem:[%s719 + $0xe1] sm:$0xff] %v674
      %740 = vst [vmem:[%s719 + $0xf1] sm:$0xff] %v675
      %741 = vst [vmem:[%s719 + $0xf9] sm:$0xff] %v676
      %742 = vst [vmem:[%s719 + $0x109] sm:$0xff] %v677
      %743 = vst [vmem:[%s719 + $0x111] sm:$0xff] %v678
      %744 = vst [vmem:[%s719 + $0x121] sm:$0xff] %v679
      %745 = vst [vmem:[%s719 + $0x129] sm:$0xff] %v680
      %746 = vst [vmem:[%s719 + $0x139] sm:$0xff] %v681
      %747 = vst [vmem:[%s719 + $0x141] sm:$0xff] %v682
      %748 = vst [vmem:[%s719 + $0x151] sm:$0xff] %v683
      %749 = vst [vmem:[%s719 + $0x159] sm:$0xff] %v684
      %750 = vst [vmem:[%s719 + $0x169] sm:$0xff] %v685
      %751 = vst [vmem:[%s719 + $0x171] sm:$0xff] %v686
      %v752 = vld [vmem:[#allocation2] sm:$0xff]
      %v753 = vld [vmem:[#allocation2 + $0x8] sm:$0xff]
      %v754 = vld [vmem:[#allocation2 + $0x18] sm:$0xff]
      %v755 = vld [vmem:[#allocation2 + $0x20] sm:$0xff]
      %v756 = vld [vmem:[#allocation2 + $0x30] sm:$0xff]
      %v757 = vld [vmem:[#allocation2 + $0x38] sm:$0xff]
      %v758 = vld [vmem:[#allocation2 + $0x48] sm:$0xff]
      %v759 = vld [vmem:[#allocation2 + $0x50] sm:$0xff]
      %v760 = vld [vmem:[#allocation2 + $0x60] sm:$0xff]
      %v761 = vld [vmem:[#allocation2 + $0x68] sm:$0xff]
      %v762 = vld [vmem:[#allocation2 + $0x78] sm:$0xff]
      %v763 = vld [vmem:[#allocation2 + $0x80] sm:$0xff]
      %v764 = vld [vmem:[#allocation2 + $0x90] sm:$0xff]
      %v765 = vld [vmem:[#allocation2 + $0x98] sm:$0xff]
      %v766 = vld [vmem:[#allocation2 + $0xa8] sm:$0xff]
      %v767 = vld [vmem:[#allocation2 + $0xb0] sm:$0xff]
      %v768 = vld [vmem:[#allocation2 + $0xc0] sm:$0xff]
      %v769 = vld [vmem:[#allocation2 + $0xc8] sm:$0xff]
      %v770 = vld [vmem:[#allocation2 + $0xd8] sm:$0xff]
      %v771 = vld [vmem:[#allocation2 + $0xe0] sm:$0xff]
      %v772 = vld [vmem:[#allocation2 + $0xf0] sm:$0xff]
      %v773 = vld [vmem:[#allocation2 + $0xf8] sm:$0xff]
      %v774 = vld [vmem:[#allocation2 + $0x108] sm:$0xff]
      %v775 = vld [vmem:[#allocation2 + $0x110] sm:$0xff]
      %v776 = vld [vmem:[#allocation2 + $0x120] sm:$0xff]
      %v777 = vld [vmem:[#allocation2 + $0x128] sm:$0xff]
      %v778 = vld [vmem:[#allocation2 + $0x138] sm:$0xff]
      %v779 = vld [vmem:[#allocation2 + $0x140] sm:$0xff]
      %v780 = vld [vmem:[#allocation2 + $0x150] sm:$0xff]
      %v781 = vld [vmem:[#allocation2 + $0x158] sm:$0xff]
      %v782 = vld [vmem:[#allocation2 + $0x168] sm:$0xff]
      %v783 = vld [vmem:[#allocation2 + $0x170] sm:$0xff]
      %v784 = vld [vmem:[#allocation2 + $0x180] sm:$0xff]
      %v785 = vld [vmem:[#allocation2 + $0x188] sm:$0xff]
      %v786 = vld [vmem:[#allocation2 + $0x198] sm:$0xff]
      %v787 = vld [vmem:[#allocation2 + $0x1a0] sm:$0xff]
      %v788 = vld [vmem:[#allocation2 + $0x1] sm:$0xff]
      %v789 = vld [vmem:[#allocation2 + $0x9] sm:$0xff]
      %v790 = vld [vmem:[#allocation2 + $0x19] sm:$0xff]
      %v791 = vld [vmem:[#allocation2 + $0x21] sm:$0xff]
      %v792 = vld [vmem:[#allocation2 + $0x31] sm:$0xff]
      %v793 = vld [vmem:[#allocation2 + $0x39] sm:$0xff]
      %v794 = vld [vmem:[#allocation2 + $0x49] sm:$0xff]
      %v795 = vld [vmem:[#allocation2 + $0x51] sm:$0xff]
      %v796 = vld [vmem:[#allocation2 + $0x61] sm:$0xff]
      %v797 = vld [vmem:[#allocation2 + $0x69] sm:$0xff]
      %v798 = vld [vmem:[#allocation2 + $0x79] sm:$0xff]
      %v799 = vld [vmem:[#allocation2 + $0x81] sm:$0xff]
      %v800 = vld [vmem:[#allocation2 + $0x91] sm:$0xff]
      %v801 = vld [vmem:[#allocation2 + $0x99] sm:$0xff]
      %v802 = vld [vmem:[#allocation2 + $0xa9] sm:$0xff]
      %v803 = vld [vmem:[#allocation2 + $0xb1] sm:$0xff]
      %v804 = vld [vmem:[#allocation2 + $0xc1] sm:$0xff]
      %v805 = vld [vmem:[#allocation2 + $0xc9] sm:$0xff]
      %v806 = vld [vmem:[#allocation2 + $0xd9] sm:$0xff]
      %v807 = vld [vmem:[#allocation2 + $0xe1] sm:$0xff]
      %v808 = vld [vmem:[#allocation2 + $0xf1] sm:$0xff]
      %v809 = vld [vmem:[#allocation2 + $0xf9] sm:$0xff]
      %v810 = vld [vmem:[#allocation2 + $0x109] sm:$0xff]
      %v811 = vld [vmem:[#allocation2 + $0x111] sm:$0xff]
      %v812 = vld [vmem:[#allocation2 + $0x121] sm:$0xff]
      %v813 = vld [vmem:[#allocation2 + $0x129] sm:$0xff]
      %v814 = vld [vmem:[#allocation2 + $0x139] sm:$0xff]
      %v815 = vld [vmem:[#allocation2 + $0x141] sm:$0xff]
      %v816 = vld [vmem:[#allocation2 + $0x151] sm:$0xff]
      %v817 = vld [vmem:[#allocation2 + $0x159] sm:$0xff]
      %v818 = vld [vmem:[#allocation2 + $0x169] sm:$0xff]
      %v819 = vld [vmem:[#allocation2 + $0x171] sm:$0xff]
      %v820 = vld [vmem:[#allocation2 + $0x181] sm:$0xff]
      %v821 = vld [vmem:[#allocation2 + $0x189] sm:$0xff]
      %v822 = vld [vmem:[#allocation2 + $0x199] sm:$0xff]
      %v823 = vld [vmem:[#allocation2 + $0x1a1] sm:$0xff]
      %v824 = vld [vmem:[#allocation2 + $0x2] sm:$0xff]
      %v825 = vld [vmem:[#allocation2 + $0xa] sm:$0xff]
      %v826 = vld [vmem:[#allocation2 + $0x1a] sm:$0xff]
      %v827 = vld [vmem:[#allocation2 + $0x22] sm:$0xff]
      %v828 = vld [vmem:[#allocation2 + $0x32] sm:$0xff]
      %v829 = vld [vmem:[#allocation2 + $0x3a] sm:$0xff]
      %v830 = vld [vmem:[#allocation2 + $0x4a] sm:$0xff]
      %v831 = vld [vmem:[#allocation2 + $0x52] sm:$0xff]
      %v832 = vld [vmem:[#allocation2 + $0x62] sm:$0xff]
      %v833 = vld [vmem:[#allocation2 + $0x6a] sm:$0xff]
      %v834 = vld [vmem:[#allocation2 + $0x7a] sm:$0xff]
      %v835 = vld [vmem:[#allocation2 + $0x82] sm:$0xff]
      %v836 = vld [vmem:[#allocation2 + $0x92] sm:$0xff]
      %v837 = vld [vmem:[#allocation2 + $0x9a] sm:$0xff]
      %v838 = vld [vmem:[#allocation2 + $0xaa] sm:$0xff]
      %v839 = vld [vmem:[#allocation2 + $0xb2] sm:$0xff]
      %v840 = vld [vmem:[#allocation2 + $0xc2] sm:$0xff]
      %v841 = vld [vmem:[#allocation2 + $0xca] sm:$0xff]
      %v842 = vld [vmem:[#allocation2 + $0xda] sm:$0xff]
      %v843 = vld [vmem:[#allocation2 + $0xe2] sm:$0xff]
      %v844 = vld [vmem:[#allocation2 + $0xf2] sm:$0xff]
      %v845 = vld [vmem:[#allocation2 + $0xfa] sm:$0xff]
      %v846 = vld [vmem:[#allocation2 + $0x10a] sm:$0xff]
      %v847 = vld [vmem:[#allocation2 + $0x112] sm:$0xff]
      %v848 = vld [vmem:[#allocation2 + $0x122] sm:$0xff]
      %v849 = vld [vmem:[#allocation2 + $0x12a] sm:$0xff]
      %v850 = vld [vmem:[#allocation2 + $0x13a] sm:$0xff]
      %v851 = vld [vmem:[#allocation2 + $0x142] sm:$0xff]
      %v852 = vld [vmem:[#allocation2 + $0x152] sm:$0xff]
      %v853 = vld [vmem:[#allocation2 + $0x15a] sm:$0xff]
      %v854 = vld [vmem:[#allocation2 + $0x16a] sm:$0xff]
      %v855 = vld [vmem:[#allocation2 + $0x172] sm:$0xff]
      %v856 = vld [vmem:[#allocation2 + $0x182] sm:$0xff]
      %v857 = vld [vmem:[#allocation2 + $0x18a] sm:$0xff]
      %v858 = vld [vmem:[#allocation2 + $0x19a] sm:$0xff]
      %v859 = vld [vmem:[#allocation2 + $0x1a2] sm:$0xff]
      %v860 = vld [vmem:[%s3] sm:$0xff]
      %v861 = vld [vmem:[%s3 + $0x8] sm:$0xff]
      %v862 = vld [vmem:[%s3 + $0x10] sm:$0xff]
      %v863 = vld [vmem:[%s3 + $0x18] sm:$0xff]
      %v864 = vld [vmem:[%s3 + $0x20] sm:$0xff]
      %v865 = vld [vmem:[%s3 + $0x28] sm:$0xff]
      %v866 = vld [vmem:[%s3 + $0x30] sm:$0xff]
      %v867 = vld [vmem:[%s3 + $0x38] sm:$0xff]
      %v868 = vld [vmem:[%s3 + $0x40] sm:$0xff]
      %v869 = vld [vmem:[%s3 + $0x48] sm:$0xff]
      %v870 = vld [vmem:[%s3 + $0x50] sm:$0xff]
      %v871 = vld [vmem:[%s3 + $0x58] sm:$0xff]
      %v872 = vld [vmem:[%s3 + $0x60] sm:$0xff]
      %v873 = vld [vmem:[%s3 + $0x68] sm:$0xff]
      %v874 = vld [vmem:[%s3 + $0x70] sm:$0xff]
      %v875 = vld [vmem:[%s3 + $0x78] sm:$0xff]
      %v876 = vld [vmem:[%s3 + $0x80] sm:$0xff]
      %v877 = vld [vmem:[%s3 + $0x88] sm:$0xff]
      %v878 = vld [vmem:[%s3 + $0x90] sm:$0xff]
      %v879 = vld [vmem:[%s3 + $0x98] sm:$0xff]
      %v880 = vld [vmem:[%s3 + $0xa0] sm:$0xff]
      %v881 = vld [vmem:[%s3 + $0xa8] sm:$0xff]
      %v882 = vld [vmem:[%s3 + $0xb0] sm:$0xff]
      %v883 = vld [vmem:[%s3 + $0xb8] sm:$0xff]
      %v884 = vld [vmem:[%s3 + $0xc0] sm:$0xff]
      %v885 = vld [vmem:[%s3 + $0xc8] sm:$0xff]
      %v886 = vld [vmem:[%s3 + $0xd0] sm:$0xff]
      %v887 = vld [vmem:[%s3 + $0xd8] sm:$0xff]
      %v888 = vld [vmem:[%s3 + $0xe0] sm:$0xff]
      %v889 = vld [vmem:[%s3 + $0xe8] sm:$0xff]
      %v890 = vld [vmem:[%s3 + $0xf0] sm:$0xff]
      %v891 = vld [vmem:[%s3 + $0xf8] sm:$0xff]
      %v892 = vld [vmem:[%s3 + $0x100] sm:$0xff]
      %v893 = vld [vmem:[%s3 + $0x108] sm:$0xff]
      %v894 = vld [vmem:[%s3 + $0x110] sm:$0xff]
      %v895 = vld [vmem:[%s3 + $0x118] sm:$0xff]
      %v896 = vld [vmem:[%s3 + $0x120] sm:$0xff]
      %v897 = vld [vmem:[%s3 + $0x128] sm:$0xff]
      %v898 = vld [vmem:[%s3 + $0x130] sm:$0xff]
      %v899 = vld [vmem:[%s3 + $0x138] sm:$0xff]
      %v900 = vld [vmem:[%s3 + $0x140] sm:$0xff]
      %v901 = vld [vmem:[%s3 + $0x148] sm:$0xff]
      %v902 = vld [vmem:[%s3 + $0x150] sm:$0xff]
      %v903 = vld [vmem:[%s3 + $0x158] sm:$0xff]
      %v904 = vld [vmem:[%s3 + $0x160] sm:$0xff]
      %v905 = vld [vmem:[%s3 + $0x168] sm:$0xff]
      %v906 = vld [vmem:[%s3 + $0x170] sm:$0xff]
      %v907 = vld [vmem:[%s3 + $0x178] sm:$0xff]
      %v908 = vld [vmem:[%s3 + $0x180] sm:$0xff]
      %v909 = vld [vmem:[%s3 + $0x188] sm:$0xff]
      %v910 = vld [vmem:[%s3 + $0x190] sm:$0xff]
      %v911 = vld [vmem:[%s3 + $0x198] sm:$0xff]
      %v912 = vld [vmem:[%s3 + $0x1a0] sm:$0xff]
      %v913 = vld [vmem:[%s3 + $0x1a8] sm:$0xff]
      %v914 = vld [vmem:[%s3 + $0x1b0] sm:$0xff]
      %v915 = vld [vmem:[%s3 + $0x1b8] sm:$0xff]
      %v916 = vld [vmem:[%s3 + $0x1c0] sm:$0xff]
      %v917 = vld [vmem:[%s3 + $0x1c8] sm:$0xff]
      %v918 = vld [vmem:[%s3 + $0x1d0] sm:$0xff]
      %v919 = vld [vmem:[%s3 + $0x1d8] sm:$0xff]
      %v920 = vld [vmem:[%s3 + $0x1e0] sm:$0xff]
      %v921 = vld [vmem:[%s3 + $0x1e8] sm:$0xff]
      %v922 = vld [vmem:[%s3 + $0x1f0] sm:$0xff]
      %v923 = vld [vmem:[%s3 + $0x1f8] sm:$0xff]
      %v924 = vld [vmem:[%s3 + $0x200] sm:$0xff]
      %v925 = vld [vmem:[%s3 + $0x208] sm:$0xff]
      %v926 = vld [vmem:[%s3 + $0x210] sm:$0xff]
      %v927 = vld [vmem:[%s3 + $0x218] sm:$0xff]
      %v928 = vld [vmem:[%s3 + $0x220] sm:$0xff]
      %v929 = vld [vmem:[%s3 + $0x228] sm:$0xff]
      %v930 = vld [vmem:[%s3 + $0x230] sm:$0xff]
      %v931 = vld [vmem:[%s3 + $0x238] sm:$0xff]
      %v932 = vld [vmem:[%s3 + $0x240] sm:$0xff]
      %v933 = vld [vmem:[%s3 + $0x248] sm:$0xff]
      %v934 = vld [vmem:[%s3 + $0x250] sm:$0xff]
      %v935 = vld [vmem:[%s3 + $0x258] sm:$0xff]
      %v936 = vld [vmem:[%s3 + $0x260] sm:$0xff]
      %v937 = vld [vmem:[%s3 + $0x268] sm:$0xff]
      %v938 = vld [vmem:[%s3 + $0x270] sm:$0xff]
      %v939 = vld [vmem:[%s3 + $0x278] sm:$0xff]
      %v940 = vld [vmem:[%s3 + $0x280] sm:$0xff]
      %v941 = vld [vmem:[%s3 + $0x288] sm:$0xff]
      %v942 = vld [vmem:[%s3 + $0x290] sm:$0xff]
      %v943 = vld [vmem:[%s3 + $0x298] sm:$0xff]
      %v944 = vld [vmem:[%s3 + $0x2a0] sm:$0xff]
      %v945 = vld [vmem:[%s3 + $0x2a8] sm:$0xff]
      %v946 = vld [vmem:[%s3 + $0x2b0] sm:$0xff]
      %v947 = vld [vmem:[%s3 + $0x2b8] sm:$0xff]
      %v948 = vld [vmem:[%s3 + $0x2c0] sm:$0xff]
      %v949 = vld [vmem:[%s3 + $0x2c8] sm:$0xff]
      %v950 = vld [vmem:[%s3 + $0x2d0] sm:$0xff]
      %v951 = vld [vmem:[%s3 + $0x2d8] sm:$0xff]
      %v952 = vld [vmem:[%s3 + $0x2e0] sm:$0xff]
      %v953 = vld [vmem:[%s3 + $0x2e8] sm:$0xff]
      %v954 = vld [vmem:[%s3 + $0x2f0] sm:$0xff]
      %v955 = vld [vmem:[%s3 + $0x2f8] sm:$0xff]
      %956 = vmatprep.subr.mxu0 0.0
      %957 = vmatpush1.msra.mxu0 %v908
      %958 = vmatprep.subr.mxu0 0.0
      %959 = vmatpush1.msra.mxu0 %v909
      %960 = vmatprep.subr.mxu0 0.0
      %961 = vmatpush1.msra.mxu0 %v910
      %962 = vmatprep.subr.mxu0 0.0
      %963 = vmatpush1.msra.mxu0 %v911
      %964 = vmatprep.subr.mxu0 0.0
      %965 = vmatpush1.msra.mxu0 %v912
      %966 = vmatprep.subr.mxu0 0.0
      %967 = vmatpush1.msra.mxu0 %v913
      %968 = vmatprep.subr.mxu0 0.0
      %969 = vmatpush1.msra.mxu0 %v914
      %970 = vmatprep.subr.mxu0 0.0
      %971 = vmatpush1.msra.mxu0 %v915
      %972 = vmatprep.subr.mxu0 0.0
      %973 = vmatpush1.msra.mxu0 %v916
      %974 = vmatprep.subr.mxu0 0.0
      %975 = vmatpush1.msra.mxu0 %v917
      %976 = vmatprep.subr.mxu0 0.0
      %977 = vmatpush1.msra.mxu0 %v918
      %978 = vmatprep.subr.mxu0 0.0
      %979 = vmatpush1.msra.mxu0 %v919
      %980 = vmatprep.subr.mxu0 0.0
      %981 = vmatpush1.msra.mxu0 %v920
      %982 = vmatprep.subr.mxu0 0.0
      %983 = vmatpush1.msra.mxu0 %v921
      %984 = vmatprep.subr.mxu0 0.0
      %985 = vmatpush1.msra.mxu0 %v922
      %986 = vmatprep.subr.mxu0 0.0
      %987 = vmatpush1.msra.mxu0 %v923
      %988 = vmatprep.subr.mxu0 0.0
      %989 = vmatpush1.msra.mxu0 %v924
      %990 = vmatprep.subr.mxu0 0.0
      %991 = vmatpush1.msra.mxu0 %v925
      %992 = vmatprep.subr.mxu0 0.0
      %993 = vmatpush1.msra.mxu0 %v926
      %994 = vmatprep.subr.mxu0 0.0
      %995 = vmatpush1.msra.mxu0 %v927
      %996 = vmatprep.subr.mxu0 0.0
      %997 = vmatpush1.msra.mxu0 %v928
      %998 = vmatprep.subr.mxu0 0.0
      %999 = vmatpush1.msra.mxu0 %v929
      %1000 = vmatprep.subr.mxu0 0.0
      %1001 = vmatpush1.msra.mxu0 %v930
      %1002 = vmatprep.subr.mxu0 0.0
      %1003 = vmatpush1.msra.mxu0 %v931
      %1004 = vmatprep.subr.mxu0 0.0
      %1005 = vmatpush1.msra.mxu0 %v932
      %1006 = vmatprep.subr.mxu0 0.0
      %1007 = vmatpush1.msra.mxu0 %v933
      %1008 = vmatprep.subr.mxu0 0.0
      %1009 = vmatpush1.msra.mxu0 %v934
      %1010 = vmatprep.subr.mxu0 0.0
      %1011 = vmatpush1.msra.mxu0 %v935
      %1012 = vmatprep.subr.mxu0 0.0
      %1013 = vmatpush1.msra.mxu0 %v936
      %1014 = vmatprep.subr.mxu0 0.0
      %1015 = vmatpush1.msra.mxu0 %v937
      %1016 = vmatprep.subr.mxu0 0.0
      %1017 = vmatpush1.msra.mxu0 %v938
      %1018 = vmatprep.subr.mxu0 0.0
      %1019 = vmatpush1.msra.mxu0 %v939
      %1020 = vmatprep.mubr.f32.mxu0 %v790
      %1021 = vmatmul.mubr.f32.gmra.mrb[0].mxu0 %v754
      %v1022 = vpop.f32.mrb[0].mxu0
      %v1023 = vadd.f32 0.0, %v1022
      %v1024 = vpop.f32.mrb[0].mxu0
      %1025 = vmatprep.mubr.f32.mxu0 %v791
      %1026 = vmatmul.mubr.f32.gmra.mrb[0].mxu0 %v755
      %v1027 = vpop.f32.mrb[0].mxu0
      %v1028 = vadd.f32 0.0, %v1027
      %v1029 = vpop.f32.mrb[0].mxu0
      %1030 = vmatprep.mubr.f32.mxu0 %v792
      %1031 = vmatmul.mubr.f32.gmra.mrb[0].mxu0 %v756
      %v1032 = vpop.f32.mrb[0].mxu0
      %v1033 = vadd.f32 0.0, %v1032
      %v1034 = vpop.f32.mrb[0].mxu0
      %1035 = vmatprep.mubr.f32.mxu0 %v793
      %1036 = vmatmul.mubr.f32.gmra.mrb[0].mxu0 %v757
      %v1037 = vpop.f32.mrb[0].mxu0
      %v1038 = vadd.f32 0.0, %v1037
      %v1039 = vpop.f32.mrb[0].mxu0
      %1040 = vmatprep.mubr.f32.mxu0 %v794
      %1041 = vmatmul.mubr.f32.gmra.mrb[0].mxu0 %v758
      %v1042 = vpop.f32.mrb[0].mxu0
      %v1043 = vadd.f32 0.0, %v1042
      %v1044 = vpop.f32.mrb[0].mxu0
      %1045 = vmatprep.mubr.f32.mxu0 %v795
      %1046 = vmatmul.mubr.f32.gmra.mrb[0].mxu0 %v759
      %v1047 = vpop.f32.mrb[0].mxu0
      %v1048 = vadd.f32 0.0, %v1047
      %v1049 = vpop.f32.mrb[0].mxu0
      %1050 = vmatprep.mubr.f32.mxu0 %v796
      %1051 = vmatmul.mubr.f32.gmra.mrb[0].mxu0 %v760
      %v1052 = vpop.f32.mrb[0].mxu0
      %v1053 = vadd.f32 0.0, %v1052
      %v1054 = vpop.f32.mrb[0].mxu0
      %1055 = vmatprep.mubr.f32.mxu0 %v797
      %1056 = vmatmul.mubr.f32.gmra.mrb[0].mxu0 %v761
      %v1057 = vpop.f32.mrb[0].mxu0
      %v1058 = vadd.f32 0.0, %v1057
      %v1059 = vpop.f32.mrb[0].mxu0
      %1060 = vmatprep.mubr.f32.mxu0 %v798
      %1061 = vmatmul.mubr.f32.gmra.mrb[0].mxu0 %v762
      %v1062 = vpop.f32.mrb[0].mxu0
      %v1063 = vadd.f32 0.0, %v1062
      %v1064 = vpop.f32.mrb[0].mxu0
      %1065 = vmatprep.mubr.f32.mxu0 %v799
      %1066 = vmatmul.mubr.f32.gmra.mrb[0].mxu0 %v763
      %v1067 = vpop.f32.mrb[0].mxu0
      %v1068 = vadd.f32 0.0, %v1067
      %v1069 = vpop.f32.mrb[0].mxu0
      %1070 = vmatprep.mubr.f32.mxu0 %v800
      %1071 = vmatmul.mubr.f32.gmra.mrb[0].mxu0 %v764
      %v1072 = vpop.f32.mrb[0].mxu0
      %v1073 = vadd.f32 0.0, %v1072
      %v1074 = vpop.f32.mrb[0].mxu0
      %1075 = vmatprep.mubr.f32.mxu0 %v801
      %1076 = vmatmul.mubr.f32.gmra.mrb[0].mxu0 %v765
      %v1077 = vpop.f32.mrb[0].mxu0
      %v1078 = vadd.f32 0.0, %v1077
      %v1079 = vpop.f32.mrb[0].mxu0
      %1080 = vmatprep.mubr.f32.mxu0 %v802
      %1081 = vmatmul.mubr.f32.gmra.mrb[0].mxu0 %v766
      %v1082 = vpop.f32.mrb[0].mxu0
      %v1083 = vadd.f32 0.0, %v1082
      %v1084 = vpop.f32.mrb[0].mxu0
      %1085 = vmatprep.mubr.f32.mxu0 %v803
      %1086 = vmatmul.mubr.f32.gmra.mrb[0].mxu0 %v767
      %v1087 = vpop.f32.mrb[0].mxu0
      %v1088 = vadd.f32 0.0, %v1087
      %v1089 = vpop.f32.mrb[0].mxu0
      %1090 = vmatprep.mubr.f32.mxu0 %v804
      %1091 = vmatmul.mubr.f32.gmra.mrb[0].mxu0 %v768
      %v1092 = vpop.f32.mrb[0].mxu0
      %v1093 = vadd.f32 0.0, %v1092
      %v1094 = vpop.f32.mrb[0].mxu0
      %1095 = vmatprep.mubr.f32.mxu0 %v805
      %1096 = vmatmul.mubr.f32.gmra.mrb[0].mxu0 %v769
      %v1097 = vpop.f32.mrb[0].mxu0
      %v1098 = vadd.f32 0.0, %v1097
      %v1099 = vpop.f32.mrb[0].mxu0
      %1100 = vmatprep.mubr.f32.mxu0 %v806
      %1101 = vmatmul.mubr.f32.gmra.mrb[0].mxu0 %v770
      %v1102 = vpop.f32.mrb[0].mxu0
      %v1103 = vadd.f32 0.0, %v1102
      %v1104 = vpop.f32.mrb[0].mxu0
      %1105 = vmatprep.mubr.f32.mxu0 %v807
      %1106 = vmatmul.mubr.f32.gmra.mrb[0].mxu0 %v771
      %v1107 = vpop.f32.mrb[0].mxu0
      %v1108 = vadd.f32 0.0, %v1107
      %v1109 = vpop.f32.mrb[0].mxu0
      %1110 = vmatprep.mubr.f32.mxu0 %v808
      %1111 = vmatmul.mubr.f32.gmra.mrb[0].mxu0 %v772
      %v1112 = vpop.f32.mrb[0].mxu0
      %v1113 = vadd.f32 0.0, %v1112
      %v1114 = vpop.f32.mrb[0].mxu0
      %1115 = vmatprep.mubr.f32.mxu0 %v809
      %1116 = vmatmul.mubr.f32.gmra.mrb[0].mxu0 %v773
      %v1117 = vpop.f32.mrb[0].mxu0
      %v1118 = vadd.f32 0.0, %v1117
      %v1119 = vpop.f32.mrb[0].mxu0
      %1120 = vmatprep.mubr.f32.mxu0 %v810
      %1121 = vmatmul.mubr.f32.gmra.mrb[0].mxu0 %v774
      %v1122 = vpop.f32.mrb[0].mxu0
      %v1123 = vadd.f32 0.0, %v1122
      %v1124 = vpop.f32.mrb[0].mxu0
      %1125 = vmatprep.mubr.f32.mxu0 %v811
      %1126 = vmatmul.mubr.f32.gmra.mrb[0].mxu0 %v775
      %v1127 = vpop.f32.mrb[0].mxu0
      %v1128 = vadd.f32 0.0, %v1127
      %v1129 = vpop.f32.mrb[0].mxu0
      %1130 = vmatprep.mubr.f32.mxu0 %v812
      %1131 = vmatmul.mubr.f32.gmra.mrb[0].mxu0 %v776
      %v1132 = vpop.f32.mrb[0].mxu0
      %v1133 = vadd.f32 0.0, %v1132
      %v1134 = vpop.f32.mrb[0].mxu0
      %1135 = vmatprep.mubr.f32.mxu0 %v813
      %1136 = vmatmul.mubr.f32.gmra.mrb[0].mxu0 %v777
      %v1137 = vpop.f32.mrb[0].mxu0
      %v1138 = vadd.f32 0.0, %v1137
      %v1139 = vpop.f32.mrb[0].mxu0
      %1140 = vmatprep.mubr.f32.mxu0 %v814
      %1141 = vmatmul.mubr.f32.gmra.mrb[0].mxu0 %v778
      %v1142 = vpop.f32.mrb[0].mxu0
      %v1143 = vadd.f32 0.0, %v1142
      %v1144 = vpop.f32.mrb[0].mxu0
      %1145 = vmatprep.mubr.f32.mxu0 %v815
      %1146 = vmatmul.mubr.f32.gmra.mrb[0].mxu0 %v779
      %v1147 = vpop.f32.mrb[0].mxu0
      %v1148 = vadd.f32 0.0, %v1147
      %v1149 = vpop.f32.mrb[0].mxu0
      %1150 = vmatprep.mubr.f32.mxu0 %v816
      %1151 = vmatmul.mubr.f32.gmra.mrb[0].mxu0 %v780
      %v1152 = vpop.f32.mrb[0].mxu0
      %v1153 = vadd.f32 0.0, %v1152
      %v1154 = vpop.f32.mrb[0].mxu0
      %1155 = vmatprep.mubr.f32.mxu0 %v817
      %1156 = vmatmul.mubr.f32.gmra.mrb[0].mxu0 %v781
      %v1157 = vpop.f32.mrb[0].mxu0
      %v1158 = vadd.f32 0.0, %v1157
      %v1159 = vpop.f32.mrb[0].mxu0
      %1160 = vmatprep.mubr.f32.mxu0 %v818
      %1161 = vmatmul.mubr.f32.gmra.mrb[0].mxu0 %v782
      %v1162 = vpop.f32.mrb[0].mxu0
      %v1163 = vadd.f32 0.0, %v1162
      %v1164 = vpop.f32.mrb[0].mxu0
      %1165 = vmatprep.mubr.f32.mxu0 %v819
      %1166 = vmatmul.mubr.f32.gmra.mrb[0].mxu0 %v783
      %v1167 = vpop.f32.mrb[0].mxu0
      %v1168 = vadd.f32 0.0, %v1167
      %v1169 = vpop.f32.mrb[0].mxu0
      %1170 = vmatprep.mubr.f32.mxu0 %v820
      %1171 = vmatmul.mubr.f32.gmra.mrb[0].mxu0 %v784
      %v1172 = vpop.f32.mrb[0].mxu0
      %v1173 = vadd.f32 0.0, %v1172
      %v1174 = vpop.f32.mrb[0].mxu0
      %1175 = vmatprep.mubr.f32.mxu0 %v821
      %1176 = vmatmul.mubr.f32.gmra.mrb[0].mxu0 %v785
      %v1177 = vpop.f32.mrb[0].mxu0
      %v1178 = vadd.f32 0.0, %v1177
      %v1179 = vpop.f32.mrb[0].mxu0
      %1180 = vdwg.mxu0
      %1181 = vmatprep.subr.mxu0 0.0
      %1182 = vmatpush1.msra.mxu0 %v940
      %1183 = vmatprep.subr.mxu0 0.0
      %1184 = vmatpush1.msra.mxu0 %v941
      %1185 = vmatprep.subr.mxu0 0.0
      %1186 = vmatpush1.msra.mxu0 %v942
      %1187 = vmatprep.subr.mxu0 0.0
      %1188 = vmatpush1.msra.mxu0 %v943
      %1189 = vmatprep.subr.mxu0 0.0
      %1190 = vmatpush1.msra.mxu0 %v944
      %1191 = vmatprep.subr.mxu0 0.0
      %1192 = vmatpush1.msra.mxu0 %v945
      %1193 = vmatprep.subr.mxu0 0.0
      %1194 = vmatpush1.msra.mxu0 %v946
      %1195 = vmatprep.subr.mxu0 0.0
      %1196 = vmatpush1.msra.mxu0 %v947
      %1197 = vmatprep.subr.mxu0 0.0
      %1198 = vmatpush1.msra.mxu0 %v948
      %1199 = vmatprep.subr.mxu0 0.0
      %1200 = vmatpush1.msra.mxu0 %v949
      %1201 = vmatprep.subr.mxu0 0.0
      %1202 = vmatpush1.msra.mxu0 %v950
      %1203 = vmatprep.subr.mxu0 0.0
      %1204 = vmatpush1.msra.mxu0 %v951
      %1205 = vmatprep.subr.mxu0 0.0
      %1206 = vmatpush1.msra.mxu0 %v952
      %1207 = vmatprep.subr.mxu0 0.0
      %1208 = vmatpush1.msra.mxu0 %v953
      %1209 = vmatprep.subr.mxu0 0.0
      %1210 = vmatpush1.msra.mxu0 %v954
      %1211 = vmatprep.subr.mxu0 0.0
      %1212 = vmatpush1.msra.mxu0 %v955
      %1213 = vmatprep.subr.mxu0 0.0
      %1214 = vmatpush1.msra.mxu0 0.0
      %1215 = vmatprep.subr.mxu0 0.0
      %1216 = vmatpush1.msra.mxu0 0.0
      %1217 = vmatprep.subr.mxu0 0.0
      %1218 = vmatpush1.msra.mxu0 0.0
      %1219 = vmatprep.subr.mxu0 0.0
      %1220 = vmatpush1.msra.mxu0 0.0
      %1221 = vmatprep.subr.mxu0 0.0
      %1222 = vmatpush1.msra.mxu0 0.0
      %1223 = vmatprep.subr.mxu0 0.0
      %1224 = vmatpush1.msra.mxu0 0.0
      %1225 = vmatprep.subr.mxu0 0.0
      %1226 = vmatpush1.msra.mxu0 0.0
      %1227 = vmatprep.subr.mxu0 0.0
      %1228 = vmatpush1.msra.mxu0 0.0
      %1229 = vmatprep.subr.mxu0 0.0
      %1230 = vmatpush1.msra.mxu0 0.0
      %1231 = vmatprep.subr.mxu0 0.0
      %1232 = vmatpush1.msra.mxu0 0.0
      %1233 = vmatprep.subr.mxu0 0.0
      %1234 = vmatpush1.msra.mxu0 0.0
      %1235 = vmatprep.subr.mxu0 0.0
      %1236 = vmatpush1.msra.mxu0 0.0
      %1237 = vmatprep.subr.mxu0 0.0
      %1238 = vmatpush1.msra.mxu0 0.0
      %1239 = vmatprep.subr.mxu0 0.0
      %1240 = vmatpush1.msra.mxu0 0.0
      %1241 = vmatprep.subr.mxu0 0.0
      %1242 = vmatpush1.msra.mxu0 0.0
      %1243 = vmatprep.subr.mxu0 0.0
      %1244 = vmatpush1.msra.mxu0 0.0
      %1245 = vmatprep.mubr.f32.mxu0 0.0
      %1246 = vmatmul.mubr.f32.gmra.mrb[0].mxu0 %v826
      %v1247 = vpop.f32.mrb[0].mxu0
      %v1248 = vadd.f32 %v1023, %v1247
      %v1249 = vpop.f32.mrb[0].mxu0
      %1250 = vmatprep.mubr.f32.mxu0 0.0
      %1251 = vmatmul.mubr.f32.gmra.mrb[0].mxu0 %v827
      %v1252 = vpop.f32.mrb[0].mxu0
      %v1253 = vadd.f32 %v1028, %v1252
      %v1254 = vpop.f32.mrb[0].mxu0
      %1255 = vmatprep.mubr.f32.mxu0 0.0
      %1256 = vmatmul.mubr.f32.gmra.mrb[0].mxu0 %v828
      %v1257 = vpop.f32.mrb[0].mxu0
      %v1258 = vadd.f32 %v1033, %v1257
      %v1259 = vpop.f32.mrb[0].mxu0
      %1260 = vmatprep.mubr.f32.mxu0 0.0
      %1261 = vmatmul.mubr.f32.gmra.mrb[0].mxu0 %v829
      %v1262 = vpop.f32.mrb[0].mxu0
      %v1263 = vadd.f32 %v1038, %v1262
      %v1264 = vpop.f32.mrb[0].mxu0
      %1265 = vmatprep.mubr.f32.mxu0 0.0
      %1266 = vmatmul.mubr.f32.gmra.mrb[0].mxu0 %v830
      %v1267 = vpop.f32.mrb[0].mxu0
      %v1268 = vadd.f32 %v1043, %v1267
      %v1269 = vpop.f32.mrb[0].mxu0
      %1270 = vmatprep.mubr.f32.mxu0 0.0
      %1271 = vmatmul.mubr.f32.gmra.mrb[0].mxu0 %v831
      %v1272 = vpop.f32.mrb[0].mxu0
      %v1273 = vadd.f32 %v1048, %v1272
      %v1274 = vpop.f32.mrb[0].mxu0
      %1275 = vmatprep.mubr.f32.mxu0 0.0
      %1276 = vmatmul.mubr.f32.gmra.mrb[0].mxu0 %v832
      %v1277 = vpop.f32.mrb[0].mxu0
      %v1278 = vadd.f32 %v1053, %v1277
      %v1279 = vpop.f32.mrb[0].mxu0
      %1280 = vmatprep.mubr.f32.mxu0 0.0
      %1281 = vmatmul.mubr.f32.gmra.mrb[0].mxu0 %v833
      %v1282 = vpop.f32.mrb[0].mxu0
      %v1283 = vadd.f32 %v1058, %v1282
      %v1284 = vpop.f32.mrb[0].mxu0
      %1285 = vmatprep.mubr.f32.mxu0 0.0
      %1286 = vmatmul.mubr.f32.gmra.mrb[0].mxu0 %v834
      %v1287 = vpop.f32.mrb[0].mxu0
      %v1288 = vadd.f32 %v1063, %v1287
      %v1289 = vpop.f32.mrb[0].mxu0
      %1290 = vmatprep.mubr.f32.mxu0 0.0
      %1291 = vmatmul.mubr.f32.gmra.mrb[0].mxu0 %v835
      %v1292 = vpop.f32.mrb[0].mxu0
      %v1293 = vadd.f32 %v1068, %v1292
      %v1294 = vpop.f32.mrb[0].mxu0
      %1295 = vmatprep.mubr.f32.mxu0 0.0
      %1296 = vmatmul.mubr.f32.gmra.mrb[0].mxu0 %v836
      %v1297 = vpop.f32.mrb[0].mxu0
      %v1298 = vadd.f32 %v1073, %v1297
      %v1299 = vpop.f32.mrb[0].mxu0
      %1300 = vmatprep.mubr.f32.mxu0 0.0
      %1301 = vmatmul.mubr.f32.gmra.mrb[0].mxu0 %v837
      %v1302 = vpop.f32.mrb[0].mxu0
      %v1303 = vadd.f32 %v1078, %v1302
      %v1304 = vpop.f32.mrb[0].mxu0
      %1305 = vmatprep.mubr.f32.mxu0 0.0
      %1306 = vmatmul.mubr.f32.gmra.mrb[0].mxu0 %v838
      %v1307 = vpop.f32.mrb[0].mxu0
      %v1308 = vadd.f32 %v1083, %v1307
      %v1309 = vpop.f32.mrb[0].mxu0
      %1310 = vmatprep.mubr.f32.mxu0 0.0
      %1311 = vmatmul.mubr.f32.gmra.mrb[0].mxu0 %v839
      %v1312 = vpop.f32.mrb[0].mxu0
      %v1313 = vadd.f32 %v1088, %v1312
      %v1314 = vpop.f32.mrb[0].mxu0
      %1315 = vmatprep.mubr.f32.mxu0 0.0
      %1316 = vmatmul.mubr.f32.gmra.mrb[0].mxu0 %v840
      %v1317 = vpop.f32.mrb[0].mxu0
      %v1318 = vadd.f32 %v1093, %v1317
      %v1319 = vpop.f32.mrb[0].mxu0
      %1320 = vmatprep.mubr.f32.mxu0 0.0
      %1321 = vmatmul.mubr.f32.gmra.mrb[0].mxu0 %v841
      %v1322 = vpop.f32.mrb[0].mxu0
      %v1323 = vadd.f32 %v1098, %v1322
      %v1324 = vpop.f32.mrb[0].mxu0
      %1325 = vmatprep.mubr.f32.mxu0 0.0
      %1326 = vmatmul.mubr.f32.gmra.mrb[0].mxu0 %v842
      %v1327 = vpop.f32.mrb[0].mxu0
      %v1328 = vadd.f32 %v1103, %v1327
      %v1329 = vpop.f32.mrb[0].mxu0
      %1330 = vmatprep.mubr.f32.mxu0 0.0
      %1331 = vmatmul.mubr.f32.gmra.mrb[0].mxu0 %v843
      %v1332 = vpop.f32.mrb[0].mxu0
      %v1333 = vadd.f32 %v1108, %v1332
      %v1334 = vpop.f32.mrb[0].mxu0
      %1335 = vmatprep.mubr.f32.mxu0 0.0
      %1336 = vmatmul.mubr.f32.gmra.mrb[0].mxu0 %v844
      %v1337 = vpop.f32.mrb[0].mxu0
      %v1338 = vadd.f32 %v1113, %v1337
      %v1339 = vpop.f32.mrb[0].mxu0
      %1340 = vmatprep.mubr.f32.mxu0 0.0
      %1341 = vmatmul.mubr.f32.gmra.mrb[0].mxu0 %v845
      %v1342 = vpop.f32.mrb[0].mxu0
      %v1343 = vadd.f32 %v1118, %v1342
      %v1344 = vpop.f32.mrb[0].mxu0
      %1345 = vmatprep.mubr.f32.mxu0 0.0
      %1346 = vmatmul.mubr.f32.gmra.mrb[0].mxu0 %v846
      %v1347 = vpop.f32.mrb[0].mxu0
      %v1348 = vadd.f32 %v1123, %v1347
      %v1349 = vpop.f32.mrb[0].mxu0
      %1350 = vmatprep.mubr.f32.mxu0 0.0
      %1351 = vmatmul.mubr.f32.gmra.mrb[0].mxu0 %v847
      %v1352 = vpop.f32.mrb[0].mxu0
      %v1353 = vadd.f32 %v1128, %v1352
      %v1354 = vpop.f32.mrb[0].mxu0
      %1355 = vmatprep.mubr.f32.mxu0 0.0
      %1356 = vmatmul.mubr.f32.gmra.mrb[0].mxu0 %v848
      %v1357 = vpop.f32.mrb[0].mxu0
      %v1358 = vadd.f32 %v1133, %v1357
      %v1359 = vpop.f32.mrb[0].mxu0
      %1360 = vmatprep.mubr.f32.mxu0 0.0
      %1361 = vmatmul.mubr.f32.gmra.mrb[0].mxu0 %v849
      %v1362 = vpop.f32.mrb[0].mxu0
      %v1363 = vadd.f32 %v1138, %v1362
      %v1364 = vpop.f32.mrb[0].mxu0
      %1365 = vmatprep.mubr.f32.mxu0 0.0
      %1366 = vmatmul.mubr.f32.gmra.mrb[0].mxu0 %v850
      %v1367 = vpop.f32.mrb[0].mxu0
      %v1368 = vadd.f32 %v1143, %v1367
      %v1369 = vpop.f32.mrb[0].mxu0
      %1370 = vmatprep.mubr.f32.mxu0 0.0
      %1371 = vmatmul.mubr.f32.gmra.mrb[0].mxu0 %v851
      %v1372 = vpop.f32.mrb[0].mxu0
      %v1373 = vadd.f32 %v1148, %v1372
      %v1374 = vpop.f32.mrb[0].mxu0
      %1375 = vmatprep.mubr.f32.mxu0 0.0
      %1376 = vmatmul.mubr.f32.gmra.mrb[0].mxu0 %v852
      %v1377 = vpop.f32.mrb[0].mxu0
      %v1378 = vadd.f32 %v1153, %v1377
      %v1379 = vpop.f32.mrb[0].mxu0
      %1380 = vmatprep.mubr.f32.mxu0 0.0
      %1381 = vmatmul.mubr.f32.gmra.mrb[0].mxu0 %v853
      %v1382 = vpop.f32.mrb[0].mxu0
      %v1383 = vadd.f32 %v1158, %v1382
      %v1384 = vpop.f32.mrb[0].mxu0
      %1385 = vmatprep.mubr.f32.mxu0 0.0
      %1386 = vmatmul.mubr.f32.gmra.mrb[0].mxu0 %v854
      %v1387 = vpop.f32.mrb[0].mxu0
      %v1388 = vadd.f32 %v1163, %v1387
      %v1389 = vpop.f32.mrb[0].mxu0
      %1390 = vmatprep.mubr.f32.mxu0 0.0
      %1391 = vmatmul.mubr.f32.gmra.mrb[0].mxu0 %v855
      %v1392 = vpop.f32.mrb[0].mxu0
      %v1393 = vadd.f32 %v1168, %v1392
      %v1394 = vpop.f32.mrb[0].mxu0
      %1395 = vmatprep.mubr.f32.mxu0 0.0
      %1396 = vmatmul.mubr.f32.gmra.mrb[0].mxu0 %v856
      %v1397 = vpop.f32.mrb[0].mxu0
      %v1398 = vadd.f32 %v1173, %v1397
      %v1399 = vpop.f32.mrb[0].mxu0
      %1400 = vmatprep.mubr.f32.mxu0 0.0
      %1401 = vmatmul.mubr.f32.gmra.mrb[0].mxu0 %v857
      %v1402 = vpop.f32.mrb[0].mxu0
      %v1403 = vadd.f32 %v1178, %v1402
      %v1404 = vpop.f32.mrb[0].mxu0
      %1405 = vdwg.mxu0
      %1406 = vmatprep.subr.mxu0 0.0
      %1407 = vmatpush1.msra.mxu0 %v860
      %1408 = vmatprep.subr.mxu0 0.0
      %1409 = vmatpush1.msra.mxu0 %v861
      %1410 = vmatprep.subr.mxu0 0.0
      %1411 = vmatpush1.msra.mxu0 %v862
      %1412 = vmatprep.subr.mxu0 0.0
      %1413 = vmatpush1.msra.mxu0 %v863
      %1414 = vmatprep.subr.mxu0 0.0
      %1415 = vmatpush1.msra.mxu0 %v864
      %1416 = vmatprep.subr.mxu0 0.0
      %1417 = vmatpush1.msra.mxu0 %v865
      %1418 = vmatprep.subr.mxu0 0.0
      %1419 = vmatpush1.msra.mxu0 %v866
      %1420 = vmatprep.subr.mxu0 0.0
      %1421 = vmatpush1.msra.mxu0 %v867
      %1422 = vmatprep.subr.mxu0 0.0
      %1423 = vmatpush1.msra.mxu0 %v868
      %1424 = vmatprep.subr.mxu0 0.0
      %1425 = vmatpush1.msra.mxu0 %v869
      %1426 = vmatprep.subr.mxu0 0.0
      %1427 = vmatpush1.msra.mxu0 %v870
      %1428 = vmatprep.subr.mxu0 0.0
      %1429 = vmatpush1.msra.mxu0 %v871
      %1430 = vmatprep.subr.mxu0 0.0
      %1431 = vmatpush1.msra.mxu0 %v872
      %1432 = vmatprep.subr.mxu0 0.0
      %1433 = vmatpush1.msra.mxu0 %v873
      %1434 = vmatprep.subr.mxu0 0.0
      %1435 = vmatpush1.msra.mxu0 %v874
      %1436 = vmatprep.subr.mxu0 0.0
      %1437 = vmatpush1.msra.mxu0 %v875
      %1438 = vmatprep.subr.mxu0 0.0
      %1439 = vmatpush1.msra.mxu0 %v876
      %1440 = vmatprep.subr.mxu0 0.0
      %1441 = vmatpush1.msra.mxu0 %v877
      %1442 = vmatprep.subr.mxu0 0.0
      %1443 = vmatpush1.msra.mxu0 %v878
      %1444 = vmatprep.subr.mxu0 0.0
      %1445 = vmatpush1.msra.mxu0 %v879
      %1446 = vmatprep.subr.mxu0 0.0
      %1447 = vmatpush1.msra.mxu0 %v880
      %1448 = vmatprep.subr.mxu0 0.0
      %1449 = vmatpush1.msra.mxu0 %v881
      %1450 = vmatprep.subr.mxu0 0.0
      %1451 = vmatpush1.msra.mxu0 %v882
      %1452 = vmatprep.subr.mxu0 0.0
      %1453 = vmatpush1.msra.mxu0 %v883
      %1454 = vmatprep.subr.mxu0 0.0
      %1455 = vmatpush1.msra.mxu0 %v884
      %1456 = vmatprep.subr.mxu0 0.0
      %1457 = vmatpush1.msra.mxu0 %v885
      %1458 = vmatprep.subr.mxu0 0.0
      %1459 = vmatpush1.msra.mxu0 %v886
      %1460 = vmatprep.subr.mxu0 0.0
      %1461 = vmatpush1.msra.mxu0 %v887
      %1462 = vmatprep.subr.mxu0 0.0
      %1463 = vmatpush1.msra.mxu0 %v888
      %1464 = vmatprep.subr.mxu0 0.0
      %1465 = vmatpush1.msra.mxu0 %v889
      %1466 = vmatprep.subr.mxu0 0.0
      %1467 = vmatpush1.msra.mxu0 %v890
      %1468 = vmatprep.subr.mxu0 0.0
      %1469 = vmatpush1.msra.mxu0 %v891
      %1470 = vmatprep.mubr.f32.mxu0 %v788
      %1471 = vmatmul.mubr.f32.gmra.mrb[0].mxu0 %v752
      %v1472 = vpop.f32.mrb[0].mxu0
      %v1473 = vadd.f32 %v1248, %v1472
      %v1474 = vpop.f32.mrb[0].mxu0
      %1475 = vmatprep.mubr.f32.mxu0 %v789
      %1476 = vmatmul.mubr.f32.gmra.mrb[0].mxu0 %v753
      %v1477 = vpop.f32.mrb[0].mxu0
      %v1478 = vadd.f32 %v1253, %v1477
      %v1479 = vpop.f32.mrb[0].mxu0
      %1480 = vmatprep.mubr.f32.mxu0 %v790
      %1481 = vmatmul.mubr.f32.gmra.mrb[0].mxu0 %v754
      %v1482 = vpop.f32.mrb[0].mxu0
      %v1483 = vadd.f32 %v1258, %v1482
      %v1484 = vpop.f32.mrb[0].mxu0
      %1485 = vmatprep.mubr.f32.mxu0 %v791
      %1486 = vmatmul.mubr.f32.gmra.mrb[0].mxu0 %v755
      %v1487 = vpop.f32.mrb[0].mxu0
      %v1488 = vadd.f32 %v1263, %v1487
      %v1489 = vpop.f32.mrb[0].mxu0
      %1490 = vmatprep.mubr.f32.mxu0 %v792
      %1491 = vmatmul.mubr.f32.gmra.mrb[0].mxu0 %v756
      %v1492 = vpop.f32.mrb[0].mxu0
      %v1493 = vadd.f32 %v1268, %v1492
      %v1494 = vpop.f32.mrb[0].mxu0
      %1495 = vmatprep.mubr.f32.mxu0 %v793
      %1496 = vmatmul.mubr.f32.gmra.mrb[0].mxu0 %v757
      %v1497 = vpop.f32.mrb[0].mxu0
      %v1498 = vadd.f32 %v1273, %v1497
      %v1499 = vpop.f32.mrb[0].mxu0
      %1500 = vmatprep.mubr.f32.mxu0 %v794
      %1501 = vmatmul.mubr.f32.gmra.mrb[0].mxu0 %v758
      %v1502 = vpop.f32.mrb[0].mxu0
      %v1503 = vadd.f32 %v1278, %v1502
      %v1504 = vpop.f32.mrb[0].mxu0
      %1505 = vmatprep.mubr.f32.mxu0 %v795
      %1506 = vmatmul.mubr.f32.gmra.mrb[0].mxu0 %v759
      %v1507 = vpop.f32.mrb[0].mxu0
      %v1508 = vadd.f32 %v1283, %v1507
      %v1509 = vpop.f32.mrb[0].mxu0
      %1510 = vmatprep.mubr.f32.mxu0 %v796
      %1511 = vmatmul.mubr.f32.gmra.mrb[0].mxu0 %v760
      %v1512 = vpop.f32.mrb[0].mxu0
      %v1513 = vadd.f32 %v1288, %v1512
      %v1514 = vpop.f32.mrb[0].mxu0
      %1515 = vmatprep.mubr.f32.mxu0 %v797
      %1516 = vmatmul.mubr.f32.gmra.mrb[0].mxu0 %v761
      %v1517 = vpop.f32.mrb[0].mxu0
      %v1518 = vadd.f32 %v1293, %v1517
      %v1519 = vpop.f32.mrb[0].mxu0
      %1520 = vmatprep.mubr.f32.mxu0 %v798
      %1521 = vmatmul.mubr.f32.gmra.mrb[0].mxu0 %v762
      %v1522 = vpop.f32.mrb[0].mxu0
      %v1523 = vadd.f32 %v1298, %v1522
      %v1524 = vpop.f32.mrb[0].mxu0
      %1525 = vmatprep.mubr.f32.mxu0 %v799
      %1526 = vmatmul.mubr.f32.gmra.mrb[0].mxu0 %v763
      %v1527 = vpop.f32.mrb[0].mxu0
      %v1528 = vadd.f32 %v1303, %v1527
      %v1529 = vpop.f32.mrb[0].mxu0
      %1530 = vmatprep.mubr.f32.mxu0 %v800
      %1531 = vmatmul.mubr.f32.gmra.mrb[0].mxu0 %v764
      %v1532 = vpop.f32.mrb[0].mxu0
      %v1533 = vadd.f32 %v1308, %v1532
      %v1534 = vpop.f32.mrb[0].mxu0
      %1535 = vmatprep.mubr.f32.mxu0 %v801
      %1536 = vmatmul.mubr.f32.gmra.mrb[0].mxu0 %v765
      %v1537 = vpop.f32.mrb[0].mxu0
      %v1538 = vadd.f32 %v1313, %v1537
      %v1539 = vpop.f32.mrb[0].mxu0
      %1540 = vmatprep.mubr.f32.mxu0 %v802
      %1541 = vmatmul.mubr.f32.gmra.mrb[0].mxu0 %v766
      %v1542 = vpop.f32.mrb[0].mxu0
      %v1543 = vadd.f32 %v1318, %v1542
      %v1544 = vpop.f32.mrb[0].mxu0
      %1545 = vmatprep.mubr.f32.mxu0 %v803
      %1546 = vmatmul.mubr.f32.gmra.mrb[0].mxu0 %v767
      %v1547 = vpop.f32.mrb[0].mxu0
      %v1548 = vadd.f32 %v1323, %v1547
      %v1549 = vpop.f32.mrb[0].mxu0
      %1550 = vmatprep.mubr.f32.mxu0 %v804
      %1551 = vmatmul.mubr.f32.gmra.mrb[0].mxu0 %v768
      %v1552 = vpop.f32.mrb[0].mxu0
      %v1553 = vadd.f32 %v1328, %v1552
      %v1554 = vpop.f32.mrb[0].mxu0
      %1555 = vmatprep.mubr.f32.mxu0 %v805
      %1556 = vmatmul.mubr.f32.gmra.mrb[0].mxu0 %v769
      %v1557 = vpop.f32.mrb[0].mxu0
      %v1558 = vadd.f32 %v1333, %v1557
      %v1559 = vpop.f32.mrb[0].mxu0
      %1560 = vmatprep.mubr.f32.mxu0 %v806
      %1561 = vmatmul.mubr.f32.gmra.mrb[0].mxu0 %v770
      %v1562 = vpop.f32.mrb[0].mxu0
      %v1563 = vadd.f32 %v1338, %v1562
      %v1564 = vpop.f32.mrb[0].mxu0
      %1565 = vmatprep.mubr.f32.mxu0 %v807
      %1566 = vmatmul.mubr.f32.gmra.mrb[0].mxu0 %v771
      %v1567 = vpop.f32.mrb[0].mxu0
      %v1568 = vadd.f32 %v1343, %v1567
      %v1569 = vpop.f32.mrb[0].mxu0
      %1570 = vmatprep.mubr.f32.mxu0 %v808
      %1571 = vmatmul.mubr.f32.gmra.mrb[0].mxu0 %v772
      %v1572 = vpop.f32.mrb[0].mxu0
      %v1573 = vadd.f32 %v1348, %v1572
      %v1574 = vpop.f32.mrb[0].mxu0
      %1575 = vmatprep.mubr.f32.mxu0 %v809
      %1576 = vmatmul.mubr.f32.gmra.mrb[0].mxu0 %v773
      %v1577 = vpop.f32.mrb[0].mxu0
      %v1578 = vadd.f32 %v1353, %v1577
      %v1579 = vpop.f32.mrb[0].mxu0
      %1580 = vmatprep.mubr.f32.mxu0 %v810
      %1581 = vmatmul.mubr.f32.gmra.mrb[0].mxu0 %v774
      %v1582 = vpop.f32.mrb[0].mxu0
      %v1583 = vadd.f32 %v1358, %v1582
      %v1584 = vpop.f32.mrb[0].mxu0
      %1585 = vmatprep.mubr.f32.mxu0 %v811
      %1586 = vmatmul.mubr.f32.gmra.mrb[0].mxu0 %v775
      %v1587 = vpop.f32.mrb[0].mxu0
      %v1588 = vadd.f32 %v1363, %v1587
      %v1589 = vpop.f32.mrb[0].mxu0
      %1590 = vmatprep.mubr.f32.mxu0 %v812
      %1591 = vmatmul.mubr.f32.gmra.mrb[0].mxu0 %v776
      %v1592 = vpop.f32.mrb[0].mxu0
      %v1593 = vadd.f32 %v1368, %v1592
      %v1594 = vpop.f32.mrb[0].mxu0
      %1595 = vmatprep.mubr.f32.mxu0 %v813
      %1596 = vmatmul.mubr.f32.gmra.mrb[0].mxu0 %v777
      %v1597 = vpop.f32.mrb[0].mxu0
      %v1598 = vadd.f32 %v1373, %v1597
      %v1599 = vpop.f32.mrb[0].mxu0
      %1600 = vmatprep.mubr.f32.mxu0 %v814
      %1601 = vmatmul.mubr.f32.gmra.mrb[0].mxu0 %v778
      %v1602 = vpop.f32.mrb[0].mxu0
      %v1603 = vadd.f32 %v1378, %v1602
      %v1604 = vpop.f32.mrb[0].mxu0
      %1605 = vmatprep.mubr.f32.mxu0 %v815
      %1606 = vmatmul.mubr.f32.gmra.mrb[0].mxu0 %v779
      %v1607 = vpop.f32.mrb[0].mxu0
      %v1608 = vadd.f32 %v1383, %v1607
      %v1609 = vpop.f32.mrb[0].mxu0
      %1610 = vmatprep.mubr.f32.mxu0 %v816
      %1611 = vmatmul.mubr.f32.gmra.mrb[0].mxu0 %v780
      %v1612 = vpop.f32.mrb[0].mxu0
      %v1613 = vadd.f32 %v1388, %v1612
      %v1614 = vpop.f32.mrb[0].mxu0
      %1615 = vmatprep.mubr.f32.mxu0 %v817
      %1616 = vmatmul.mubr.f32.gmra.mrb[0].mxu0 %v781
      %v1617 = vpop.f32.mrb[0].mxu0
      %v1618 = vadd.f32 %v1393, %v1617
      %v1619 = vpop.f32.mrb[0].mxu0
      %1620 = vmatprep.mubr.f32.mxu0 %v818
      %1621 = vmatmul.mubr.f32.gmra.mrb[0].mxu0 %v782
      %v1622 = vpop.f32.mrb[0].mxu0
      %v1623 = vadd.f32 %v1398, %v1622
      %v1624 = vpop.f32.mrb[0].mxu0
      %1625 = vmatprep.mubr.f32.mxu0 %v819
      %1626 = vmatmul.mubr.f32.gmra.mrb[0].mxu0 %v783
      %v1627 = vpop.f32.mrb[0].mxu0
      %v1628 = vadd.f32 %v1403, %v1627
      %v1629 = vpop.f32.mrb[0].mxu0
      %1630 = vdwg.mxu0
      %1631 = vmatprep.subr.mxu0 0.0
      %1632 = vmatpush1.msra.mxu0 %v892
      %1633 = vmatprep.subr.mxu0 0.0
      %1634 = vmatpush1.msra.mxu0 %v893
      %1635 = vmatprep.subr.mxu0 0.0
      %1636 = vmatpush1.msra.mxu0 %v894
      %1637 = vmatprep.subr.mxu0 0.0
      %1638 = vmatpush1.msra.mxu0 %v895
      %1639 = vmatprep.subr.mxu0 0.0
      %1640 = vmatpush1.msra.mxu0 %v896
      %1641 = vmatprep.subr.mxu0 0.0
      %1642 = vmatpush1.msra.mxu0 %v897
      %1643 = vmatprep.subr.mxu0 0.0
      %1644 = vmatpush1.msra.mxu0 %v898
      %1645 = vmatprep.subr.mxu0 0.0
      %1646 = vmatpush1.msra.mxu0 %v899
      %1647 = vmatprep.subr.mxu0 0.0
      %1648 = vmatpush1.msra.mxu0 %v900
      %1649 = vmatprep.subr.mxu0 0.0
      %1650 = vmatpush1.msra.mxu0 %v901
      %1651 = vmatprep.subr.mxu0 0.0
      %1652 = vmatpush1.msra.mxu0 %v902
      %1653 = vmatprep.subr.mxu0 0.0
      %1654 = vmatpush1.msra.mxu0 %v903
      %1655 = vmatprep.subr.mxu0 0.0
      %1656 = vmatpush1.msra.mxu0 %v904
      %1657 = vmatprep.subr.mxu0 0.0
      %1658 = vmatpush1.msra.mxu0 %v905
      %1659 = vmatprep.subr.mxu0 0.0
      %1660 = vmatpush1.msra.mxu0 %v906
      %1661 = vmatprep.subr.mxu0 0.0
      %1662 = vmatpush1.msra.mxu0 %v907
      %1663 = vmatprep.subr.mxu0 0.0
      %1664 = vmatpush1.msra.mxu0 0.0
      %1665 = vmatprep.subr.mxu0 0.0
      %1666 = vmatpush1.msra.mxu0 0.0
      %1667 = vmatprep.subr.mxu0 0.0
      %1668 = vmatpush1.msra.mxu0 0.0
      %1669 = vmatprep.subr.mxu0 0.0
      %1670 = vmatpush1.msra.mxu0 0.0
      %1671 = vmatprep.subr.mxu0 0.0
      %1672 = vmatpush1.msra.mxu0 0.0
      %1673 = vmatprep.subr.mxu0 0.0
      %1674 = vmatpush1.msra.mxu0 0.0
      %1675 = vmatprep.subr.mxu0 0.0
      %1676 = vmatpush1.msra.mxu0 0.0
      %1677 = vmatprep.subr.mxu0 0.0
      %1678 = vmatpush1.msra.mxu0 0.0
      %1679 = vmatprep.subr.mxu0 0.0
      %1680 = vmatpush1.msra.mxu0 0.0
      %1681 = vmatprep.subr.mxu0 0.0
      %1682 = vmatpush1.msra.mxu0 0.0
      %1683 = vmatprep.subr.mxu0 0.0
      %1684 = vmatpush1.msra.mxu0 0.0
      %1685 = vmatprep.subr.mxu0 0.0
      %1686 = vmatpush1.msra.mxu0 0.0
      %1687 = vmatprep.subr.mxu0 0.0
      %1688 = vmatpush1.msra.mxu0 0.0
      %1689 = vmatprep.subr.mxu0 0.0
      %1690 = vmatpush1.msra.mxu0 0.0
      %1691 = vmatprep.subr.mxu0 0.0
      %1692 = vmatpush1.msra.mxu0 0.0
      %1693 = vmatprep.subr.mxu0 0.0
      %1694 = vmatpush1.msra.mxu0 0.0
      %1695 = vmatprep.mubr.f32.mxu0 0.0
      %1696 = vmatmul.mubr.f32.gmra.mrb[0].mxu0 %v824
      %v1697 = vpop.f32.mrb[0].mxu0
      %v1698 = vadd.f32 %v1473, %v1697
      %v1699 = vpop.f32.mrb[0].mxu0
      %1700 = vmatprep.mubr.f32.mxu0 0.0
      %1701 = vmatmul.mubr.f32.gmra.mrb[0].mxu0 %v825
      %v1702 = vpop.f32.mrb[0].mxu0
      %v1703 = vadd.f32 %v1478, %v1702
      %v1704 = vpop.f32.mrb[0].mxu0
      %1705 = vmatprep.mubr.f32.mxu0 0.0
      %1706 = vmatmul.mubr.f32.gmra.mrb[0].mxu0 %v826
      %v1707 = vpop.f32.mrb[0].mxu0
      %v1708 = vadd.f32 %v1483, %v1707
      %v1709 = vpop.f32.mrb[0].mxu0
      %1710 = vmatprep.mubr.f32.mxu0 0.0
      %1711 = vmatmul.mubr.f32.gmra.mrb[0].mxu0 %v827
      %v1712 = vpop.f32.mrb[0].mxu0
      %v1713 = vadd.f32 %v1488, %v1712
      %v1714 = vpop.f32.mrb[0].mxu0
      %1715 = vmatprep.mubr.f32.mxu0 0.0
      %1716 = vmatmul.mubr.f32.gmra.mrb[0].mxu0 %v828
      %v1717 = vpop.f32.mrb[0].mxu0
      %v1718 = vadd.f32 %v1493, %v1717
      %v1719 = vpop.f32.mrb[0].mxu0
      %1720 = vmatprep.mubr.f32.mxu0 0.0
      %1721 = vmatmul.mubr.f32.gmra.mrb[0].mxu0 %v829
      %v1722 = vpop.f32.mrb[0].mxu0
      %v1723 = vadd.f32 %v1498, %v1722
      %v1724 = vpop.f32.mrb[0].mxu0
      %1725 = vmatprep.mubr.f32.mxu0 0.0
      %1726 = vmatmul.mubr.f32.gmra.mrb[0].mxu0 %v830
      %v1727 = vpop.f32.mrb[0].mxu0
      %v1728 = vadd.f32 %v1503, %v1727
      %v1729 = vpop.f32.mrb[0].mxu0
      %1730 = vmatprep.mubr.f32.mxu0 0.0
      %1731 = vmatmul.mubr.f32.gmra.mrb[0].mxu0 %v831
      %v1732 = vpop.f32.mrb[0].mxu0
      %v1733 = vadd.f32 %v1508, %v1732
      %v1734 = vpop.f32.mrb[0].mxu0
      %1735 = vmatprep.mubr.f32.mxu0 0.0
      %1736 = vmatmul.mubr.f32.gmra.mrb[0].mxu0 %v832
      %v1737 = vpop.f32.mrb[0].mxu0
      %v1738 = vadd.f32 %v1513, %v1737
      %v1739 = vpop.f32.mrb[0].mxu0
      %1740 = vmatprep.mubr.f32.mxu0 0.0
      %1741 = vmatmul.mubr.f32.gmra.mrb[0].mxu0 %v833
      %v1742 = vpop.f32.mrb[0].mxu0
      %v1743 = vadd.f32 %v1518, %v1742
      %v1744 = vpop.f32.mrb[0].mxu0
      %1745 = vmatprep.mubr.f32.mxu0 0.0
      %1746 = vmatmul.mubr.f32.gmra.mrb[0].mxu0 %v834
      %v1747 = vpop.f32.mrb[0].mxu0
      %v1748 = vadd.f32 %v1523, %v1747
      %v1749 = vpop.f32.mrb[0].mxu0
      %1750 = vmatprep.mubr.f32.mxu0 0.0
      %1751 = vmatmul.mubr.f32.gmra.mrb[0].mxu0 %v835
      %v1752 = vpop.f32.mrb[0].mxu0
      %v1753 = vadd.f32 %v1528, %v1752
      %v1754 = vpop.f32.mrb[0].mxu0
      %1755 = vmatprep.mubr.f32.mxu0 0.0
      %1756 = vmatmul.mubr.f32.gmra.mrb[0].mxu0 %v836
      %v1757 = vpop.f32.mrb[0].mxu0
      %v1758 = vadd.f32 %v1533, %v1757
      %v1759 = vpop.f32.mrb[0].mxu0
      %1760 = vmatprep.mubr.f32.mxu0 0.0
      %1761 = vmatmul.mubr.f32.gmra.mrb[0].mxu0 %v837
      %v1762 = vpop.f32.mrb[0].mxu0
      %v1763 = vadd.f32 %v1538, %v1762
      %v1764 = vpop.f32.mrb[0].mxu0
      %1765 = vmatprep.mubr.f32.mxu0 0.0
      %1766 = vmatmul.mubr.f32.gmra.mrb[0].mxu0 %v838
      %v1767 = vpop.f32.mrb[0].mxu0
      %v1768 = vadd.f32 %v1543, %v1767
      %v1769 = vpop.f32.mrb[0].mxu0
      %1770 = vmatprep.mubr.f32.mxu0 0.0
      %1771 = vmatmul.mubr.f32.gmra.mrb[0].mxu0 %v839
      %v1772 = vpop.f32.mrb[0].mxu0
      %v1773 = vadd.f32 %v1548, %v1772
      %v1774 = vpop.f32.mrb[0].mxu0
      %1775 = vmatprep.mubr.f32.mxu0 0.0
      %1776 = vmatmul.mubr.f32.gmra.mrb[0].mxu0 %v840
      %v1777 = vpop.f32.mrb[0].mxu0
      %v1778 = vadd.f32 %v1553, %v1777
      %v1779 = vpop.f32.mrb[0].mxu0
      %1780 = vmatprep.mubr.f32.mxu0 0.0
      %1781 = vmatmul.mubr.f32.gmra.mrb[0].mxu0 %v841
      %v1782 = vpop.f32.mrb[0].mxu0
      %v1783 = vadd.f32 %v1558, %v1782
      %v1784 = vpop.f32.mrb[0].mxu0
      %1785 = vmatprep.mubr.f32.mxu0 0.0
      %1786 = vmatmul.mubr.f32.gmra.mrb[0].mxu0 %v842
      %v1787 = vpop.f32.mrb[0].mxu0
      %v1788 = vadd.f32 %v1563, %v1787
      %v1789 = vpop.f32.mrb[0].mxu0
      %1790 = vmatprep.mubr.f32.mxu0 0.0
      %1791 = vmatmul.mubr.f32.gmra.mrb[0].mxu0 %v843
      %v1792 = vpop.f32.mrb[0].mxu0
      %v1793 = vadd.f32 %v1568, %v1792
      %v1794 = vpop.f32.mrb[0].mxu0
      %1795 = vmatprep.mubr.f32.mxu0 0.0
      %1796 = vmatmul.mubr.f32.gmra.mrb[0].mxu0 %v844
      %v1797 = vpop.f32.mrb[0].mxu0
      %v1798 = vadd.f32 %v1573, %v1797
      %v1799 = vpop.f32.mrb[0].mxu0
      %1800 = vmatprep.mubr.f32.mxu0 0.0
      %1801 = vmatmul.mubr.f32.gmra.mrb[0].mxu0 %v845
      %v1802 = vpop.f32.mrb[0].mxu0
      %v1803 = vadd.f32 %v1578, %v1802
      %v1804 = vpop.f32.mrb[0].mxu0
      %1805 = vmatprep.mubr.f32.mxu0 0.0
      %1806 = vmatmul.mubr.f32.gmra.mrb[0].mxu0 %v846
      %v1807 = vpop.f32.mrb[0].mxu0
      %v1808 = vadd.f32 %v1583, %v1807
      %v1809 = vpop.f32.mrb[0].mxu0
      %1810 = vmatprep.mubr.f32.mxu0 0.0
      %1811 = vmatmul.mubr.f32.gmra.mrb[0].mxu0 %v847
      %v1812 = vpop.f32.mrb[0].mxu0
      %v1813 = vadd.f32 %v1588, %v1812
      %v1814 = vpop.f32.mrb[0].mxu0
      %1815 = vmatprep.mubr.f32.mxu0 0.0
      %1816 = vmatmul.mubr.f32.gmra.mrb[0].mxu0 %v848
      %v1817 = vpop.f32.mrb[0].mxu0
      %v1818 = vadd.f32 %v1593, %v1817
      %v1819 = vpop.f32.mrb[0].mxu0
      %1820 = vmatprep.mubr.f32.mxu0 0.0
      %1821 = vmatmul.mubr.f32.gmra.mrb[0].mxu0 %v849
      %v1822 = vpop.f32.mrb[0].mxu0
      %v1823 = vadd.f32 %v1598, %v1822
      %v1824 = vpop.f32.mrb[0].mxu0
      %1825 = vmatprep.mubr.f32.mxu0 0.0
      %1826 = vmatmul.mubr.f32.gmra.mrb[0].mxu0 %v850
      %v1827 = vpop.f32.mrb[0].mxu0
      %v1828 = vadd.f32 %v1603, %v1827
      %v1829 = vpop.f32.mrb[0].mxu0
      %1830 = vmatprep.mubr.f32.mxu0 0.0
      %1831 = vmatmul.mubr.f32.gmra.mrb[0].mxu0 %v851
      %v1832 = vpop.f32.mrb[0].mxu0
      %v1833 = vadd.f32 %v1608, %v1832
      %v1834 = vpop.f32.mrb[0].mxu0
      %1835 = vmatprep.mubr.f32.mxu0 0.0
      %1836 = vmatmul.mubr.f32.gmra.mrb[0].mxu0 %v852
      %v1837 = vpop.f32.mrb[0].mxu0
      %v1838 = vadd.f32 %v1613, %v1837
      %v1839 = vpop.f32.mrb[0].mxu0
      %1840 = vmatprep.mubr.f32.mxu0 0.0
      %1841 = vmatmul.mubr.f32.gmra.mrb[0].mxu0 %v853
      %v1842 = vpop.f32.mrb[0].mxu0
      %v1843 = vadd.f32 %v1618, %v1842
      %v1844 = vpop.f32.mrb[0].mxu0
      %1845 = vmatprep.mubr.f32.mxu0 0.0
      %1846 = vmatmul.mubr.f32.gmra.mrb[0].mxu0 %v854
      %v1847 = vpop.f32.mrb[0].mxu0
      %v1848 = vadd.f32 %v1623, %v1847
      %v1849 = vpop.f32.mrb[0].mxu0
      %1850 = vmatprep.mubr.f32.mxu0 0.0
      %1851 = vmatmul.mubr.f32.gmra.mrb[0].mxu0 %v855
      %v1852 = vpop.f32.mrb[0].mxu0
      %v1853 = vadd.f32 %v1628, %v1852
      %v1854 = vpop.f32.mrb[0].mxu0
      %1855 = vdwg.mxu0
      %v1856 = vld [vmem:[%s3 + $0x300] sm:$0xff]
      %v1857 = vld [vmem:[%s3 + $0x308] sm:$0xff]
      %v1858 = vld [vmem:[%s3 + $0x310] sm:$0xff]
      %v1859 = vld [vmem:[%s3 + $0x318] sm:$0xff]
      %v1860 = vld [vmem:[%s3 + $0x320] sm:$0xff]
      %v1861 = vld [vmem:[%s3 + $0x328] sm:$0xff]
      %v1862 = vld [vmem:[%s3 + $0x330] sm:$0xff]
      %v1863 = vld [vmem:[%s3 + $0x338] sm:$0xff]
      %v1864 = vld [vmem:[%s3 + $0x340] sm:$0xff]
      %v1865 = vld [vmem:[%s3 + $0x348] sm:$0xff]
      %v1866 = vld [vmem:[%s3 + $0x350] sm:$0xff]
      %v1867 = vld [vmem:[%s3 + $0x358] sm:$0xff]
      %v1868 = vld [vmem:[%s3 + $0x360] sm:$0xff]
      %v1869 = vld [vmem:[%s3 + $0x368] sm:$0xff]
      %v1870 = vld [vmem:[%s3 + $0x370] sm:$0xff]
      %v1871 = vld [vmem:[%s3 + $0x378] sm:$0xff]
      %v1872 = vld [vmem:[%s3 + $0x380] sm:$0xff]
      %v1873 = vld [vmem:[%s3 + $0x388] sm:$0xff]
      %v1874 = vld [vmem:[%s3 + $0x390] sm:$0xff]
      %v1875 = vld [vmem:[%s3 + $0x398] sm:$0xff]
      %v1876 = vld [vmem:[%s3 + $0x3a0] sm:$0xff]
      %v1877 = vld [vmem:[%s3 + $0x3a8] sm:$0xff]
      %v1878 = vld [vmem:[%s3 + $0x3b0] sm:$0xff]
      %v1879 = vld [vmem:[%s3 + $0x3b8] sm:$0xff]
      %v1880 = vld [vmem:[%s3 + $0x3c0] sm:$0xff]
      %v1881 = vld [vmem:[%s3 + $0x3c8] sm:$0xff]
      %v1882 = vld [vmem:[%s3 + $0x3d0] sm:$0xff]
      %v1883 = vld [vmem:[%s3 + $0x3d8] sm:$0xff]
      %v1884 = vld [vmem:[%s3 + $0x3e0] sm:$0xff]
      %v1885 = vld [vmem:[%s3 + $0x3e8] sm:$0xff]
      %v1886 = vld [vmem:[%s3 + $0x3f0] sm:$0xff]
      %v1887 = vld [vmem:[%s3 + $0x3f8] sm:$0xff]
      %v1888 = vld [vmem:[%s3 + $0x400] sm:$0xff]
      %v1889 = vld [vmem:[%s3 + $0x408] sm:$0xff]
      %v1890 = vld [vmem:[%s3 + $0x410] sm:$0xff]
      %v1891 = vld [vmem:[%s3 + $0x418] sm:$0xff]
      %v1892 = vld [vmem:[%s3 + $0x420] sm:$0xff]
      %v1893 = vld [vmem:[%s3 + $0x428] sm:$0xff]
      %v1894 = vld [vmem:[%s3 + $0x430] sm:$0xff]
      %v1895 = vld [vmem:[%s3 + $0x438] sm:$0xff]
      %v1896 = vld [vmem:[%s3 + $0x440] sm:$0xff]
      %v1897 = vld [vmem:[%s3 + $0x448] sm:$0xff]
      %v1898 = vld [vmem:[%s3 + $0x450] sm:$0xff]
      %v1899 = vld [vmem:[%s3 + $0x458] sm:$0xff]
      %v1900 = vld [vmem:[%s3 + $0x460] sm:$0xff]
      %v1901 = vld [vmem:[%s3 + $0x468] sm:$0xff]
      %v1902 = vld [vmem:[%s3 + $0x470] sm:$0xff]
      %v1903 = vld [vmem:[%s3 + $0x478] sm:$0xff]
      %1904 = vmatprep.subr.mxu0 0.0
      %1905 = vmatpush1.msra.mxu0 %v1856
      %1906 = vmatprep.subr.mxu0 0.0
      %1907 = vmatpush1.msra.mxu0 %v1857
      %1908 = vmatprep.subr.mxu0 0.0
      %1909 = vmatpush1.msra.mxu0 %v1858
      %1910 = vmatprep.subr.mxu0 0.0
      %1911 = vmatpush1.msra.mxu0 %v1859
      %1912 = vmatprep.subr.mxu0 0.0
      %1913 = vmatpush1.msra.mxu0 %v1860
      %1914 = vmatprep.subr.mxu0 0.0
      %1915 = vmatpush1.msra.mxu0 %v1861
      %1916 = vmatprep.subr.mxu0 0.0
      %1917 = vmatpush1.msra.mxu0 %v1862
      %1918 = vmatprep.subr.mxu0 0.0
      %1919 = vmatpush1.msra.mxu0 %v1863
      %1920 = vmatprep.subr.mxu0 0.0
      %1921 = vmatpush1.msra.mxu0 %v1864
      %1922 = vmatprep.subr.mxu0 0.0
      %1923 = vmatpush1.msra.mxu0 %v1865
      %1924 = vmatprep.subr.mxu0 0.0
      %1925 = vmatpush1.msra.mxu0 %v1866
      %1926 = vmatprep.subr.mxu0 0.0
      %1927 = vmatpush1.msra.mxu0 %v1867
      %1928 = vmatprep.subr.mxu0 0.0
      %1929 = vmatpush1.msra.mxu0 %v1868
      %1930 = vmatprep.subr.mxu0 0.0
      %1931 = vmatpush1.msra.mxu0 %v1869
      %1932 = vmatprep.subr.mxu0 0.0
      %1933 = vmatpush1.msra.mxu0 %v1870
      %1934 = vmatprep.subr.mxu0 0.0
      %1935 = vmatpush1.msra.mxu0 %v1871
      %1936 = vmatprep.subr.mxu0 0.0
      %1937 = vmatpush1.msra.mxu0 %v1872
      %1938 = vmatprep.subr.mxu0 0.0
      %1939 = vmatpush1.msra.mxu0 %v1873
      %1940 = vmatprep.subr.mxu0 0.0
      %1941 = vmatpush1.msra.mxu0 %v1874
      %1942 = vmatprep.subr.mxu0 0.0
      %1943 = vmatpush1.msra.mxu0 %v1875
      %1944 = vmatprep.subr.mxu0 0.0
      %1945 = vmatpush1.msra.mxu0 %v1876
      %1946 = vmatprep.subr.mxu0 0.0
      %1947 = vmatpush1.msra.mxu0 %v1877
      %1948 = vmatprep.subr.mxu0 0.0
      %1949 = vmatpush1.msra.mxu0 %v1878
      %1950 = vmatprep.subr.mxu0 0.0
      %1951 = vmatpush1.msra.mxu0 %v1879
      %1952 = vmatprep.subr.mxu0 0.0
      %1953 = vmatpush1.msra.mxu0 %v1880
      %1954 = vmatprep.subr.mxu0 0.0
      %1955 = vmatpush1.msra.mxu0 %v1881
      %1956 = vmatprep.subr.mxu0 0.0
      %1957 = vmatpush1.msra.mxu0 %v1882
      %1958 = vmatprep.subr.mxu0 0.0
      %1959 = vmatpush1.msra.mxu0 %v1883
      %1960 = vmatprep.subr.mxu0 0.0
      %1961 = vmatpush1.msra.mxu0 %v1884
      %1962 = vmatprep.subr.mxu0 0.0
      %1963 = vmatpush1.msra.mxu0 %v1885
      %1964 = vmatprep.subr.mxu0 0.0
      %1965 = vmatpush1.msra.mxu0 %v1886
      %1966 = vmatprep.subr.mxu0 0.0
      %1967 = vmatpush1.msra.mxu0 %v1887
      %1968 = vmatprep.mubr.f32.mxu0 %v792
      %1969 = vmatmul.mubr.f32.gmra.mrb[0].mxu0 %v756
      %v1970 = vpop.f32.mrb[0].mxu0
      %v1971 = vadd.f32 0.0, %v1970
      %v1972 = vpop.f32.mrb[0].mxu0
      %1973 = vmatprep.mubr.f32.mxu0 %v793
      %1974 = vmatmul.mubr.f32.gmra.mrb[0].mxu0 %v757
      %v1975 = vpop.f32.mrb[0].mxu0
      %v1976 = vadd.f32 0.0, %v1975
      %v1977 = vpop.f32.mrb[0].mxu0
      %1978 = vmatprep.mubr.f32.mxu0 %v794
      %1979 = vmatmul.mubr.f32.gmra.mrb[0].mxu0 %v758
      %v1980 = vpop.f32.mrb[0].mxu0
      %v1981 = vadd.f32 0.0, %v1980
      %v1982 = vpop.f32.mrb[0].mxu0
      %1983 = vmatprep.mubr.f32.mxu0 %v795
      %1984 = vmatmul.mubr.f32.gmra.mrb[0].mxu0 %v759
      %v1985 = vpop.f32.mrb[0].mxu0
      %v1986 = vadd.f32 0.0, %v1985
      %v1987 = vpop.f32.mrb[0].mxu0
      %1988 = vmatprep.mubr.f32.mxu0 %v796
      %1989 = vmatmul.mubr.f32.gmra.mrb[0].mxu0 %v760
      %v1990 = vpop.f32.mrb[0].mxu0
      %v1991 = vadd.f32 0.0, %v1990
      %v1992 = vpop.f32.mrb[0].mxu0
      %1993 = vmatprep.mubr.f32.mxu0 %v797
      %1994 = vmatmul.mubr.f32.gmra.mrb[0].mxu0 %v761
      %v1995 = vpop.f32.mrb[0].mxu0
      %v1996 = vadd.f32 0.0, %v1995
      %v1997 = vpop.f32.mrb[0].mxu0
      %1998 = vmatprep.mubr.f32.mxu0 %v798
      %1999 = vmatmul.mubr.f32.gmra.mrb[0].mxu0 %v762
      %v2000 = vpop.f32.mrb[0].mxu0
      %v2001 = vadd.f32 0.0, %v2000
      %v2002 = vpop.f32.mrb[0].mxu0
      %2003 = vmatprep.mubr.f32.mxu0 %v799
      %2004 = vmatmul.mubr.f32.gmra.mrb[0].mxu0 %v763
      %v2005 = vpop.f32.mrb[0].mxu0
      %v2006 = vadd.f32 0.0, %v2005
      %v2007 = vpop.f32.mrb[0].mxu0
      %2008 = vmatprep.mubr.f32.mxu0 %v800
      %2009 = vmatmul.mubr.f32.gmra.mrb[0].mxu0 %v764
      %v2010 = vpop.f32.mrb[0].mxu0
      %v2011 = vadd.f32 0.0, %v2010
      %v2012 = vpop.f32.mrb[0].mxu0
      %2013 = vmatprep.mubr.f32.mxu0 %v801
      %2014 = vmatmul.mubr.f32.gmra.mrb[0].mxu0 %v765
      %v2015 = vpop.f32.mrb[0].mxu0
      %v2016 = vadd.f32 0.0, %v2015
      %v2017 = vpop.f32.mrb[0].mxu0
      %2018 = vmatprep.mubr.f32.mxu0 %v802
      %2019 = vmatmul.mubr.f32.gmra.mrb[0].mxu0 %v766
      %v2020 = vpop.f32.mrb[0].mxu0
      %v2021 = vadd.f32 0.0, %v2020
      %v2022 = vpop.f32.mrb[0].mxu0
      %2023 = vmatprep.mubr.f32.mxu0 %v803
      %2024 = vmatmul.mubr.f32.gmra.mrb[0].mxu0 %v767
      %v2025 = vpop.f32.mrb[0].mxu0
      %v2026 = vadd.f32 0.0, %v2025
      %v2027 = vpop.f32.mrb[0].mxu0
      %2028 = vmatprep.mubr.f32.mxu0 %v804
      %2029 = vmatmul.mubr.f32.gmra.mrb[0].mxu0 %v768
      %v2030 = vpop.f32.mrb[0].mxu0
      %v2031 = vadd.f32 0.0, %v2030
      %v2032 = vpop.f32.mrb[0].mxu0
      %2033 = vmatprep.mubr.f32.mxu0 %v805
      %2034 = vmatmul.mubr.f32.gmra.mrb[0].mxu0 %v769
      %v2035 = vpop.f32.mrb[0].mxu0
      %v2036 = vadd.f32 0.0, %v2035
      %v2037 = vpop.f32.mrb[0].mxu0
      %2038 = vmatprep.mubr.f32.mxu0 %v806
      %2039 = vmatmul.mubr.f32.gmra.mrb[0].mxu0 %v770
      %v2040 = vpop.f32.mrb[0].mxu0
      %v2041 = vadd.f32 0.0, %v2040
      %v2042 = vpop.f32.mrb[0].mxu0
      %2043 = vmatprep.mubr.f32.mxu0 %v807
      %2044 = vmatmul.mubr.f32.gmra.mrb[0].mxu0 %v771
      %v2045 = vpop.f32.mrb[0].mxu0
      %v2046 = vadd.f32 0.0, %v2045
      %v2047 = vpop.f32.mrb[0].mxu0
      %2048 = vmatprep.mubr.f32.mxu0 %v808
      %2049 = vmatmul.mubr.f32.gmra.mrb[0].mxu0 %v772
      %v2050 = vpop.f32.mrb[0].mxu0
      %v2051 = vadd.f32 0.0, %v2050
      %v2052 = vpop.f32.mrb[0].mxu0
      %2053 = vmatprep.mubr.f32.mxu0 %v809
      %2054 = vmatmul.mubr.f32.gmra.mrb[0].mxu0 %v773
      %v2055 = vpop.f32.mrb[0].mxu0
      %v2056 = vadd.f32 0.0, %v2055
      %v2057 = vpop.f32.mrb[0].mxu0
      %2058 = vmatprep.mubr.f32.mxu0 %v810
      %2059 = vmatmul.mubr.f32.gmra.mrb[0].mxu0 %v774
      %v2060 = vpop.f32.mrb[0].mxu0
      %v2061 = vadd.f32 0.0, %v2060
      %v2062 = vpop.f32.mrb[0].mxu0
      %2063 = vmatprep.mubr.f32.mxu0 %v811
      %2064 = vmatmul.mubr.f32.gmra.mrb[0].mxu0 %v775
      %v2065 = vpop.f32.mrb[0].mxu0
      %v2066 = vadd.f32 0.0, %v2065
      %v2067 = vpop.f32.mrb[0].mxu0
      %2068 = vmatprep.mubr.f32.mxu0 %v812
      %2069 = vmatmul.mubr.f32.gmra.mrb[0].mxu0 %v776
      %v2070 = vpop.f32.mrb[0].mxu0
      %v2071 = vadd.f32 0.0, %v2070
      %v2072 = vpop.f32.mrb[0].mxu0
      %2073 = vmatprep.mubr.f32.mxu0 %v813
      %2074 = vmatmul.mubr.f32.gmra.mrb[0].mxu0 %v777
      %v2075 = vpop.f32.mrb[0].mxu0
      %v2076 = vadd.f32 0.0, %v2075
      %v2077 = vpop.f32.mrb[0].mxu0
      %2078 = vmatprep.mubr.f32.mxu0 %v814
      %2079 = vmatmul.mubr.f32.gmra.mrb[0].mxu0 %v778
      %v2080 = vpop.f32.mrb[0].mxu0
      %v2081 = vadd.f32 0.0, %v2080
      %v2082 = vpop.f32.mrb[0].mxu0
      %2083 = vmatprep.mubr.f32.mxu0 %v815
      %2084 = vmatmul.mubr.f32.gmra.mrb[0].mxu0 %v779
      %v2085 = vpop.f32.mrb[0].mxu0
      %v2086 = vadd.f32 0.0, %v2085
      %v2087 = vpop.f32.mrb[0].mxu0
      %2088 = vmatprep.mubr.f32.mxu0 %v816
      %2089 = vmatmul.mubr.f32.gmra.mrb[0].mxu0 %v780
      %v2090 = vpop.f32.mrb[0].mxu0
      %v2091 = vadd.f32 0.0, %v2090
      %v2092 = vpop.f32.mrb[0].mxu0
      %2093 = vmatprep.mubr.f32.mxu0 %v817
      %2094 = vmatmul.mubr.f32.gmra.mrb[0].mxu0 %v781
      %v2095 = vpop.f32.mrb[0].mxu0
      %v2096 = vadd.f32 0.0, %v2095
      %v2097 = vpop.f32.mrb[0].mxu0
      %2098 = vmatprep.mubr.f32.mxu0 %v818
      %2099 = vmatmul.mubr.f32.gmra.mrb[0].mxu0 %v782
      %v2100 = vpop.f32.mrb[0].mxu0
      %v2101 = vadd.f32 0.0, %v2100
      %v2102 = vpop.f32.mrb[0].mxu0
      %2103 = vmatprep.mubr.f32.mxu0 %v819
      %2104 = vmatmul.mubr.f32.gmra.mrb[0].mxu0 %v783
      %v2105 = vpop.f32.mrb[0].mxu0
      %v2106 = vadd.f32 0.0, %v2105
      %v2107 = vpop.f32.mrb[0].mxu0
      %2108 = vmatprep.mubr.f32.mxu0 %v820
      %2109 = vmatmul.mubr.f32.gmra.mrb[0].mxu0 %v784
      %v2110 = vpop.f32.mrb[0].mxu0
      %v2111 = vadd.f32 0.0, %v2110
      %v2112 = vpop.f32.mrb[0].mxu0
      %2113 = vmatprep.mubr.f32.mxu0 %v821
      %2114 = vmatmul.mubr.f32.gmra.mrb[0].mxu0 %v785
      %v2115 = vpop.f32.mrb[0].mxu0
      %v2116 = vadd.f32 0.0, %v2115
      %v2117 = vpop.f32.mrb[0].mxu0
      %2118 = vmatprep.mubr.f32.mxu0 %v822
      %2119 = vmatmul.mubr.f32.gmra.mrb[0].mxu0 %v786
      %v2120 = vpop.f32.mrb[0].mxu0
      %v2121 = vadd.f32 0.0, %v2120
      %v2122 = vpop.f32.mrb[0].mxu0
      %2123 = vmatprep.mubr.f32.mxu0 %v823
      %2124 = vmatmul.mubr.f32.gmra.mrb[0].mxu0 %v787
      %v2125 = vpop.f32.mrb[0].mxu0
      %v2126 = vadd.f32 0.0, %v2125
      %v2127 = vpop.f32.mrb[0].mxu0
      %2128 = vdwg.mxu0
      %2129 = vmatprep.subr.mxu0 0.0
      %2130 = vmatpush1.msra.mxu0 %v1888
      %2131 = vmatprep.subr.mxu0 0.0
      %2132 = vmatpush1.msra.mxu0 %v1889
      %2133 = vmatprep.subr.mxu0 0.0
      %2134 = vmatpush1.msra.mxu0 %v1890
      %2135 = vmatprep.subr.mxu0 0.0
      %2136 = vmatpush1.msra.mxu0 %v1891
      %2137 = vmatprep.subr.mxu0 0.0
      %2138 = vmatpush1.msra.mxu0 %v1892
      %2139 = vmatprep.subr.mxu0 0.0
      %2140 = vmatpush1.msra.mxu0 %v1893
      %2141 = vmatprep.subr.mxu0 0.0
      %2142 = vmatpush1.msra.mxu0 %v1894
      %2143 = vmatprep.subr.mxu0 0.0
      %2144 = vmatpush1.msra.mxu0 %v1895
      %2145 = vmatprep.subr.mxu0 0.0
      %2146 = vmatpush1.msra.mxu0 %v1896
      %2147 = vmatprep.subr.mxu0 0.0
      %2148 = vmatpush1.msra.mxu0 %v1897
      %2149 = vmatprep.subr.mxu0 0.0
      %2150 = vmatpush1.msra.mxu0 %v1898
      %2151 = vmatprep.subr.mxu0 0.0
      %2152 = vmatpush1.msra.mxu0 %v1899
      %2153 = vmatprep.subr.mxu0 0.0
      %2154 = vmatpush1.msra.mxu0 %v1900
      %2155 = vmatprep.subr.mxu0 0.0
      %2156 = vmatpush1.msra.mxu0 %v1901
      %2157 = vmatprep.subr.mxu0 0.0
      %2158 = vmatpush1.msra.mxu0 %v1902
      %2159 = vmatprep.subr.mxu0 0.0
      %2160 = vmatpush1.msra.mxu0 %v1903
      %2161 = vmatprep.subr.mxu0 0.0
      %2162 = vmatpush1.msra.mxu0 0.0
      %2163 = vmatprep.subr.mxu0 0.0
      %2164 = vmatpush1.msra.mxu0 0.0
      %2165 = vmatprep.subr.mxu0 0.0
      %2166 = vmatpush1.msra.mxu0 0.0
      %2167 = vmatprep.subr.mxu0 0.0
      %2168 = vmatpush1.msra.mxu0 0.0
      %2169 = vmatprep.subr.mxu0 0.0
      %2170 = vmatpush1.msra.mxu0 0.0
      %2171 = vmatprep.subr.mxu0 0.0
      %2172 = vmatpush1.msra.mxu0 0.0
      %2173 = vmatprep.subr.mxu0 0.0
      %2174 = vmatpush1.msra.mxu0 0.0
      %2175 = vmatprep.subr.mxu0 0.0
      %2176 = vmatpush1.msra.mxu0 0.0
      %2177 = vmatprep.subr.mxu0 0.0
      %2178 = vmatpush1.msra.mxu0 0.0
      %2179 = vmatprep.subr.mxu0 0.0
      %2180 = vmatpush1.msra.mxu0 0.0
      %2181 = vmatprep.subr.mxu0 0.0
      %2182 = vmatpush1.msra.mxu0 0.0
      %2183 = vmatprep.subr.mxu0 0.0
      %2184 = vmatpush1.msra.mxu0 0.0
      %2185 = vmatprep.subr.mxu0 0.0
      %2186 = vmatpush1.msra.mxu0 0.0
      %2187 = vmatprep.subr.mxu0 0.0
      %2188 = vmatpush1.msra.mxu0 0.0
      %2189 = vmatprep.subr.mxu0 0.0
      %2190 = vmatpush1.msra.mxu0 0.0
      %2191 = vmatprep.subr.mxu0 0.0
      %2192 = vmatpush1.msra.mxu0 0.0
      %2193 = vmatprep.mubr.f32.mxu0 0.0
      %2194 = vmatmul.mubr.f32.gmra.mrb[0].mxu0 %v828
      %v2195 = vpop.f32.mrb[0].mxu0
      %v2196 = vadd.f32 %v1971, %v2195
      %v2197 = vpop.f32.mrb[0].mxu0
      %2198 = vmatprep.mubr.f32.mxu0 0.0
      %2199 = vmatmul.mubr.f32.gmra.mrb[0].mxu0 %v829
      %v2200 = vpop.f32.mrb[0].mxu0
      %v2201 = vadd.f32 %v1976, %v2200
      %v2202 = vpop.f32.mrb[0].mxu0
      %2203 = vmatprep.mubr.f32.mxu0 0.0
      %2204 = vmatmul.mubr.f32.gmra.mrb[0].mxu0 %v830
      %v2205 = vpop.f32.mrb[0].mxu0
      %v2206 = vadd.f32 %v1981, %v2205
      %v2207 = vpop.f32.mrb[0].mxu0
      %2208 = vmatprep.mubr.f32.mxu0 0.0
      %2209 = vmatmul.mubr.f32.gmra.mrb[0].mxu0 %v831
      %v2210 = vpop.f32.mrb[0].mxu0
      %v2211 = vadd.f32 %v1986, %v2210
      %v2212 = vpop.f32.mrb[0].mxu0
      %2213 = vmatprep.mubr.f32.mxu0 0.0
      %2214 = vmatmul.mubr.f32.gmra.mrb[0].mxu0 %v832
      %v2215 = vpop.f32.mrb[0].mxu0
      %v2216 = vadd.f32 %v1991, %v2215
      %v2217 = vpop.f32.mrb[0].mxu0
      %2218 = vmatprep.mubr.f32.mxu0 0.0
      %2219 = vmatmul.mubr.f32.gmra.mrb[0].mxu0 %v833
      %v2220 = vpop.f32.mrb[0].mxu0
      %v2221 = vadd.f32 %v1996, %v2220
      %v2222 = vpop.f32.mrb[0].mxu0
      %2223 = vmatprep.mubr.f32.mxu0 0.0
      %2224 = vmatmul.mubr.f32.gmra.mrb[0].mxu0 %v834
      %v2225 = vpop.f32.mrb[0].mxu0
      %v2226 = vadd.f32 %v2001, %v2225
      %v2227 = vpop.f32.mrb[0].mxu0
      %2228 = vmatprep.mubr.f32.mxu0 0.0
      %2229 = vmatmul.mubr.f32.gmra.mrb[0].mxu0 %v835
      %v2230 = vpop.f32.mrb[0].mxu0
      %v2231 = vadd.f32 %v2006, %v2230
      %v2232 = vpop.f32.mrb[0].mxu0
      %2233 = vmatprep.mubr.f32.mxu0 0.0
      %2234 = vmatmul.mubr.f32.gmra.mrb[0].mxu0 %v836
      %v2235 = vpop.f32.mrb[0].mxu0
      %v2236 = vadd.f32 %v2011, %v2235
      %v2237 = vpop.f32.mrb[0].mxu0
      %2238 = vmatprep.mubr.f32.mxu0 0.0
      %2239 = vmatmul.mubr.f32.gmra.mrb[0].mxu0 %v837
      %v2240 = vpop.f32.mrb[0].mxu0
      %v2241 = vadd.f32 %v2016, %v2240
      %v2242 = vpop.f32.mrb[0].mxu0
      %2243 = vmatprep.mubr.f32.mxu0 0.0
      %2244 = vmatmul.mubr.f32.gmra.mrb[0].mxu0 %v838
      %v2245 = vpop.f32.mrb[0].mxu0
      %v2246 = vadd.f32 %v2021, %v2245
      %v2247 = vpop.f32.mrb[0].mxu0
      %2248 = vmatprep.mubr.f32.mxu0 0.0
      %2249 = vmatmul.mubr.f32.gmra.mrb[0].mxu0 %v839
      %v2250 = vpop.f32.mrb[0].mxu0
      %v2251 = vadd.f32 %v2026, %v2250
      %v2252 = vpop.f32.mrb[0].mxu0
      %2253 = vmatprep.mubr.f32.mxu0 0.0
      %2254 = vmatmul.mubr.f32.gmra.mrb[0].mxu0 %v840
      %v2255 = vpop.f32.mrb[0].mxu0
      %v2256 = vadd.f32 %v2031, %v2255
      %v2257 = vpop.f32.mrb[0].mxu0
      %2258 = vmatprep.mubr.f32.mxu0 0.0
      %2259 = vmatmul.mubr.f32.gmra.mrb[0].mxu0 %v841
      %v2260 = vpop.f32.mrb[0].mxu0
      %v2261 = vadd.f32 %v2036, %v2260
      %v2262 = vpop.f32.mrb[0].mxu0
      %2263 = vmatprep.mubr.f32.mxu0 0.0
      %2264 = vmatmul.mubr.f32.gmra.mrb[0].mxu0 %v842
      %v2265 = vpop.f32.mrb[0].mxu0
      %v2266 = vadd.f32 %v2041, %v2265
      %v2267 = vpop.f32.mrb[0].mxu0
      %2268 = vmatprep.mubr.f32.mxu0 0.0
      %2269 = vmatmul.mubr.f32.gmra.mrb[0].mxu0 %v843
      %v2270 = vpop.f32.mrb[0].mxu0
      %v2271 = vadd.f32 %v2046, %v2270
      %v2272 = vpop.f32.mrb[0].mxu0
      %2273 = vmatprep.mubr.f32.mxu0 0.0
      %2274 = vmatmul.mubr.f32.gmra.mrb[0].mxu0 %v844
      %v2275 = vpop.f32.mrb[0].mxu0
      %v2276 = vadd.f32 %v2051, %v2275
      %v2277 = vpop.f32.mrb[0].mxu0
      %2278 = vmatprep.mubr.f32.mxu0 0.0
      %2279 = vmatmul.mubr.f32.gmra.mrb[0].mxu0 %v845
      %v2280 = vpop.f32.mrb[0].mxu0
      %v2281 = vadd.f32 %v2056, %v2280
      %v2282 = vpop.f32.mrb[0].mxu0
      %2283 = vmatprep.mubr.f32.mxu0 0.0
      %2284 = vmatmul.mubr.f32.gmra.mrb[0].mxu0 %v846
      %v2285 = vpop.f32.mrb[0].mxu0
      %v2286 = vadd.f32 %v2061, %v2285
      %v2287 = vpop.f32.mrb[0].mxu0
      %2288 = vmatprep.mubr.f32.mxu0 0.0
      %2289 = vmatmul.mubr.f32.gmra.mrb[0].mxu0 %v847
      %v2290 = vpop.f32.mrb[0].mxu0
      %v2291 = vadd.f32 %v2066, %v2290
      %v2292 = vpop.f32.mrb[0].mxu0
      %2293 = vmatprep.mubr.f32.mxu0 0.0
      %2294 = vmatmul.mubr.f32.gmra.mrb[0].mxu0 %v848
      %v2295 = vpop.f32.mrb[0].mxu0
      %v2296 = vadd.f32 %v2071, %v2295
      %v2297 = vpop.f32.mrb[0].mxu0
      %2298 = vmatprep.mubr.f32.mxu0 0.0
      %2299 = vmatmul.mubr.f32.gmra.mrb[0].mxu0 %v849
      %v2300 = vpop.f32.mrb[0].mxu0
      %v2301 = vadd.f32 %v2076, %v2300
      %v2302 = vpop.f32.mrb[0].mxu0
      %2303 = vmatprep.mubr.f32.mxu0 0.0
      %2304 = vmatmul.mubr.f32.gmra.mrb[0].mxu0 %v850
      %v2305 = vpop.f32.mrb[0].mxu0
      %v2306 = vadd.f32 %v2081, %v2305
      %v2307 = vpop.f32.mrb[0].mxu0
      %2308 = vmatprep.mubr.f32.mxu0 0.0
      %2309 = vmatmul.mubr.f32.gmra.mrb[0].mxu0 %v851
      %v2310 = vpop.f32.mrb[0].mxu0
      %v2311 = vadd.f32 %v2086, %v2310
      %v2312 = vpop.f32.mrb[0].mxu0
      %2313 = vmatprep.mubr.f32.mxu0 0.0
      %2314 = vmatmul.mubr.f32.gmra.mrb[0].mxu0 %v852
      %v2315 = vpop.f32.mrb[0].mxu0
      %v2316 = vadd.f32 %v2091, %v2315
      %v2317 = vpop.f32.mrb[0].mxu0
      %2318 = vmatprep.mubr.f32.mxu0 0.0
      %2319 = vmatmul.mubr.f32.gmra.mrb[0].mxu0 %v853
      %v2320 = vpop.f32.mrb[0].mxu0
      %v2321 = vadd.f32 %v2096, %v2320
      %v2322 = vpop.f32.mrb[0].mxu0
      %2323 = vmatprep.mubr.f32.mxu0 0.0
      %2324 = vmatmul.mubr.f32.gmra.mrb[0].mxu0 %v854
      %v2325 = vpop.f32.mrb[0].mxu0
      %v2326 = vadd.f32 %v2101, %v2325
      %v2327 = vpop.f32.mrb[0].mxu0
      %2328 = vmatprep.mubr.f32.mxu0 0.0
      %2329 = vmatmul.mubr.f32.gmra.mrb[0].mxu0 %v855
      %v2330 = vpop.f32.mrb[0].mxu0
      %v2331 = vadd.f32 %v2106, %v2330
      %v2332 = vpop.f32.mrb[0].mxu0
      %2333 = vmatprep.mubr.f32.mxu0 0.0
      %2334 = vmatmul.mubr.f32.gmra.mrb[0].mxu0 %v856
      %v2335 = vpop.f32.mrb[0].mxu0
      %v2336 = vadd.f32 %v2111, %v2335
      %v2337 = vpop.f32.mrb[0].mxu0
      %2338 = vmatprep.mubr.f32.mxu0 0.0
      %2339 = vmatmul.mubr.f32.gmra.mrb[0].mxu0 %v857
      %v2340 = vpop.f32.mrb[0].mxu0
      %v2341 = vadd.f32 %v2116, %v2340
      %v2342 = vpop.f32.mrb[0].mxu0
      %2343 = vmatprep.mubr.f32.mxu0 0.0
      %2344 = vmatmul.mubr.f32.gmra.mrb[0].mxu0 %v858
      %v2345 = vpop.f32.mrb[0].mxu0
      %v2346 = vadd.f32 %v2121, %v2345
      %v2347 = vpop.f32.mrb[0].mxu0
      %2348 = vmatprep.mubr.f32.mxu0 0.0
      %2349 = vmatmul.mubr.f32.gmra.mrb[0].mxu0 %v859
      %v2350 = vpop.f32.mrb[0].mxu0
      %v2351 = vadd.f32 %v2126, %v2350
      %v2352 = vpop.f32.mrb[0].mxu0
      %2353 = vdwg.mxu0
      %v2354 = vadd.f32 %v1698, %v2196
      %v2355 = vadd.f32 %v1703, %v2201
      %v2356 = vadd.f32 %v1708, %v2206
      %v2357 = vadd.f32 %v1713, %v2211
      %v2358 = vadd.f32 %v1718, %v2216
      %v2359 = vadd.f32 %v1723, %v2221
      %v2360 = vadd.f32 %v1728, %v2226
      %v2361 = vadd.f32 %v1733, %v2231
      %v2362 = vadd.f32 %v1738, %v2236
      %v2363 = vadd.f32 %v1743, %v2241
      %v2364 = vadd.f32 %v1748, %v2246
      %v2365 = vadd.f32 %v1753, %v2251
      %v2366 = vadd.f32 %v1758, %v2256
      %v2367 = vadd.f32 %v1763, %v2261
      %v2368 = vadd.f32 %v1768, %v2266
      %v2369 = vadd.f32 %v1773, %v2271
      %v2370 = vadd.f32 %v1778, %v2276
      %v2371 = vadd.f32 %v1783, %v2281
      %v2372 = vadd.f32 %v1788, %v2286
      %v2373 = vadd.f32 %v1793, %v2291
      %v2374 = vadd.f32 %v1798, %v2296
      %v2375 = vadd.f32 %v1803, %v2301
      %v2376 = vadd.f32 %v1808, %v2306
      %v2377 = vadd.f32 %v1813, %v2311
      %v2378 = vadd.f32 %v1818, %v2316
      %v2379 = vadd.f32 %v1823, %v2321
      %v2380 = vadd.f32 %v1828, %v2326
      %v2381 = vadd.f32 %v1833, %v2331
      %v2382 = vadd.f32 %v1838, %v2336
      %v2383 = vadd.f32 %v1843, %v2341
      %v2384 = vadd.f32 %v1848, %v2346
      %v2385 = vadd.f32 %v1853, %v2351
      %v2386 = vld [vmem:[%s4] sm:$0x1]
      %v2388 = vlaneseq
      %v2389 = vshrl.u32 %v2388, 7
      %v2390 = vsub.s32 0, %v2389
      %v2391 = vrot.slane %v2386, %v2390
      %v2393 = vadd.f32 %v2354, %v2391
      %v2394 = vadd.f32 %v2355, %v2391
      %v2395 = vadd.f32 %v2356, %v2391
      %v2396 = vadd.f32 %v2357, %v2391
      %v2397 = vadd.f32 %v2358, %v2391
      %v2398 = vadd.f32 %v2359, %v2391
      %v2399 = vadd.f32 %v2360, %v2391
      %v2400 = vadd.f32 %v2361, %v2391
      %v2401 = vadd.f32 %v2362, %v2391
      %v2402 = vadd.f32 %v2363, %v2391
      %v2403 = vadd.f32 %v2364, %v2391
      %v2404 = vadd.f32 %v2365, %v2391
      %v2405 = vadd.f32 %v2366, %v2391
      %v2406 = vadd.f32 %v2367, %v2391
      %v2407 = vadd.f32 %v2368, %v2391
      %v2408 = vadd.f32 %v2369, %v2391
      %v2409 = vadd.f32 %v2370, %v2391
      %v2410 = vadd.f32 %v2371, %v2391
      %v2411 = vadd.f32 %v2372, %v2391
      %v2412 = vadd.f32 %v2373, %v2391
      %v2413 = vadd.f32 %v2374, %v2391
      %v2414 = vadd.f32 %v2375, %v2391
      %v2415 = vadd.f32 %v2376, %v2391
      %v2416 = vadd.f32 %v2377, %v2391
      %v2417 = vadd.f32 %v2378, %v2391
      %v2418 = vadd.f32 %v2379, %v2391
      %v2419 = vadd.f32 %v2380, %v2391
      %v2420 = vadd.f32 %v2381, %v2391
      %v2421 = vadd.f32 %v2382, %v2391
      %v2422 = vadd.f32 %v2383, %v2391
      %v2423 = vadd.f32 %v2384, %v2391
      %v2424 = vadd.f32 %v2385, %v2391
      %v2425 = vmax.f32 %v2393, 0.0
      %v2426 = vmax.f32 %v2394, 0.0
      %v2427 = vmax.f32 %v2395, 0.0
      %v2428 = vmax.f32 %v2396, 0.0
      %v2429 = vmax.f32 %v2397, 0.0
      %v2430 = vmax.f32 %v2398, 0.0
      %v2431 = vmax.f32 %v2399, 0.0
      %v2432 = vmax.f32 %v2400, 0.0
      %v2433 = vmax.f32 %v2401, 0.0
      %v2434 = vmax.f32 %v2402, 0.0
      %v2435 = vmax.f32 %v2403, 0.0
      %v2436 = vmax.f32 %v2404, 0.0
      %v2437 = vmax.f32 %v2405, 0.0
      %v2438 = vmax.f32 %v2406, 0.0
      %v2439 = vmax.f32 %v2407, 0.0
      %v2440 = vmax.f32 %v2408, 0.0
      %v2441 = vmax.f32 %v2409, 0.0
      %v2442 = vmax.f32 %v2410, 0.0
      %v2443 = vmax.f32 %v2411, 0.0
      %v2444 = vmax.f32 %v2412, 0.0
      %v2445 = vmax.f32 %v2413, 0.0
      %v2446 = vmax.f32 %v2414, 0.0
      %v2447 = vmax.f32 %v2415, 0.0
      %v2448 = vmax.f32 %v2416, 0.0
      %v2449 = vmax.f32 %v2417, 0.0
      %v2450 = vmax.f32 %v2418, 0.0
      %v2451 = vmax.f32 %v2419, 0.0
      %v2452 = vmax.f32 %v2420, 0.0
      %v2453 = vmax.f32 %v2421, 0.0
      %v2454 = vmax.f32 %v2422, 0.0
      %v2455 = vmax.f32 %v2423, 0.0
      %v2456 = vmax.f32 %v2424, 0.0
      %s2457 = scalar_lea.vmem [#allocation3], 48
      %2458 = vst [vmem:[%s2457 + $0x2] sm:$0xff] %v2425
      %2459 = vst [vmem:[%s2457 + $0xa] sm:$0xff] %v2426
      %2460 = vst [vmem:[%s2457 + $0x1a] sm:$0xff] %v2427
      %2461 = vst [vmem:[%s2457 + $0x22] sm:$0xff] %v2428
      %2462 = vst [vmem:[%s2457 + $0x32] sm:$0xff] %v2429
      %2463 = vst [vmem:[%s2457 + $0x3a] sm:$0xff] %v2430
      %2464 = vst [vmem:[%s2457 + $0x4a] sm:$0xff] %v2431
      %2465 = vst [vmem:[%s2457 + $0x52] sm:$0xff] %v2432
      %2466 = vst [vmem:[%s2457 + $0x62] sm:$0xff] %v2433
      %2467 = vst [vmem:[%s2457 + $0x6a] sm:$0xff] %v2434
      %2468 = vst [vmem:[%s2457 + $0x7a] sm:$0xff] %v2435
      %2469 = vst [vmem:[%s2457 + $0x82] sm:$0xff] %v2436
      %2470 = vst [vmem:[%s2457 + $0x92] sm:$0xff] %v2437
      %2471 = vst [vmem:[%s2457 + $0x9a] sm:$0xff] %v2438
      %2472 = vst [vmem:[%s2457 + $0xaa] sm:$0xff] %v2439
      %2473 = vst [vmem:[%s2457 + $0xb2] sm:$0xff] %v2440
      %2474 = vst [vmem:[%s2457 + $0xc2] sm:$0xff] %v2441
      %2475 = vst [vmem:[%s2457 + $0xca] sm:$0xff] %v2442
      %2476 = vst [vmem:[%s2457 + $0xda] sm:$0xff] %v2443
      %2477 = vst [vmem:[%s2457 + $0xe2] sm:$0xff] %v2444
      %2478 = vst [vmem:[%s2457 + $0xf2] sm:$0xff] %v2445
      %2479 = vst [vmem:[%s2457 + $0xfa] sm:$0xff] %v2446
      %2480 = vst [vmem:[%s2457 + $0x10a] sm:$0xff] %v2447
      %2481 = vst [vmem:[%s2457 + $0x112] sm:$0xff] %v2448
      %2482 = vst [vmem:[%s2457 + $0x122] sm:$0xff] %v2449
      %2483 = vst [vmem:[%s2457 + $0x12a] sm:$0xff] %v2450
      %2484 = vst [vmem:[%s2457 + $0x13a] sm:$0xff] %v2451
      %2485 = vst [vmem:[%s2457 + $0x142] sm:$0xff] %v2452
      %2486 = vst [vmem:[%s2457 + $0x152] sm:$0xff] %v2453
      %2487 = vst [vmem:[%s2457 + $0x15a] sm:$0xff] %v2454
      %2488 = vst [vmem:[%s2457 + $0x16a] sm:$0xff] %v2455
      %2489 = vst [vmem:[%s2457 + $0x172] sm:$0xff] %v2456
      %v2490 = vld [vmem:[#allocation3] sm:$0xff]
      %v2491 = vld [vmem:[#allocation3 + $0x8] sm:$0xff]
      %v2492 = vld [vmem:[#allocation3 + $0x18] sm:$0xff]
      %v2493 = vld [vmem:[#allocation3 + $0x20] sm:$0xff]
      %v2494 = vld [vmem:[#allocation3 + $0x30] sm:$0xff]
      %v2495 = vld [vmem:[#allocation3 + $0x38] sm:$0xff]
      %v2496 = vld [vmem:[#allocation3 + $0x48] sm:$0xff]
      %v2497 = vld [vmem:[#allocation3 + $0x50] sm:$0xff]
      %v2498 = vld [vmem:[#allocation3 + $0x60] sm:$0xff]
      %v2499 = vld [vmem:[#allocation3 + $0x68] sm:$0xff]
      %v2500 = vld [vmem:[#allocation3 + $0x78] sm:$0xff]
      %v2501 = vld [vmem:[#allocation3 + $0x80] sm:$0xff]
      %v2502 = vld [vmem:[#allocation3 + $0x90] sm:$0xff]
      %v2503 = vld [vmem:[#allocation3 + $0x98] sm:$0xff]
      %v2504 = vld [vmem:[#allocation3 + $0xa8] sm:$0xff]
      %v2505 = vld [vmem:[#allocation3 + $0xb0] sm:$0xff]
      %v2506 = vld [vmem:[#allocation3 + $0xc0] sm:$0xff]
      %v2507 = vld [vmem:[#allocation3 + $0xc8] sm:$0xff]
      %v2508 = vld [vmem:[#allocation3 + $0xd8] sm:$0xff]
      %v2509 = vld [vmem:[#allocation3 + $0xe0] sm:$0xff]
      %v2510 = vld [vmem:[#allocation3 + $0xf0] sm:$0xff]
      %v2511 = vld [vmem:[#allocation3 + $0xf8] sm:$0xff]
      %v2512 = vld [vmem:[#allocation3 + $0x108] sm:$0xff]
      %v2513 = vld [vmem:[#allocation3 + $0x110] sm:$0xff]
      %v2514 = vld [vmem:[#allocation3 + $0x120] sm:$0xff]
      %v2515 = vld [vmem:[#allocation3 + $0x128] sm:$0xff]
      %v2516 = vld [vmem:[#allocation3 + $0x138] sm:$0xff]
      %v2517 = vld [vmem:[#allocation3 + $0x140] sm:$0xff]
      %v2518 = vld [vmem:[#allocation3 + $0x150] sm:$0xff]
      %v2519 = vld [vmem:[#allocation3 + $0x158] sm:$0xff]
      %v2520 = vld [vmem:[#allocation3 + $0x168] sm:$0xff]
      %v2521 = vld [vmem:[#allocation3 + $0x170] sm:$0xff]
      %v2522 = vld [vmem:[#allocation3 + $0x180] sm:$0xff]
      %v2523 = vld [vmem:[#allocation3 + $0x188] sm:$0xff]
      %v2524 = vld [vmem:[#allocation3 + $0x198] sm:$0xff]
      %v2525 = vld [vmem:[#allocation3 + $0x1a0] sm:$0xff]
      %v2526 = vld [vmem:[#allocation3 + $0x1b0] sm:$0xff]
      %v2527 = vld [vmem:[#allocation3 + $0x1b8] sm:$0xff]
      %v2528 = vld [vmem:[#allocation3 + $0x1c8] sm:$0xff]
      %v2529 = vld [vmem:[#allocation3 + $0x1d0] sm:$0xff]
      %v2530 = vld [vmem:[#allocation3 + $0x2] sm:$0xff]
      %v2531 = vld [vmem:[#allocation3 + $0xa] sm:$0xff]
      %v2532 = vld [vmem:[#allocation3 + $0x1a] sm:$0xff]
      %v2533 = vld [vmem:[#allocation3 + $0x22] sm:$0xff]
      %v2534 = vld [vmem:[#allocation3 + $0x32] sm:$0xff]
      %v2535 = vld [vmem:[#allocation3 + $0x3a] sm:$0xff]
      %v2536 = vld [vmem:[#allocation3 + $0x4a] sm:$0xff]
      %v2537 = vld [vmem:[#allocation3 + $0x52] sm:$0xff]
      %v2538 = vld [vmem:[#allocation3 + $0x62] sm:$0xff]
      %v2539 = vld [vmem:[#allocation3 + $0x6a] sm:$0xff]
      %v2540 = vld [vmem:[#allocation3 + $0x7a] sm:$0xff]
      %v2541 = vld [vmem:[#allocation3 + $0x82] sm:$0xff]
      %v2542 = vld [vmem:[#allocation3 + $0x92] sm:$0xff]
      %v2543 = vld [vmem:[#allocation3 + $0x9a] sm:$0xff]
      %v2544 = vld [vmem:[#allocation3 + $0xaa] sm:$0xff]
      %v2545 = vld [vmem:[#allocation3 + $0xb2] sm:$0xff]
      %v2546 = vld [vmem:[#allocation3 + $0xc2] sm:$0xff]
      %v2547 = vld [vmem:[#allocation3 + $0xca] sm:$0xff]
      %v2548 = vld [vmem:[#allocation3 + $0xda] sm:$0xff]
      %v2549 = vld [vmem:[#allocation3 + $0xe2] sm:$0xff]
      %v2550 = vld [vmem:[#allocation3 + $0xf2] sm:$0xff]
      %v2551 = vld [vmem:[#allocation3 + $0xfa] sm:$0xff]
      %v2552 = vld [vmem:[#allocation3 + $0x10a] sm:$0xff]
      %v2553 = vld [vmem:[#allocation3 + $0x112] sm:$0xff]
      %v2554 = vld [vmem:[#allocation3 + $0x122] sm:$0xff]
      %v2555 = vld [vmem:[#allocation3 + $0x12a] sm:$0xff]
      %v2556 = vld [vmem:[#allocation3 + $0x13a] sm:$0xff]
      %v2557 = vld [vmem:[#allocation3 + $0x142] sm:$0xff]
      %v2558 = vld [vmem:[#allocation3 + $0x152] sm:$0xff]
      %v2559 = vld [vmem:[#allocation3 + $0x15a] sm:$0xff]
      %v2560 = vld [vmem:[#allocation3 + $0x16a] sm:$0xff]
      %v2561 = vld [vmem:[#allocation3 + $0x172] sm:$0xff]
      %v2562 = vld [vmem:[#allocation3 + $0x182] sm:$0xff]
      %v2563 = vld [vmem:[#allocation3 + $0x18a] sm:$0xff]
      %v2564 = vld [vmem:[#allocation3 + $0x19a] sm:$0xff]
      %v2565 = vld [vmem:[#allocation3 + $0x1a2] sm:$0xff]
      %v2566 = vld [vmem:[#allocation3 + $0x1b2] sm:$0xff]
      %v2567 = vld [vmem:[#allocation3 + $0x1ba] sm:$0xff]
      %v2568 = vld [vmem:[#allocation3 + $0x1ca] sm:$0xff]
      %v2569 = vld [vmem:[#allocation3 + $0x1d2] sm:$0xff]
      %v2570 = vld [vmem:[#allocation3 + $0x4] sm:$0xff]
      %v2571 = vld [vmem:[#allocation3 + $0xc] sm:$0xff]
      %v2572 = vld [vmem:[#allocation3 + $0x1c] sm:$0xff]
      %v2573 = vld [vmem:[#allocation3 + $0x24] sm:$0xff]
      %v2574 = vld [vmem:[#allocation3 + $0x34] sm:$0xff]
      %v2575 = vld [vmem:[#allocation3 + $0x3c] sm:$0xff]
      %v2576 = vld [vmem:[#allocation3 + $0x4c] sm:$0xff]
      %v2577 = vld [vmem:[#allocation3 + $0x54] sm:$0xff]
      %v2578 = vld [vmem:[#allocation3 + $0x64] sm:$0xff]
      %v2579 = vld [vmem:[#allocation3 + $0x6c] sm:$0xff]
      %v2580 = vld [vmem:[#allocation3 + $0x7c] sm:$0xff]
      %v2581 = vld [vmem:[#allocation3 + $0x84] sm:$0xff]
      %v2582 = vld [vmem:[#allocation3 + $0x94] sm:$0xff]
      %v2583 = vld [vmem:[#allocation3 + $0x9c] sm:$0xff]
      %v2584 = vld [vmem:[#allocation3 + $0xac] sm:$0xff]
      %v2585 = vld [vmem:[#allocation3 + $0xb4] sm:$0xff]
      %v2586 = vld [vmem:[#allocation3 + $0xc4] sm:$0xff]
      %v2587 = vld [vmem:[#allocation3 + $0xcc] sm:$0xff]
      %v2588 = vld [vmem:[#allocation3 + $0xdc] sm:$0xff]
      %v2589 = vld [vmem:[#allocation3 + $0xe4] sm:$0xff]
      %v2590 = vld [vmem:[#allocation3 + $0xf4] sm:$0xff]
      %v2591 = vld [vmem:[#allocation3 + $0xfc] sm:$0xff]
      %v2592 = vld [vmem:[#allocation3 + $0x10c] sm:$0xff]
      %v2593 = vld [vmem:[#allocation3 + $0x114] sm:$0xff]
      %v2594 = vld [vmem:[#allocation3 + $0x124] sm:$0xff]
      %v2595 = vld [vmem:[#allocation3 + $0x12c] sm:$0xff]
      %v2596 = vld [vmem:[#allocation3 + $0x13c] sm:$0xff]
      %v2597 = vld [vmem:[#allocation3 + $0x144] sm:$0xff]
      %v2598 = vld [vmem:[#allocation3 + $0x154] sm:$0xff]
      %v2599 = vld [vmem:[#allocation3 + $0x15c] sm:$0xff]
      %v2600 = vld [vmem:[#allocation3 + $0x16c] sm:$0xff]
      %v2601 = vld [vmem:[#allocation3 + $0x174] sm:$0xff]
      %v2602 = vld [vmem:[#allocation3 + $0x184] sm:$0xff]
      %v2603 = vld [vmem:[#allocation3 + $0x18c] sm:$0xff]
      %v2604 = vld [vmem:[#allocation3 + $0x19c] sm:$0xff]
      %v2605 = vld [vmem:[#allocation3 + $0x1a4] sm:$0xff]
      %v2606 = vld [vmem:[#allocation3 + $0x1b4] sm:$0xff]
      %v2607 = vld [vmem:[#allocation3 + $0x1bc] sm:$0xff]
      %v2608 = vld [vmem:[#allocation3 + $0x1cc] sm:$0xff]
      %v2609 = vld [vmem:[#allocation3 + $0x1d4] sm:$0xff]
      %v2610 = vld [vmem:[%s5] sm:$0xff]
      %v2611 = vld [vmem:[%s5 + $0x8] sm:$0xff]
      %v2612 = vld [vmem:[%s5 + $0x10] sm:$0xff]
      %v2613 = vld [vmem:[%s5 + $0x18] sm:$0xff]
      %v2614 = vld [vmem:[%s5 + $0x20] sm:$0xff]
      %v2615 = vld [vmem:[%s5 + $0x28] sm:$0xff]
      %v2616 = vld [vmem:[%s5 + $0x30] sm:$0xff]
      %v2617 = vld [vmem:[%s5 + $0x38] sm:$0xff]
      %v2618 = vld [vmem:[%s5 + $0x40] sm:$0xff]
      %v2619 = vld [vmem:[%s5 + $0x48] sm:$0xff]
      %v2620 = vld [vmem:[%s5 + $0x50] sm:$0xff]
      %v2621 = vld [vmem:[%s5 + $0x58] sm:$0xff]
      %v2622 = vld [vmem:[%s5 + $0x60] sm:$0xff]
      %v2623 = vld [vmem:[%s5 + $0x68] sm:$0xff]
      %v2624 = vld [vmem:[%s5 + $0x70] sm:$0xff]
      %v2625 = vld [vmem:[%s5 + $0x78] sm:$0xff]
      %v2626 = vld [vmem:[%s5 + $0x80] sm:$0xff]
      %v2627 = vld [vmem:[%s5 + $0x88] sm:$0xff]
      %v2628 = vld [vmem:[%s5 + $0x90] sm:$0xff]
      %v2629 = vld [vmem:[%s5 + $0x98] sm:$0xff]
      %v2630 = vld [vmem:[%s5 + $0xa0] sm:$0xff]
      %v2631 = vld [vmem:[%s5 + $0xa8] sm:$0xff]
      %v2632 = vld [vmem:[%s5 + $0xb0] sm:$0xff]
      %v2633 = vld [vmem:[%s5 + $0xb8] sm:$0xff]
      %v2634 = vld [vmem:[%s5 + $0xc0] sm:$0xff]
      %v2635 = vld [vmem:[%s5 + $0xc8] sm:$0xff]
      %v2636 = vld [vmem:[%s5 + $0xd0] sm:$0xff]
      %v2637 = vld [vmem:[%s5 + $0xd8] sm:$0xff]
      %v2638 = vld [vmem:[%s5 + $0xe0] sm:$0xff]
      %v2639 = vld [vmem:[%s5 + $0xe8] sm:$0xff]
      %v2640 = vld [vmem:[%s5 + $0xf0] sm:$0xff]
      %v2641 = vld [vmem:[%s5 + $0xf8] sm:$0xff]
      %v2642 = vld [vmem:[%s5 + $0x100] sm:$0xff]
      %v2643 = vld [vmem:[%s5 + $0x108] sm:$0xff]
      %v2644 = vld [vmem:[%s5 + $0x110] sm:$0xff]
      %v2645 = vld [vmem:[%s5 + $0x118] sm:$0xff]
      %v2646 = vld [vmem:[%s5 + $0x120] sm:$0xff]
      %v2647 = vld [vmem:[%s5 + $0x128] sm:$0xff]
      %v2648 = vld [vmem:[%s5 + $0x130] sm:$0xff]
      %v2649 = vld [vmem:[%s5 + $0x138] sm:$0xff]
      %v2650 = vld [vmem:[%s5 + $0x140] sm:$0xff]
      %v2651 = vld [vmem:[%s5 + $0x148] sm:$0xff]
      %v2652 = vld [vmem:[%s5 + $0x150] sm:$0xff]
      %v2653 = vld [vmem:[%s5 + $0x158] sm:$0xff]
      %v2654 = vld [vmem:[%s5 + $0x160] sm:$0xff]
      %v2655 = vld [vmem:[%s5 + $0x168] sm:$0xff]
      %v2656 = vld [vmem:[%s5 + $0x170] sm:$0xff]
      %v2657 = vld [vmem:[%s5 + $0x178] sm:$0xff]
      %v2658 = vld [vmem:[%s5 + $0x180] sm:$0xff]
      %v2659 = vld [vmem:[%s5 + $0x188] sm:$0xff]
      %v2660 = vld [vmem:[%s5 + $0x190] sm:$0xff]
      %v2661 = vld [vmem:[%s5 + $0x198] sm:$0xff]
      %v2662 = vld [vmem:[%s5 + $0x1a0] sm:$0xff]
      %v2663 = vld [vmem:[%s5 + $0x1a8] sm:$0xff]
      %v2664 = vld [vmem:[%s5 + $0x1b0] sm:$0xff]
      %v2665 = vld [vmem:[%s5 + $0x1b8] sm:$0xff]
      %v2666 = vld [vmem:[%s5 + $0x1c0] sm:$0xff]
      %v2667 = vld [vmem:[%s5 + $0x1c8] sm:$0xff]
      %v2668 = vld [vmem:[%s5 + $0x1d0] sm:$0xff]
      %v2669 = vld [vmem:[%s5 + $0x1d8] sm:$0xff]
      %v2670 = vld [vmem:[%s5 + $0x1e0] sm:$0xff]
      %v2671 = vld [vmem:[%s5 + $0x1e8] sm:$0xff]
      %v2672 = vld [vmem:[%s5 + $0x1f0] sm:$0xff]
      %v2673 = vld [vmem:[%s5 + $0x1f8] sm:$0xff]
      %v2674 = vld [vmem:[%s5 + $0x200] sm:$0xff]
      %v2675 = vld [vmem:[%s5 + $0x208] sm:$0xff]
      %v2676 = vld [vmem:[%s5 + $0x210] sm:$0xff]
      %v2677 = vld [vmem:[%s5 + $0x218] sm:$0xff]
      %v2678 = vld [vmem:[%s5 + $0x220] sm:$0xff]
      %v2679 = vld [vmem:[%s5 + $0x228] sm:$0xff]
      %v2680 = vld [vmem:[%s5 + $0x230] sm:$0xff]
      %v2681 = vld [vmem:[%s5 + $0x238] sm:$0xff]
      %v2682 = vld [vmem:[%s5 + $0x240] sm:$0xff]
      %v2683 = vld [vmem:[%s5 + $0x248] sm:$0xff]
      %v2684 = vld [vmem:[%s5 + $0x250] sm:$0xff]
      %v2685 = vld [vmem:[%s5 + $0x258] sm:$0xff]
      %v2686 = vld [vmem:[%s5 + $0x260] sm:$0xff]
      %v2687 = vld [vmem:[%s5 + $0x268] sm:$0xff]
      %v2688 = vld [vmem:[%s5 + $0x270] sm:$0xff]
      %v2689 = vld [vmem:[%s5 + $0x278] sm:$0xff]
      %v2690 = vld [vmem:[%s5 + $0x280] sm:$0xff]
      %v2691 = vld [vmem:[%s5 + $0x288] sm:$0xff]
      %v2692 = vld [vmem:[%s5 + $0x290] sm:$0xff]
      %v2693 = vld [vmem:[%s5 + $0x298] sm:$0xff]
      %v2694 = vld [vmem:[%s5 + $0x2a0] sm:$0xff]
      %v2695 = vld [vmem:[%s5 + $0x2a8] sm:$0xff]
      %v2696 = vld [vmem:[%s5 + $0x2b0] sm:$0xff]
      %v2697 = vld [vmem:[%s5 + $0x2b8] sm:$0xff]
      %v2698 = vld [vmem:[%s5 + $0x2c0] sm:$0xff]
      %v2699 = vld [vmem:[%s5 + $0x2c8] sm:$0xff]
      %v2700 = vld [vmem:[%s5 + $0x2d0] sm:$0xff]
      %v2701 = vld [vmem:[%s5 + $0x2d8] sm:$0xff]
      %v2702 = vld [vmem:[%s5 + $0x2e0] sm:$0xff]
      %v2703 = vld [vmem:[%s5 + $0x2e8] sm:$0xff]
      %v2704 = vld [vmem:[%s5 + $0x2f0] sm:$0xff]
      %v2705 = vld [vmem:[%s5 + $0x2f8] sm:$0xff]
      %2706 = vmatprep.subr.mxu0 0.0
      %2707 = vmatpush1.msra.mxu0 %v2658
      %2708 = vmatprep.subr.mxu0 0.0
      %2709 = vmatpush1.msra.mxu0 %v2659
      %2710 = vmatprep.subr.mxu0 0.0
      %2711 = vmatpush1.msra.mxu0 %v2660
      %2712 = vmatprep.subr.mxu0 0.0
      %2713 = vmatpush1.msra.mxu0 %v2661
      %2714 = vmatprep.subr.mxu0 0.0
      %2715 = vmatpush1.msra.mxu0 %v2662
      %2716 = vmatprep.subr.mxu0 0.0
      %2717 = vmatpush1.msra.mxu0 %v2663
      %2718 = vmatprep.subr.mxu0 0.0
      %2719 = vmatpush1.msra.mxu0 %v2664
      %2720 = vmatprep.subr.mxu0 0.0
      %2721 = vmatpush1.msra.mxu0 %v2665
      %2722 = vmatprep.subr.mxu0 0.0
      %2723 = vmatpush1.msra.mxu0 %v2666
      %2724 = vmatprep.subr.mxu0 0.0
      %2725 = vmatpush1.msra.mxu0 %v2667
      %2726 = vmatprep.subr.mxu0 0.0
      %2727 = vmatpush1.msra.mxu0 %v2668
      %2728 = vmatprep.subr.mxu0 0.0
      %2729 = vmatpush1.msra.mxu0 %v2669
      %2730 = vmatprep.subr.mxu0 0.0
      %2731 = vmatpush1.msra.mxu0 %v2670
      %2732 = vmatprep.subr.mxu0 0.0
      %2733 = vmatpush1.msra.mxu0 %v2671
      %2734 = vmatprep.subr.mxu0 0.0
      %2735 = vmatpush1.msra.mxu0 %v2672
      %2736 = vmatprep.subr.mxu0 0.0
      %2737 = vmatpush1.msra.mxu0 %v2673
      %2738 = vmatprep.subr.mxu0 0.0
      %2739 = vmatpush1.msra.mxu0 %v2674
      %2740 = vmatprep.subr.mxu0 0.0
      %2741 = vmatpush1.msra.mxu0 %v2675
      %2742 = vmatprep.subr.mxu0 0.0
      %2743 = vmatpush1.msra.mxu0 %v2676
      %2744 = vmatprep.subr.mxu0 0.0
      %2745 = vmatpush1.msra.mxu0 %v2677
      %2746 = vmatprep.subr.mxu0 0.0
      %2747 = vmatpush1.msra.mxu0 %v2678
      %2748 = vmatprep.subr.mxu0 0.0
      %2749 = vmatpush1.msra.mxu0 %v2679
      %2750 = vmatprep.subr.mxu0 0.0
      %2751 = vmatpush1.msra.mxu0 %v2680
      %2752 = vmatprep.subr.mxu0 0.0
      %2753 = vmatpush1.msra.mxu0 %v2681
      %2754 = vmatprep.subr.mxu0 0.0
      %2755 = vmatpush1.msra.mxu0 %v2682
      %2756 = vmatprep.subr.mxu0 0.0
      %2757 = vmatpush1.msra.mxu0 %v2683
      %2758 = vmatprep.subr.mxu0 0.0
      %2759 = vmatpush1.msra.mxu0 %v2684
      %2760 = vmatprep.subr.mxu0 0.0
      %2761 = vmatpush1.msra.mxu0 %v2685
      %2762 = vmatprep.subr.mxu0 0.0
      %2763 = vmatpush1.msra.mxu0 %v2686
      %2764 = vmatprep.subr.mxu0 0.0
      %2765 = vmatpush1.msra.mxu0 %v2687
      %2766 = vmatprep.subr.mxu0 0.0
      %2767 = vmatpush1.msra.mxu0 %v2688
      %2768 = vmatprep.subr.mxu0 0.0
      %2769 = vmatpush1.msra.mxu0 %v2689
      %2770 = vmatprep.mubr.f32.mxu0 %v2534
      %2771 = vmatmul.mubr.f32.gmra.mrb[0].mxu0 %v2494
      %v2772 = vpop.f32.mrb[0].mxu0
      %v2773 = vadd.f32 0.0, %v2772
      %v2774 = vpop.f32.mrb[0].mxu0
      %2775 = vmatprep.mubr.f32.mxu0 %v2535
      %2776 = vmatmul.mubr.f32.gmra.mrb[0].mxu0 %v2495
      %v2777 = vpop.f32.mrb[0].mxu0
      %v2778 = vadd.f32 0.0, %v2777
      %v2779 = vpop.f32.mrb[0].mxu0
      %2780 = vmatprep.mubr.f32.mxu0 %v2536
      %2781 = vmatmul.mubr.f32.gmra.mrb[0].mxu0 %v2496
      %v2782 = vpop.f32.mrb[0].mxu0
      %v2783 = vadd.f32 0.0, %v2782
      %v2784 = vpop.f32.mrb[0].mxu0
      %2785 = vmatprep.mubr.f32.mxu0 %v2537
      %2786 = vmatmul.mubr.f32.gmra.mrb[0].mxu0 %v2497
      %v2787 = vpop.f32.mrb[0].mxu0
      %v2788 = vadd.f32 0.0, %v2787
      %v2789 = vpop.f32.mrb[0].mxu0
      %2790 = vmatprep.mubr.f32.mxu0 %v2538
      %2791 = vmatmul.mubr.f32.gmra.mrb[0].mxu0 %v2498
      %v2792 = vpop.f32.mrb[0].mxu0
      %v2793 = vadd.f32 0.0, %v2792
      %v2794 = vpop.f32.mrb[0].mxu0
      %2795 = vmatprep.mubr.f32.mxu0 %v2539
      %2796 = vmatmul.mubr.f32.gmra.mrb[0].mxu0 %v2499
      %v2797 = vpop.f32.mrb[0].mxu0
      %v2798 = vadd.f32 0.0, %v2797
      %v2799 = vpop.f32.mrb[0].mxu0
      %2800 = vmatprep.mubr.f32.mxu0 %v2540
      %2801 = vmatmul.mubr.f32.gmra.mrb[0].mxu0 %v2500
      %v2802 = vpop.f32.mrb[0].mxu0
      %v2803 = vadd.f32 0.0, %v2802
      %v2804 = vpop.f32.mrb[0].mxu0
      %2805 = vmatprep.mubr.f32.mxu0 %v2541
      %2806 = vmatmul.mubr.f32.gmra.mrb[0].mxu0 %v2501
      %v2807 = vpop.f32.mrb[0].mxu0
      %v2808 = vadd.f32 0.0, %v2807
      %v2809 = vpop.f32.mrb[0].mxu0
      %2810 = vmatprep.mubr.f32.mxu0 %v2542
      %2811 = vmatmul.mubr.f32.gmra.mrb[0].mxu0 %v2502
      %v2812 = vpop.f32.mrb[0].mxu0
      %v2813 = vadd.f32 0.0, %v2812
      %v2814 = vpop.f32.mrb[0].mxu0
      %2815 = vmatprep.mubr.f32.mxu0 %v2543
      %2816 = vmatmul.mubr.f32.gmra.mrb[0].mxu0 %v2503
      %v2817 = vpop.f32.mrb[0].mxu0
      %v2818 = vadd.f32 0.0, %v2817
      %v2819 = vpop.f32.mrb[0].mxu0
      %2820 = vmatprep.mubr.f32.mxu0 %v2544
      %2821 = vmatmul.mubr.f32.gmra.mrb[0].mxu0 %v2504
      %v2822 = vpop.f32.mrb[0].mxu0
      %v2823 = vadd.f32 0.0, %v2822
      %v2824 = vpop.f32.mrb[0].mxu0
      %2825 = vmatprep.mubr.f32.mxu0 %v2545
      %2826 = vmatmul.mubr.f32.gmra.mrb[0].mxu0 %v2505
      %v2827 = vpop.f32.mrb[0].mxu0
      %v2828 = vadd.f32 0.0, %v2827
      %v2829 = vpop.f32.mrb[0].mxu0
      %2830 = vmatprep.mubr.f32.mxu0 %v2546
      %2831 = vmatmul.mubr.f32.gmra.mrb[0].mxu0 %v2506
      %v2832 = vpop.f32.mrb[0].mxu0
      %v2833 = vadd.f32 0.0, %v2832
      %v2834 = vpop.f32.mrb[0].mxu0
      %2835 = vmatprep.mubr.f32.mxu0 %v2547
      %2836 = vmatmul.mubr.f32.gmra.mrb[0].mxu0 %v2507
      %v2837 = vpop.f32.mrb[0].mxu0
      %v2838 = vadd.f32 0.0, %v2837
      %v2839 = vpop.f32.mrb[0].mxu0
      %2840 = vmatprep.mubr.f32.mxu0 %v2548
      %2841 = vmatmul.mubr.f32.gmra.mrb[0].mxu0 %v2508
      %v2842 = vpop.f32.mrb[0].mxu0
      %v2843 = vadd.f32 0.0, %v2842
      %v2844 = vpop.f32.mrb[0].mxu0
      %2845 = vmatprep.mubr.f32.mxu0 %v2549
      %2846 = vmatmul.mubr.f32.gmra.mrb[0].mxu0 %v2509
      %v2847 = vpop.f32.mrb[0].mxu0
      %v2848 = vadd.f32 0.0, %v2847
      %v2849 = vpop.f32.mrb[0].mxu0
      %2850 = vmatprep.mubr.f32.mxu0 %v2550
      %2851 = vmatmul.mubr.f32.gmra.mrb[0].mxu0 %v2510
      %v2852 = vpop.f32.mrb[0].mxu0
      %v2853 = vadd.f32 0.0, %v2852
      %v2854 = vpop.f32.mrb[0].mxu0
      %2855 = vmatprep.mubr.f32.mxu0 %v2551
      %2856 = vmatmul.mubr.f32.gmra.mrb[0].mxu0 %v2511
      %v2857 = vpop.f32.mrb[0].mxu0
      %v2858 = vadd.f32 0.0, %v2857
      %v2859 = vpop.f32.mrb[0].mxu0
      %2860 = vmatprep.mubr.f32.mxu0 %v2552
      %2861 = vmatmul.mubr.f32.gmra.mrb[0].mxu0 %v2512
      %v2862 = vpop.f32.mrb[0].mxu0
      %v2863 = vadd.f32 0.0, %v2862
      %v2864 = vpop.f32.mrb[0].mxu0
      %2865 = vmatprep.mubr.f32.mxu0 %v2553
      %2866 = vmatmul.mubr.f32.gmra.mrb[0].mxu0 %v2513
      %v2867 = vpop.f32.mrb[0].mxu0
      %v2868 = vadd.f32 0.0, %v2867
      %v2869 = vpop.f32.mrb[0].mxu0
      %2870 = vmatprep.mubr.f32.mxu0 %v2554
      %2871 = vmatmul.mubr.f32.gmra.mrb[0].mxu0 %v2514
      %v2872 = vpop.f32.mrb[0].mxu0
      %v2873 = vadd.f32 0.0, %v2872
      %v2874 = vpop.f32.mrb[0].mxu0
      %2875 = vmatprep.mubr.f32.mxu0 %v2555
      %2876 = vmatmul.mubr.f32.gmra.mrb[0].mxu0 %v2515
      %v2877 = vpop.f32.mrb[0].mxu0
      %v2878 = vadd.f32 0.0, %v2877
      %v2879 = vpop.f32.mrb[0].mxu0
      %2880 = vmatprep.mubr.f32.mxu0 %v2556
      %2881 = vmatmul.mubr.f32.gmra.mrb[0].mxu0 %v2516
      %v2882 = vpop.f32.mrb[0].mxu0
      %v2883 = vadd.f32 0.0, %v2882
      %v2884 = vpop.f32.mrb[0].mxu0
      %2885 = vmatprep.mubr.f32.mxu0 %v2557
      %2886 = vmatmul.mubr.f32.gmra.mrb[0].mxu0 %v2517
      %v2887 = vpop.f32.mrb[0].mxu0
      %v2888 = vadd.f32 0.0, %v2887
      %v2889 = vpop.f32.mrb[0].mxu0
      %2890 = vmatprep.mubr.f32.mxu0 %v2558
      %2891 = vmatmul.mubr.f32.gmra.mrb[0].mxu0 %v2518
      %v2892 = vpop.f32.mrb[0].mxu0
      %v2893 = vadd.f32 0.0, %v2892
      %v2894 = vpop.f32.mrb[0].mxu0
      %2895 = vmatprep.mubr.f32.mxu0 %v2559
      %2896 = vmatmul.mubr.f32.gmra.mrb[0].mxu0 %v2519
      %v2897 = vpop.f32.mrb[0].mxu0
      %v2898 = vadd.f32 0.0, %v2897
      %v2899 = vpop.f32.mrb[0].mxu0
      %2900 = vmatprep.mubr.f32.mxu0 %v2560
      %2901 = vmatmul.mubr.f32.gmra.mrb[0].mxu0 %v2520
      %v2902 = vpop.f32.mrb[0].mxu0
      %v2903 = vadd.f32 0.0, %v2902
      %v2904 = vpop.f32.mrb[0].mxu0
      %2905 = vmatprep.mubr.f32.mxu0 %v2561
      %2906 = vmatmul.mubr.f32.gmra.mrb[0].mxu0 %v2521
      %v2907 = vpop.f32.mrb[0].mxu0
      %v2908 = vadd.f32 0.0, %v2907
      %v2909 = vpop.f32.mrb[0].mxu0
      %2910 = vmatprep.mubr.f32.mxu0 %v2562
      %2911 = vmatmul.mubr.f32.gmra.mrb[0].mxu0 %v2522
      %v2912 = vpop.f32.mrb[0].mxu0
      %v2913 = vadd.f32 0.0, %v2912
      %v2914 = vpop.f32.mrb[0].mxu0
      %2915 = vmatprep.mubr.f32.mxu0 %v2563
      %2916 = vmatmul.mubr.f32.gmra.mrb[0].mxu0 %v2523
      %v2917 = vpop.f32.mrb[0].mxu0
      %v2918 = vadd.f32 0.0, %v2917
      %v2919 = vpop.f32.mrb[0].mxu0
      %2920 = vmatprep.mubr.f32.mxu0 %v2564
      %2921 = vmatmul.mubr.f32.gmra.mrb[0].mxu0 %v2524
      %v2922 = vpop.f32.mrb[0].mxu0
      %v2923 = vadd.f32 0.0, %v2922
      %v2924 = vpop.f32.mrb[0].mxu0
      %2925 = vmatprep.mubr.f32.mxu0 %v2565
      %2926 = vmatmul.mubr.f32.gmra.mrb[0].mxu0 %v2525
      %v2927 = vpop.f32.mrb[0].mxu0
      %v2928 = vadd.f32 0.0, %v2927
      %v2929 = vpop.f32.mrb[0].mxu0
      %2930 = vdwg.mxu0
      %2931 = vmatprep.subr.mxu0 0.0
      %2932 = vmatpush1.msra.mxu0 %v2690
      %2933 = vmatprep.subr.mxu0 0.0
      %2934 = vmatpush1.msra.mxu0 %v2691
      %2935 = vmatprep.subr.mxu0 0.0
      %2936 = vmatpush1.msra.mxu0 %v2692
      %2937 = vmatprep.subr.mxu0 0.0
      %2938 = vmatpush1.msra.mxu0 %v2693
      %2939 = vmatprep.subr.mxu0 0.0
      %2940 = vmatpush1.msra.mxu0 %v2694
      %2941 = vmatprep.subr.mxu0 0.0
      %2942 = vmatpush1.msra.mxu0 %v2695
      %2943 = vmatprep.subr.mxu0 0.0
      %2944 = vmatpush1.msra.mxu0 %v2696
      %2945 = vmatprep.subr.mxu0 0.0
      %2946 = vmatpush1.msra.mxu0 %v2697
      %2947 = vmatprep.subr.mxu0 0.0
      %2948 = vmatpush1.msra.mxu0 %v2698
      %2949 = vmatprep.subr.mxu0 0.0
      %2950 = vmatpush1.msra.mxu0 %v2699
      %2951 = vmatprep.subr.mxu0 0.0
      %2952 = vmatpush1.msra.mxu0 %v2700
      %2953 = vmatprep.subr.mxu0 0.0
      %2954 = vmatpush1.msra.mxu0 %v2701
      %2955 = vmatprep.subr.mxu0 0.0
      %2956 = vmatpush1.msra.mxu0 %v2702
      %2957 = vmatprep.subr.mxu0 0.0
      %2958 = vmatpush1.msra.mxu0 %v2703
      %2959 = vmatprep.subr.mxu0 0.0
      %2960 = vmatpush1.msra.mxu0 %v2704
      %2961 = vmatprep.subr.mxu0 0.0
      %2962 = vmatpush1.msra.mxu0 %v2705
      %2963 = vmatprep.subr.mxu0 0.0
      %2964 = vmatpush1.msra.mxu0 0.0
      %2965 = vmatprep.subr.mxu0 0.0
      %2966 = vmatpush1.msra.mxu0 0.0
      %2967 = vmatprep.subr.mxu0 0.0
      %2968 = vmatpush1.msra.mxu0 0.0
      %2969 = vmatprep.subr.mxu0 0.0
      %2970 = vmatpush1.msra.mxu0 0.0
      %2971 = vmatprep.subr.mxu0 0.0
      %2972 = vmatpush1.msra.mxu0 0.0
      %2973 = vmatprep.subr.mxu0 0.0
      %2974 = vmatpush1.msra.mxu0 0.0
      %2975 = vmatprep.subr.mxu0 0.0
      %2976 = vmatpush1.msra.mxu0 0.0
      %2977 = vmatprep.subr.mxu0 0.0
      %2978 = vmatpush1.msra.mxu0 0.0
      %2979 = vmatprep.subr.mxu0 0.0
      %2980 = vmatpush1.msra.mxu0 0.0
      %2981 = vmatprep.subr.mxu0 0.0
      %2982 = vmatpush1.msra.mxu0 0.0
      %2983 = vmatprep.subr.mxu0 0.0
      %2984 = vmatpush1.msra.mxu0 0.0
      %2985 = vmatprep.subr.mxu0 0.0
      %2986 = vmatpush1.msra.mxu0 0.0
      %2987 = vmatprep.subr.mxu0 0.0
      %2988 = vmatpush1.msra.mxu0 0.0
      %2989 = vmatprep.subr.mxu0 0.0
      %2990 = vmatpush1.msra.mxu0 0.0
      %2991 = vmatprep.subr.mxu0 0.0
      %2992 = vmatpush1.msra.mxu0 0.0
      %2993 = vmatprep.subr.mxu0 0.0
      %2994 = vmatpush1.msra.mxu0 0.0
      %2995 = vmatprep.mubr.f32.mxu0 0.0
      %2996 = vmatmul.mubr.f32.gmra.mrb[0].mxu0 %v2574
      %v2997 = vpop.f32.mrb[0].mxu0
      %v2998 = vadd.f32 %v2773, %v2997
      %v2999 = vpop.f32.mrb[0].mxu0
      %3000 = vmatprep.mubr.f32.mxu0 0.0
      %3001 = vmatmul.mubr.f32.gmra.mrb[0].mxu0 %v2575
      %v3002 = vpop.f32.mrb[0].mxu0
      %v3003 = vadd.f32 %v2778, %v3002
      %v3004 = vpop.f32.mrb[0].mxu0
      %3005 = vmatprep.mubr.f32.mxu0 0.0
      %3006 = vmatmul.mubr.f32.gmra.mrb[0].mxu0 %v2576
      %v3007 = vpop.f32.mrb[0].mxu0
      %v3008 = vadd.f32 %v2783, %v3007
      %v3009 = vpop.f32.mrb[0].mxu0
      %3010 = vmatprep.mubr.f32.mxu0 0.0
      %3011 = vmatmul.mubr.f32.gmra.mrb[0].mxu0 %v2577
      %v3012 = vpop.f32.mrb[0].mxu0
      %v3013 = vadd.f32 %v2788, %v3012
      %v3014 = vpop.f32.mrb[0].mxu0
      %3015 = vmatprep.mubr.f32.mxu0 0.0
      %3016 = vmatmul.mubr.f32.gmra.mrb[0].mxu0 %v2578
      %v3017 = vpop.f32.mrb[0].mxu0
      %v3018 = vadd.f32 %v2793, %v3017
      %v3019 = vpop.f32.mrb[0].mxu0
      %3020 = vmatprep.mubr.f32.mxu0 0.0
      %3021 = vmatmul.mubr.f32.gmra.mrb[0].mxu0 %v2579
      %v3022 = vpop.f32.mrb[0].mxu0
      %v3023 = vadd.f32 %v2798, %v3022
      %v3024 = vpop.f32.mrb[0].mxu0
      %3025 = vmatprep.mubr.f32.mxu0 0.0
      %3026 = vmatmul.mubr.f32.gmra.mrb[0].mxu0 %v2580
      %v3027 = vpop.f32.mrb[0].mxu0
      %v3028 = vadd.f32 %v2803, %v3027
      %v3029 = vpop.f32.mrb[0].mxu0
      %3030 = vmatprep.mubr.f32.mxu0 0.0
      %3031 = vmatmul.mubr.f32.gmra.mrb[0].mxu0 %v2581
      %v3032 = vpop.f32.mrb[0].mxu0
      %v3033 = vadd.f32 %v2808, %v3032
      %v3034 = vpop.f32.mrb[0].mxu0
      %3035 = vmatprep.mubr.f32.mxu0 0.0
      %3036 = vmatmul.mubr.f32.gmra.mrb[0].mxu0 %v2582
      %v3037 = vpop.f32.mrb[0].mxu0
      %v3038 = vadd.f32 %v2813, %v3037
      %v3039 = vpop.f32.mrb[0].mxu0
      %3040 = vmatprep.mubr.f32.mxu0 0.0
      %3041 = vmatmul.mubr.f32.gmra.mrb[0].mxu0 %v2583
      %v3042 = vpop.f32.mrb[0].mxu0
      %v3043 = vadd.f32 %v2818, %v3042
      %v3044 = vpop.f32.mrb[0].mxu0
      %3045 = vmatprep.mubr.f32.mxu0 0.0
      %3046 = vmatmul.mubr.f32.gmra.mrb[0].mxu0 %v2584
      %v3047 = vpop.f32.mrb[0].mxu0
      %v3048 = vadd.f32 %v2823, %v3047
      %v3049 = vpop.f32.mrb[0].mxu0
      %3050 = vmatprep.mubr.f32.mxu0 0.0
      %3051 = vmatmul.mubr.f32.gmra.mrb[0].mxu0 %v2585
      %v3052 = vpop.f32.mrb[0].mxu0
      %v3053 = vadd.f32 %v2828, %v3052
      %v3054 = vpop.f32.mrb[0].mxu0
      %3055 = vmatprep.mubr.f32.mxu0 0.0
      %3056 = vmatmul.mubr.f32.gmra.mrb[0].mxu0 %v2586
      %v3057 = vpop.f32.mrb[0].mxu0
      %v3058 = vadd.f32 %v2833, %v3057
      %v3059 = vpop.f32.mrb[0].mxu0
      %3060 = vmatprep.mubr.f32.mxu0 0.0
      %3061 = vmatmul.mubr.f32.gmra.mrb[0].mxu0 %v2587
      %v3062 = vpop.f32.mrb[0].mxu0
      %v3063 = vadd.f32 %v2838, %v3062
      %v3064 = vpop.f32.mrb[0].mxu0
      %3065 = vmatprep.mubr.f32.mxu0 0.0
      %3066 = vmatmul.mubr.f32.gmra.mrb[0].mxu0 %v2588
      %v3067 = vpop.f32.mrb[0].mxu0
      %v3068 = vadd.f32 %v2843, %v3067
      %v3069 = vpop.f32.mrb[0].mxu0
      %3070 = vmatprep.mubr.f32.mxu0 0.0
      %3071 = vmatmul.mubr.f32.gmra.mrb[0].mxu0 %v2589
      %v3072 = vpop.f32.mrb[0].mxu0
      %v3073 = vadd.f32 %v2848, %v3072
      %v3074 = vpop.f32.mrb[0].mxu0
      %3075 = vmatprep.mubr.f32.mxu0 0.0
      %3076 = vmatmul.mubr.f32.gmra.mrb[0].mxu0 %v2590
      %v3077 = vpop.f32.mrb[0].mxu0
      %v3078 = vadd.f32 %v2853, %v3077
      %v3079 = vpop.f32.mrb[0].mxu0
      %3080 = vmatprep.mubr.f32.mxu0 0.0
      %3081 = vmatmul.mubr.f32.gmra.mrb[0].mxu0 %v2591
      %v3082 = vpop.f32.mrb[0].mxu0
      %v3083 = vadd.f32 %v2858, %v3082
      %v3084 = vpop.f32.mrb[0].mxu0
      %3085 = vmatprep.mubr.f32.mxu0 0.0
      %3086 = vmatmul.mubr.f32.gmra.mrb[0].mxu0 %v2592
      %v3087 = vpop.f32.mrb[0].mxu0
      %v3088 = vadd.f32 %v2863, %v3087
      %v3089 = vpop.f32.mrb[0].mxu0
      %3090 = vmatprep.mubr.f32.mxu0 0.0
      %3091 = vmatmul.mubr.f32.gmra.mrb[0].mxu0 %v2593
      %v3092 = vpop.f32.mrb[0].mxu0
      %v3093 = vadd.f32 %v2868, %v3092
      %v3094 = vpop.f32.mrb[0].mxu0
      %3095 = vmatprep.mubr.f32.mxu0 0.0
      %3096 = vmatmul.mubr.f32.gmra.mrb[0].mxu0 %v2594
      %v3097 = vpop.f32.mrb[0].mxu0
      %v3098 = vadd.f32 %v2873, %v3097
      %v3099 = vpop.f32.mrb[0].mxu0
      %3100 = vmatprep.mubr.f32.mxu0 0.0
      %3101 = vmatmul.mubr.f32.gmra.mrb[0].mxu0 %v2595
      %v3102 = vpop.f32.mrb[0].mxu0
      %v3103 = vadd.f32 %v2878, %v3102
      %v3104 = vpop.f32.mrb[0].mxu0
      %3105 = vmatprep.mubr.f32.mxu0 0.0
      %3106 = vmatmul.mubr.f32.gmra.mrb[0].mxu0 %v2596
      %v3107 = vpop.f32.mrb[0].mxu0
      %v3108 = vadd.f32 %v2883, %v3107
      %v3109 = vpop.f32.mrb[0].mxu0
      %3110 = vmatprep.mubr.f32.mxu0 0.0
      %3111 = vmatmul.mubr.f32.gmra.mrb[0].mxu0 %v2597
      %v3112 = vpop.f32.mrb[0].mxu0
      %v3113 = vadd.f32 %v2888, %v3112
      %v3114 = vpop.f32.mrb[0].mxu0
      %3115 = vmatprep.mubr.f32.mxu0 0.0
      %3116 = vmatmul.mubr.f32.gmra.mrb[0].mxu0 %v2598
      %v3117 = vpop.f32.mrb[0].mxu0
      %v3118 = vadd.f32 %v2893, %v3117
      %v3119 = vpop.f32.mrb[0].mxu0
      %3120 = vmatprep.mubr.f32.mxu0 0.0
      %3121 = vmatmul.mubr.f32.gmra.mrb[0].mxu0 %v2599
      %v3122 = vpop.f32.mrb[0].mxu0
      %v3123 = vadd.f32 %v2898, %v3122
      %v3124 = vpop.f32.mrb[0].mxu0
      %3125 = vmatprep.mubr.f32.mxu0 0.0
      %3126 = vmatmul.mubr.f32.gmra.mrb[0].mxu0 %v2600
      %v3127 = vpop.f32.mrb[0].mxu0
      %v3128 = vadd.f32 %v2903, %v3127
      %v3129 = vpop.f32.mrb[0].mxu0
      %3130 = vmatprep.mubr.f32.mxu0 0.0
      %3131 = vmatmul.mubr.f32.gmra.mrb[0].mxu0 %v2601
      %v3132 = vpop.f32.mrb[0].mxu0
      %v3133 = vadd.f32 %v2908, %v3132
      %v3134 = vpop.f32.mrb[0].mxu0
      %3135 = vmatprep.mubr.f32.mxu0 0.0
      %3136 = vmatmul.mubr.f32.gmra.mrb[0].mxu0 %v2602
      %v3137 = vpop.f32.mrb[0].mxu0
      %v3138 = vadd.f32 %v2913, %v3137
      %v3139 = vpop.f32.mrb[0].mxu0
      %3140 = vmatprep.mubr.f32.mxu0 0.0
      %3141 = vmatmul.mubr.f32.gmra.mrb[0].mxu0 %v2603
      %v3142 = vpop.f32.mrb[0].mxu0
      %v3143 = vadd.f32 %v2918, %v3142
      %v3144 = vpop.f32.mrb[0].mxu0
      %3145 = vmatprep.mubr.f32.mxu0 0.0
      %3146 = vmatmul.mubr.f32.gmra.mrb[0].mxu0 %v2604
      %v3147 = vpop.f32.mrb[0].mxu0
      %v3148 = vadd.f32 %v2923, %v3147
      %v3149 = vpop.f32.mrb[0].mxu0
      %3150 = vmatprep.mubr.f32.mxu0 0.0
      %3151 = vmatmul.mubr.f32.gmra.mrb[0].mxu0 %v2605
      %v3152 = vpop.f32.mrb[0].mxu0
      %v3153 = vadd.f32 %v2928, %v3152
      %v3154 = vpop.f32.mrb[0].mxu0
      %3155 = vdwg.mxu0
      %3156 = vmatprep.subr.mxu0 0.0
      %3157 = vmatpush1.msra.mxu0 %v2610
      %3158 = vmatprep.subr.mxu0 0.0
      %3159 = vmatpush1.msra.mxu0 %v2611
      %3160 = vmatprep.subr.mxu0 0.0
      %3161 = vmatpush1.msra.mxu0 %v2612
      %3162 = vmatprep.subr.mxu0 0.0
      %3163 = vmatpush1.msra.mxu0 %v2613
      %3164 = vmatprep.subr.mxu0 0.0
      %3165 = vmatpush1.msra.mxu0 %v2614
      %3166 = vmatprep.subr.mxu0 0.0
      %3167 = vmatpush1.msra.mxu0 %v2615
      %3168 = vmatprep.subr.mxu0 0.0
      %3169 = vmatpush1.msra.mxu0 %v2616
      %3170 = vmatprep.subr.mxu0 0.0
      %3171 = vmatpush1.msra.mxu0 %v2617
      %3172 = vmatprep.subr.mxu0 0.0
      %3173 = vmatpush1.msra.mxu0 %v2618
      %3174 = vmatprep.subr.mxu0 0.0
      %3175 = vmatpush1.msra.mxu0 %v2619
      %3176 = vmatprep.subr.mxu0 0.0
      %3177 = vmatpush1.msra.mxu0 %v2620
      %3178 = vmatprep.subr.mxu0 0.0
      %3179 = vmatpush1.msra.mxu0 %v2621
      %3180 = vmatprep.subr.mxu0 0.0
      %3181 = vmatpush1.msra.mxu0 %v2622
      %3182 = vmatprep.subr.mxu0 0.0
      %3183 = vmatpush1.msra.mxu0 %v2623
      %3184 = vmatprep.subr.mxu0 0.0
      %3185 = vmatpush1.msra.mxu0 %v2624
      %3186 = vmatprep.subr.mxu0 0.0
      %3187 = vmatpush1.msra.mxu0 %v2625
      %3188 = vmatprep.subr.mxu0 0.0
      %3189 = vmatpush1.msra.mxu0 %v2626
      %3190 = vmatprep.subr.mxu0 0.0
      %3191 = vmatpush1.msra.mxu0 %v2627
      %3192 = vmatprep.subr.mxu0 0.0
      %3193 = vmatpush1.msra.mxu0 %v2628
      %3194 = vmatprep.subr.mxu0 0.0
      %3195 = vmatpush1.msra.mxu0 %v2629
      %3196 = vmatprep.subr.mxu0 0.0
      %3197 = vmatpush1.msra.mxu0 %v2630
      %3198 = vmatprep.subr.mxu0 0.0
      %3199 = vmatpush1.msra.mxu0 %v2631
      %3200 = vmatprep.subr.mxu0 0.0
      %3201 = vmatpush1.msra.mxu0 %v2632
      %3202 = vmatprep.subr.mxu0 0.0
      %3203 = vmatpush1.msra.mxu0 %v2633
      %3204 = vmatprep.subr.mxu0 0.0
      %3205 = vmatpush1.msra.mxu0 %v2634
      %3206 = vmatprep.subr.mxu0 0.0
      %3207 = vmatpush1.msra.mxu0 %v2635
      %3208 = vmatprep.subr.mxu0 0.0
      %3209 = vmatpush1.msra.mxu0 %v2636
      %3210 = vmatprep.subr.mxu0 0.0
      %3211 = vmatpush1.msra.mxu0 %v2637
      %3212 = vmatprep.subr.mxu0 0.0
      %3213 = vmatpush1.msra.mxu0 %v2638
      %3214 = vmatprep.subr.mxu0 0.0
      %3215 = vmatpush1.msra.mxu0 %v2639
      %3216 = vmatprep.subr.mxu0 0.0
      %3217 = vmatpush1.msra.mxu0 %v2640
      %3218 = vmatprep.subr.mxu0 0.0
      %3219 = vmatpush1.msra.mxu0 %v2641
      %3220 = vmatprep.mubr.f32.mxu0 %v2530
      %3221 = vmatmul.mubr.f32.gmra.mrb[0].mxu0 %v2490
      %v3222 = vpop.f32.mrb[0].mxu0
      %v3223 = vadd.f32 %v2998, %v3222
      %v3224 = vpop.f32.mrb[0].mxu0
      %3225 = vmatprep.mubr.f32.mxu0 %v2531
      %3226 = vmatmul.mubr.f32.gmra.mrb[0].mxu0 %v2491
      %v3227 = vpop.f32.mrb[0].mxu0
      %v3228 = vadd.f32 %v3003, %v3227
      %v3229 = vpop.f32.mrb[0].mxu0
      %3230 = vmatprep.mubr.f32.mxu0 %v2532
      %3231 = vmatmul.mubr.f32.gmra.mrb[0].mxu0 %v2492
      %v3232 = vpop.f32.mrb[0].mxu0
      %v3233 = vadd.f32 %v3008, %v3232
      %v3234 = vpop.f32.mrb[0].mxu0
      %3235 = vmatprep.mubr.f32.mxu0 %v2533
      %3236 = vmatmul.mubr.f32.gmra.mrb[0].mxu0 %v2493
      %v3237 = vpop.f32.mrb[0].mxu0
      %v3238 = vadd.f32 %v3013, %v3237
      %v3239 = vpop.f32.mrb[0].mxu0
      %3240 = vmatprep.mubr.f32.mxu0 %v2534
      %3241 = vmatmul.mubr.f32.gmra.mrb[0].mxu0 %v2494
      %v3242 = vpop.f32.mrb[0].mxu0
      %v3243 = vadd.f32 %v3018, %v3242
      %v3244 = vpop.f32.mrb[0].mxu0
      %3245 = vmatprep.mubr.f32.mxu0 %v2535
      %3246 = vmatmul.mubr.f32.gmra.mrb[0].mxu0 %v2495
      %v3247 = vpop.f32.mrb[0].mxu0
      %v3248 = vadd.f32 %v3023, %v3247
      %v3249 = vpop.f32.mrb[0].mxu0
      %3250 = vmatprep.mubr.f32.mxu0 %v2536
      %3251 = vmatmul.mubr.f32.gmra.mrb[0].mxu0 %v2496
      %v3252 = vpop.f32.mrb[0].mxu0
      %v3253 = vadd.f32 %v3028, %v3252
      %v3254 = vpop.f32.mrb[0].mxu0
      %3255 = vmatprep.mubr.f32.mxu0 %v2537
      %3256 = vmatmul.mubr.f32.gmra.mrb[0].mxu0 %v2497
      %v3257 = vpop.f32.mrb[0].mxu0
      %v3258 = vadd.f32 %v3033, %v3257
      %v3259 = vpop.f32.mrb[0].mxu0
      %3260 = vmatprep.mubr.f32.mxu0 %v2538
      %3261 = vmatmul.mubr.f32.gmra.mrb[0].mxu0 %v2498
      %v3262 = vpop.f32.mrb[0].mxu0
      %v3263 = vadd.f32 %v3038, %v3262
      %v3264 = vpop.f32.mrb[0].mxu0
      %3265 = vmatprep.mubr.f32.mxu0 %v2539
      %3266 = vmatmul.mubr.f32.gmra.mrb[0].mxu0 %v2499
      %v3267 = vpop.f32.mrb[0].mxu0
      %v3268 = vadd.f32 %v3043, %v3267
      %v3269 = vpop.f32.mrb[0].mxu0
      %3270 = vmatprep.mubr.f32.mxu0 %v2540
      %3271 = vmatmul.mubr.f32.gmra.mrb[0].mxu0 %v2500
      %v3272 = vpop.f32.mrb[0].mxu0
      %v3273 = vadd.f32 %v3048, %v3272
      %v3274 = vpop.f32.mrb[0].mxu0
      %3275 = vmatprep.mubr.f32.mxu0 %v2541
      %3276 = vmatmul.mubr.f32.gmra.mrb[0].mxu0 %v2501
      %v3277 = vpop.f32.mrb[0].mxu0
      %v3278 = vadd.f32 %v3053, %v3277
      %v3279 = vpop.f32.mrb[0].mxu0
      %3280 = vmatprep.mubr.f32.mxu0 %v2542
      %3281 = vmatmul.mubr.f32.gmra.mrb[0].mxu0 %v2502
      %v3282 = vpop.f32.mrb[0].mxu0
      %v3283 = vadd.f32 %v3058, %v3282
      %v3284 = vpop.f32.mrb[0].mxu0
      %3285 = vmatprep.mubr.f32.mxu0 %v2543
      %3286 = vmatmul.mubr.f32.gmra.mrb[0].mxu0 %v2503
      %v3287 = vpop.f32.mrb[0].mxu0
      %v3288 = vadd.f32 %v3063, %v3287
      %v3289 = vpop.f32.mrb[0].mxu0
      %3290 = vmatprep.mubr.f32.mxu0 %v2544
      %3291 = vmatmul.mubr.f32.gmra.mrb[0].mxu0 %v2504
      %v3292 = vpop.f32.mrb[0].mxu0
      %v3293 = vadd.f32 %v3068, %v3292
      %v3294 = vpop.f32.mrb[0].mxu0
      %3295 = vmatprep.mubr.f32.mxu0 %v2545
      %3296 = vmatmul.mubr.f32.gmra.mrb[0].mxu0 %v2505
      %v3297 = vpop.f32.mrb[0].mxu0
      %v3298 = vadd.f32 %v3073, %v3297
      %v3299 = vpop.f32.mrb[0].mxu0
      %3300 = vmatprep.mubr.f32.mxu0 %v2546
      %3301 = vmatmul.mubr.f32.gmra.mrb[0].mxu0 %v2506
      %v3302 = vpop.f32.mrb[0].mxu0
      %v3303 = vadd.f32 %v3078, %v3302
      %v3304 = vpop.f32.mrb[0].mxu0
      %3305 = vmatprep.mubr.f32.mxu0 %v2547
      %3306 = vmatmul.mubr.f32.gmra.mrb[0].mxu0 %v2507
      %v3307 = vpop.f32.mrb[0].mxu0
      %v3308 = vadd.f32 %v3083, %v3307
      %v3309 = vpop.f32.mrb[0].mxu0
      %3310 = vmatprep.mubr.f32.mxu0 %v2548
      %3311 = vmatmul.mubr.f32.gmra.mrb[0].mxu0 %v2508
      %v3312 = vpop.f32.mrb[0].mxu0
      %v3313 = vadd.f32 %v3088, %v3312
      %v3314 = vpop.f32.mrb[0].mxu0
      %3315 = vmatprep.mubr.f32.mxu0 %v2549
      %3316 = vmatmul.mubr.f32.gmra.mrb[0].mxu0 %v2509
      %v3317 = vpop.f32.mrb[0].mxu0
      %v3318 = vadd.f32 %v3093, %v3317
      %v3319 = vpop.f32.mrb[0].mxu0
      %3320 = vmatprep.mubr.f32.mxu0 %v2550
      %3321 = vmatmul.mubr.f32.gmra.mrb[0].mxu0 %v2510
      %v3322 = vpop.f32.mrb[0].mxu0
      %v3323 = vadd.f32 %v3098, %v3322
      %v3324 = vpop.f32.mrb[0].mxu0
      %3325 = vmatprep.mubr.f32.mxu0 %v2551
      %3326 = vmatmul.mubr.f32.gmra.mrb[0].mxu0 %v2511
      %v3327 = vpop.f32.mrb[0].mxu0
      %v3328 = vadd.f32 %v3103, %v3327
      %v3329 = vpop.f32.mrb[0].mxu0
      %3330 = vmatprep.mubr.f32.mxu0 %v2552
      %3331 = vmatmul.mubr.f32.gmra.mrb[0].mxu0 %v2512
      %v3332 = vpop.f32.mrb[0].mxu0
      %v3333 = vadd.f32 %v3108, %v3332
      %v3334 = vpop.f32.mrb[0].mxu0
      %3335 = vmatprep.mubr.f32.mxu0 %v2553
      %3336 = vmatmul.mubr.f32.gmra.mrb[0].mxu0 %v2513
      %v3337 = vpop.f32.mrb[0].mxu0
      %v3338 = vadd.f32 %v3113, %v3337
      %v3339 = vpop.f32.mrb[0].mxu0
      %3340 = vmatprep.mubr.f32.mxu0 %v2554
      %3341 = vmatmul.mubr.f32.gmra.mrb[0].mxu0 %v2514
      %v3342 = vpop.f32.mrb[0].mxu0
      %v3343 = vadd.f32 %v3118, %v3342
      %v3344 = vpop.f32.mrb[0].mxu0
      %3345 = vmatprep.mubr.f32.mxu0 %v2555
      %3346 = vmatmul.mubr.f32.gmra.mrb[0].mxu0 %v2515
      %v3347 = vpop.f32.mrb[0].mxu0
      %v3348 = vadd.f32 %v3123, %v3347
      %v3349 = vpop.f32.mrb[0].mxu0
      %3350 = vmatprep.mubr.f32.mxu0 %v2556
      %3351 = vmatmul.mubr.f32.gmra.mrb[0].mxu0 %v2516
      %v3352 = vpop.f32.mrb[0].mxu0
      %v3353 = vadd.f32 %v3128, %v3352
      %v3354 = vpop.f32.mrb[0].mxu0
      %3355 = vmatprep.mubr.f32.mxu0 %v2557
      %3356 = vmatmul.mubr.f32.gmra.mrb[0].mxu0 %v2517
      %v3357 = vpop.f32.mrb[0].mxu0
      %v3358 = vadd.f32 %v3133, %v3357
      %v3359 = vpop.f32.mrb[0].mxu0
      %3360 = vmatprep.mubr.f32.mxu0 %v2558
      %3361 = vmatmul.mubr.f32.gmra.mrb[0].mxu0 %v2518
      %v3362 = vpop.f32.mrb[0].mxu0
      %v3363 = vadd.f32 %v3138, %v3362
      %v3364 = vpop.f32.mrb[0].mxu0
      %3365 = vmatprep.mubr.f32.mxu0 %v2559
      %3366 = vmatmul.mubr.f32.gmra.mrb[0].mxu0 %v2519
      %v3367 = vpop.f32.mrb[0].mxu0
      %v3368 = vadd.f32 %v3143, %v3367
      %v3369 = vpop.f32.mrb[0].mxu0
      %3370 = vmatprep.mubr.f32.mxu0 %v2560
      %3371 = vmatmul.mubr.f32.gmra.mrb[0].mxu0 %v2520
      %v3372 = vpop.f32.mrb[0].mxu0
      %v3373 = vadd.f32 %v3148, %v3372
      %v3374 = vpop.f32.mrb[0].mxu0
      %3375 = vmatprep.mubr.f32.mxu0 %v2561
      %3376 = vmatmul.mubr.f32.gmra.mrb[0].mxu0 %v2521
      %v3377 = vpop.f32.mrb[0].mxu0
      %v3378 = vadd.f32 %v3153, %v3377
      %v3379 = vpop.f32.mrb[0].mxu0
      %3380 = vdwg.mxu0
      %3381 = vmatprep.subr.mxu0 0.0
      %3382 = vmatpush1.msra.mxu0 %v2642
      %3383 = vmatprep.subr.mxu0 0.0
      %3384 = vmatpush1.msra.mxu0 %v2643
      %3385 = vmatprep.subr.mxu0 0.0
      %3386 = vmatpush1.msra.mxu0 %v2644
      %3387 = vmatprep.subr.mxu0 0.0
      %3388 = vmatpush1.msra.mxu0 %v2645
      %3389 = vmatprep.subr.mxu0 0.0
      %3390 = vmatpush1.msra.mxu0 %v2646
      %3391 = vmatprep.subr.mxu0 0.0
      %3392 = vmatpush1.msra.mxu0 %v2647
      %3393 = vmatprep.subr.mxu0 0.0
      %3394 = vmatpush1.msra.mxu0 %v2648
      %3395 = vmatprep.subr.mxu0 0.0
      %3396 = vmatpush1.msra.mxu0 %v2649
      %3397 = vmatprep.subr.mxu0 0.0
      %3398 = vmatpush1.msra.mxu0 %v2650
      %3399 = vmatprep.subr.mxu0 0.0
      %3400 = vmatpush1.msra.mxu0 %v2651
      %3401 = vmatprep.subr.mxu0 0.0
      %3402 = vmatpush1.msra.mxu0 %v2652
      %3403 = vmatprep.subr.mxu0 0.0
      %3404 = vmatpush1.msra.mxu0 %v2653
      %3405 = vmatprep.subr.mxu0 0.0
      %3406 = vmatpush1.msra.mxu0 %v2654
      %3407 = vmatprep.subr.mxu0 0.0
      %3408 = vmatpush1.msra.mxu0 %v2655
      %3409 = vmatprep.subr.mxu0 0.0
      %3410 = vmatpush1.msra.mxu0 %v2656
      %3411 = vmatprep.subr.mxu0 0.0
      %3412 = vmatpush1.msra.mxu0 %v2657
      %3413 = vmatprep.subr.mxu0 0.0
      %3414 = vmatpush1.msra.mxu0 0.0
      %3415 = vmatprep.subr.mxu0 0.0
      %3416 = vmatpush1.msra.mxu0 0.0
      %3417 = vmatprep.subr.mxu0 0.0
      %3418 = vmatpush1.msra.mxu0 0.0
      %3419 = vmatprep.subr.mxu0 0.0
      %3420 = vmatpush1.msra.mxu0 0.0
      %3421 = vmatprep.subr.mxu0 0.0
      %3422 = vmatpush1.msra.mxu0 0.0
      %3423 = vmatprep.subr.mxu0 0.0
      %3424 = vmatpush1.msra.mxu0 0.0
      %3425 = vmatprep.subr.mxu0 0.0
      %3426 = vmatpush1.msra.mxu0 0.0
      %3427 = vmatprep.subr.mxu0 0.0
      %3428 = vmatpush1.msra.mxu0 0.0
      %3429 = vmatprep.subr.mxu0 0.0
      %3430 = vmatpush1.msra.mxu0 0.0
      %3431 = vmatprep.subr.mxu0 0.0
      %3432 = vmatpush1.msra.mxu0 0.0
      %3433 = vmatprep.subr.mxu0 0.0
      %3434 = vmatpush1.msra.mxu0 0.0
      %3435 = vmatprep.subr.mxu0 0.0
      %3436 = vmatpush1.msra.mxu0 0.0
      %3437 = vmatprep.subr.mxu0 0.0
      %3438 = vmatpush1.msra.mxu0 0.0
      %3439 = vmatprep.subr.mxu0 0.0
      %3440 = vmatpush1.msra.mxu0 0.0
      %3441 = vmatprep.subr.mxu0 0.0
      %3442 = vmatpush1.msra.mxu0 0.0
      %3443 = vmatprep.subr.mxu0 0.0
      %3444 = vmatpush1.msra.mxu0 0.0
      %3445 = vmatprep.mubr.f32.mxu0 0.0
      %3446 = vmatmul.mubr.f32.gmra.mrb[0].mxu0 %v2570
      %v3447 = vpop.f32.mrb[0].mxu0
      %v3448 = vadd.f32 %v3223, %v3447
      %v3449 = vpop.f32.mrb[0].mxu0
      %3450 = vmatprep.mubr.f32.mxu0 0.0
      %3451 = vmatmul.mubr.f32.gmra.mrb[0].mxu0 %v2571
      %v3452 = vpop.f32.mrb[0].mxu0
      %v3453 = vadd.f32 %v3228, %v3452
      %v3454 = vpop.f32.mrb[0].mxu0
      %3455 = vmatprep.mubr.f32.mxu0 0.0
      %3456 = vmatmul.mubr.f32.gmra.mrb[0].mxu0 %v2572
      %v3457 = vpop.f32.mrb[0].mxu0
      %v3458 = vadd.f32 %v3233, %v3457
      %v3459 = vpop.f32.mrb[0].mxu0
      %3460 = vmatprep.mubr.f32.mxu0 0.0
      %3461 = vmatmul.mubr.f32.gmra.mrb[0].mxu0 %v2573
      %v3462 = vpop.f32.mrb[0].mxu0
      %v3463 = vadd.f32 %v3238, %v3462
      %v3464 = vpop.f32.mrb[0].mxu0
      %3465 = vmatprep.mubr.f32.mxu0 0.0
      %3466 = vmatmul.mubr.f32.gmra.mrb[0].mxu0 %v2574
      %v3467 = vpop.f32.mrb[0].mxu0
      %v3468 = vadd.f32 %v3243, %v3467
      %v3469 = vpop.f32.mrb[0].mxu0
      %3470 = vmatprep.mubr.f32.mxu0 0.0
      %3471 = vmatmul.mubr.f32.gmra.mrb[0].mxu0 %v2575
      %v3472 = vpop.f32.mrb[0].mxu0
      %v3473 = vadd.f32 %v3248, %v3472
      %v3474 = vpop.f32.mrb[0].mxu0
      %3475 = vmatprep.mubr.f32.mxu0 0.0
      %3476 = vmatmul.mubr.f32.gmra.mrb[0].mxu0 %v2576
      %v3477 = vpop.f32.mrb[0].mxu0
      %v3478 = vadd.f32 %v3253, %v3477
      %v3479 = vpop.f32.mrb[0].mxu0
      %3480 = vmatprep.mubr.f32.mxu0 0.0
      %3481 = vmatmul.mubr.f32.gmra.mrb[0].mxu0 %v2577
      %v3482 = vpop.f32.mrb[0].mxu0
      %v3483 = vadd.f32 %v3258, %v3482
      %v3484 = vpop.f32.mrb[0].mxu0
      %3485 = vmatprep.mubr.f32.mxu0 0.0
      %3486 = vmatmul.mubr.f32.gmra.mrb[0].mxu0 %v2578
      %v3487 = vpop.f32.mrb[0].mxu0
      %v3488 = vadd.f32 %v3263, %v3487
      %v3489 = vpop.f32.mrb[0].mxu0
      %3490 = vmatprep.mubr.f32.mxu0 0.0
      %3491 = vmatmul.mubr.f32.gmra.mrb[0].mxu0 %v2579
      %v3492 = vpop.f32.mrb[0].mxu0
      %v3493 = vadd.f32 %v3268, %v3492
      %v3494 = vpop.f32.mrb[0].mxu0
      %3495 = vmatprep.mubr.f32.mxu0 0.0
      %3496 = vmatmul.mubr.f32.gmra.mrb[0].mxu0 %v2580
      %v3497 = vpop.f32.mrb[0].mxu0
      %v3498 = vadd.f32 %v3273, %v3497
      %v3499 = vpop.f32.mrb[0].mxu0
      %3500 = vmatprep.mubr.f32.mxu0 0.0
      %3501 = vmatmul.mubr.f32.gmra.mrb[0].mxu0 %v2581
      %v3502 = vpop.f32.mrb[0].mxu0
      %v3503 = vadd.f32 %v3278, %v3502
      %v3504 = vpop.f32.mrb[0].mxu0
      %3505 = vmatprep.mubr.f32.mxu0 0.0
      %3506 = vmatmul.mubr.f32.gmra.mrb[0].mxu0 %v2582
      %v3507 = vpop.f32.mrb[0].mxu0
      %v3508 = vadd.f32 %v3283, %v3507
      %v3509 = vpop.f32.mrb[0].mxu0
      %3510 = vmatprep.mubr.f32.mxu0 0.0
      %3511 = vmatmul.mubr.f32.gmra.mrb[0].mxu0 %v2583
      %v3512 = vpop.f32.mrb[0].mxu0
      %v3513 = vadd.f32 %v3288, %v3512
      %v3514 = vpop.f32.mrb[0].mxu0
      %3515 = vmatprep.mubr.f32.mxu0 0.0
      %3516 = vmatmul.mubr.f32.gmra.mrb[0].mxu0 %v2584
      %v3517 = vpop.f32.mrb[0].mxu0
      %v3518 = vadd.f32 %v3293, %v3517
      %v3519 = vpop.f32.mrb[0].mxu0
      %3520 = vmatprep.mubr.f32.mxu0 0.0
      %3521 = vmatmul.mubr.f32.gmra.mrb[0].mxu0 %v2585
      %v3522 = vpop.f32.mrb[0].mxu0
      %v3523 = vadd.f32 %v3298, %v3522
      %v3524 = vpop.f32.mrb[0].mxu0
      %3525 = vmatprep.mubr.f32.mxu0 0.0
      %3526 = vmatmul.mubr.f32.gmra.mrb[0].mxu0 %v2586
      %v3527 = vpop.f32.mrb[0].mxu0
      %v3528 = vadd.f32 %v3303, %v3527
      %v3529 = vpop.f32.mrb[0].mxu0
      %3530 = vmatprep.mubr.f32.mxu0 0.0
      %3531 = vmatmul.mubr.f32.gmra.mrb[0].mxu0 %v2587
      %v3532 = vpop.f32.mrb[0].mxu0
      %v3533 = vadd.f32 %v3308, %v3532
      %v3534 = vpop.f32.mrb[0].mxu0
      %3535 = vmatprep.mubr.f32.mxu0 0.0
      %3536 = vmatmul.mubr.f32.gmra.mrb[0].mxu0 %v2588
      %v3537 = vpop.f32.mrb[0].mxu0
      %v3538 = vadd.f32 %v3313, %v3537
      %v3539 = vpop.f32.mrb[0].mxu0
      %3540 = vmatprep.mubr.f32.mxu0 0.0
      %3541 = vmatmul.mubr.f32.gmra.mrb[0].mxu0 %v2589
      %v3542 = vpop.f32.mrb[0].mxu0
      %v3543 = vadd.f32 %v3318, %v3542
      %v3544 = vpop.f32.mrb[0].mxu0
      %3545 = vmatprep.mubr.f32.mxu0 0.0
      %3546 = vmatmul.mubr.f32.gmra.mrb[0].mxu0 %v2590
      %v3547 = vpop.f32.mrb[0].mxu0
      %v3548 = vadd.f32 %v3323, %v3547
      %v3549 = vpop.f32.mrb[0].mxu0
      %3550 = vmatprep.mubr.f32.mxu0 0.0
      %3551 = vmatmul.mubr.f32.gmra.mrb[0].mxu0 %v2591
      %v3552 = vpop.f32.mrb[0].mxu0
      %v3553 = vadd.f32 %v3328, %v3552
      %v3554 = vpop.f32.mrb[0].mxu0
      %3555 = vmatprep.mubr.f32.mxu0 0.0
      %3556 = vmatmul.mubr.f32.gmra.mrb[0].mxu0 %v2592
      %v3557 = vpop.f32.mrb[0].mxu0
      %v3558 = vadd.f32 %v3333, %v3557
      %v3559 = vpop.f32.mrb[0].mxu0
      %3560 = vmatprep.mubr.f32.mxu0 0.0
      %3561 = vmatmul.mubr.f32.gmra.mrb[0].mxu0 %v2593
      %v3562 = vpop.f32.mrb[0].mxu0
      %v3563 = vadd.f32 %v3338, %v3562
      %v3564 = vpop.f32.mrb[0].mxu0
      %3565 = vmatprep.mubr.f32.mxu0 0.0
      %3566 = vmatmul.mubr.f32.gmra.mrb[0].mxu0 %v2594
      %v3567 = vpop.f32.mrb[0].mxu0
      %v3568 = vadd.f32 %v3343, %v3567
      %v3569 = vpop.f32.mrb[0].mxu0
      %3570 = vmatprep.mubr.f32.mxu0 0.0
      %3571 = vmatmul.mubr.f32.gmra.mrb[0].mxu0 %v2595
      %v3572 = vpop.f32.mrb[0].mxu0
      %v3573 = vadd.f32 %v3348, %v3572
      %v3574 = vpop.f32.mrb[0].mxu0
      %3575 = vmatprep.mubr.f32.mxu0 0.0
      %3576 = vmatmul.mubr.f32.gmra.mrb[0].mxu0 %v2596
      %v3577 = vpop.f32.mrb[0].mxu0
      %v3578 = vadd.f32 %v3353, %v3577
      %v3579 = vpop.f32.mrb[0].mxu0
      %3580 = vmatprep.mubr.f32.mxu0 0.0
      %3581 = vmatmul.mubr.f32.gmra.mrb[0].mxu0 %v2597
      %v3582 = vpop.f32.mrb[0].mxu0
      %v3583 = vadd.f32 %v3358, %v3582
      %v3584 = vpop.f32.mrb[0].mxu0
      %3585 = vmatprep.mubr.f32.mxu0 0.0
      %3586 = vmatmul.mubr.f32.gmra.mrb[0].mxu0 %v2598
      %v3587 = vpop.f32.mrb[0].mxu0
      %v3588 = vadd.f32 %v3363, %v3587
      %v3589 = vpop.f32.mrb[0].mxu0
      %3590 = vmatprep.mubr.f32.mxu0 0.0
      %3591 = vmatmul.mubr.f32.gmra.mrb[0].mxu0 %v2599
      %v3592 = vpop.f32.mrb[0].mxu0
      %v3593 = vadd.f32 %v3368, %v3592
      %v3594 = vpop.f32.mrb[0].mxu0
      %3595 = vmatprep.mubr.f32.mxu0 0.0
      %3596 = vmatmul.mubr.f32.gmra.mrb[0].mxu0 %v2600
      %v3597 = vpop.f32.mrb[0].mxu0
      %v3598 = vadd.f32 %v3373, %v3597
      %v3599 = vpop.f32.mrb[0].mxu0
      %3600 = vmatprep.mubr.f32.mxu0 0.0
      %3601 = vmatmul.mubr.f32.gmra.mrb[0].mxu0 %v2601
      %v3602 = vpop.f32.mrb[0].mxu0
      %v3603 = vadd.f32 %v3378, %v3602
      %v3604 = vpop.f32.mrb[0].mxu0
      %3605 = vdwg.mxu0
      %v3606 = vld [vmem:[%s5 + $0x300] sm:$0xff]
      %v3607 = vld [vmem:[%s5 + $0x308] sm:$0xff]
      %v3608 = vld [vmem:[%s5 + $0x310] sm:$0xff]
      %v3609 = vld [vmem:[%s5 + $0x318] sm:$0xff]
      %v3610 = vld [vmem:[%s5 + $0x320] sm:$0xff]
      %v3611 = vld [vmem:[%s5 + $0x328] sm:$0xff]
      %v3612 = vld [vmem:[%s5 + $0x330] sm:$0xff]
      %v3613 = vld [vmem:[%s5 + $0x338] sm:$0xff]
      %v3614 = vld [vmem:[%s5 + $0x340] sm:$0xff]
      %v3615 = vld [vmem:[%s5 + $0x348] sm:$0xff]
      %v3616 = vld [vmem:[%s5 + $0x350] sm:$0xff]
      %v3617 = vld [vmem:[%s5 + $0x358] sm:$0xff]
      %v3618 = vld [vmem:[%s5 + $0x360] sm:$0xff]
      %v3619 = vld [vmem:[%s5 + $0x368] sm:$0xff]
      %v3620 = vld [vmem:[%s5 + $0x370] sm:$0xff]
      %v3621 = vld [vmem:[%s5 + $0x378] sm:$0xff]
      %v3622 = vld [vmem:[%s5 + $0x380] sm:$0xff]
      %v3623 = vld [vmem:[%s5 + $0x388] sm:$0xff]
      %v3624 = vld [vmem:[%s5 + $0x390] sm:$0xff]
      %v3625 = vld [vmem:[%s5 + $0x398] sm:$0xff]
      %v3626 = vld [vmem:[%s5 + $0x3a0] sm:$0xff]
      %v3627 = vld [vmem:[%s5 + $0x3a8] sm:$0xff]
      %v3628 = vld [vmem:[%s5 + $0x3b0] sm:$0xff]
      %v3629 = vld [vmem:[%s5 + $0x3b8] sm:$0xff]
      %v3630 = vld [vmem:[%s5 + $0x3c0] sm:$0xff]
      %v3631 = vld [vmem:[%s5 + $0x3c8] sm:$0xff]
      %v3632 = vld [vmem:[%s5 + $0x3d0] sm:$0xff]
      %v3633 = vld [vmem:[%s5 + $0x3d8] sm:$0xff]
      %v3634 = vld [vmem:[%s5 + $0x3e0] sm:$0xff]
      %v3635 = vld [vmem:[%s5 + $0x3e8] sm:$0xff]
      %v3636 = vld [vmem:[%s5 + $0x3f0] sm:$0xff]
      %v3637 = vld [vmem:[%s5 + $0x3f8] sm:$0xff]
      %v3638 = vld [vmem:[%s5 + $0x400] sm:$0xff]
      %v3639 = vld [vmem:[%s5 + $0x408] sm:$0xff]
      %v3640 = vld [vmem:[%s5 + $0x410] sm:$0xff]
      %v3641 = vld [vmem:[%s5 + $0x418] sm:$0xff]
      %v3642 = vld [vmem:[%s5 + $0x420] sm:$0xff]
      %v3643 = vld [vmem:[%s5 + $0x428] sm:$0xff]
      %v3644 = vld [vmem:[%s5 + $0x430] sm:$0xff]
      %v3645 = vld [vmem:[%s5 + $0x438] sm:$0xff]
      %v3646 = vld [vmem:[%s5 + $0x440] sm:$0xff]
      %v3647 = vld [vmem:[%s5 + $0x448] sm:$0xff]
      %v3648 = vld [vmem:[%s5 + $0x450] sm:$0xff]
      %v3649 = vld [vmem:[%s5 + $0x458] sm:$0xff]
      %v3650 = vld [vmem:[%s5 + $0x460] sm:$0xff]
      %v3651 = vld [vmem:[%s5 + $0x468] sm:$0xff]
      %v3652 = vld [vmem:[%s5 + $0x470] sm:$0xff]
      %v3653 = vld [vmem:[%s5 + $0x478] sm:$0xff]
      %3654 = vmatprep.subr.mxu0 0.0
      %3655 = vmatpush1.msra.mxu0 %v3606
      %3656 = vmatprep.subr.mxu0 0.0
      %3657 = vmatpush1.msra.mxu0 %v3607
      %3658 = vmatprep.subr.mxu0 0.0
      %3659 = vmatpush1.msra.mxu0 %v3608
      %3660 = vmatprep.subr.mxu0 0.0
      %3661 = vmatpush1.msra.mxu0 %v3609
      %3662 = vmatprep.subr.mxu0 0.0
      %3663 = vmatpush1.msra.mxu0 %v3610
      %3664 = vmatprep.subr.mxu0 0.0
      %3665 = vmatpush1.msra.mxu0 %v3611
      %3666 = vmatprep.subr.mxu0 0.0
      %3667 = vmatpush1.msra.mxu0 %v3612
      %3668 = vmatprep.subr.mxu0 0.0
      %3669 = vmatpush1.msra.mxu0 %v3613
      %3670 = vmatprep.subr.mxu0 0.0
      %3671 = vmatpush1.msra.mxu0 %v3614
      %3672 = vmatprep.subr.mxu0 0.0
      %3673 = vmatpush1.msra.mxu0 %v3615
      %3674 = vmatprep.subr.mxu0 0.0
      %3675 = vmatpush1.msra.mxu0 %v3616
      %3676 = vmatprep.subr.mxu0 0.0
      %3677 = vmatpush1.msra.mxu0 %v3617
      %3678 = vmatprep.subr.mxu0 0.0
      %3679 = vmatpush1.msra.mxu0 %v3618
      %3680 = vmatprep.subr.mxu0 0.0
      %3681 = vmatpush1.msra.mxu0 %v3619
      %3682 = vmatprep.subr.mxu0 0.0
      %3683 = vmatpush1.msra.mxu0 %v3620
      %3684 = vmatprep.subr.mxu0 0.0
      %3685 = vmatpush1.msra.mxu0 %v3621
      %3686 = vmatprep.subr.mxu0 0.0
      %3687 = vmatpush1.msra.mxu0 %v3622
      %3688 = vmatprep.subr.mxu0 0.0
      %3689 = vmatpush1.msra.mxu0 %v3623
      %3690 = vmatprep.subr.mxu0 0.0
      %3691 = vmatpush1.msra.mxu0 %v3624
      %3692 = vmatprep.subr.mxu0 0.0
      %3693 = vmatpush1.msra.mxu0 %v3625
      %3694 = vmatprep.subr.mxu0 0.0
      %3695 = vmatpush1.msra.mxu0 %v3626
      %3696 = vmatprep.subr.mxu0 0.0
      %3697 = vmatpush1.msra.mxu0 %v3627
      %3698 = vmatprep.subr.mxu0 0.0
      %3699 = vmatpush1.msra.mxu0 %v3628
      %3700 = vmatprep.subr.mxu0 0.0
      %3701 = vmatpush1.msra.mxu0 %v3629
      %3702 = vmatprep.subr.mxu0 0.0
      %3703 = vmatpush1.msra.mxu0 %v3630
      %3704 = vmatprep.subr.mxu0 0.0
      %3705 = vmatpush1.msra.mxu0 %v3631
      %3706 = vmatprep.subr.mxu0 0.0
      %3707 = vmatpush1.msra.mxu0 %v3632
      %3708 = vmatprep.subr.mxu0 0.0
      %3709 = vmatpush1.msra.mxu0 %v3633
      %3710 = vmatprep.subr.mxu0 0.0
      %3711 = vmatpush1.msra.mxu0 %v3634
      %3712 = vmatprep.subr.mxu0 0.0
      %3713 = vmatpush1.msra.mxu0 %v3635
      %3714 = vmatprep.subr.mxu0 0.0
      %3715 = vmatpush1.msra.mxu0 %v3636
      %3716 = vmatprep.subr.mxu0 0.0
      %3717 = vmatpush1.msra.mxu0 %v3637
      %3718 = vmatprep.mubr.f32.mxu0 %v2538
      %3719 = vmatmul.mubr.f32.gmra.mrb[0].mxu0 %v2498
      %v3720 = vpop.f32.mrb[0].mxu0
      %v3721 = vadd.f32 0.0, %v3720
      %v3722 = vpop.f32.mrb[0].mxu0
      %3723 = vmatprep.mubr.f32.mxu0 %v2539
      %3724 = vmatmul.mubr.f32.gmra.mrb[0].mxu0 %v2499
      %v3725 = vpop.f32.mrb[0].mxu0
      %v3726 = vadd.f32 0.0, %v3725
      %v3727 = vpop.f32.mrb[0].mxu0
      %3728 = vmatprep.mubr.f32.mxu0 %v2540
      %3729 = vmatmul.mubr.f32.gmra.mrb[0].mxu0 %v2500
      %v3730 = vpop.f32.mrb[0].mxu0
      %v3731 = vadd.f32 0.0, %v3730
      %v3732 = vpop.f32.mrb[0].mxu0
      %3733 = vmatprep.mubr.f32.mxu0 %v2541
      %3734 = vmatmul.mubr.f32.gmra.mrb[0].mxu0 %v2501
      %v3735 = vpop.f32.mrb[0].mxu0
      %v3736 = vadd.f32 0.0, %v3735
      %v3737 = vpop.f32.mrb[0].mxu0
      %3738 = vmatprep.mubr.f32.mxu0 %v2542
      %3739 = vmatmul.mubr.f32.gmra.mrb[0].mxu0 %v2502
      %v3740 = vpop.f32.mrb[0].mxu0
      %v3741 = vadd.f32 0.0, %v3740
      %v3742 = vpop.f32.mrb[0].mxu0
      %3743 = vmatprep.mubr.f32.mxu0 %v2543
      %3744 = vmatmul.mubr.f32.gmra.mrb[0].mxu0 %v2503
      %v3745 = vpop.f32.mrb[0].mxu0
      %v3746 = vadd.f32 0.0, %v3745
      %v3747 = vpop.f32.mrb[0].mxu0
      %3748 = vmatprep.mubr.f32.mxu0 %v2544
      %3749 = vmatmul.mubr.f32.gmra.mrb[0].mxu0 %v2504
      %v3750 = vpop.f32.mrb[0].mxu0
      %v3751 = vadd.f32 0.0, %v3750
      %v3752 = vpop.f32.mrb[0].mxu0
      %3753 = vmatprep.mubr.f32.mxu0 %v2545
      %3754 = vmatmul.mubr.f32.gmra.mrb[0].mxu0 %v2505
      %v3755 = vpop.f32.mrb[0].mxu0
      %v3756 = vadd.f32 0.0, %v3755
      %v3757 = vpop.f32.mrb[0].mxu0
      %3758 = vmatprep.mubr.f32.mxu0 %v2546
      %3759 = vmatmul.mubr.f32.gmra.mrb[0].mxu0 %v2506
      %v3760 = vpop.f32.mrb[0].mxu0
      %v3761 = vadd.f32 0.0, %v3760
      %v3762 = vpop.f32.mrb[0].mxu0
      %3763 = vmatprep.mubr.f32.mxu0 %v2547
      %3764 = vmatmul.mubr.f32.gmra.mrb[0].mxu0 %v2507
      %v3765 = vpop.f32.mrb[0].mxu0
      %v3766 = vadd.f32 0.0, %v3765
      %v3767 = vpop.f32.mrb[0].mxu0
      %3768 = vmatprep.mubr.f32.mxu0 %v2548
      %3769 = vmatmul.mubr.f32.gmra.mrb[0].mxu0 %v2508
      %v3770 = vpop.f32.mrb[0].mxu0
      %v3771 = vadd.f32 0.0, %v3770
      %v3772 = vpop.f32.mrb[0].mxu0
      %3773 = vmatprep.mubr.f32.mxu0 %v2549
      %3774 = vmatmul.mubr.f32.gmra.mrb[0].mxu0 %v2509
      %v3775 = vpop.f32.mrb[0].mxu0
      %v3776 = vadd.f32 0.0, %v3775
      %v3777 = vpop.f32.mrb[0].mxu0
      %3778 = vmatprep.mubr.f32.mxu0 %v2550
      %3779 = vmatmul.mubr.f32.gmra.mrb[0].mxu0 %v2510
      %v3780 = vpop.f32.mrb[0].mxu0
      %v3781 = vadd.f32 0.0, %v3780
      %v3782 = vpop.f32.mrb[0].mxu0
      %3783 = vmatprep.mubr.f32.mxu0 %v2551
      %3784 = vmatmul.mubr.f32.gmra.mrb[0].mxu0 %v2511
      %v3785 = vpop.f32.mrb[0].mxu0
      %v3786 = vadd.f32 0.0, %v3785
      %v3787 = vpop.f32.mrb[0].mxu0
      %3788 = vmatprep.mubr.f32.mxu0 %v2552
      %3789 = vmatmul.mubr.f32.gmra.mrb[0].mxu0 %v2512
      %v3790 = vpop.f32.mrb[0].mxu0
      %v3791 = vadd.f32 0.0, %v3790
      %v3792 = vpop.f32.mrb[0].mxu0
      %3793 = vmatprep.mubr.f32.mxu0 %v2553
      %3794 = vmatmul.mubr.f32.gmra.mrb[0].mxu0 %v2513
      %v3795 = vpop.f32.mrb[0].mxu0
      %v3796 = vadd.f32 0.0, %v3795
      %v3797 = vpop.f32.mrb[0].mxu0
      %3798 = vmatprep.mubr.f32.mxu0 %v2554
      %3799 = vmatmul.mubr.f32.gmra.mrb[0].mxu0 %v2514
      %v3800 = vpop.f32.mrb[0].mxu0
      %v3801 = vadd.f32 0.0, %v3800
      %v3802 = vpop.f32.mrb[0].mxu0
      %3803 = vmatprep.mubr.f32.mxu0 %v2555
      %3804 = vmatmul.mubr.f32.gmra.mrb[0].mxu0 %v2515
      %v3805 = vpop.f32.mrb[0].mxu0
      %v3806 = vadd.f32 0.0, %v3805
      %v3807 = vpop.f32.mrb[0].mxu0
      %3808 = vmatprep.mubr.f32.mxu0 %v2556
      %3809 = vmatmul.mubr.f32.gmra.mrb[0].mxu0 %v2516
      %v3810 = vpop.f32.mrb[0].mxu0
      %v3811 = vadd.f32 0.0, %v3810
      %v3812 = vpop.f32.mrb[0].mxu0
      %3813 = vmatprep.mubr.f32.mxu0 %v2557
      %3814 = vmatmul.mubr.f32.gmra.mrb[0].mxu0 %v2517
      %v3815 = vpop.f32.mrb[0].mxu0
      %v3816 = vadd.f32 0.0, %v3815
      %v3817 = vpop.f32.mrb[0].mxu0
      %3818 = vmatprep.mubr.f32.mxu0 %v2558
      %3819 = vmatmul.mubr.f32.gmra.mrb[0].mxu0 %v2518
      %v3820 = vpop.f32.mrb[0].mxu0
      %v3821 = vadd.f32 0.0, %v3820
      %v3822 = vpop.f32.mrb[0].mxu0
      %3823 = vmatprep.mubr.f32.mxu0 %v2559
      %3824 = vmatmul.mubr.f32.gmra.mrb[0].mxu0 %v2519
      %v3825 = vpop.f32.mrb[0].mxu0
      %v3826 = vadd.f32 0.0, %v3825
      %v3827 = vpop.f32.mrb[0].mxu0
      %3828 = vmatprep.mubr.f32.mxu0 %v2560
      %3829 = vmatmul.mubr.f32.gmra.mrb[0].mxu0 %v2520
      %v3830 = vpop.f32.mrb[0].mxu0
      %v3831 = vadd.f32 0.0, %v3830
      %v3832 = vpop.f32.mrb[0].mxu0
      %3833 = vmatprep.mubr.f32.mxu0 %v2561
      %3834 = vmatmul.mubr.f32.gmra.mrb[0].mxu0 %v2521
      %v3835 = vpop.f32.mrb[0].mxu0
      %v3836 = vadd.f32 0.0, %v3835
      %v3837 = vpop.f32.mrb[0].mxu0
      %3838 = vmatprep.mubr.f32.mxu0 %v2562
      %3839 = vmatmul.mubr.f32.gmra.mrb[0].mxu0 %v2522
      %v3840 = vpop.f32.mrb[0].mxu0
      %v3841 = vadd.f32 0.0, %v3840
      %v3842 = vpop.f32.mrb[0].mxu0
      %3843 = vmatprep.mubr.f32.mxu0 %v2563
      %3844 = vmatmul.mubr.f32.gmra.mrb[0].mxu0 %v2523
      %v3845 = vpop.f32.mrb[0].mxu0
      %v3846 = vadd.f32 0.0, %v3845
      %v3847 = vpop.f32.mrb[0].mxu0
      %3848 = vmatprep.mubr.f32.mxu0 %v2564
      %3849 = vmatmul.mubr.f32.gmra.mrb[0].mxu0 %v2524
      %v3850 = vpop.f32.mrb[0].mxu0
      %v3851 = vadd.f32 0.0, %v3850
      %v3852 = vpop.f32.mrb[0].mxu0
      %3853 = vmatprep.mubr.f32.mxu0 %v2565
      %3854 = vmatmul.mubr.f32.gmra.mrb[0].mxu0 %v2525
      %v3855 = vpop.f32.mrb[0].mxu0
      %v3856 = vadd.f32 0.0, %v3855
      %v3857 = vpop.f32.mrb[0].mxu0
      %3858 = vmatprep.mubr.f32.mxu0 %v2566
      %3859 = vmatmul.mubr.f32.gmra.mrb[0].mxu0 %v2526
      %v3860 = vpop.f32.mrb[0].mxu0
      %v3861 = vadd.f32 0.0, %v3860
      %v3862 = vpop.f32.mrb[0].mxu0
      %3863 = vmatprep.mubr.f32.mxu0 %v2567
      %3864 = vmatmul.mubr.f32.gmra.mrb[0].mxu0 %v2527
      %v3865 = vpop.f32.mrb[0].mxu0
      %v3866 = vadd.f32 0.0, %v3865
      %v3867 = vpop.f32.mrb[0].mxu0
      %3868 = vmatprep.mubr.f32.mxu0 %v2568
      %3869 = vmatmul.mubr.f32.gmra.mrb[0].mxu0 %v2528
      %v3870 = vpop.f32.mrb[0].mxu0
      %v3871 = vadd.f32 0.0, %v3870
      %v3872 = vpop.f32.mrb[0].mxu0
      %3873 = vmatprep.mubr.f32.mxu0 %v2569
      %3874 = vmatmul.mubr.f32.gmra.mrb[0].mxu0 %v2529
      %v3875 = vpop.f32.mrb[0].mxu0
      %v3876 = vadd.f32 0.0, %v3875
      %v3877 = vpop.f32.mrb[0].mxu0
      %3878 = vdwg.mxu0
      %3879 = vmatprep.subr.mxu0 0.0
      %3880 = vmatpush1.msra.mxu0 %v3638
      %3881 = vmatprep.subr.mxu0 0.0
      %3882 = vmatpush1.msra.mxu0 %v3639
      %3883 = vmatprep.subr.mxu0 0.0
      %3884 = vmatpush1.msra.mxu0 %v3640
      %3885 = vmatprep.subr.mxu0 0.0
      %3886 = vmatpush1.msra.mxu0 %v3641
      %3887 = vmatprep.subr.mxu0 0.0
      %3888 = vmatpush1.msra.mxu0 %v3642
      %3889 = vmatprep.subr.mxu0 0.0
      %3890 = vmatpush1.msra.mxu0 %v3643
      %3891 = vmatprep.subr.mxu0 0.0
      %3892 = vmatpush1.msra.mxu0 %v3644
      %3893 = vmatprep.subr.mxu0 0.0
      %3894 = vmatpush1.msra.mxu0 %v3645
      %3895 = vmatprep.subr.mxu0 0.0
      %3896 = vmatpush1.msra.mxu0 %v3646
      %3897 = vmatprep.subr.mxu0 0.0
      %3898 = vmatpush1.msra.mxu0 %v3647
      %3899 = vmatprep.subr.mxu0 0.0
      %3900 = vmatpush1.msra.mxu0 %v3648
      %3901 = vmatprep.subr.mxu0 0.0
      %3902 = vmatpush1.msra.mxu0 %v3649
      %3903 = vmatprep.subr.mxu0 0.0
      %3904 = vmatpush1.msra.mxu0 %v3650
      %3905 = vmatprep.subr.mxu0 0.0
      %3906 = vmatpush1.msra.mxu0 %v3651
      %3907 = vmatprep.subr.mxu0 0.0
      %3908 = vmatpush1.msra.mxu0 %v3652
      %3909 = vmatprep.subr.mxu0 0.0
      %3910 = vmatpush1.msra.mxu0 %v3653
      %3911 = vmatprep.subr.mxu0 0.0
      %3912 = vmatpush1.msra.mxu0 0.0
      %3913 = vmatprep.subr.mxu0 0.0
      %3914 = vmatpush1.msra.mxu0 0.0
      %3915 = vmatprep.subr.mxu0 0.0
      %3916 = vmatpush1.msra.mxu0 0.0
      %3917 = vmatprep.subr.mxu0 0.0
      %3918 = vmatpush1.msra.mxu0 0.0
      %3919 = vmatprep.subr.mxu0 0.0
      %3920 = vmatpush1.msra.mxu0 0.0
      %3921 = vmatprep.subr.mxu0 0.0
      %3922 = vmatpush1.msra.mxu0 0.0
      %3923 = vmatprep.subr.mxu0 0.0
      %3924 = vmatpush1.msra.mxu0 0.0
      %3925 = vmatprep.subr.mxu0 0.0
      %3926 = vmatpush1.msra.mxu0 0.0
      %3927 = vmatprep.subr.mxu0 0.0
      %3928 = vmatpush1.msra.mxu0 0.0
      %3929 = vmatprep.subr.mxu0 0.0
      %3930 = vmatpush1.msra.mxu0 0.0
      %3931 = vmatprep.subr.mxu0 0.0
      %3932 = vmatpush1.msra.mxu0 0.0
      %3933 = vmatprep.subr.mxu0 0.0
      %3934 = vmatpush1.msra.mxu0 0.0
      %3935 = vmatprep.subr.mxu0 0.0
      %3936 = vmatpush1.msra.mxu0 0.0
      %3937 = vmatprep.subr.mxu0 0.0
      %3938 = vmatpush1.msra.mxu0 0.0
      %3939 = vmatprep.subr.mxu0 0.0
      %3940 = vmatpush1.msra.mxu0 0.0
      %3941 = vmatprep.subr.mxu0 0.0
      %3942 = vmatpush1.msra.mxu0 0.0
      %3943 = vmatprep.mubr.f32.mxu0 0.0
      %3944 = vmatmul.mubr.f32.gmra.mrb[0].mxu0 %v2578
      %v3945 = vpop.f32.mrb[0].mxu0
      %v3946 = vadd.f32 %v3721, %v3945
      %v3947 = vpop.f32.mrb[0].mxu0
      %3948 = vmatprep.mubr.f32.mxu0 0.0
      %3949 = vmatmul.mubr.f32.gmra.mrb[0].mxu0 %v2579
      %v3950 = vpop.f32.mrb[0].mxu0
      %v3951 = vadd.f32 %v3726, %v3950
      %v3952 = vpop.f32.mrb[0].mxu0
      %3953 = vmatprep.mubr.f32.mxu0 0.0
      %3954 = vmatmul.mubr.f32.gmra.mrb[0].mxu0 %v2580
      %v3955 = vpop.f32.mrb[0].mxu0
      %v3956 = vadd.f32 %v3731, %v3955
      %v3957 = vpop.f32.mrb[0].mxu0
      %3958 = vmatprep.mubr.f32.mxu0 0.0
      %3959 = vmatmul.mubr.f32.gmra.mrb[0].mxu0 %v2581
      %v3960 = vpop.f32.mrb[0].mxu0
      %v3961 = vadd.f32 %v3736, %v3960
      %v3962 = vpop.f32.mrb[0].mxu0
      %3963 = vmatprep.mubr.f32.mxu0 0.0
      %3964 = vmatmul.mubr.f32.gmra.mrb[0].mxu0 %v2582
      %v3965 = vpop.f32.mrb[0].mxu0
      %v3966 = vadd.f32 %v3741, %v3965
      %v3967 = vpop.f32.mrb[0].mxu0
      %3968 = vmatprep.mubr.f32.mxu0 0.0
      %3969 = vmatmul.mubr.f32.gmra.mrb[0].mxu0 %v2583
      %v3970 = vpop.f32.mrb[0].mxu0
      %v3971 = vadd.f32 %v3746, %v3970
      %v3972 = vpop.f32.mrb[0].mxu0
      %3973 = vmatprep.mubr.f32.mxu0 0.0
      %3974 = vmatmul.mubr.f32.gmra.mrb[0].mxu0 %v2584
      %v3975 = vpop.f32.mrb[0].mxu0
      %v3976 = vadd.f32 %v3751, %v3975
      %v3977 = vpop.f32.mrb[0].mxu0
      %3978 = vmatprep.mubr.f32.mxu0 0.0
      %3979 = vmatmul.mubr.f32.gmra.mrb[0].mxu0 %v2585
      %v3980 = vpop.f32.mrb[0].mxu0
      %v3981 = vadd.f32 %v3756, %v3980
      %v3982 = vpop.f32.mrb[0].mxu0
      %3983 = vmatprep.mubr.f32.mxu0 0.0
      %3984 = vmatmul.mubr.f32.gmra.mrb[0].mxu0 %v2586
      %v3985 = vpop.f32.mrb[0].mxu0
      %v3986 = vadd.f32 %v3761, %v3985
      %v3987 = vpop.f32.mrb[0].mxu0
      %3988 = vmatprep.mubr.f32.mxu0 0.0
      %3989 = vmatmul.mubr.f32.gmra.mrb[0].mxu0 %v2587
      %v3990 = vpop.f32.mrb[0].mxu0
      %v3991 = vadd.f32 %v3766, %v3990
      %v3992 = vpop.f32.mrb[0].mxu0
      %3993 = vmatprep.mubr.f32.mxu0 0.0
      %3994 = vmatmul.mubr.f32.gmra.mrb[0].mxu0 %v2588
      %v3995 = vpop.f32.mrb[0].mxu0
      %v3996 = vadd.f32 %v3771, %v3995
      %v3997 = vpop.f32.mrb[0].mxu0
      %3998 = vmatprep.mubr.f32.mxu0 0.0
      %3999 = vmatmul.mubr.f32.gmra.mrb[0].mxu0 %v2589
      %v4000 = vpop.f32.mrb[0].mxu0
      %v4001 = vadd.f32 %v3776, %v4000
      %v4002 = vpop.f32.mrb[0].mxu0
      %4003 = vmatprep.mubr.f32.mxu0 0.0
      %4004 = vmatmul.mubr.f32.gmra.mrb[0].mxu0 %v2590
      %v4005 = vpop.f32.mrb[0].mxu0
      %v4006 = vadd.f32 %v3781, %v4005
      %v4007 = vpop.f32.mrb[0].mxu0
      %4008 = vmatprep.mubr.f32.mxu0 0.0
      %4009 = vmatmul.mubr.f32.gmra.mrb[0].mxu0 %v2591
      %v4010 = vpop.f32.mrb[0].mxu0
      %v4011 = vadd.f32 %v3786, %v4010
      %v4012 = vpop.f32.mrb[0].mxu0
      %4013 = vmatprep.mubr.f32.mxu0 0.0
      %4014 = vmatmul.mubr.f32.gmra.mrb[0].mxu0 %v2592
      %v4015 = vpop.f32.mrb[0].mxu0
      %v4016 = vadd.f32 %v3791, %v4015
      %v4017 = vpop.f32.mrb[0].mxu0
      %4018 = vmatprep.mubr.f32.mxu0 0.0
      %4019 = vmatmul.mubr.f32.gmra.mrb[0].mxu0 %v2593
      %v4020 = vpop.f32.mrb[0].mxu0
      %v4021 = vadd.f32 %v3796, %v4020
      %v4022 = vpop.f32.mrb[0].mxu0
      %4023 = vmatprep.mubr.f32.mxu0 0.0
      %4024 = vmatmul.mubr.f32.gmra.mrb[0].mxu0 %v2594
      %v4025 = vpop.f32.mrb[0].mxu0
      %v4026 = vadd.f32 %v3801, %v4025
      %v4027 = vpop.f32.mrb[0].mxu0
      %4028 = vmatprep.mubr.f32.mxu0 0.0
      %4029 = vmatmul.mubr.f32.gmra.mrb[0].mxu0 %v2595
      %v4030 = vpop.f32.mrb[0].mxu0
      %v4031 = vadd.f32 %v3806, %v4030
      %v4032 = vpop.f32.mrb[0].mxu0
      %4033 = vmatprep.mubr.f32.mxu0 0.0
      %4034 = vmatmul.mubr.f32.gmra.mrb[0].mxu0 %v2596
      %v4035 = vpop.f32.mrb[0].mxu0
      %v4036 = vadd.f32 %v3811, %v4035
      %v4037 = vpop.f32.mrb[0].mxu0
      %4038 = vmatprep.mubr.f32.mxu0 0.0
      %4039 = vmatmul.mubr.f32.gmra.mrb[0].mxu0 %v2597
      %v4040 = vpop.f32.mrb[0].mxu0
      %v4041 = vadd.f32 %v3816, %v4040
      %v4042 = vpop.f32.mrb[0].mxu0
      %4043 = vmatprep.mubr.f32.mxu0 0.0
      %4044 = vmatmul.mubr.f32.gmra.mrb[0].mxu0 %v2598
      %v4045 = vpop.f32.mrb[0].mxu0
      %v4046 = vadd.f32 %v3821, %v4045
      %v4047 = vpop.f32.mrb[0].mxu0
      %4048 = vmatprep.mubr.f32.mxu0 0.0
      %4049 = vmatmul.mubr.f32.gmra.mrb[0].mxu0 %v2599
      %v4050 = vpop.f32.mrb[0].mxu0
      %v4051 = vadd.f32 %v3826, %v4050
      %v4052 = vpop.f32.mrb[0].mxu0
      %4053 = vmatprep.mubr.f32.mxu0 0.0
      %4054 = vmatmul.mubr.f32.gmra.mrb[0].mxu0 %v2600
      %v4055 = vpop.f32.mrb[0].mxu0
      %v4056 = vadd.f32 %v3831, %v4055
      %v4057 = vpop.f32.mrb[0].mxu0
      %4058 = vmatprep.mubr.f32.mxu0 0.0
      %4059 = vmatmul.mubr.f32.gmra.mrb[0].mxu0 %v2601
      %v4060 = vpop.f32.mrb[0].mxu0
      %v4061 = vadd.f32 %v3836, %v4060
      %v4062 = vpop.f32.mrb[0].mxu0
      %4063 = vmatprep.mubr.f32.mxu0 0.0
      %4064 = vmatmul.mubr.f32.gmra.mrb[0].mxu0 %v2602
      %v4065 = vpop.f32.mrb[0].mxu0
      %v4066 = vadd.f32 %v3841, %v4065
      %v4067 = vpop.f32.mrb[0].mxu0
      %4068 = vmatprep.mubr.f32.mxu0 0.0
      %4069 = vmatmul.mubr.f32.gmra.mrb[0].mxu0 %v2603
      %v4070 = vpop.f32.mrb[0].mxu0
      %v4071 = vadd.f32 %v3846, %v4070
      %v4072 = vpop.f32.mrb[0].mxu0
      %4073 = vmatprep.mubr.f32.mxu0 0.0
      %4074 = vmatmul.mubr.f32.gmra.mrb[0].mxu0 %v2604
      %v4075 = vpop.f32.mrb[0].mxu0
      %v4076 = vadd.f32 %v3851, %v4075
      %v4077 = vpop.f32.mrb[0].mxu0
      %4078 = vmatprep.mubr.f32.mxu0 0.0
      %4079 = vmatmul.mubr.f32.gmra.mrb[0].mxu0 %v2605
      %v4080 = vpop.f32.mrb[0].mxu0
      %v4081 = vadd.f32 %v3856, %v4080
      %v4082 = vpop.f32.mrb[0].mxu0
      %4083 = vmatprep.mubr.f32.mxu0 0.0
      %4084 = vmatmul.mubr.f32.gmra.mrb[0].mxu0 %v2606
      %v4085 = vpop.f32.mrb[0].mxu0
      %v4086 = vadd.f32 %v3861, %v4085
      %v4087 = vpop.f32.mrb[0].mxu0
      %4088 = vmatprep.mubr.f32.mxu0 0.0
      %4089 = vmatmul.mubr.f32.gmra.mrb[0].mxu0 %v2607
      %v4090 = vpop.f32.mrb[0].mxu0
      %v4091 = vadd.f32 %v3866, %v4090
      %v4092 = vpop.f32.mrb[0].mxu0
      %4093 = vmatprep.mubr.f32.mxu0 0.0
      %4094 = vmatmul.mubr.f32.gmra.mrb[0].mxu0 %v2608
      %v4095 = vpop.f32.mrb[0].mxu0
      %v4096 = vadd.f32 %v3871, %v4095
      %v4097 = vpop.f32.mrb[0].mxu0
      %4098 = vmatprep.mubr.f32.mxu0 0.0
      %4099 = vmatmul.mubr.f32.gmra.mrb[0].mxu0 %v2609
      %v4100 = vpop.f32.mrb[0].mxu0
      %v4101 = vadd.f32 %v3876, %v4100
      %v4102 = vpop.f32.mrb[0].mxu0
      %4103 = vdwg.mxu0
      %v4104 = vadd.f32 %v3448, %v3946
      %v4105 = vadd.f32 %v3453, %v3951
      %v4106 = vadd.f32 %v3458, %v3956
      %v4107 = vadd.f32 %v3463, %v3961
      %v4108 = vadd.f32 %v3468, %v3966
      %v4109 = vadd.f32 %v3473, %v3971
      %v4110 = vadd.f32 %v3478, %v3976
      %v4111 = vadd.f32 %v3483, %v3981
      %v4112 = vadd.f32 %v3488, %v3986
      %v4113 = vadd.f32 %v3493, %v3991
      %v4114 = vadd.f32 %v3498, %v3996
      %v4115 = vadd.f32 %v3503, %v4001
      %v4116 = vadd.f32 %v3508, %v4006
      %v4117 = vadd.f32 %v3513, %v4011
      %v4118 = vadd.f32 %v3518, %v4016
      %v4119 = vadd.f32 %v3523, %v4021
      %v4120 = vadd.f32 %v3528, %v4026
      %v4121 = vadd.f32 %v3533, %v4031
      %v4122 = vadd.f32 %v3538, %v4036
      %v4123 = vadd.f32 %v3543, %v4041
      %v4124 = vadd.f32 %v3548, %v4046
      %v4125 = vadd.f32 %v3553, %v4051
      %v4126 = vadd.f32 %v3558, %v4056
      %v4127 = vadd.f32 %v3563, %v4061
      %v4128 = vadd.f32 %v3568, %v4066
      %v4129 = vadd.f32 %v3573, %v4071
      %v4130 = vadd.f32 %v3578, %v4076
      %v4131 = vadd.f32 %v3583, %v4081
      %v4132 = vadd.f32 %v3588, %v4086
      %v4133 = vadd.f32 %v3593, %v4091
      %v4134 = vadd.f32 %v3598, %v4096
      %v4135 = vadd.f32 %v3603, %v4101
      %v4136 = vld [vmem:[%s6] sm:$0x1]
      %v4138 = vlaneseq
      %v4139 = vshrl.u32 %v4138, 7
      %v4140 = vsub.s32 0, %v4139
      %v4141 = vrot.slane %v4136, %v4140
      %v4143 = vadd.f32 %v4104, %v4141
      %v4144 = vadd.f32 %v4105, %v4141
      %v4145 = vadd.f32 %v4106, %v4141
      %v4146 = vadd.f32 %v4107, %v4141
      %v4147 = vadd.f32 %v4108, %v4141
      %v4148 = vadd.f32 %v4109, %v4141
      %v4149 = vadd.f32 %v4110, %v4141
      %v4150 = vadd.f32 %v4111, %v4141
      %v4151 = vadd.f32 %v4112, %v4141
      %v4152 = vadd.f32 %v4113, %v4141
      %v4153 = vadd.f32 %v4114, %v4141
      %v4154 = vadd.f32 %v4115, %v4141
      %v4155 = vadd.f32 %v4116, %v4141
      %v4156 = vadd.f32 %v4117, %v4141
      %v4157 = vadd.f32 %v4118, %v4141
      %v4158 = vadd.f32 %v4119, %v4141
      %v4159 = vadd.f32 %v4120, %v4141
      %v4160 = vadd.f32 %v4121, %v4141
      %v4161 = vadd.f32 %v4122, %v4141
      %v4162 = vadd.f32 %v4123, %v4141
      %v4163 = vadd.f32 %v4124, %v4141
      %v4164 = vadd.f32 %v4125, %v4141
      %v4165 = vadd.f32 %v4126, %v4141
      %v4166 = vadd.f32 %v4127, %v4141
      %v4167 = vadd.f32 %v4128, %v4141
      %v4168 = vadd.f32 %v4129, %v4141
      %v4169 = vadd.f32 %v4130, %v4141
      %v4170 = vadd.f32 %v4131, %v4141
      %v4171 = vadd.f32 %v4132, %v4141
      %v4172 = vadd.f32 %v4133, %v4141
      %v4173 = vadd.f32 %v4134, %v4141
      %v4174 = vadd.f32 %v4135, %v4141
      %v4175 = vmax.f32 %v4143, 0.0
      %v4176 = vmax.f32 %v4144, 0.0
      %v4177 = vmax.f32 %v4145, 0.0
      %v4178 = vmax.f32 %v4146, 0.0
      %v4179 = vmax.f32 %v4147, 0.0
      %v4180 = vmax.f32 %v4148, 0.0
      %v4181 = vmax.f32 %v4149, 0.0
      %v4182 = vmax.f32 %v4150, 0.0
      %v4183 = vmax.f32 %v4151, 0.0
      %v4184 = vmax.f32 %v4152, 0.0
      %v4185 = vmax.f32 %v4153, 0.0
      %v4186 = vmax.f32 %v4154, 0.0
      %v4187 = vmax.f32 %v4155, 0.0
      %v4188 = vmax.f32 %v4156, 0.0
      %v4189 = vmax.f32 %v4157, 0.0
      %v4190 = vmax.f32 %v4158, 0.0
      %v4191 = vmax.f32 %v4159, 0.0
      %v4192 = vmax.f32 %v4160, 0.0
      %v4193 = vmax.f32 %v4161, 0.0
      %v4194 = vmax.f32 %v4162, 0.0
      %v4195 = vmax.f32 %v4163, 0.0
      %v4196 = vmax.f32 %v4164, 0.0
      %v4197 = vmax.f32 %v4165, 0.0
      %v4198 = vmax.f32 %v4166, 0.0
      %v4199 = vmax.f32 %v4167, 0.0
      %v4200 = vmax.f32 %v4168, 0.0
      %v4201 = vmax.f32 %v4169, 0.0
      %v4202 = vmax.f32 %v4170, 0.0
      %v4203 = vmax.f32 %v4171, 0.0
      %v4204 = vmax.f32 %v4172, 0.0
      %v4205 = vmax.f32 %v4173, 0.0
      %v4206 = vmax.f32 %v4174, 0.0
      %v4207 = vld [vmem:[%s278] sm:$0xff]
      %v4208 = vld [vmem:[%s278 + $0x8] sm:$0xff]
      %v4209 = vld [vmem:[%s278 + $0x10] sm:$0xff]
      %v4210 = vld [vmem:[%s278 + $0x18] sm:$0xff]
      %v4211 = vld [vmem:[%s278 + $0x20] sm:$0xff]
      %v4212 = vld [vmem:[%s278 + $0x28] sm:$0xff]
      %v4213 = vld [vmem:[%s278 + $0x30] sm:$0xff]
      %v4214 = vld [vmem:[%s278 + $0x38] sm:$0xff]
      %v4215 = vld [vmem:[%s278 + $0x40] sm:$0xff]
      %v4216 = vld [vmem:[%s278 + $0x48] sm:$0xff]
      %v4217 = vld [vmem:[%s278 + $0x50] sm:$0xff]
      %v4218 = vld [vmem:[%s278 + $0x58] sm:$0xff]
      %v4219 = vld [vmem:[%s278 + $0x60] sm:$0xff]
      %v4220 = vld [vmem:[%s278 + $0x68] sm:$0xff]
      %v4221 = vld [vmem:[%s278 + $0x70] sm:$0xff]
      %v4222 = vld [vmem:[%s278 + $0x78] sm:$0xff]
      %v4223 = vld [vmem:[%s278 + $0x80] sm:$0xff]
      %v4224 = vld [vmem:[%s278 + $0x88] sm:$0xff]
      %v4225 = vld [vmem:[%s278 + $0x90] sm:$0xff]
      %v4226 = vld [vmem:[%s278 + $0x98] sm:$0xff]
      %v4227 = vld [vmem:[%s278 + $0xa0] sm:$0xff]
      %v4228 = vld [vmem:[%s278 + $0xa8] sm:$0xff]
      %v4229 = vld [vmem:[%s278 + $0xb0] sm:$0xff]
      %v4230 = vld [vmem:[%s278 + $0xb8] sm:$0xff]
      %v4231 = vld [vmem:[%s278 + $0xc0] sm:$0xff]
      %v4232 = vld [vmem:[%s278 + $0xc8] sm:$0xff]
      %v4233 = vld [vmem:[%s278 + $0xd0] sm:$0xff]
      %v4234 = vld [vmem:[%s278 + $0xd8] sm:$0xff]
      %v4235 = vld [vmem:[%s278 + $0xe0] sm:$0xff]
      %v4236 = vld [vmem:[%s278 + $0xe8] sm:$0xff]
      %v4237 = vld [vmem:[%s278 + $0xf0] sm:$0xff]
      %v4238 = vld [vmem:[%s278 + $0xf8] sm:$0xff]
      %v4239 = vadd.f32 %v4175, %v4207
      %v4240 = vadd.f32 %v4176, %v4208
      %v4241 = vadd.f32 %v4177, %v4209
      %v4242 = vadd.f32 %v4178, %v4210
      %v4243 = vadd.f32 %v4179, %v4211
      %v4244 = vadd.f32 %v4180, %v4212
      %v4245 = vadd.f32 %v4181, %v4213
      %v4246 = vadd.f32 %v4182, %v4214
      %v4247 = vadd.f32 %v4183, %v4215
      %v4248 = vadd.f32 %v4184, %v4216
      %v4249 = vadd.f32 %v4185, %v4217
      %v4250 = vadd.f32 %v4186, %v4218
      %v4251 = vadd.f32 %v4187, %v4219
      %v4252 = vadd.f32 %v4188, %v4220
      %v4253 = vadd.f32 %v4189, %v4221
      %v4254 = vadd.f32 %v4190, %v4222
      %v4255 = vadd.f32 %v4191, %v4223
      %v4256 = vadd.f32 %v4192, %v4224
      %v4257 = vadd.f32 %v4193, %v4225
      %v4258 = vadd.f32 %v4194, %v4226
      %v4259 = vadd.f32 %v4195, %v4227
      %v4260 = vadd.f32 %v4196, %v4228
      %v4261 = vadd.f32 %v4197, %v4229
      %v4262 = vadd.f32 %v4198, %v4230
      %v4263 = vadd.f32 %v4199, %v4231
      %v4264 = vadd.f32 %v4200, %v4232
      %v4265 = vadd.f32 %v4201, %v4233
      %v4266 = vadd.f32 %v4202, %v4234
      %v4267 = vadd.f32 %v4203, %v4235
      %v4268 = vadd.f32 %v4204, %v4236
      %v4269 = vadd.f32 %v4205, %v4237
      %v4270 = vadd.f32 %v4206, %v4238
      %4271 = vst [vmem:[%s278] sm:$0xff] %v4239
      %4272 = vst [vmem:[%s278 + $0x8] sm:$0xff] %v4240
      %4273 = vst [vmem:[%s278 + $0x10] sm:$0xff] %v4241
      %4274 = vst [vmem:[%s278 + $0x18] sm:$0xff] %v4242
      %4275 = vst [vmem:[%s278 + $0x20] sm:$0xff] %v4243
      %4276 = vst [vmem:[%s278 + $0x28] sm:$0xff] %v4244
      %4277 = vst [vmem:[%s278 + $0x30] sm:$0xff] %v4245
      %4278 = vst [vmem:[%s278 + $0x38] sm:$0xff] %v4246
      %4279 = vst [vmem:[%s278 + $0x40] sm:$0xff] %v4247
      %4280 = vst [vmem:[%s278 + $0x48] sm:$0xff] %v4248
      %4281 = vst [vmem:[%s278 + $0x50] sm:$0xff] %v4249
      %4282 = vst [vmem:[%s278 + $0x58] sm:$0xff] %v4250
      %4283 = vst [vmem:[%s278 + $0x60] sm:$0xff] %v4251
      %4284 = vst [vmem:[%s278 + $0x68] sm:$0xff] %v4252
      %4285 = vst [vmem:[%s278 + $0x70] sm:$0xff] %v4253
      %4286 = vst [vmem:[%s278 + $0x78] sm:$0xff] %v4254
      %4287 = vst [vmem:[%s278 + $0x80] sm:$0xff] %v4255
      %4288 = vst [vmem:[%s278 + $0x88] sm:$0xff] %v4256
      %4289 = vst [vmem:[%s278 + $0x90] sm:$0xff] %v4257
      %4290 = vst [vmem:[%s278 + $0x98] sm:$0xff] %v4258
      %4291 = vst [vmem:[%s278 + $0xa0] sm:$0xff] %v4259
      %4292 = vst [vmem:[%s278 + $0xa8] sm:$0xff] %v4260
      %4293 = vst [vmem:[%s278 + $0xb0] sm:$0xff] %v4261
      %4294 = vst [vmem:[%s278 + $0xb8] sm:$0xff] %v4262
      %4295 = vst [vmem:[%s278 + $0xc0] sm:$0xff] %v4263
      %4296 = vst [vmem:[%s278 + $0xc8] sm:$0xff] %v4264
      %4297 = vst [vmem:[%s278 + $0xd0] sm:$0xff] %v4265
      %4298 = vst [vmem:[%s278 + $0xd8] sm:$0xff] %v4266
      %4299 = vst [vmem:[%s278 + $0xe0] sm:$0xff] %v4267
      %4300 = vst [vmem:[%s278 + $0xe8] sm:$0xff] %v4268
      %4301 = vst [vmem:[%s278 + $0xf0] sm:$0xff] %v4269
      %4302 = vst [vmem:[%s278 + $0xf8] sm:$0xff] %v4270
      %p4303 = scmp.lt.s32.totalorder %s18, 1
      %s4304 = scalar_select %p4303, %s18, 1
      %s4305 = smul.addr %s4304, 32
      %s4306 = smul.addr %s4305, 8
      %s4307 = scalar_lea.vmem %s7, %s4306
      // Predicated region
      $region49: #{refinement_stage_forward.7} parent=47 // pred_check
        %p4308 = pneg %p188
      $region50: #{refinement_stage_forward.7} parent=47 // pred_check_branch
        %4310 = sbr.rel (%p4308) target = $region52
      $region51: #{refinement_stage_forward.7} parent=47 // pred_region
        _
      $region52: #{refinement_stage_forward.7} parent=47 // pred_fallthru
        _
    $region48: #{refinement_stage_forward.7} parent=5 // pred_fallthru
      _
    %p4311 = scmp.le.s32.totalorder 2, %s13
    // Predicated region
    $region53: #{refinement_stage_forward.7} parent=5 // pred_check
      %p4312 = pneg %p4311
    $region54: #{refinement_stage_forward.7} parent=5 // pred_check_branch
      %4314 = sbr.rel (%p4312) target = $region56
    $region55: #{refinement_stage_forward.7} parent=5 // pred_region
      %s4315 = ssub.s32 %s13, 2
      // Predicated region
      $region57: #{refinement_stage_forward.7} parent=55 // pred_check
        %p4316 = pneg %p194
      $region58: #{refinement_stage_forward.7} parent=55 // pred_check_branch
        %4318 = sbr.rel (%p4316) target = $region60
      $region59: #{refinement_stage_forward.7} parent=55 // pred_region
        %p4319 = scmp.lt.s32.totalorder %s19, 1
        %s4320 = scalar_select %p4319, %s19, 1
        %s4321 = smul.addr %s4320, 32
        %s4322 = smul.addr %s4321, 8
        %s4323 = scalar_lea.vmem %s7, %s4322
      $region60: #{refinement_stage_forward.7} parent=55 // pred_fallthru
        _
    $region56: #{refinement_stage_forward.7} parent=5 // pred_fallthru
      _
  $region6: #{refinement_stage_forward.7} parent=0 // loop_footer
    %s17 = sadd.s32 1, %s13
  $region7: #{refinement_stage_forward.7} parent=0 // loop_footer_branch
    %12 = sbr.rel target = $region3
  $region8: #{refinement_stage_forward.7} parent=0 // loop_exit
    _

</llo_original>
